<compile_context>
chip_gen: v6e
topology: v6e:2x2x1
jax: 0.10.0
libtpu: 0.0.40
codegen_flags: <defaults>
</compile_context>

<pallas_src>
import functools

import jax
import jax.numpy as jnp
from jax import lax
from jax.experimental import pallas as pl
from jax.experimental.pallas import tpu as pltpu


def _grouping_kernel(x_ref, c_ref, idx_ref, dist_ref, *, nb_neighbours):
    """One (batch, M-tile) per grid step.

    x_ref    : (1, D, N)  float32 VMEM  -- full point set, channel-first
    c_ref    : (1, D, TM) float32 VMEM  -- centroid tile, channel-first
    idx_ref  : (1, K, TM) int32         -- k-th nearest neighbour index
    dist_ref : (1, K, TM) float32       -- k-th nearest euclidean distance
    """
    x = x_ref[0]                                    # (D, N)
    c = c_ref[0]                                    # (D, TM)
    n = x.shape[1]

    # ||c - x||^2 = ||c||^2 + ||x||^2 - 2 c.x ; contract the tiny D (sublane)
    # axis directly -> (TM, N), no transpose of the point set needed.
    xx = jnp.sum(x * x, axis=0)[None, :]            # (1, N)
    cc = jnp.sum(c * c, axis=0)[:, None]            # (TM, 1)
    cx = lax.dot_general(c, x, (((0,), (0,)), ((), ())),
                         preferred_element_type=jnp.float32)   # (TM, N)
    d = jnp.maximum(cc + xx - 2.0 * cx, 0.0)        # squared distances (TM, N)

    col_iota = lax.broadcasted_iota(jnp.int32, d.shape, 1)      # (TM, N)
    knock_out = jnp.float32(3.4e38)                  # large finite, not inf

    # Iterative K-smallest selection on squared distances (sqrt deferred).
    # K is static & small -> unrolled Python loop.
    for k in range(nb_neighbours):
        mn = jnp.min(d, axis=-1, keepdims=True)                  # (TM, 1)
        # lowest index achieving the minimum (stable tie-break)
        idx = jnp.min(jnp.where(d == mn, col_iota, n), axis=-1)  # (TM,)
        idx_ref[0, k, :] = idx.astype(jnp.int32)                 # lane-dense row
        dist_ref[0, k, :] = jnp.sqrt(mn[:, 0])                   # sqrt on K*TM only
        # knock out the selected column for the next round
        d = jnp.where(col_iota == idx[:, None], knock_out, d)


def _pick_m_tile(M, N, vmem_budget_bytes=24 * 1024 * 1024):
    """Largest M tile that divides M and keeps ~4 f32 (TM, N) arrays in budget."""
    for tm in (1024, 512, 256, 128):
        if M % tm == 0 and 4 * tm * N * 4 <= vmem_budget_bytes:
            return tm
    return M   # small / irregular M: take the whole thing as one block


def grouping_forward(x, subsampled_centroids, *, nb_neighbours,
                     sampling_method="knn", patch_radius=None):
    """JAX/Pallas equivalent of Grouping.forward.

    x                    : (B, N, D) float32
    subsampled_centroids : (B, M, D) float32
    Returns neighbour indices (B, M, nb_neighbours) int32.
    """
    B, N, D = x.shape
    _, M, _ = subsampled_centroids.shape
    K = nb_neighbours
    if K > N:
        raise ValueError("nb_neighbours must be <= number of points")

    # Channel-first layout so N / M sit on the lane axis inside the kernel.
    x_t = jnp.transpose(x, (0, 2, 1)).astype(jnp.float32)                    # (B, D, N)
    c_t = jnp.transpose(subsampled_centroids, (0, 2, 1)).astype(jnp.float32)  # (B, D, M)

    TM = _pick_m_tile(M, N)
    grid = (B, M // TM)

    kernel = functools.partial(_grouping_kernel, nb_neighbours=K)

    idx_km, dist_km = pl.pallas_call(
        kernel,
        out_shape=(
            jax.ShapeDtypeStruct((B, K, M), jnp.int32),
            jax.ShapeDtypeStruct((B, K, M), jnp.float32),
        ),
        grid_spec=pltpu.PrefetchScalarGridSpec(
            num_scalar_prefetch=0,
            grid=grid,
            in_specs=[
                # full point set, resident across the M axis (block idx const)
                pl.BlockSpec((1, D, N), lambda b, m: (b, 0, 0)),
                # centroid tile
                pl.BlockSpec((1, D, TM), lambda b, m: (b, 0, m)),
            ],
            out_specs=[
                pl.BlockSpec((1, K, TM), lambda b, m: (b, 0, m)),
                pl.BlockSpec((1, K, TM), lambda b, m: (b, 0, m)),
            ],
        ),
        compiler_params=pltpu.CompilerParams(
            dimension_semantics=("parallel", "parallel"),
            vmem_limit_bytes=48 * 1024 * 1024,   # headroom under v7x 64 MiB
        ),
    )(x_t, c_t)

    # Tiny layout fix-up outside the kernel: (B, K, M) -> (B, M, K).
    idx = jnp.transpose(idx_km, (0, 2, 1))
    if sampling_method == "knn":
        return idx
    elif sampling_method == "query_ball":
        dist = jnp.transpose(dist_km, (0, 2, 1))
        # indexes[distances > patch_radius] = -1
        return jnp.where(dist > patch_radius, jnp.int32(-1), idx)
    else:
        raise ValueError(f"unknown sampling_method {sampling_method}")


def _knn_reference(x, c, nb_neighbours):
    """Pure-JAX reference mirroring square_distance + torch.sort."""
    term1 = jnp.sum(c ** 2, axis=2, keepdims=True)               # (B, M, 1)
    term2 = jnp.sum(x ** 2, axis=2)[:, None, :]                  # (B, 1, N)
    term3 = jnp.einsum("bmd,bnd->bmn", c, x)                     # (B, M, N)
    dist = jnp.sqrt(jnp.maximum(term1 + term2 - 2.0 * term3, 0.0))
    order = jnp.argsort(dist, axis=2)[:, :, :nb_neighbours]
    sorted_dist = jnp.sort(dist, axis=2)[:, :, :nb_neighbours]
    return order, sorted_dist


if __name__ == "__main__":
    # Small, deterministic point-cloud shapes (lane/sublane friendly).
    B, N, M, D = 2, 256, 128, 8
    nb_neighbours = 8
    batch_size = B

    # Module parameters from __init__ (not used by forward, kept for fidelity).
    zerotensor = jnp.zeros((1, 1, 1), jnp.float32)
    batch_tensor = jnp.arange(batch_size, dtype=jnp.int32)

    key = jax.random.PRNGKey(0)
    kx, kc = jax.random.split(key)
    x = jax.random.normal(kx, (B, N, D), dtype=jnp.float32)
    subsampled_centroids = jax.random.normal(kc, (B, M, D), dtype=jnp.float32)

    # --- knn path ---
    idx = grouping_forward(x, subsampled_centroids,
                           nb_neighbours=nb_neighbours,
                           sampling_method="knn")
    idx = jax.block_until_ready(idx)

    ref_idx, ref_dist = _knn_reference(x, subsampled_centroids, nb_neighbours)
    assert idx.shape == (B, M, nb_neighbours)
    assert bool(jnp.all(idx == ref_idx)), "knn indices mismatch vs reference"

    # --- query_ball path ---
    patch_radius = 2.0
    idx_qb = grouping_forward(x, subsampled_centroids,
                              nb_neighbours=nb_neighbours,
                              sampling_method="query_ball",
                              patch_radius=patch_radius)
    idx_qb = jax.block_until_ready(idx_qb)
    ref_qb = jnp.where(ref_dist > patch_radius, jnp.int32(-1), ref_idx)
    assert bool(jnp.all(idx_qb == ref_qb)), "query_ball indices mismatch"

    print("KERNEL_OK")
</pallas_src>

<mosaic_0001>
module attributes {stable_mosaic.version = 11 : i64} {
  func.func @_grouping_kernel(%arg0: i32, %arg1: i32, %arg2: memref<1x8x256xf32, #tpu.memory_space<vmem>>, %arg3: memref<1x8x128xf32, #tpu.memory_space<vmem>>, %arg4: memref<1x8x128xi32, #tpu.memory_space<vmem>>, %arg5: memref<1x8x128xf32, #tpu.memory_space<vmem>>) attributes {dimension_semantics = [#tpu.dimension_semantics<parallel>, #tpu.dimension_semantics<parallel>], iteration_bounds = array<i64: 2, 1>, scalar_prefetch = 0 : i64, scratch_operands = 0 : i64, tpu.core_type = #tpu.core_type<tc>, window_params = [{transform_indices = @transform_0, window_bounds = array<i64: 1, 8, 256>}, {transform_indices = @transform_1, window_bounds = array<i64: 1, 8, 128>}, {transform_indices = @transform_2, window_bounds = array<i64: 1, 8, 128>}, {transform_indices = @transform_3, window_bounds = array<i64: 1, 8, 128>}]} {
    %c0 = arith.constant 0 : index
    %c0_0 = arith.constant 0 : index
    %c0_1 = arith.constant 0 : index
    %0 = vector.load %arg2[%c0, %c0_0, %c0_1] : memref<1x8x256xf32, #tpu.memory_space<vmem>>, vector<1x8x256xf32>
    %1 = vector.shape_cast %0 : vector<1x8x256xf32> to vector<8x256xf32>
    %c0_2 = arith.constant 0 : index
    %c0_3 = arith.constant 0 : index
    %c0_4 = arith.constant 0 : index
    %2 = vector.load %arg3[%c0_2, %c0_3, %c0_4] : memref<1x8x128xf32, #tpu.memory_space<vmem>>, vector<1x8x128xf32>
    %3 = vector.shape_cast %2 : vector<1x8x128xf32> to vector<8x128xf32>
    %4 = arith.mulf %1, %1 : vector<8x256xf32>
    %cst = arith.constant dense<0.000000e+00> : vector<256xf32>
    %5 = vector.multi_reduction <add>, %4, %cst [0] : vector<8x256xf32> to vector<256xf32>
    %6 = vector.shape_cast %5 : vector<256xf32> to vector<1x256xf32>
    %7 = arith.mulf %3, %3 : vector<8x128xf32>
    %cst_5 = arith.constant dense<0.000000e+00> : vector<128xf32>
    %8 = vector.multi_reduction <add>, %7, %cst_5 [0] : vector<8x128xf32> to vector<128xf32>
    %9 = vector.shape_cast %8 : vector<128xf32> to vector<128x1xf32>
    %cst_6 = arith.constant dense<0.000000e+00> : vector<128x256xf32>
    %10 = tpu.matmul %3, %1, %cst_6 {dimension_numbers = #tpu.dot_dimension_numbers<[0], [0], [1], [1], [0, 1, 1, 1], [], []>} : vector<8x128xf32>, vector<8x256xf32>, vector<128x256xf32> -> vector<128x256xf32>
    %11 = vector.broadcast %9 : vector<128x1xf32> to vector<128x256xf32>
    %12 = vector.broadcast %6 : vector<1x256xf32> to vector<128x256xf32>
    %13 = arith.addf %11, %12 : vector<128x256xf32>
    %cst_7 = arith.constant 2.000000e+00 : f32
    %14 = vector.broadcast %cst_7 : f32 to vector<128x256xf32>
    %15 = arith.mulf %14, %10 : vector<128x256xf32>
    %16 = arith.subf %13, %15 : vector<128x256xf32>
    %cst_8 = arith.constant 0.000000e+00 : f32
    %17 = vector.broadcast %cst_8 : f32 to vector<128x256xf32>
    %18 = arith.maximumf %16, %17 : vector<128x256xf32>
    %19 = tpu.iota {dimensions = array<i32: 1>} : vector<128x256xi32>
    %cst_9 = arith.constant dense<0x7F800000> : vector<128xf32>
    %20 = vector.multi_reduction <minimumf>, %18, %cst_9 [1] : vector<128x256xf32> to vector<128xf32>
    %21 = vector.shape_cast %20 : vector<128xf32> to vector<128x1xf32>
    %22 = vector.broadcast %21 : vector<128x1xf32> to vector<128x256xf32>
    %23 = arith.cmpf oeq, %18, %22 : vector<128x256xf32>
    %c256_i32 = arith.constant 256 : i32
    %24 = vector.broadcast %c256_i32 : i32 to vector<128x256xi32>
    %25 = arith.select %23, %19, %24 : vector<128x256xi1>, vector<128x256xi32>
    %cst_10 = arith.constant dense<2147483647> : vector<128xi32>
    %26 = vector.multi_reduction <minsi>, %25, %cst_10 [1] : vector<128x256xi32> to vector<128xi32>
    %c0_11 = arith.constant 0 : index
    %c0_12 = arith.constant 0 : index
    %c0_13 = arith.constant 0 : index
    %27 = vector.load %arg4[%c0_11, %c0_12, %c0_13] : memref<1x8x128xi32, #tpu.memory_space<vmem>>, vector<1x1x128xi32>
    %28 = vector.shape_cast %27 : vector<1x1x128xi32> to vector<128xi32>
    %29 = vector.shape_cast %26 : vector<128xi32> to vector<1x1x128xi32>
    tpu.vector_store %arg4[%c0_11, %c0_12, %c0_13], %29 {strides = array<i32>} : memref<1x8x128xi32, #tpu.memory_space<vmem>>, vector<1x1x128xi32>,
    %30 = vector.shape_cast %21 : vector<128x1xf32> to vector<128xf32>
    %31 = math.sqrt %30 : vector<128xf32>
    %c0_14 = arith.constant 0 : index
    %c0_15 = arith.constant 0 : index
    %c0_16 = arith.constant 0 : index
    %32 = vector.load %arg5[%c0_14, %c0_15, %c0_16] : memref<1x8x128xf32, #tpu.memory_space<vmem>>, vector<1x1x128xf32>
    %33 = vector.shape_cast %32 : vector<1x1x128xf32> to vector<128xf32>
    %34 = vector.shape_cast %31 : vector<128xf32> to vector<1x1x128xf32>
    tpu.vector_store %arg5[%c0_14, %c0_15, %c0_16], %34 {strides = array<i32>} : memref<1x8x128xf32, #tpu.memory_space<vmem>>, vector<1x1x128xf32>,
    %35 = vector.shape_cast %26 : vector<128xi32> to vector<128x1xi32>
    %36 = vector.broadcast %35 : vector<128x1xi32> to vector<128x256xi32>
    %37 = arith.cmpi eq, %19, %36 : vector<128x256xi32>
    %cst_17 = arith.constant 3.400000e+38 : f32
    %38 = vector.broadcast %cst_17 : f32 to vector<128x256xf32>
    %39 = arith.select %37, %38, %18 : vector<128x256xi1>, vector<128x256xf32>
    %cst_18 = arith.constant dense<0x7F800000> : vector<128xf32>
    %40 = vector.multi_reduction <minimumf>, %39, %cst_18 [1] : vector<128x256xf32> to vector<128xf32>
    %41 = vector.shape_cast %40 : vector<128xf32> to vector<128x1xf32>
    %42 = vector.broadcast %41 : vector<128x1xf32> to vector<128x256xf32>
    %43 = arith.cmpf oeq, %39, %42 : vector<128x256xf32>
    %c256_i32_19 = arith.constant 256 : i32
    %44 = vector.broadcast %c256_i32_19 : i32 to vector<128x256xi32>
    %45 = arith.select %43, %19, %44 : vector<128x256xi1>, vector<128x256xi32>
    %cst_20 = arith.constant dense<2147483647> : vector<128xi32>
    %46 = vector.multi_reduction <minsi>, %45, %cst_20 [1] : vector<128x256xi32> to vector<128xi32>
    %c0_21 = arith.constant 0 : index
    %c1 = arith.constant 1 : index
    %c0_22 = arith.constant 0 : index
    %47 = vector.load %arg4[%c0_21, %c1, %c0_22] : memref<1x8x128xi32, #tpu.memory_space<vmem>>, vector<1x1x128xi32>
    %48 = vector.shape_cast %47 : vector<1x1x128xi32> to vector<128xi32>
    %49 = vector.shape_cast %46 : vector<128xi32> to vector<1x1x128xi32>
    tpu.vector_store %arg4[%c0_21, %c1, %c0_22], %49 {strides = array<i32>} : memref<1x8x128xi32, #tpu.memory_space<vmem>>, vector<1x1x128xi32>,
    %50 = vector.shape_cast %41 : vector<128x1xf32> to vector<128xf32>
    %51 = math.sqrt %50 : vector<128xf32>
    %c0_23 = arith.constant 0 : index
    %c1_24 = arith.constant 1 : index
    %c0_25 = arith.constant 0 : index
    %52 = vector.load %arg5[%c0_23, %c1_24, %c0_25] : memref<1x8x128xf32, #tpu.memory_space<vmem>>, vector<1x1x128xf32>
    %53 = vector.shape_cast %52 : vector<1x1x128xf32> to vector<128xf32>
    %54 = vector.shape_cast %51 : vector<128xf32> to vector<1x1x128xf32>
    tpu.vector_store %arg5[%c0_23, %c1_24, %c0_25], %54 {strides = array<i32>} : memref<1x8x128xf32, #tpu.memory_space<vmem>>, vector<1x1x128xf32>,
    %55 = vector.shape_cast %46 : vector<128xi32> to vector<128x1xi32>
    %56 = vector.broadcast %55 : vector<128x1xi32> to vector<128x256xi32>
    %57 = arith.cmpi eq, %19, %56 : vector<128x256xi32>
    %cst_26 = arith.constant 3.400000e+38 : f32
    %58 = vector.broadcast %cst_26 : f32 to vector<128x256xf32>
    %59 = arith.select %57, %58, %39 : vector<128x256xi1>, vector<128x256xf32>
    %cst_27 = arith.constant dense<0x7F800000> : vector<128xf32>
    %60 = vector.multi_reduction <minimumf>, %59, %cst_27 [1] : vector<128x256xf32> to vector<128xf32>
    %61 = vector.shape_cast %60 : vector<128xf32> to vector<128x1xf32>
    %62 = vector.broadcast %61 : vector<128x1xf32> to vector<128x256xf32>
    %63 = arith.cmpf oeq, %59, %62 : vector<128x256xf32>
    %c256_i32_28 = arith.constant 256 : i32
    %64 = vector.broadcast %c256_i32_28 : i32 to vector<128x256xi32>
    %65 = arith.select %63, %19, %64 : vector<128x256xi1>, vector<128x256xi32>
    %cst_29 = arith.constant dense<2147483647> : vector<128xi32>
    %66 = vector.multi_reduction <minsi>, %65, %cst_29 [1] : vector<128x256xi32> to vector<128xi32>
    %c0_30 = arith.constant 0 : index
    %c2 = arith.constant 2 : index
    %c0_31 = arith.constant 0 : index
    %67 = vector.load %arg4[%c0_30, %c2, %c0_31] : memref<1x8x128xi32, #tpu.memory_space<vmem>>, vector<1x1x128xi32>
    %68 = vector.shape_cast %67 : vector<1x1x128xi32> to vector<128xi32>
    %69 = vector.shape_cast %66 : vector<128xi32> to vector<1x1x128xi32>
    tpu.vector_store %arg4[%c0_30, %c2, %c0_31], %69 {strides = array<i32>} : memref<1x8x128xi32, #tpu.memory_space<vmem>>, vector<1x1x128xi32>,
    %70 = vector.shape_cast %61 : vector<128x1xf32> to vector<128xf32>
    %71 = math.sqrt %70 : vector<128xf32>
    %c0_32 = arith.constant 0 : index
    %c2_33 = arith.constant 2 : index
    %c0_34 = arith.constant 0 : index
    %72 = vector.load %arg5[%c0_32, %c2_33, %c0_34] : memref<1x8x128xf32, #tpu.memory_space<vmem>>, vector<1x1x128xf32>
    %73 = vector.shape_cast %72 : vector<1x1x128xf32> to vector<128xf32>
    %74 = vector.shape_cast %71 : vector<128xf32> to vector<1x1x128xf32>
    tpu.vector_store %arg5[%c0_32, %c2_33, %c0_34], %74 {strides = array<i32>} : memref<1x8x128xf32, #tpu.memory_space<vmem>>, vector<1x1x128xf32>,
    %75 = vector.shape_cast %66 : vector<128xi32> to vector<128x1xi32>
    %76 = vector.broadcast %75 : vector<128x1xi32> to vector<128x256xi32>
    %77 = arith.cmpi eq, %19, %76 : vector<128x256xi32>
    %cst_35 = arith.constant 3.400000e+38 : f32
    %78 = vector.broadcast %cst_35 : f32 to vector<128x256xf32>
    %79 = arith.select %77, %78, %59 : vector<128x256xi1>, vector<128x256xf32>
    %cst_36 = arith.constant dense<0x7F800000> : vector<128xf32>
    %80 = vector.multi_reduction <minimumf>, %79, %cst_36 [1] : vector<128x256xf32> to vector<128xf32>
    %81 = vector.shape_cast %80 : vector<128xf32> to vector<128x1xf32>
    %82 = vector.broadcast %81 : vector<128x1xf32> to vector<128x256xf32>
    %83 = arith.cmpf oeq, %79, %82 : vector<128x256xf32>
    %c256_i32_37 = arith.constant 256 : i32
    %84 = vector.broadcast %c256_i32_37 : i32 to vector<128x256xi32>
    %85 = arith.select %83, %19, %84 : vector<128x256xi1>, vector<128x256xi32>
    %cst_38 = arith.constant dense<2147483647> : vector<128xi32>
    %86 = vector.multi_reduction <minsi>, %85, %cst_38 [1] : vector<128x256xi32> to vector<128xi32>
    %c0_39 = arith.constant 0 : index
    %c3 = arith.constant 3 : index
    %c0_40 = arith.constant 0 : index
    %87 = vector.load %arg4[%c0_39, %c3, %c0_40] : memref<1x8x128xi32, #tpu.memory_space<vmem>>, vector<1x1x128xi32>
    %88 = vector.shape_cast %87 : vector<1x1x128xi32> to vector<128xi32>
    %89 = vector.shape_cast %86 : vector<128xi32> to vector<1x1x128xi32>
    tpu.vector_store %arg4[%c0_39, %c3, %c0_40], %89 {strides = array<i32>} : memref<1x8x128xi32, #tpu.memory_space<vmem>>, vector<1x1x128xi32>,
    %90 = vector.shape_cast %81 : vector<128x1xf32> to vector<128xf32>
    %91 = math.sqrt %90 : vector<128xf32>
    %c0_41 = arith.constant 0 : index
    %c3_42 = arith.constant 3 : index
    %c0_43 = arith.constant 0 : index
    %92 = vector.load %arg5[%c0_41, %c3_42, %c0_43] : memref<1x8x128xf32, #tpu.memory_space<vmem>>, vector<1x1x128xf32>
    %93 = vector.shape_cast %92 : vector<1x1x128xf32> to vector<128xf32>
    %94 = vector.shape_cast %91 : vector<128xf32> to vector<1x1x128xf32>
    tpu.vector_store %arg5[%c0_41, %c3_42, %c0_43], %94 {strides = array<i32>} : memref<1x8x128xf32, #tpu.memory_space<vmem>>, vector<1x1x128xf32>,
    %95 = vector.shape_cast %86 : vector<128xi32> to vector<128x1xi32>
    %96 = vector.broadcast %95 : vector<128x1xi32> to vector<128x256xi32>
    %97 = arith.cmpi eq, %19, %96 : vector<128x256xi32>
    %cst_44 = arith.constant 3.400000e+38 : f32
    %98 = vector.broadcast %cst_44 : f32 to vector<128x256xf32>
    %99 = arith.select %97, %98, %79 : vector<128x256xi1>, vector<128x256xf32>
    %cst_45 = arith.constant dense<0x7F800000> : vector<128xf32>
    %100 = vector.multi_reduction <minimumf>, %99, %cst_45 [1] : vector<128x256xf32> to vector<128xf32>
    %101 = vector.shape_cast %100 : vector<128xf32> to vector<128x1xf32>
    %102 = vector.broadcast %101 : vector<128x1xf32> to vector<128x256xf32>
    %103 = arith.cmpf oeq, %99, %102 : vector<128x256xf32>
    %c256_i32_46 = arith.constant 256 : i32
    %104 = vector.broadcast %c256_i32_46 : i32 to vector<128x256xi32>
    %105 = arith.select %103, %19, %104 : vector<128x256xi1>, vector<128x256xi32>
    %cst_47 = arith.constant dense<2147483647> : vector<128xi32>
    %106 = vector.multi_reduction <minsi>, %105, %cst_47 [1] : vector<128x256xi32> to vector<128xi32>
    %c0_48 = arith.constant 0 : index
    %c4 = arith.constant 4 : index
    %c0_49 = arith.constant 0 : index
    %107 = vector.load %arg4[%c0_48, %c4, %c0_49] : memref<1x8x128xi32, #tpu.memory_space<vmem>>, vector<1x1x128xi32>
    %108 = vector.shape_cast %107 : vector<1x1x128xi32> to vector<128xi32>
    %109 = vector.shape_cast %106 : vector<128xi32> to vector<1x1x128xi32>
    tpu.vector_store %arg4[%c0_48, %c4, %c0_49], %109 {strides = array<i32>} : memref<1x8x128xi32, #tpu.memory_space<vmem>>, vector<1x1x128xi32>,
    %110 = vector.shape_cast %101 : vector<128x1xf32> to vector<128xf32>
    %111 = math.sqrt %110 : vector<128xf32>
    %c0_50 = arith.constant 0 : index
    %c4_51 = arith.constant 4 : index
    %c0_52 = arith.constant 0 : index
    %112 = vector.load %arg5[%c0_50, %c4_51, %c0_52] : memref<1x8x128xf32, #tpu.memory_space<vmem>>, vector<1x1x128xf32>
    %113 = vector.shape_cast %112 : vector<1x1x128xf32> to vector<128xf32>
    %114 = vector.shape_cast %111 : vector<128xf32> to vector<1x1x128xf32>
    tpu.vector_store %arg5[%c0_50, %c4_51, %c0_52], %114 {strides = array<i32>} : memref<1x8x128xf32, #tpu.memory_space<vmem>>, vector<1x1x128xf32>,
    %115 = vector.shape_cast %106 : vector<128xi32> to vector<128x1xi32>
    %116 = vector.broadcast %115 : vector<128x1xi32> to vector<128x256xi32>
    %117 = arith.cmpi eq, %19, %116 : vector<128x256xi32>
    %cst_53 = arith.constant 3.400000e+38 : f32
    %118 = vector.broadcast %cst_53 : f32 to vector<128x256xf32>
    %119 = arith.select %117, %118, %99 : vector<128x256xi1>, vector<128x256xf32>
    %cst_54 = arith.constant dense<0x7F800000> : vector<128xf32>
    %120 = vector.multi_reduction <minimumf>, %119, %cst_54 [1] : vector<128x256xf32> to vector<128xf32>
    %121 = vector.shape_cast %120 : vector<128xf32> to vector<128x1xf32>
    %122 = vector.broadcast %121 : vector<128x1xf32> to vector<128x256xf32>
    %123 = arith.cmpf oeq, %119, %122 : vector<128x256xf32>
    %c256_i32_55 = arith.constant 256 : i32
    %124 = vector.broadcast %c256_i32_55 : i32 to vector<128x256xi32>
    %125 = arith.select %123, %19, %124 : vector<128x256xi1>, vector<128x256xi32>
    %cst_56 = arith.constant dense<2147483647> : vector<128xi32>
    %126 = vector.multi_reduction <minsi>, %125, %cst_56 [1] : vector<128x256xi32> to vector<128xi32>
    %c0_57 = arith.constant 0 : index
    %c5 = arith.constant 5 : index
    %c0_58 = arith.constant 0 : index
    %127 = vector.load %arg4[%c0_57, %c5, %c0_58] : memref<1x8x128xi32, #tpu.memory_space<vmem>>, vector<1x1x128xi32>
    %128 = vector.shape_cast %127 : vector<1x1x128xi32> to vector<128xi32>
    %129 = vector.shape_cast %126 : vector<128xi32> to vector<1x1x128xi32>
    tpu.vector_store %arg4[%c0_57, %c5, %c0_58], %129 {strides = array<i32>} : memref<1x8x128xi32, #tpu.memory_space<vmem>>, vector<1x1x128xi32>,
    %130 = vector.shape_cast %121 : vector<128x1xf32> to vector<128xf32>
    %131 = math.sqrt %130 : vector<128xf32>
    %c0_59 = arith.constant 0 : index
    %c5_60 = arith.constant 5 : index
    %c0_61 = arith.constant 0 : index
    %132 = vector.load %arg5[%c0_59, %c5_60, %c0_61] : memref<1x8x128xf32, #tpu.memory_space<vmem>>, vector<1x1x128xf32>
    %133 = vector.shape_cast %132 : vector<1x1x128xf32> to vector<128xf32>
    %134 = vector.shape_cast %131 : vector<128xf32> to vector<1x1x128xf32>
    tpu.vector_store %arg5[%c0_59, %c5_60, %c0_61], %134 {strides = array<i32>} : memref<1x8x128xf32, #tpu.memory_space<vmem>>, vector<1x1x128xf32>,
    %135 = vector.shape_cast %126 : vector<128xi32> to vector<128x1xi32>
    %136 = vector.broadcast %135 : vector<128x1xi32> to vector<128x256xi32>
    %137 = arith.cmpi eq, %19, %136 : vector<128x256xi32>
    %cst_62 = arith.constant 3.400000e+38 : f32
    %138 = vector.broadcast %cst_62 : f32 to vector<128x256xf32>
    %139 = arith.select %137, %138, %119 : vector<128x256xi1>, vector<128x256xf32>
    %cst_63 = arith.constant dense<0x7F800000> : vector<128xf32>
    %140 = vector.multi_reduction <minimumf>, %139, %cst_63 [1] : vector<128x256xf32> to vector<128xf32>
    %141 = vector.shape_cast %140 : vector<128xf32> to vector<128x1xf32>
    %142 = vector.broadcast %141 : vector<128x1xf32> to vector<128x256xf32>
    %143 = arith.cmpf oeq, %139, %142 : vector<128x256xf32>
    %c256_i32_64 = arith.constant 256 : i32
    %144 = vector.broadcast %c256_i32_64 : i32 to vector<128x256xi32>
    %145 = arith.select %143, %19, %144 : vector<128x256xi1>, vector<128x256xi32>
    %cst_65 = arith.constant dense<2147483647> : vector<128xi32>
    %146 = vector.multi_reduction <minsi>, %145, %cst_65 [1] : vector<128x256xi32> to vector<128xi32>
    %c0_66 = arith.constant 0 : index
    %c6 = arith.constant 6 : index
    %c0_67 = arith.constant 0 : index
    %147 = vector.load %arg4[%c0_66, %c6, %c0_67] : memref<1x8x128xi32, #tpu.memory_space<vmem>>, vector<1x1x128xi32>
    %148 = vector.shape_cast %147 : vector<1x1x128xi32> to vector<128xi32>
    %149 = vector.shape_cast %146 : vector<128xi32> to vector<1x1x128xi32>
    tpu.vector_store %arg4[%c0_66, %c6, %c0_67], %149 {strides = array<i32>} : memref<1x8x128xi32, #tpu.memory_space<vmem>>, vector<1x1x128xi32>,
    %150 = vector.shape_cast %141 : vector<128x1xf32> to vector<128xf32>
    %151 = math.sqrt %150 : vector<128xf32>
    %c0_68 = arith.constant 0 : index
    %c6_69 = arith.constant 6 : index
    %c0_70 = arith.constant 0 : index
    %152 = vector.load %arg5[%c0_68, %c6_69, %c0_70] : memref<1x8x128xf32, #tpu.memory_space<vmem>>, vector<1x1x128xf32>
    %153 = vector.shape_cast %152 : vector<1x1x128xf32> to vector<128xf32>
    %154 = vector.shape_cast %151 : vector<128xf32> to vector<1x1x128xf32>
    tpu.vector_store %arg5[%c0_68, %c6_69, %c0_70], %154 {strides = array<i32>} : memref<1x8x128xf32, #tpu.memory_space<vmem>>, vector<1x1x128xf32>,
    %155 = vector.shape_cast %146 : vector<128xi32> to vector<128x1xi32>
    %156 = vector.broadcast %155 : vector<128x1xi32> to vector<128x256xi32>
    %157 = arith.cmpi eq, %19, %156 : vector<128x256xi32>
    %cst_71 = arith.constant 3.400000e+38 : f32
    %158 = vector.broadcast %cst_71 : f32 to vector<128x256xf32>
    %159 = arith.select %157, %158, %139 : vector<128x256xi1>, vector<128x256xf32>
    %cst_72 = arith.constant dense<0x7F800000> : vector<128xf32>
    %160 = vector.multi_reduction <minimumf>, %159, %cst_72 [1] : vector<128x256xf32> to vector<128xf32>
    %161 = vector.shape_cast %160 : vector<128xf32> to vector<128x1xf32>
    %162 = vector.broadcast %161 : vector<128x1xf32> to vector<128x256xf32>
    %163 = arith.cmpf oeq, %159, %162 : vector<128x256xf32>
    %c256_i32_73 = arith.constant 256 : i32
    %164 = vector.broadcast %c256_i32_73 : i32 to vector<128x256xi32>
    %165 = arith.select %163, %19, %164 : vector<128x256xi1>, vector<128x256xi32>
    %cst_74 = arith.constant dense<2147483647> : vector<128xi32>
    %166 = vector.multi_reduction <minsi>, %165, %cst_74 [1] : vector<128x256xi32> to vector<128xi32>
    %c0_75 = arith.constant 0 : index
    %c7 = arith.constant 7 : index
    %c0_76 = arith.constant 0 : index
    %167 = vector.load %arg4[%c0_75, %c7, %c0_76] : memref<1x8x128xi32, #tpu.memory_space<vmem>>, vector<1x1x128xi32>
    %168 = vector.shape_cast %167 : vector<1x1x128xi32> to vector<128xi32>
    %169 = vector.shape_cast %166 : vector<128xi32> to vector<1x1x128xi32>
    tpu.vector_store %arg4[%c0_75, %c7, %c0_76], %169 {strides = array<i32>} : memref<1x8x128xi32, #tpu.memory_space<vmem>>, vector<1x1x128xi32>,
    %170 = vector.shape_cast %161 : vector<128x1xf32> to vector<128xf32>
    %171 = math.sqrt %170 : vector<128xf32>
    %c0_77 = arith.constant 0 : index
    %c7_78 = arith.constant 7 : index
    %c0_79 = arith.constant 0 : index
    %172 = vector.load %arg5[%c0_77, %c7_78, %c0_79] : memref<1x8x128xf32, #tpu.memory_space<vmem>>, vector<1x1x128xf32>
    %173 = vector.shape_cast %172 : vector<1x1x128xf32> to vector<128xf32>
    %174 = vector.shape_cast %171 : vector<128xf32> to vector<1x1x128xf32>
    tpu.vector_store %arg5[%c0_77, %c7_78, %c0_79], %174 {strides = array<i32>} : memref<1x8x128xf32, #tpu.memory_space<vmem>>, vector<1x1x128xf32>,
    return
  }
  func.func @transform_0(%arg0: i32, %arg1: i32) -> (i32, i32, i32) {
    %c0_i32 = arith.constant 0 : i32
    %c0_i32_0 = arith.constant 0 : i32
    %c0_i32_1 = arith.constant 0 : i32
    return %arg0, %c0_i32, %c0_i32_0 : i32, i32, i32
  }
  func.func @transform_1(%arg0: i32, %arg1: i32) -> (i32, i32, i32) {
    %c0_i32 = arith.constant 0 : i32
    %c0_i32_0 = arith.constant 0 : i32
    return %arg0, %c0_i32, %arg1 : i32, i32, i32
  }
  func.func @transform_2(%arg0: i32, %arg1: i32) -> (i32, i32, i32) {
    %c0_i32 = arith.constant 0 : i32
    %c0_i32_0 = arith.constant 0 : i32
    return %arg0, %c0_i32, %arg1 : i32, i32, i32
  }
  func.func @transform_3(%arg0: i32, %arg1: i32) -> (i32, i32, i32) {
    %c0_i32 = arith.constant 0 : i32
    %c0_i32_0 = arith.constant 0 : i32
    return %arg0, %c0_i32, %arg1 : i32, i32, i32
  }
}

</mosaic_0001>

<llo_original>
// kernel: tpu_custom_call.1
$region0: #{tpu_custom_call.1}
  #allocation0 [shape = 'u32[]', space=smem, size = 0x4, offset = 0x4, fixed_abs, tag = 'smem constant byte address 0x4 - core index']
  #allocation1 [shape = 'u32[144,128]{1,0:T(1,128)}', space=vmem, size = 0x12000, scoped, tag = 'internal scratch']
  %s0 = inlined_call_operand.hbm [shape: f32[2,8,256], index: 0, kind: input, shape index: {}]
  %s1 = inlined_call_operand.hbm [shape: f32[2,8,128], index: 1, kind: input, shape index: {}]
  %s2 = inlined_call_operand.hbm [shape: s32[2,8,128], index: 2, kind: output, shape index: {0}]
  %s3 = inlined_call_operand.hbm [shape: f32[2,8,128], index: 3, kind: output, shape index: {1}]
  %4 = xla_tuple %s2, %s3
  %s5 = sld [smem:[#allocation0]]
  $region57: #{tpu_custom_call.1} parent=0
    _
  %s7 = ssub.s32 1, %s5
  %s8 = scalar_select 0, %s7, %s5
  $region1: #{tpu_custom_call.1} parent=0
    #allocation2 [shape = 'u8[16384]{0}', space=vmem, size = 0x4000, scoped, tag = 'input window, operand 0']
    #allocation3 [shape = 's32[2]{0}', space=sflag, size = 0x8, scoped, tag = 'scoped memory for tpu_custom_call.1']
    #allocation4 [shape = 's32[2]{0}', space=sflag, size = 0x8, scoped, tag = 'scoped memory for tpu_custom_call.1']
    #allocation5 [shape = 'u8[8192]{0}', space=vmem, size = 0x2000, scoped, tag = 'input window, operand 1']
    #allocation6 [shape = 's32[2]{0}', space=sflag, size = 0x8, scoped, tag = 'scoped memory for tpu_custom_call.1']
    #allocation7 [shape = 'u8[8192]{0}', space=vmem, size = 0x2000, scoped, tag = 'output window, operand 0']
    #allocation8 [shape = 'u8[8192]{0}', space=vmem, size = 0x2000, scoped, tag = 'output window, operand 1']
    #allocation9 [shape = 's32[2]{0}', space=sflag, size = 0x8, scoped, tag = 'scoped memory for tpu_custom_call.1']
    %9 = vsyncpa [#allocation3], 0
    %s10 = scalar_lea.sflag [#allocation3], 1
    %11 = vsyncpa %s10, 0
    %12 = vsyncpa [#allocation6], 0
    %s13 = scalar_lea.sflag [#allocation6], 1
    %14 = vsyncpa %s13, 0
    %15 = vsyncpa [#allocation4], 0
    %s16 = scalar_lea.sflag [#allocation4], 1
    %17 = vsyncpa %s16, 0
    %18 = vsyncpa [#allocation9], 0
    %s19 = scalar_lea.sflag [#allocation9], 1
    %20 = vsyncpa %s19, 0
    loop: start=0, step=1, limit=4
    $region2: #{tpu_custom_call.1} parent=1 // loop_pre_header
      _
    $region3: #{tpu_custom_call.1} parent=1 // loop_header
      %s22 = sphi 0, %s26
      %p23 = scmp.ge.s32.totalorder %s22, 4
      %s29 = sphi 0, %s41
      %s30 = sphi 0, %s37
      %s31 = sphi 0, %s29
      %s32 = sphi 0, %s30
      %s33 = sphi 0, %s31
      %s34 = sphi 0, %s32
      %s44 = sphi 0, %s46
      %s47 = sphi 0, %s44
      %s48 = sphi 0, %s47
      %s64 = sphi 0, %s48
      %s72 = sphi 0, %s74
      %s75 = sphi 0, %s72
      %s76 = sphi 0, %s75
      %s92 = sphi 0, %s76
      %s100 = sphi 0, %s102
      %s103 = sphi 0, %s100
      %s104 = sphi 0, %s103
      %s120 = sphi 0, %s104
      %s128 = sphi 0, %s130
      %s131 = sphi 0, %s128
      %s132 = sphi 0, %s131
      %s148 = sphi 0, %s132
    $region4: #{tpu_custom_call.1} parent=1 // loop_header_branch
      %25 = sbr.rel (%p23) target = $region8
    $region5: #{tpu_custom_call.1} parent=1 // loop_body
      %s27 = ssub.s32 %s22, 1
      %s28 = ssub.s32 %s22, 2
      %s35 = sadd.s32 1, %s30
      %p36 = scmp.ge.s32.totalorder %s35, 1
      %s37 = scalar_select %p36, 0, %s35
      %s38 = sadd.s32 1, %s29
      %s39 = scalar_select %p36, %s38, %s29
      %p40 = scmp.ge.s32.totalorder %s39, 2
      %s41 = scalar_select %p40, 0, %s39
      %s42 = ssub.s32 %s29, %s41
      %p43 = scmp.eq.s32.totalorder %s42, 0
      %s45 = sadd.s32 %s44, 1
      %s46 = scalar_select %p43, %s44, %s45
      %p49 = pneg %p43
      %p50 = scmp.eq.s32.totalorder %s22, 1
      %p51 = por %p49, %p50
      %p52 = scmp.ne.s32.totalorder %s44, %s47
      %p53 = scmp.eq.s32.totalorder %s22, 0
      %p54 = por %p52, %p53
      %p55 = scmp.ne.s32.totalorder %s44, %s47
      %p56 = scmp.eq.s32.totalorder %s27, 1
      %p57 = por %p55, %p56
      %p58 = scmp.ne.s32.totalorder %s47, %s48
      %p59 = scmp.eq.s32.totalorder %s27, 0
      %p60 = por %p58, %p59
      %p61 = scmp.ne.s32.totalorder %s47, %s48
      %p62 = scmp.eq.s32.totalorder %s28, 1
      %p63 = por %p61, %p62
      %p65 = scmp.ne.s32.totalorder %s48, %s64
      %p66 = scmp.eq.s32.totalorder %s28, 0
      %p67 = por %p65, %p66
      %s68 = ssub.s32 %s29, %s41
      %s69 = ssub.s32 %s30, %s37
      %s70 = sor.u32 %s68, %s69
      %p71 = scmp.eq.s32.totalorder %s70, 0
      %s73 = sadd.s32 %s72, 1
      %s74 = scalar_select %p71, %s72, %s73
      %p77 = pneg %p71
      %p78 = scmp.eq.s32.totalorder %s22, 1
      %p79 = por %p77, %p78
      %p80 = scmp.ne.s32.totalorder %s72, %s75
      %p81 = scmp.eq.s32.totalorder %s22, 0
      %p82 = por %p80, %p81
      %p83 = scmp.ne.s32.totalorder %s72, %s75
      %p84 = scmp.eq.s32.totalorder %s27, 1
      %p85 = por %p83, %p84
      %p86 = scmp.ne.s32.totalorder %s75, %s76
      %p87 = scmp.eq.s32.totalorder %s27, 0
      %p88 = por %p86, %p87
      %p89 = scmp.ne.s32.totalorder %s75, %s76
      %p90 = scmp.eq.s32.totalorder %s28, 1
      %p91 = por %p89, %p90
      %p93 = scmp.ne.s32.totalorder %s76, %s92
      %p94 = scmp.eq.s32.totalorder %s28, 0
      %p95 = por %p93, %p94
      %s96 = ssub.s32 %s29, %s41
      %s97 = ssub.s32 %s30, %s37
      %s98 = sor.u32 %s96, %s97
      %p99 = scmp.eq.s32.totalorder %s98, 0
      %s101 = sadd.s32 %s100, 1
      %s102 = scalar_select %p99, %s100, %s101
      %p105 = pneg %p99
      %p106 = scmp.eq.s32.totalorder %s22, 1
      %p107 = por %p105, %p106
      %p108 = scmp.ne.s32.totalorder %s100, %s103
      %p109 = scmp.eq.s32.totalorder %s22, 0
      %p110 = por %p108, %p109
      %p111 = scmp.ne.s32.totalorder %s100, %s103
      %p112 = scmp.eq.s32.totalorder %s27, 1
      %p113 = por %p111, %p112
      %p114 = scmp.ne.s32.totalorder %s103, %s104
      %p115 = scmp.eq.s32.totalorder %s27, 0
      %p116 = por %p114, %p115
      %p117 = scmp.ne.s32.totalorder %s103, %s104
      %p118 = scmp.eq.s32.totalorder %s28, 1
      %p119 = por %p117, %p118
      %p121 = scmp.ne.s32.totalorder %s104, %s120
      %p122 = scmp.eq.s32.totalorder %s28, 0
      %p123 = por %p121, %p122
      %s124 = ssub.s32 %s29, %s41
      %s125 = ssub.s32 %s30, %s37
      %s126 = sor.u32 %s124, %s125
      %p127 = scmp.eq.s32.totalorder %s126, 0
      %s129 = sadd.s32 %s128, 1
      %s130 = scalar_select %p127, %s128, %s129
      %p133 = pneg %p127
      %p134 = scmp.eq.s32.totalorder %s22, 1
      %p135 = por %p133, %p134
      %p136 = scmp.ne.s32.totalorder %s128, %s131
      %p137 = scmp.eq.s32.totalorder %s22, 0
      %p138 = por %p136, %p137
      %p139 = scmp.ne.s32.totalorder %s128, %s131
      %p140 = scmp.eq.s32.totalorder %s27, 1
      %p141 = por %p139, %p140
      %p142 = scmp.ne.s32.totalorder %s131, %s132
      %p143 = scmp.eq.s32.totalorder %s27, 0
      %p144 = por %p142, %p143
      %p145 = scmp.ne.s32.totalorder %s131, %s132
      %p146 = scmp.eq.s32.totalorder %s28, 1
      %p147 = por %p145, %p146
      %p149 = scmp.ne.s32.totalorder %s132, %s148
      %p150 = scmp.eq.s32.totalorder %s28, 0
      %p151 = por %p149, %p150
      %p152 = scmp.le.s32.totalorder 1, %s22
      %p153 = scmp.lt.s32.totalorder %s22, 3
      %p154 = pnand %p152, %p153
      %p155 = pneg %p154
      // Predicated region
      $region9: #{tpu_custom_call.1} parent=5 // pred_check
        _
      $region10: #{tpu_custom_call.1} parent=5 // pred_check_branch
        %157 = sbr.rel (%p154) target = $region12
      $region11: #{tpu_custom_call.1} parent=5 // pred_region
        %s158 = ssub.s32 %s22, 1
      $region12: #{tpu_custom_call.1} parent=5 // pred_fallthru
        _
      %p159 = scmp.lt.s32.totalorder %s22, 2
      // Predicated region
      $region13: #{tpu_custom_call.1} parent=5 // pred_check
        %p160 = pneg %p159
      $region14: #{tpu_custom_call.1} parent=5 // pred_check_branch
        %162 = sbr.rel (%p160) target = $region16
      $region15: #{tpu_custom_call.1} parent=5 // pred_region
        // Predicated region
        $region17: #{tpu_custom_call.1} parent=15 // pred_check
          %p163 = pneg %p54
        $region18: #{tpu_custom_call.1} parent=15 // pred_check_branch
          %165 = sbr.rel (%p163) target = $region20
        $region19: #{tpu_custom_call.1} parent=15 // pred_region
          %s166 = sand.u32 %s44, 1
          %s167 = scalar_lea.sflag [#allocation3], %s166
          %s168 = sand.u32 %s44, 1
          %s169 = smul.addr %s168, 16
          %s170 = scalar_lea.vmem [#allocation2], %s169
          %s172 = ssub.s32 256, 256
          %173 = vsyncadd %s167, %s172
          %s174 = smul.addr %s29, 2
          %s175 = smul.addr %s174, 128
          %s176 = scalar_lea.hbm %s0, %s175
          %s178 = sshll.u32 %s170, 4
          %s179 = int_to_ptr.vmem [resolvable:$true] %s178
          %181 = dma.hbm_to_vmem [thread:$0]  %s176, 256, %s179, %s167
        $region20: #{tpu_custom_call.1} parent=15 // pred_fallthru
          _
        // Predicated region
        $region21: #{tpu_custom_call.1} parent=15 // pred_check
          %p182 = pneg %p82
        $region22: #{tpu_custom_call.1} parent=15 // pred_check_branch
          %184 = sbr.rel (%p182) target = $region24
        $region23: #{tpu_custom_call.1} parent=15 // pred_region
          %s185 = sand.u32 %s72, 1
          %s186 = scalar_lea.sflag [#allocation6], %s185
          %s187 = sand.u32 %s72, 1
          %s188 = smul.addr %s187, 8
          %s189 = scalar_lea.vmem [#allocation5], %s188
          %s191 = ssub.s32 128, 128
          %192 = vsyncadd %s186, %s191
          %s193 = sadd.s32 %s30, %s29
          %s194 = smul.addr %s193, 128
          %s195 = scalar_lea.hbm %s1, %s194
          %s197 = sshll.u32 %s189, 4
          %s198 = int_to_ptr.vmem [resolvable:$true] %s197
          %200 = dma.hbm_to_vmem [thread:$0]  %s195, 128, %s198, %s186
        $region24: #{tpu_custom_call.1} parent=15 // pred_fallthru
          _
      $region16: #{tpu_custom_call.1} parent=5 // pred_fallthru
        _
      %p201 = scmp.le.s32.totalorder 1, %s22
      %p202 = scmp.lt.s32.totalorder %s22, 3
      %p203 = pnand %p201, %p202
      %p204 = pneg %p203
      // Predicated region
      $region25: #{tpu_custom_call.1} parent=5 // pred_check
        _
      $region26: #{tpu_custom_call.1} parent=5 // pred_check_branch
        %206 = sbr.rel (%p203) target = $region28
      $region27: #{tpu_custom_call.1} parent=5 // pred_region
        %s207 = ssub.s32 %s22, 1
        %s208 = sand.u32 %s47, 1
        %s209 = scalar_lea.sflag [#allocation3], %s208
        %s210 = sand.u32 %s47, 1
        %s211 = smul.addr %s210, 16
        %s212 = scalar_lea.vmem [#allocation2], %s211
        // Predicated region
        $region29: #{tpu_custom_call.1} parent=27 // pred_check
          %p213 = pneg %p60
        $region30: #{tpu_custom_call.1} parent=27 // pred_check_branch
          %215 = sbr.rel (%p213) target = $region32
        $region31: #{tpu_custom_call.1} parent=27 // pred_region
          %216 = dma.done %s209, 256
        $region32: #{tpu_custom_call.1} parent=27 // pred_fallthru
          _
        %s217 = sand.u32 %s75, 1
        %s218 = scalar_lea.sflag [#allocation6], %s217
        %s219 = sand.u32 %s75, 1
        %s220 = smul.addr %s219, 8
        %s221 = scalar_lea.vmem [#allocation5], %s220
        // Predicated region
        $region33: #{tpu_custom_call.1} parent=27 // pred_check
          %p222 = pneg %p88
        $region34: #{tpu_custom_call.1} parent=27 // pred_check_branch
          %224 = sbr.rel (%p222) target = $region36
        $region35: #{tpu_custom_call.1} parent=27 // pred_region
          %225 = dma.done %s218, 128
        $region36: #{tpu_custom_call.1} parent=27 // pred_fallthru
          _
        %s226 = sand.u32 %s47, 1
        %s227 = scalar_lea.sflag [#allocation3], %s226
        %s228 = sand.u32 %s47, 1
        %s229 = smul.addr %s228, 16
        %s230 = scalar_lea.vmem [#allocation2], %s229
        %p231 = pneg %p60
        %p232 = pneg %p57
        %s233 = sand.u32 %s75, 1
        %s234 = scalar_lea.sflag [#allocation6], %s233
        %s235 = sand.u32 %s75, 1
        %s236 = smul.addr %s235, 8
        %s237 = scalar_lea.vmem [#allocation5], %s236
        %p238 = pneg %p88
        %p239 = pneg %p85
        %p240 = pneg %p116
        %p241 = pneg %p113
        %s242 = sand.u32 %s103, 1
        %s243 = scalar_lea.sflag [#allocation4], %s242
        %s244 = sand.u32 %s103, 1
        %s245 = smul.addr %s244, 8
        %s246 = scalar_lea.vmem [#allocation7], %s245
        %p247 = pneg %p144
        %p248 = pneg %p141
        %s249 = sand.u32 %s131, 1
        %s250 = scalar_lea.sflag [#allocation9], %s249
        %s251 = sand.u32 %s131, 1
        %s252 = smul.addr %s251, 8
        %s253 = scalar_lea.vmem [#allocation8], %s252
        %v254 = vld [vmem:[%s212] sm:$0xff]
        %v255 = vld [vmem:[%s212 + $0x8] sm:$0xff]
        %v256 = vld [vmem:[%s221] sm:$0xff]
        %v257 = vmul.f32 %v254, %v254
        %v258 = vmul.f32 %v255, %v255
        %v259 = vrot.slane %v257, 4
        %v260 = vadd.f32 %v257, %v259
        %v261 = vrot.slane %v260, 2
        %v262 = vadd.f32 %v260, %v261
        %v263 = vrot.slane %v262, 1
        %v264 = vadd.f32 %v262, %v263
        %v265 = vrot.slane %v258, 4
        %v266 = vadd.f32 %v258, %v265
        %v267 = vrot.slane %v266, 2
        %v268 = vadd.f32 %v266, %v267
        %v269 = vrot.slane %v268, 1
        %v270 = vadd.f32 %v268, %v269
        %v271 = vmul.f32 %v256, %v256
        %v272 = vrot.slane %v271, 4
        %v273 = vadd.f32 %v271, %v272
        %v274 = vrot.slane %v273, 2
        %v275 = vadd.f32 %v273, %v274
        %v276 = vrot.slane %v275, 1
        %v277 = vadd.f32 %v275, %v276
        %279 = vbcast.lane.b32.xlu0 %v277, 256
        %v280 = vpop.permute.xlu0 %279
        %s282 = sor.u32 256, 8
        %283 = vbcast.lane.b32.xlu0 %v277, %s282
        %v284 = vpop.permute.xlu0 %283
        %s286 = sor.u32 256, 16
        %287 = vbcast.lane.b32.xlu0 %v277, %s286
        %v288 = vpop.permute.xlu0 %287
        %s290 = sor.u32 256, 24
        %291 = vbcast.lane.b32.xlu0 %v277, %s290
        %v292 = vpop.permute.xlu0 %291
        %s294 = sor.u32 256, 32
        %295 = vbcast.lane.b32.xlu0 %v277, %s294
        %v296 = vpop.permute.xlu0 %295
        %s298 = sor.u32 256, 40
        %299 = vbcast.lane.b32.xlu0 %v277, %s298
        %v300 = vpop.permute.xlu0 %299
        %s302 = sor.u32 256, 48
        %303 = vbcast.lane.b32.xlu0 %v277, %s302
        %v304 = vpop.permute.xlu0 %303
        %s306 = sor.u32 256, 56
        %307 = vbcast.lane.b32.xlu0 %v277, %s306
        %v308 = vpop.permute.xlu0 %307
        %s310 = sor.u32 256, 64
        %311 = vbcast.lane.b32.xlu0 %v277, %s310
        %v312 = vpop.permute.xlu0 %311
        %s314 = sor.u32 256, 72
        %315 = vbcast.lane.b32.xlu0 %v277, %s314
        %v316 = vpop.permute.xlu0 %315
        %s318 = sor.u32 256, 80
        %319 = vbcast.lane.b32.xlu0 %v277, %s318
        %v320 = vpop.permute.xlu0 %319
        %s322 = sor.u32 256, 88
        %323 = vbcast.lane.b32.xlu0 %v277, %s322
        %v324 = vpop.permute.xlu0 %323
        %s326 = sor.u32 256, 96
        %327 = vbcast.lane.b32.xlu0 %v277, %s326
        %v328 = vpop.permute.xlu0 %327
        %s330 = sor.u32 256, 104
        %331 = vbcast.lane.b32.xlu0 %v277, %s330
        %v332 = vpop.permute.xlu0 %331
        %s334 = sor.u32 256, 112
        %335 = vbcast.lane.b32.xlu0 %v277, %s334
        %v336 = vpop.permute.xlu0 %335
        %s338 = sor.u32 256, 120
        %339 = vbcast.lane.b32.xlu0 %v277, %s338
        %v340 = vpop.permute.xlu0 %339
        %341 = vxpose.xlu0.b32.start [1/16] %v256, 128
        %342 = vxpose.xlu0.b32.cont [2/16] 0.0, 128
        %343 = vxpose.xlu0.b32.cont [3/16] 0.0, 128
        %344 = vxpose.xlu0.b32.cont [4/16] 0.0, 128
        %345 = vxpose.xlu0.b32.cont [5/16] 0.0, 128
        %346 = vxpose.xlu0.b32.cont [6/16] 0.0, 128
        %347 = vxpose.xlu0.b32.cont [7/16] 0.0, 128
        %348 = vxpose.xlu0.b32.cont [8/16] 0.0, 128
        %349 = vxpose.xlu0.b32.cont [9/16] 0.0, 128
        %350 = vxpose.xlu0.b32.cont [10/16] 0.0, 128
        %351 = vxpose.xlu0.b32.cont [11/16] 0.0, 128
        %352 = vxpose.xlu0.b32.cont [12/16] 0.0, 128
        %353 = vxpose.xlu0.b32.cont [13/16] 0.0, 128
        %354 = vxpose.xlu0.b32.cont [14/16] 0.0, 128
        %355 = vxpose.xlu0.b32.cont [15/16] 0.0, 128
        %356 = vxpose.xlu0.b32.end [16/16] 0.0, 128
        %v357 = vpop.trf.xlu0
        %v358 = vpop.trf.xlu0
        %v359 = vpop.trf.xlu0
        %v360 = vpop.trf.xlu0
        %v361 = vpop.trf.xlu0
        %v362 = vpop.trf.xlu0
        %v363 = vpop.trf.xlu0
        %v364 = vpop.trf.xlu0
        %v365 = vpop.trf.xlu0
        %v366 = vpop.trf.xlu0
        %v367 = vpop.trf.xlu0
        %v368 = vpop.trf.xlu0
        %v369 = vpop.trf.xlu0
        %v370 = vpop.trf.xlu0
        %v371 = vpop.trf.xlu0
        %v372 = vpop.trf.xlu0
        %vm373 = vcmask 64512
        %v375 = vsel %vm373, %v357, 0
        %v378 = vsel %vm373, %v358, 0
        %v381 = vsel %vm373, %v359, 0
        %v384 = vsel %vm373, %v360, 0
        %v387 = vsel %vm373, %v361, 0
        %v390 = vsel %vm373, %v362, 0
        %v393 = vsel %vm373, %v363, 0
        %v396 = vsel %vm373, %v364, 0
        %v399 = vsel %vm373, %v365, 0
        %v402 = vsel %vm373, %v366, 0
        %v405 = vsel %vm373, %v367, 0
        %v408 = vsel %vm373, %v368, 0
        %v411 = vsel %vm373, %v369, 0
        %v414 = vsel %vm373, %v370, 0
        %v417 = vsel %vm373, %v371, 0
        %v420 = vsel %vm373, %v372, 0
        %422 = vmatprep.subr.mxu0 0.0
        %423 = vmatpush1.msra.mxu0 0.0
        %424 = vmatprep.subr.mxu0 0.0
        %425 = vmatpush1.msra.mxu0 0.0
        %426 = vmatprep.subr.mxu0 0.0
        %427 = vmatpush1.msra.mxu0 0.0
        %428 = vmatprep.subr.mxu0 0.0
        %429 = vmatpush1.msra.mxu0 0.0
        %430 = vmatprep.subr.mxu0 0.0
        %431 = vmatpush1.msra.mxu0 0.0
        %432 = vmatprep.subr.mxu0 0.0
        %433 = vmatpush1.msra.mxu0 0.0
        %434 = vmatprep.subr.mxu0 0.0
        %435 = vmatpush1.msra.mxu0 0.0
        %436 = vmatprep.subr.mxu0 0.0
        %437 = vmatpush1.msra.mxu0 0.0
        %438 = vmatprep.subr.mxu0 0.0
        %439 = vmatpush1.msra.mxu0 0.0
        %440 = vmatprep.subr.mxu0 0.0
        %441 = vmatpush1.msra.mxu0 0.0
        %442 = vmatprep.subr.mxu0 0.0
        %443 = vmatpush1.msra.mxu0 0.0
        %444 = vmatprep.subr.mxu0 0.0
        %445 = vmatpush1.msra.mxu0 0.0
        %446 = vmatprep.subr.mxu0 0.0
        %447 = vmatpush1.msra.mxu0 0.0
        %448 = vmatprep.subr.mxu0 0.0
        %449 = vmatpush1.msra.mxu0 0.0
        %450 = vmatprep.subr.mxu0 0.0
        %451 = vmatpush1.msra.mxu0 0.0
        %452 = vmatprep.subr.mxu0 %v255
        %453 = vmatpush1.msra.mxu0 %v254
        %454 = vmatprep.subr.mxu0 0.0
        %455 = vmatpush2.msra.mxu0 0.0
        %456 = vmatprep.subr.mxu0 0.0
        %457 = vmatpush2.msra.mxu0 0.0
        %458 = vmatprep.subr.mxu0 0.0
        %459 = vmatpush2.msra.mxu0 0.0
        %460 = vmatprep.subr.mxu0 0.0
        %461 = vmatpush2.msra.mxu0 0.0
        %462 = vmatprep.subr.mxu0 0.0
        %463 = vmatpush2.msra.mxu0 0.0
        %464 = vmatprep.subr.mxu0 0.0
        %465 = vmatpush2.msra.mxu0 0.0
        %466 = vmatprep.subr.mxu0 0.0
        %467 = vmatpush2.msra.mxu0 0.0
        %468 = vmatprep.subr.mxu0 0.0
        %469 = vmatpush2.msra.mxu0 0.0
        %470 = vmatprep.subr.mxu0 0.0
        %471 = vmatpush2.msra.mxu0 0.0
        %472 = vmatprep.subr.mxu0 0.0
        %473 = vmatpush2.msra.mxu0 0.0
        %474 = vmatprep.subr.mxu0 0.0
        %475 = vmatpush2.msra.mxu0 0.0
        %476 = vmatprep.subr.mxu0 0.0
        %477 = vmatpush2.msra.mxu0 0.0
        %478 = vmatprep.subr.mxu0 0.0
        %479 = vmatpush2.msra.mxu0 0.0
        %480 = vmatprep.subr.mxu0 0.0
        %481 = vmatpush2.msra.mxu0 0.0
        %482 = vmatprep.subr.mxu0 0.0
        %483 = vmatpush2.msra.mxu0 0.0
        %484 = vmatprep.subr.mxu0 0.0
        %485 = vmatpush2.msra.mxu0 0.0
        %486 = vmatprep.mubr.f32.mxu0 0.0
        %487 = vmatmul.mubr.f32.gmra.mxu0 %v375
        %v488 = vpop.f32.mrf.mxu0
        %v489 = vadd.f32 0.0, %v488
        %v490 = vpop.f32.mrf.mxu0
        %v491 = vadd.f32 0.0, %v490
        %492 = vmatprep.mubr.f32.mxu0 0.0
        %493 = vmatmul.mubr.f32.gmra.mxu0 %v378
        %v494 = vpop.f32.mrf.mxu0
        %v495 = vadd.f32 0.0, %v494
        %v496 = vpop.f32.mrf.mxu0
        %v497 = vadd.f32 0.0, %v496
        %498 = vmatprep.mubr.f32.mxu0 0.0
        %499 = vmatmul.mubr.f32.gmra.mxu0 %v381
        %v500 = vpop.f32.mrf.mxu0
        %v501 = vadd.f32 0.0, %v500
        %v502 = vpop.f32.mrf.mxu0
        %v503 = vadd.f32 0.0, %v502
        %504 = vmatprep.mubr.f32.mxu0 0.0
        %505 = vmatmul.mubr.f32.gmra.mxu0 %v384
        %v506 = vpop.f32.mrf.mxu0
        %v507 = vadd.f32 0.0, %v506
        %v508 = vpop.f32.mrf.mxu0
        %v509 = vadd.f32 0.0, %v508
        %510 = vmatprep.mubr.f32.mxu0 0.0
        %511 = vmatmul.mubr.f32.gmra.mxu0 %v387
        %v512 = vpop.f32.mrf.mxu0
        %v513 = vadd.f32 0.0, %v512
        %v514 = vpop.f32.mrf.mxu0
        %v515 = vadd.f32 0.0, %v514
        %516 = vmatprep.mubr.f32.mxu0 0.0
        %517 = vmatmul.mubr.f32.gmra.mxu0 %v390
        %v518 = vpop.f32.mrf.mxu0
        %v519 = vadd.f32 0.0, %v518
        %v520 = vpop.f32.mrf.mxu0
        %v521 = vadd.f32 0.0, %v520
        %522 = vmatprep.mubr.f32.mxu0 0.0
        %523 = vmatmul.mubr.f32.gmra.mxu0 %v393
        %v524 = vpop.f32.mrf.mxu0
        %v525 = vadd.f32 0.0, %v524
        %v526 = vpop.f32.mrf.mxu0
        %v527 = vadd.f32 0.0, %v526
        %528 = vmatprep.mubr.f32.mxu0 0.0
        %529 = vmatmul.mubr.f32.gmra.mxu0 %v396
        %v530 = vpop.f32.mrf.mxu0
        %v531 = vadd.f32 0.0, %v530
        %v532 = vpop.f32.mrf.mxu0
        %v533 = vadd.f32 0.0, %v532
        %534 = vmatprep.mubr.f32.mxu0 0.0
        %535 = vmatmul.mubr.f32.gmra.mxu0 %v399
        %v536 = vpop.f32.mrf.mxu0
        %v537 = vadd.f32 0.0, %v536
        %v538 = vpop.f32.mrf.mxu0
        %v539 = vadd.f32 0.0, %v538
        %540 = vmatprep.mubr.f32.mxu0 0.0
        %541 = vmatmul.mubr.f32.gmra.mxu0 %v402
        %v542 = vpop.f32.mrf.mxu0
        %v543 = vadd.f32 0.0, %v542
        %v544 = vpop.f32.mrf.mxu0
        %v545 = vadd.f32 0.0, %v544
        %546 = vmatprep.mubr.f32.mxu0 0.0
        %547 = vmatmul.mubr.f32.gmra.mxu0 %v405
        %v548 = vpop.f32.mrf.mxu0
        %v549 = vadd.f32 0.0, %v548
        %v550 = vpop.f32.mrf.mxu0
        %v551 = vadd.f32 0.0, %v550
        %552 = vmatprep.mubr.f32.mxu0 0.0
        %553 = vmatmul.mubr.f32.gmra.mxu0 %v408
        %v554 = vpop.f32.mrf.mxu0
        %v555 = vadd.f32 0.0, %v554
        %v556 = vpop.f32.mrf.mxu0
        %v557 = vadd.f32 0.0, %v556
        %558 = vmatprep.mubr.f32.mxu0 0.0
        %559 = vmatmul.mubr.f32.gmra.mxu0 %v411
        %v560 = vpop.f32.mrf.mxu0
        %v561 = vadd.f32 0.0, %v560
        %v562 = vpop.f32.mrf.mxu0
        %v563 = vadd.f32 0.0, %v562
        %564 = vmatprep.mubr.f32.mxu0 0.0
        %565 = vmatmul.mubr.f32.gmra.mxu0 %v414
        %v566 = vpop.f32.mrf.mxu0
        %v567 = vadd.f32 0.0, %v566
        %v568 = vpop.f32.mrf.mxu0
        %v569 = vadd.f32 0.0, %v568
        %570 = vmatprep.mubr.f32.mxu0 0.0
        %571 = vmatmul.mubr.f32.gmra.mxu0 %v417
        %v572 = vpop.f32.mrf.mxu0
        %v573 = vadd.f32 0.0, %v572
        %v574 = vpop.f32.mrf.mxu0
        %v575 = vadd.f32 0.0, %v574
        %576 = vmatprep.mubr.f32.mxu0 0.0
        %577 = vmatmul.mubr.f32.gmra.mxu0 %v420
        %v578 = vpop.f32.mrf.mxu0
        %v579 = vadd.f32 0.0, %v578
        %v580 = vpop.f32.mrf.mxu0
        %v581 = vadd.f32 0.0, %v580
        %582 = vdwg.mxu0
        %v583 = vadd.f32 %v280, %v264
        %v584 = vadd.f32 %v280, %v270
        %v585 = vadd.f32 %v284, %v264
        %v586 = vadd.f32 %v284, %v270
        %v587 = vadd.f32 %v288, %v264
        %v588 = vadd.f32 %v288, %v270
        %v589 = vadd.f32 %v292, %v264
        %v590 = vadd.f32 %v292, %v270
        %v591 = vadd.f32 %v296, %v264
        %v592 = vadd.f32 %v296, %v270
        %v593 = vadd.f32 %v300, %v264
        %v594 = vadd.f32 %v300, %v270
        %v595 = vadd.f32 %v304, %v264
        %v596 = vadd.f32 %v304, %v270
        %v597 = vadd.f32 %v308, %v264
        %v598 = vadd.f32 %v308, %v270
        %v599 = vadd.f32 %v312, %v264
        %v600 = vadd.f32 %v312, %v270
        %v601 = vadd.f32 %v316, %v264
        %v602 = vadd.f32 %v316, %v270
        %v603 = vadd.f32 %v320, %v264
        %v604 = vadd.f32 %v320, %v270
        %v605 = vadd.f32 %v324, %v264
        %v606 = vadd.f32 %v324, %v270
        %v607 = vadd.f32 %v328, %v264
        %v608 = vadd.f32 %v328, %v270
        %v609 = vadd.f32 %v332, %v264
        %v610 = vadd.f32 %v332, %v270
        %v611 = vadd.f32 %v336, %v264
        %v612 = vadd.f32 %v336, %v270
        %v613 = vadd.f32 %v340, %v264
        %v614 = vadd.f32 %v340, %v270
        %v615 = vmul.f32 %v489, 2.0
        %v616 = vmul.f32 %v491, 2.0
        %v617 = vmul.f32 %v495, 2.0
        %v618 = vmul.f32 %v497, 2.0
        %v619 = vmul.f32 %v501, 2.0
        %v620 = vmul.f32 %v503, 2.0
        %v621 = vmul.f32 %v507, 2.0
        %v622 = vmul.f32 %v509, 2.0
        %v623 = vmul.f32 %v513, 2.0
        %v624 = vmul.f32 %v515, 2.0
        %v625 = vmul.f32 %v519, 2.0
        %v626 = vmul.f32 %v521, 2.0
        %v627 = vmul.f32 %v525, 2.0
        %v628 = vmul.f32 %v527, 2.0
        %v629 = vmul.f32 %v531, 2.0
        %v630 = vmul.f32 %v533, 2.0
        %v631 = vmul.f32 %v537, 2.0
        %v632 = vmul.f32 %v539, 2.0
        %v633 = vmul.f32 %v543, 2.0
        %v634 = vmul.f32 %v545, 2.0
        %v635 = vmul.f32 %v549, 2.0
        %v636 = vmul.f32 %v551, 2.0
        %v637 = vmul.f32 %v555, 2.0
        %v638 = vmul.f32 %v557, 2.0
        %v639 = vmul.f32 %v561, 2.0
        %v640 = vmul.f32 %v563, 2.0
        %v641 = vmul.f32 %v567, 2.0
        %v642 = vmul.f32 %v569, 2.0
        %v643 = vmul.f32 %v573, 2.0
        %v644 = vmul.f32 %v575, 2.0
        %v645 = vmul.f32 %v579, 2.0
        %v646 = vmul.f32 %v581, 2.0
        %v647 = vsub.f32 %v583, %v615
        %v648 = vsub.f32 %v584, %v616
        %v649 = vsub.f32 %v585, %v617
        %v650 = vsub.f32 %v586, %v618
        %v651 = vsub.f32 %v587, %v619
        %v652 = vsub.f32 %v588, %v620
        %v653 = vsub.f32 %v589, %v621
        %v654 = vsub.f32 %v590, %v622
        %v655 = vsub.f32 %v591, %v623
        %v656 = vsub.f32 %v592, %v624
        %v657 = vsub.f32 %v593, %v625
        %v658 = vsub.f32 %v594, %v626
        %v659 = vsub.f32 %v595, %v627
        %v660 = vsub.f32 %v596, %v628
        %v661 = vsub.f32 %v597, %v629
        %v662 = vsub.f32 %v598, %v630
        %v663 = vsub.f32 %v599, %v631
        %v664 = vsub.f32 %v600, %v632
        %v665 = vsub.f32 %v601, %v633
        %v666 = vsub.f32 %v602, %v634
        %v667 = vsub.f32 %v603, %v635
        %v668 = vsub.f32 %v604, %v636
        %v669 = vsub.f32 %v605, %v637
        %v670 = vsub.f32 %v606, %v638
        %v671 = vsub.f32 %v607, %v639
        %v672 = vsub.f32 %v608, %v640
        %v673 = vsub.f32 %v609, %v641
        %v674 = vsub.f32 %v610, %v642
        %v675 = vsub.f32 %v611, %v643
        %v676 = vsub.f32 %v612, %v644
        %v677 = vsub.f32 %v613, %v645
        %v678 = vsub.f32 %v614, %v646
        %v679 = vmax.f32 %v647, 0.0
        %v680 = vmax.f32 %v648, 0.0
        %v681 = vmax.f32 %v649, 0.0
        %v682 = vmax.f32 %v650, 0.0
        %v683 = vmax.f32 %v651, 0.0
        %v684 = vmax.f32 %v652, 0.0
        %v685 = vmax.f32 %v653, 0.0
        %v686 = vmax.f32 %v654, 0.0
        %v687 = vmax.f32 %v655, 0.0
        %v688 = vmax.f32 %v656, 0.0
        %v689 = vmax.f32 %v657, 0.0
        %v690 = vmax.f32 %v658, 0.0
        %v691 = vmax.f32 %v659, 0.0
        %v692 = vmax.f32 %v660, 0.0
        %v693 = vmax.f32 %v661, 0.0
        %v694 = vmax.f32 %v662, 0.0
        %v695 = vmax.f32 %v663, 0.0
        %v696 = vmax.f32 %v664, 0.0
        %v697 = vmax.f32 %v665, 0.0
        %v698 = vmax.f32 %v666, 0.0
        %v699 = vmax.f32 %v667, 0.0
        %v700 = vmax.f32 %v668, 0.0
        %v701 = vmax.f32 %v669, 0.0
        %v702 = vmax.f32 %v670, 0.0
        %v703 = vmax.f32 %v671, 0.0
        %v704 = vmax.f32 %v672, 0.0
        %v705 = vmax.f32 %v673, 0.0
        %v706 = vmax.f32 %v674, 0.0
        %v707 = vmax.f32 %v675, 0.0
        %v708 = vmax.f32 %v676, 0.0
        %v709 = vmax.f32 %v677, 0.0
        %v710 = vmax.f32 %v678, 0.0
        %v711 = vlaneseq
        %v712 = vand.u32 %v711, 127
        %v713 = vadd.s32 %v712, 128
        %v714 = vmin.f32 %v679, %v680
        %715 = vmin.xlane.f32.xlu0 %v714
        %v716 = vpop.xlane.xlu0 %715
        %v717 = vmin.f32 %v681, %v682
        %718 = vmin.xlane.f32.xlu0 %v717
        %v719 = vpop.xlane.xlu0 %718
        %v720 = vmin.f32 %v683, %v684
        %721 = vmin.xlane.f32.xlu0 %v720
        %v722 = vpop.xlane.xlu0 %721
        %v723 = vmin.f32 %v685, %v686
        %724 = vmin.xlane.f32.xlu0 %v723
        %v725 = vpop.xlane.xlu0 %724
        %v726 = vmin.f32 %v687, %v688
        %727 = vmin.xlane.f32.xlu0 %v726
        %v728 = vpop.xlane.xlu0 %727
        %v729 = vmin.f32 %v689, %v690
        %730 = vmin.xlane.f32.xlu0 %v729
        %v731 = vpop.xlane.xlu0 %730
        %v732 = vmin.f32 %v691, %v692
        %733 = vmin.xlane.f32.xlu0 %v732
        %v734 = vpop.xlane.xlu0 %733
        %v735 = vmin.f32 %v693, %v694
        %736 = vmin.xlane.f32.xlu0 %v735
        %v737 = vpop.xlane.xlu0 %736
        %v738 = vmin.f32 %v695, %v696
        %739 = vmin.xlane.f32.xlu0 %v738
        %v740 = vpop.xlane.xlu0 %739
        %v741 = vmin.f32 %v697, %v698
        %742 = vmin.xlane.f32.xlu0 %v741
        %v743 = vpop.xlane.xlu0 %742
        %v744 = vmin.f32 %v699, %v700
        %745 = vmin.xlane.f32.xlu0 %v744
        %v746 = vpop.xlane.xlu0 %745
        %v747 = vmin.f32 %v701, %v702
        %748 = vmin.xlane.f32.xlu0 %v747
        %v749 = vpop.xlane.xlu0 %748
        %v750 = vmin.f32 %v703, %v704
        %751 = vmin.xlane.f32.xlu0 %v750
        %v752 = vpop.xlane.xlu0 %751
        %v753 = vmin.f32 %v705, %v706
        %754 = vmin.xlane.f32.xlu0 %v753
        %v755 = vpop.xlane.xlu0 %754
        %v756 = vmin.f32 %v707, %v708
        %757 = vmin.xlane.f32.xlu0 %v756
        %v758 = vpop.xlane.xlu0 %757
        %v759 = vmin.f32 %v709, %v710
        %760 = vmin.xlane.f32.xlu0 %v759
        %v761 = vpop.xlane.xlu0 %760
        %vm762 = vcmp.eq.f32.partialorder %v679, %v716
        %vm763 = vcmp.eq.f32.partialorder %v680, %v716
        %vm764 = vcmp.eq.f32.partialorder %v681, %v719
        %vm765 = vcmp.eq.f32.partialorder %v682, %v719
        %vm766 = vcmp.eq.f32.partialorder %v683, %v722
        %vm767 = vcmp.eq.f32.partialorder %v684, %v722
        %vm768 = vcmp.eq.f32.partialorder %v685, %v725
        %vm769 = vcmp.eq.f32.partialorder %v686, %v725
        %vm770 = vcmp.eq.f32.partialorder %v687, %v728
        %vm771 = vcmp.eq.f32.partialorder %v688, %v728
        %vm772 = vcmp.eq.f32.partialorder %v689, %v731
        %vm773 = vcmp.eq.f32.partialorder %v690, %v731
        %vm774 = vcmp.eq.f32.partialorder %v691, %v734
        %vm775 = vcmp.eq.f32.partialorder %v692, %v734
        %vm776 = vcmp.eq.f32.partialorder %v693, %v737
        %vm777 = vcmp.eq.f32.partialorder %v694, %v737
        %vm778 = vcmp.eq.f32.partialorder %v695, %v740
        %vm779 = vcmp.eq.f32.partialorder %v696, %v740
        %vm780 = vcmp.eq.f32.partialorder %v697, %v743
        %vm781 = vcmp.eq.f32.partialorder %v698, %v743
        %vm782 = vcmp.eq.f32.partialorder %v699, %v746
        %vm783 = vcmp.eq.f32.partialorder %v700, %v746
        %vm784 = vcmp.eq.f32.partialorder %v701, %v749
        %vm785 = vcmp.eq.f32.partialorder %v702, %v749
        %vm786 = vcmp.eq.f32.partialorder %v703, %v752
        %vm787 = vcmp.eq.f32.partialorder %v704, %v752
        %vm788 = vcmp.eq.f32.partialorder %v705, %v755
        %vm789 = vcmp.eq.f32.partialorder %v706, %v755
        %vm790 = vcmp.eq.f32.partialorder %v707, %v758
        %vm791 = vcmp.eq.f32.partialorder %v708, %v758
        %vm792 = vcmp.eq.f32.partialorder %v709, %v761
        %vm793 = vcmp.eq.f32.partialorder %v710, %v761
        %v794 = vsel %vm762, %v712, 256
        %v795 = vsel %vm763, %v713, 256
        %v796 = vsel %vm764, %v712, 256
        %v797 = vsel %vm765, %v713, 256
        %v798 = vsel %vm766, %v712, 256
        %v799 = vsel %vm767, %v713, 256
        %v800 = vsel %vm768, %v712, 256
        %v801 = vsel %vm769, %v713, 256
        %v802 = vsel %vm770, %v712, 256
        %v803 = vsel %vm771, %v713, 256
        %v804 = vsel %vm772, %v712, 256
        %v805 = vsel %vm773, %v713, 256
        %v806 = vsel %vm774, %v712, 256
        %v807 = vsel %vm775, %v713, 256
        %v808 = vsel %vm776, %v712, 256
        %v809 = vsel %vm777, %v713, 256
        %v810 = vsel %vm778, %v712, 256
        %v811 = vsel %vm779, %v713, 256
        %v812 = vsel %vm780, %v712, 256
        %v813 = vsel %vm781, %v713, 256
        %v814 = vsel %vm782, %v712, 256
        %v815 = vsel %vm783, %v713, 256
        %v816 = vsel %vm784, %v712, 256
        %v817 = vsel %vm785, %v713, 256
        %v818 = vsel %vm786, %v712, 256
        %v819 = vsel %vm787, %v713, 256
        %v820 = vsel %vm788, %v712, 256
        %v821 = vsel %vm789, %v713, 256
        %v822 = vsel %vm790, %v712, 256
        %v823 = vsel %vm791, %v713, 256
        %v824 = vsel %vm792, %v712, 256
        %v825 = vsel %vm793, %v713, 256
        %vm826 = vcmp.lt.s32.totalorder %v794, %v795
        %v827 = vsel %vm826, %v794, %v795
        %v828 = vand.u32 %v827, 65535
        %v829 = vshra.s32 %v827, 16
        %v830 = vcvt.s32.f32 %v828
        %v831 = vcvt.s32.f32 %v829
        %832 = vmin.xlane.f32.xlu0 %v831
        %v833 = vpop.xlane.xlu0 %832
        %vm834 = vcmp.eq.f32.partialorder %v831, %v833
        %v835 = vsel %vm834, %v830, inf
        %836 = vmin.xlane.f32.xlu0 %v835
        %v837 = vpop.xlane.xlu0 %836
        %v838 = vcvt.f32.s32 %v837
        %v839 = vcvt.f32.s32 %v833
        %v840 = vshll.u32 %v839, 16
        %v841 = vadd.s32 %v840, %v838
        %vm842 = vcmp.lt.s32.totalorder %v796, %v797
        %v843 = vsel %vm842, %v796, %v797
        %v844 = vand.u32 %v843, 65535
        %v845 = vshra.s32 %v843, 16
        %v846 = vcvt.s32.f32 %v844
        %v847 = vcvt.s32.f32 %v845
        %848 = vmin.xlane.f32.xlu0 %v847
        %v849 = vpop.xlane.xlu0 %848
        %vm850 = vcmp.eq.f32.partialorder %v847, %v849
        %v851 = vsel %vm850, %v846, inf
        %852 = vmin.xlane.f32.xlu0 %v851
        %v853 = vpop.xlane.xlu0 %852
        %v854 = vcvt.f32.s32 %v853
        %v855 = vcvt.f32.s32 %v849
        %v856 = vshll.u32 %v855, 16
        %v857 = vadd.s32 %v856, %v854
        %vm858 = vcmp.lt.s32.totalorder %v798, %v799
        %v859 = vsel %vm858, %v798, %v799
        %v860 = vand.u32 %v859, 65535
        %v861 = vshra.s32 %v859, 16
        %v862 = vcvt.s32.f32 %v860
        %v863 = vcvt.s32.f32 %v861
        %864 = vmin.xlane.f32.xlu0 %v863
        %v865 = vpop.xlane.xlu0 %864
        %vm866 = vcmp.eq.f32.partialorder %v863, %v865
        %v867 = vsel %vm866, %v862, inf
        %868 = vmin.xlane.f32.xlu0 %v867
        %v869 = vpop.xlane.xlu0 %868
        %v870 = vcvt.f32.s32 %v869
        %v871 = vcvt.f32.s32 %v865
        %v872 = vshll.u32 %v871, 16
        %v873 = vadd.s32 %v872, %v870
        %vm874 = vcmp.lt.s32.totalorder %v800, %v801
        %v875 = vsel %vm874, %v800, %v801
        %v876 = vand.u32 %v875, 65535
        %v877 = vshra.s32 %v875, 16
        %v878 = vcvt.s32.f32 %v876
        %v879 = vcvt.s32.f32 %v877
        %880 = vmin.xlane.f32.xlu0 %v879
        %v881 = vpop.xlane.xlu0 %880
        %vm882 = vcmp.eq.f32.partialorder %v879, %v881
        %v883 = vsel %vm882, %v878, inf
        %884 = vmin.xlane.f32.xlu0 %v883
        %v885 = vpop.xlane.xlu0 %884
        %v886 = vcvt.f32.s32 %v885
        %v887 = vcvt.f32.s32 %v881
        %v888 = vshll.u32 %v887, 16
        %v889 = vadd.s32 %v888, %v886
        %vm890 = vcmp.lt.s32.totalorder %v802, %v803
        %v891 = vsel %vm890, %v802, %v803
        %v892 = vand.u32 %v891, 65535
        %v893 = vshra.s32 %v891, 16
        %v894 = vcvt.s32.f32 %v892
        %v895 = vcvt.s32.f32 %v893
        %896 = vmin.xlane.f32.xlu0 %v895
        %v897 = vpop.xlane.xlu0 %896
        %vm898 = vcmp.eq.f32.partialorder %v895, %v897
        %v899 = vsel %vm898, %v894, inf
        %900 = vmin.xlane.f32.xlu0 %v899
        %v901 = vpop.xlane.xlu0 %900
        %v902 = vcvt.f32.s32 %v901
        %v903 = vcvt.f32.s32 %v897
        %v904 = vshll.u32 %v903, 16
        %v905 = vadd.s32 %v904, %v902
        %vm906 = vcmp.lt.s32.totalorder %v804, %v805
        %v907 = vsel %vm906, %v804, %v805
        %v908 = vand.u32 %v907, 65535
        %v909 = vshra.s32 %v907, 16
        %v910 = vcvt.s32.f32 %v908
        %v911 = vcvt.s32.f32 %v909
        %912 = vmin.xlane.f32.xlu0 %v911
        %v913 = vpop.xlane.xlu0 %912
        %vm914 = vcmp.eq.f32.partialorder %v911, %v913
        %v915 = vsel %vm914, %v910, inf
        %916 = vmin.xlane.f32.xlu0 %v915
        %v917 = vpop.xlane.xlu0 %916
        %v918 = vcvt.f32.s32 %v917
        %v919 = vcvt.f32.s32 %v913
        %v920 = vshll.u32 %v919, 16
        %v921 = vadd.s32 %v920, %v918
        %vm922 = vcmp.lt.s32.totalorder %v806, %v807
        %v923 = vsel %vm922, %v806, %v807
        %v924 = vand.u32 %v923, 65535
        %v925 = vshra.s32 %v923, 16
        %v926 = vcvt.s32.f32 %v924
        %v927 = vcvt.s32.f32 %v925
        %928 = vmin.xlane.f32.xlu0 %v927
        %v929 = vpop.xlane.xlu0 %928
        %vm930 = vcmp.eq.f32.partialorder %v927, %v929
        %v931 = vsel %vm930, %v926, inf
        %932 = vmin.xlane.f32.xlu0 %v931
        %v933 = vpop.xlane.xlu0 %932
        %v934 = vcvt.f32.s32 %v933
        %v935 = vcvt.f32.s32 %v929
        %v936 = vshll.u32 %v935, 16
        %v937 = vadd.s32 %v936, %v934
        %vm938 = vcmp.lt.s32.totalorder %v808, %v809
        %v939 = vsel %vm938, %v808, %v809
        %v940 = vand.u32 %v939, 65535
        %v941 = vshra.s32 %v939, 16
        %v942 = vcvt.s32.f32 %v940
        %v943 = vcvt.s32.f32 %v941
        %944 = vmin.xlane.f32.xlu0 %v943
        %v945 = vpop.xlane.xlu0 %944
        %vm946 = vcmp.eq.f32.partialorder %v943, %v945
        %v947 = vsel %vm946, %v942, inf
        %948 = vmin.xlane.f32.xlu0 %v947
        %v949 = vpop.xlane.xlu0 %948
        %v950 = vcvt.f32.s32 %v949
        %v951 = vcvt.f32.s32 %v945
        %v952 = vshll.u32 %v951, 16
        %v953 = vadd.s32 %v952, %v950
        %vm954 = vcmp.lt.s32.totalorder %v810, %v811
        %v955 = vsel %vm954, %v810, %v811
        %v956 = vand.u32 %v955, 65535
        %v957 = vshra.s32 %v955, 16
        %v958 = vcvt.s32.f32 %v956
        %v959 = vcvt.s32.f32 %v957
        %960 = vmin.xlane.f32.xlu0 %v959
        %v961 = vpop.xlane.xlu0 %960
        %vm962 = vcmp.eq.f32.partialorder %v959, %v961
        %v963 = vsel %vm962, %v958, inf
        %964 = vmin.xlane.f32.xlu0 %v963
        %v965 = vpop.xlane.xlu0 %964
        %v966 = vcvt.f32.s32 %v965
        %v967 = vcvt.f32.s32 %v961
        %v968 = vshll.u32 %v967, 16
        %v969 = vadd.s32 %v968, %v966
        %vm970 = vcmp.lt.s32.totalorder %v812, %v813
        %v971 = vsel %vm970, %v812, %v813
        %v972 = vand.u32 %v971, 65535
        %v973 = vshra.s32 %v971, 16
        %v974 = vcvt.s32.f32 %v972
        %v975 = vcvt.s32.f32 %v973
        %976 = vmin.xlane.f32.xlu0 %v975
        %v977 = vpop.xlane.xlu0 %976
        %vm978 = vcmp.eq.f32.partialorder %v975, %v977
        %v979 = vsel %vm978, %v974, inf
        %980 = vmin.xlane.f32.xlu0 %v979
        %v981 = vpop.xlane.xlu0 %980
        %v982 = vcvt.f32.s32 %v981
        %v983 = vcvt.f32.s32 %v977
        %v984 = vshll.u32 %v983, 16
        %v985 = vadd.s32 %v984, %v982
        %vm986 = vcmp.lt.s32.totalorder %v814, %v815
        %v987 = vsel %vm986, %v814, %v815
        %v988 = vand.u32 %v987, 65535
        %v989 = vshra.s32 %v987, 16
        %v990 = vcvt.s32.f32 %v988
        %v991 = vcvt.s32.f32 %v989
        %992 = vmin.xlane.f32.xlu0 %v991
        %v993 = vpop.xlane.xlu0 %992
        %vm994 = vcmp.eq.f32.partialorder %v991, %v993
        %v995 = vsel %vm994, %v990, inf
        %996 = vmin.xlane.f32.xlu0 %v995
        %v997 = vpop.xlane.xlu0 %996
        %v998 = vcvt.f32.s32 %v997
        %v999 = vcvt.f32.s32 %v993
        %v1000 = vshll.u32 %v999, 16
        %v1001 = vadd.s32 %v1000, %v998
        %vm1002 = vcmp.lt.s32.totalorder %v816, %v817
        %v1003 = vsel %vm1002, %v816, %v817
        %v1004 = vand.u32 %v1003, 65535
        %v1005 = vshra.s32 %v1003, 16
        %v1006 = vcvt.s32.f32 %v1004
        %v1007 = vcvt.s32.f32 %v1005
        %1008 = vmin.xlane.f32.xlu0 %v1007
        %v1009 = vpop.xlane.xlu0 %1008
        %vm1010 = vcmp.eq.f32.partialorder %v1007, %v1009
        %v1011 = vsel %vm1010, %v1006, inf
        %1012 = vmin.xlane.f32.xlu0 %v1011
        %v1013 = vpop.xlane.xlu0 %1012
        %v1014 = vcvt.f32.s32 %v1013
        %v1015 = vcvt.f32.s32 %v1009
        %v1016 = vshll.u32 %v1015, 16
        %v1017 = vadd.s32 %v1016, %v1014
        %vm1018 = vcmp.lt.s32.totalorder %v818, %v819
        %v1019 = vsel %vm1018, %v818, %v819
        %v1020 = vand.u32 %v1019, 65535
        %v1021 = vshra.s32 %v1019, 16
        %v1022 = vcvt.s32.f32 %v1020
        %v1023 = vcvt.s32.f32 %v1021
        %1024 = vmin.xlane.f32.xlu0 %v1023
        %v1025 = vpop.xlane.xlu0 %1024
        %vm1026 = vcmp.eq.f32.partialorder %v1023, %v1025
        %v1027 = vsel %vm1026, %v1022, inf
        %1028 = vmin.xlane.f32.xlu0 %v1027
        %v1029 = vpop.xlane.xlu0 %1028
        %v1030 = vcvt.f32.s32 %v1029
        %v1031 = vcvt.f32.s32 %v1025
        %v1032 = vshll.u32 %v1031, 16
        %v1033 = vadd.s32 %v1032, %v1030
        %vm1034 = vcmp.lt.s32.totalorder %v820, %v821
        %v1035 = vsel %vm1034, %v820, %v821
        %v1036 = vand.u32 %v1035, 65535
        %v1037 = vshra.s32 %v1035, 16
        %v1038 = vcvt.s32.f32 %v1036
        %v1039 = vcvt.s32.f32 %v1037
        %1040 = vmin.xlane.f32.xlu0 %v1039
        %v1041 = vpop.xlane.xlu0 %1040
        %vm1042 = vcmp.eq.f32.partialorder %v1039, %v1041
        %v1043 = vsel %vm1042, %v1038, inf
        %1044 = vmin.xlane.f32.xlu0 %v1043
        %v1045 = vpop.xlane.xlu0 %1044
        %v1046 = vcvt.f32.s32 %v1045
        %v1047 = vcvt.f32.s32 %v1041
        %v1048 = vshll.u32 %v1047, 16
        %v1049 = vadd.s32 %v1048, %v1046
        %vm1050 = vcmp.lt.s32.totalorder %v822, %v823
        %v1051 = vsel %vm1050, %v822, %v823
        %v1052 = vand.u32 %v1051, 65535
        %v1053 = vshra.s32 %v1051, 16
        %v1054 = vcvt.s32.f32 %v1052
        %v1055 = vcvt.s32.f32 %v1053
        %1056 = vmin.xlane.f32.xlu0 %v1055
        %v1057 = vpop.xlane.xlu0 %1056
        %vm1058 = vcmp.eq.f32.partialorder %v1055, %v1057
        %v1059 = vsel %vm1058, %v1054, inf
        %1060 = vmin.xlane.f32.xlu0 %v1059
        %v1061 = vpop.xlane.xlu0 %1060
        %v1062 = vcvt.f32.s32 %v1061
        %v1063 = vcvt.f32.s32 %v1057
        %v1064 = vshll.u32 %v1063, 16
        %v1065 = vadd.s32 %v1064, %v1062
        %vm1066 = vcmp.lt.s32.totalorder %v824, %v825
        %v1067 = vsel %vm1066, %v824, %v825
        %v1068 = vand.u32 %v1067, 65535
        %v1069 = vshra.s32 %v1067, 16
        %v1070 = vcvt.s32.f32 %v1068
        %v1071 = vcvt.s32.f32 %v1069
        %1072 = vmin.xlane.f32.xlu0 %v1071
        %v1073 = vpop.xlane.xlu0 %1072
        %vm1074 = vcmp.eq.f32.partialorder %v1071, %v1073
        %v1075 = vsel %vm1074, %v1070, inf
        %1076 = vmin.xlane.f32.xlu0 %v1075
        %v1077 = vpop.xlane.xlu0 %1076
        %v1078 = vcvt.f32.s32 %v1077
        %v1079 = vcvt.f32.s32 %v1073
        %v1080 = vshll.u32 %v1079, 16
        %v1081 = vadd.s32 %v1080, %v1078
        %v1082 = vlaneseq
        %v1083 = vshrl.u32 %v1082, 7
        %v1084 = vsub.s32 %v712, %v1083
        %v1085 = vrot.slane %v841, %v1084
        %v1086 = vadd.s32 %v712, 4294967288
        %v1087 = vlaneseq
        %v1088 = vshrl.u32 %v1087, 7
        %v1089 = vsub.s32 %v1086, %v1088
        %v1090 = vrot.slane %v857, %v1089
        %vm1091 = vcmask 130112
        %v1092 = vsel %vm1091, %v1090, %v1085
        %v1093 = vadd.s32 %v712, 4294967280
        %v1094 = vlaneseq
        %v1095 = vshrl.u32 %v1094, 7
        %v1096 = vsub.s32 %v1093, %v1095
        %v1097 = vrot.slane %v873, %v1096
        %vm1098 = vcmask 195712
        %v1099 = vsel %vm1098, %v1097, %v1092
        %v1100 = vadd.s32 %v712, 4294967272
        %v1101 = vlaneseq
        %v1102 = vshrl.u32 %v1101, 7
        %v1103 = vsub.s32 %v1100, %v1102
        %v1104 = vrot.slane %v889, %v1103
        %vm1105 = vcmask 261312
        %v1106 = vsel %vm1105, %v1104, %v1099
        %v1107 = vadd.s32 %v712, 4294967264
        %v1108 = vlaneseq
        %v1109 = vshrl.u32 %v1108, 7
        %v1110 = vsub.s32 %v1107, %v1109
        %v1111 = vrot.slane %v905, %v1110
        %vm1112 = vcmask 326912
        %v1113 = vsel %vm1112, %v1111, %v1106
        %v1114 = vadd.s32 %v712, 4294967256
        %v1115 = vlaneseq
        %v1116 = vshrl.u32 %v1115, 7
        %v1117 = vsub.s32 %v1114, %v1116
        %v1118 = vrot.slane %v921, %v1117
        %vm1119 = vcmask 392512
        %v1120 = vsel %vm1119, %v1118, %v1113
        %v1121 = vadd.s32 %v712, 4294967248
        %v1122 = vlaneseq
        %v1123 = vshrl.u32 %v1122, 7
        %v1124 = vsub.s32 %v1121, %v1123
        %v1125 = vrot.slane %v937, %v1124
        %vm1126 = vcmask 458112
        %v1127 = vsel %vm1126, %v1125, %v1120
        %v1128 = vadd.s32 %v712, 4294967240
        %v1129 = vlaneseq
        %v1130 = vshrl.u32 %v1129, 7
        %v1131 = vsub.s32 %v1128, %v1130
        %v1132 = vrot.slane %v953, %v1131
        %vm1133 = vcmask 523712
        %v1134 = vsel %vm1133, %v1132, %v1127
        %v1135 = vadd.s32 %v712, 4294967232
        %v1136 = vlaneseq
        %v1137 = vshrl.u32 %v1136, 7
        %v1138 = vsub.s32 %v1135, %v1137
        %v1139 = vrot.slane %v969, %v1138
        %vm1140 = vcmask 589312
        %v1141 = vsel %vm1140, %v1139, %v1134
        %v1142 = vadd.s32 %v712, 4294967224
        %v1143 = vlaneseq
        %v1144 = vshrl.u32 %v1143, 7
        %v1145 = vsub.s32 %v1142, %v1144
        %v1146 = vrot.slane %v985, %v1145
        %vm1147 = vcmask 654912
        %v1148 = vsel %vm1147, %v1146, %v1141
        %v1149 = vadd.s32 %v712, 4294967216
        %v1150 = vlaneseq
        %v1151 = vshrl.u32 %v1150, 7
        %v1152 = vsub.s32 %v1149, %v1151
        %v1153 = vrot.slane %v1001, %v1152
        %vm1154 = vcmask 720512
        %v1155 = vsel %vm1154, %v1153, %v1148
        %v1156 = vadd.s32 %v712, 4294967208
        %v1157 = vlaneseq
        %v1158 = vshrl.u32 %v1157, 7
        %v1159 = vsub.s32 %v1156, %v1158
        %v1160 = vrot.slane %v1017, %v1159
        %vm1161 = vcmask 786112
        %v1162 = vsel %vm1161, %v1160, %v1155
        %v1163 = vadd.s32 %v712, 4294967200
        %v1164 = vlaneseq
        %v1165 = vshrl.u32 %v1164, 7
        %v1166 = vsub.s32 %v1163, %v1165
        %v1167 = vrot.slane %v1033, %v1166
        %vm1168 = vcmask 851712
        %v1169 = vsel %vm1168, %v1167, %v1162
        %v1170 = vadd.s32 %v712, 4294967192
        %v1171 = vlaneseq
        %v1172 = vshrl.u32 %v1171, 7
        %v1173 = vsub.s32 %v1170, %v1172
        %v1174 = vrot.slane %v1049, %v1173
        %vm1175 = vcmask 917312
        %v1176 = vsel %vm1175, %v1174, %v1169
        %v1177 = vadd.s32 %v712, 4294967184
        %v1178 = vlaneseq
        %v1179 = vshrl.u32 %v1178, 7
        %v1180 = vsub.s32 %v1177, %v1179
        %v1181 = vrot.slane %v1065, %v1180
        %vm1182 = vcmask 982912
        %v1183 = vsel %vm1182, %v1181, %v1176
        %v1184 = vadd.s32 %v712, 4294967176
        %v1185 = vlaneseq
        %v1186 = vshrl.u32 %v1185, 7
        %v1187 = vsub.s32 %v1184, %v1186
        %v1188 = vrot.slane %v1081, %v1187
        %vm1189 = vcmask 1048512
        %v1190 = vsel %vm1189, %v1188, %v1183
        %1191 = vst [vmem:[%s246] sm:$0x1] %v1190
        %v1192 = vrsqrt.pop %v716
        %v1193 = vmul.f32 %v716, %v1192
        %vm1194 = vcmp.eq.f32.partialorder %v716, inf
        %v1195 = vsel %vm1194, %v716, %v1193
        %vm1196 = vcmp.eq.f32.partialorder %v716, 0.0
        %v1197 = vand.u32 %v716, 2147483648
        %v1198 = vsel %vm1196, %v1197, %v1195
        %v1199 = vrsqrt.pop %v719
        %v1200 = vmul.f32 %v719, %v1199
        %vm1201 = vcmp.eq.f32.partialorder %v719, inf
        %v1202 = vsel %vm1201, %v719, %v1200
        %vm1203 = vcmp.eq.f32.partialorder %v719, 0.0
        %v1204 = vand.u32 %v719, 2147483648
        %v1205 = vsel %vm1203, %v1204, %v1202
        %v1206 = vrsqrt.pop %v722
        %v1207 = vmul.f32 %v722, %v1206
        %vm1208 = vcmp.eq.f32.partialorder %v722, inf
        %v1209 = vsel %vm1208, %v722, %v1207
        %vm1210 = vcmp.eq.f32.partialorder %v722, 0.0
        %v1211 = vand.u32 %v722, 2147483648
        %v1212 = vsel %vm1210, %v1211, %v1209
        %v1213 = vrsqrt.pop %v725
        %v1214 = vmul.f32 %v725, %v1213
        %vm1215 = vcmp.eq.f32.partialorder %v725, inf
        %v1216 = vsel %vm1215, %v725, %v1214
        %vm1217 = vcmp.eq.f32.partialorder %v725, 0.0
        %v1218 = vand.u32 %v725, 2147483648
        %v1219 = vsel %vm1217, %v1218, %v1216
        %v1220 = vrsqrt.pop %v728
        %v1221 = vmul.f32 %v728, %v1220
        %vm1222 = vcmp.eq.f32.partialorder %v728, inf
        %v1223 = vsel %vm1222, %v728, %v1221
        %vm1224 = vcmp.eq.f32.partialorder %v728, 0.0
        %v1225 = vand.u32 %v728, 2147483648
        %v1226 = vsel %vm1224, %v1225, %v1223
        %v1227 = vrsqrt.pop %v731
        %v1228 = vmul.f32 %v731, %v1227
        %vm1229 = vcmp.eq.f32.partialorder %v731, inf
        %v1230 = vsel %vm1229, %v731, %v1228
        %vm1231 = vcmp.eq.f32.partialorder %v731, 0.0
        %v1232 = vand.u32 %v731, 2147483648
        %v1233 = vsel %vm1231, %v1232, %v1230
        %v1234 = vrsqrt.pop %v734
        %v1235 = vmul.f32 %v734, %v1234
        %vm1236 = vcmp.eq.f32.partialorder %v734, inf
        %v1237 = vsel %vm1236, %v734, %v1235
        %vm1238 = vcmp.eq.f32.partialorder %v734, 0.0
        %v1239 = vand.u32 %v734, 2147483648
        %v1240 = vsel %vm1238, %v1239, %v1237
        %v1241 = vrsqrt.pop %v737
        %v1242 = vmul.f32 %v737, %v1241
        %vm1243 = vcmp.eq.f32.partialorder %v737, inf
        %v1244 = vsel %vm1243, %v737, %v1242
        %vm1245 = vcmp.eq.f32.partialorder %v737, 0.0
        %v1246 = vand.u32 %v737, 2147483648
        %v1247 = vsel %vm1245, %v1246, %v1244
        %v1248 = vrsqrt.pop %v740
        %v1249 = vmul.f32 %v740, %v1248
        %vm1250 = vcmp.eq.f32.partialorder %v740, inf
        %v1251 = vsel %vm1250, %v740, %v1249
        %vm1252 = vcmp.eq.f32.partialorder %v740, 0.0
        %v1253 = vand.u32 %v740, 2147483648
        %v1254 = vsel %vm1252, %v1253, %v1251
        %v1255 = vrsqrt.pop %v743
        %v1256 = vmul.f32 %v743, %v1255
        %vm1257 = vcmp.eq.f32.partialorder %v743, inf
        %v1258 = vsel %vm1257, %v743, %v1256
        %vm1259 = vcmp.eq.f32.partialorder %v743, 0.0
        %v1260 = vand.u32 %v743, 2147483648
        %v1261 = vsel %vm1259, %v1260, %v1258
        %v1262 = vrsqrt.pop %v746
        %v1263 = vmul.f32 %v746, %v1262
        %vm1264 = vcmp.eq.f32.partialorder %v746, inf
        %v1265 = vsel %vm1264, %v746, %v1263
        %vm1266 = vcmp.eq.f32.partialorder %v746, 0.0
        %v1267 = vand.u32 %v746, 2147483648
        %v1268 = vsel %vm1266, %v1267, %v1265
        %v1269 = vrsqrt.pop %v749
        %v1270 = vmul.f32 %v749, %v1269
        %vm1271 = vcmp.eq.f32.partialorder %v749, inf
        %v1272 = vsel %vm1271, %v749, %v1270
        %vm1273 = vcmp.eq.f32.partialorder %v749, 0.0
        %v1274 = vand.u32 %v749, 2147483648
        %v1275 = vsel %vm1273, %v1274, %v1272
        %v1276 = vrsqrt.pop %v752
        %v1277 = vmul.f32 %v752, %v1276
        %vm1278 = vcmp.eq.f32.partialorder %v752, inf
        %v1279 = vsel %vm1278, %v752, %v1277
        %vm1280 = vcmp.eq.f32.partialorder %v752, 0.0
        %v1281 = vand.u32 %v752, 2147483648
        %v1282 = vsel %vm1280, %v1281, %v1279
        %v1283 = vrsqrt.pop %v755
        %v1284 = vmul.f32 %v755, %v1283
        %vm1285 = vcmp.eq.f32.partialorder %v755, inf
        %v1286 = vsel %vm1285, %v755, %v1284
        %vm1287 = vcmp.eq.f32.partialorder %v755, 0.0
        %v1288 = vand.u32 %v755, 2147483648
        %v1289 = vsel %vm1287, %v1288, %v1286
        %v1290 = vrsqrt.pop %v758
        %v1291 = vmul.f32 %v758, %v1290
        %vm1292 = vcmp.eq.f32.partialorder %v758, inf
        %v1293 = vsel %vm1292, %v758, %v1291
        %vm1294 = vcmp.eq.f32.partialorder %v758, 0.0
        %v1295 = vand.u32 %v758, 2147483648
        %v1296 = vsel %vm1294, %v1295, %v1293
        %v1297 = vrsqrt.pop %v761
        %v1298 = vmul.f32 %v761, %v1297
        %vm1299 = vcmp.eq.f32.partialorder %v761, inf
        %v1300 = vsel %vm1299, %v761, %v1298
        %vm1301 = vcmp.eq.f32.partialorder %v761, 0.0
        %v1302 = vand.u32 %v761, 2147483648
        %v1303 = vsel %vm1301, %v1302, %v1300
        %v1320 = vlaneseq
        %v1321 = vshrl.u32 %v1320, 7
        %v1322 = vsub.s32 %v712, %v1321
        %v1323 = vrot.slane %v1198, %v1322
        %v1324 = vlaneseq
        %v1325 = vshrl.u32 %v1324, 7
        %v1326 = vsub.s32 %v1086, %v1325
        %v1327 = vrot.slane %v1205, %v1326
        %v1328 = vsel %vm1091, %v1327, %v1323
        %v1329 = vlaneseq
        %v1330 = vshrl.u32 %v1329, 7
        %v1331 = vsub.s32 %v1093, %v1330
        %v1332 = vrot.slane %v1212, %v1331
        %v1333 = vsel %vm1098, %v1332, %v1328
        %v1334 = vlaneseq
        %v1335 = vshrl.u32 %v1334, 7
        %v1336 = vsub.s32 %v1100, %v1335
        %v1337 = vrot.slane %v1219, %v1336
        %v1338 = vsel %vm1105, %v1337, %v1333
        %v1339 = vlaneseq
        %v1340 = vshrl.u32 %v1339, 7
        %v1341 = vsub.s32 %v1107, %v1340
        %v1342 = vrot.slane %v1226, %v1341
        %v1343 = vsel %vm1112, %v1342, %v1338
        %v1344 = vlaneseq
        %v1345 = vshrl.u32 %v1344, 7
        %v1346 = vsub.s32 %v1114, %v1345
        %v1347 = vrot.slane %v1233, %v1346
        %v1348 = vsel %vm1119, %v1347, %v1343
        %v1349 = vlaneseq
        %v1350 = vshrl.u32 %v1349, 7
        %v1351 = vsub.s32 %v1121, %v1350
        %v1352 = vrot.slane %v1240, %v1351
        %v1353 = vsel %vm1126, %v1352, %v1348
        %v1354 = vlaneseq
        %v1355 = vshrl.u32 %v1354, 7
        %v1356 = vsub.s32 %v1128, %v1355
        %v1357 = vrot.slane %v1247, %v1356
        %v1358 = vsel %vm1133, %v1357, %v1353
        %v1359 = vlaneseq
        %v1360 = vshrl.u32 %v1359, 7
        %v1361 = vsub.s32 %v1135, %v1360
        %v1362 = vrot.slane %v1254, %v1361
        %v1363 = vsel %vm1140, %v1362, %v1358
        %v1364 = vlaneseq
        %v1365 = vshrl.u32 %v1364, 7
        %v1366 = vsub.s32 %v1142, %v1365
        %v1367 = vrot.slane %v1261, %v1366
        %v1368 = vsel %vm1147, %v1367, %v1363
        %v1369 = vlaneseq
        %v1370 = vshrl.u32 %v1369, 7
        %v1371 = vsub.s32 %v1149, %v1370
        %v1372 = vrot.slane %v1268, %v1371
        %v1373 = vsel %vm1154, %v1372, %v1368
        %v1374 = vlaneseq
        %v1375 = vshrl.u32 %v1374, 7
        %v1376 = vsub.s32 %v1156, %v1375
        %v1377 = vrot.slane %v1275, %v1376
        %v1378 = vsel %vm1161, %v1377, %v1373
        %v1379 = vlaneseq
        %v1380 = vshrl.u32 %v1379, 7
        %v1381 = vsub.s32 %v1163, %v1380
        %v1382 = vrot.slane %v1282, %v1381
        %v1383 = vsel %vm1168, %v1382, %v1378
        %v1384 = vlaneseq
        %v1385 = vshrl.u32 %v1384, 7
        %v1386 = vsub.s32 %v1170, %v1385
        %v1387 = vrot.slane %v1289, %v1386
        %v1388 = vsel %vm1175, %v1387, %v1383
        %v1389 = vlaneseq
        %v1390 = vshrl.u32 %v1389, 7
        %v1391 = vsub.s32 %v1177, %v1390
        %v1392 = vrot.slane %v1296, %v1391
        %v1393 = vsel %vm1182, %v1392, %v1388
        %v1394 = vlaneseq
        %v1395 = vshrl.u32 %v1394, 7
        %v1396 = vsub.s32 %v1184, %v1395
        %v1397 = vrot.slane %v1303, %v1396
        %v1398 = vsel %vm1189, %v1397, %v1393
        %1400 = vst [vmem:[%s253] sm:$0x1] %v1398
        %vm1401 = vcmp.eq.s32.totalorder %v712, %v841
        %vm1402 = vcmp.eq.s32.totalorder %v713, %v841
        %vm1403 = vcmp.eq.s32.totalorder %v712, %v857
        %vm1404 = vcmp.eq.s32.totalorder %v713, %v857
        %vm1405 = vcmp.eq.s32.totalorder %v712, %v873
        %vm1406 = vcmp.eq.s32.totalorder %v713, %v873
        %vm1407 = vcmp.eq.s32.totalorder %v712, %v889
        %vm1408 = vcmp.eq.s32.totalorder %v713, %v889
        %vm1409 = vcmp.eq.s32.totalorder %v712, %v905
        %vm1410 = vcmp.eq.s32.totalorder %v713, %v905
        %vm1411 = vcmp.eq.s32.totalorder %v712, %v921
        %vm1412 = vcmp.eq.s32.totalorder %v713, %v921
        %vm1413 = vcmp.eq.s32.totalorder %v712, %v937
        %vm1414 = vcmp.eq.s32.totalorder %v713, %v937
        %vm1415 = vcmp.eq.s32.totalorder %v712, %v953
        %vm1416 = vcmp.eq.s32.totalorder %v713, %v953
        %vm1417 = vcmp.eq.s32.totalorder %v712, %v969
        %vm1418 = vcmp.eq.s32.totalorder %v713, %v969
        %vm1419 = vcmp.eq.s32.totalorder %v712, %v985
        %vm1420 = vcmp.eq.s32.totalorder %v713, %v985
        %vm1421 = vcmp.eq.s32.totalorder %v712, %v1001
        %vm1422 = vcmp.eq.s32.totalorder %v713, %v1001
        %vm1423 = vcmp.eq.s32.totalorder %v712, %v1017
        %vm1424 = vcmp.eq.s32.totalorder %v713, %v1017
        %vm1425 = vcmp.eq.s32.totalorder %v712, %v1033
        %vm1426 = vcmp.eq.s32.totalorder %v713, %v1033
        %vm1427 = vcmp.eq.s32.totalorder %v712, %v1049
        %vm1428 = vcmp.eq.s32.totalorder %v713, %v1049
        %vm1429 = vcmp.eq.s32.totalorder %v712, %v1065
        %vm1430 = vcmp.eq.s32.totalorder %v713, %v1065
        %vm1431 = vcmp.eq.s32.totalorder %v712, %v1081
        %vm1432 = vcmp.eq.s32.totalorder %v713, %v1081
        %v1433 = vsel %vm1401, 3.4e+38, %v679
        %v1434 = vsel %vm1402, 3.4e+38, %v680
        %v1435 = vsel %vm1403, 3.4e+38, %v681
        %v1436 = vsel %vm1404, 3.4e+38, %v682
        %v1437 = vsel %vm1405, 3.4e+38, %v683
        %v1438 = vsel %vm1406, 3.4e+38, %v684
        %v1439 = vsel %vm1407, 3.4e+38, %v685
        %v1440 = vsel %vm1408, 3.4e+38, %v686
        %v1441 = vsel %vm1409, 3.4e+38, %v687
        %v1442 = vsel %vm1410, 3.4e+38, %v688
        %v1443 = vsel %vm1411, 3.4e+38, %v689
        %v1444 = vsel %vm1412, 3.4e+38, %v690
        %v1445 = vsel %vm1413, 3.4e+38, %v691
        %v1446 = vsel %vm1414, 3.4e+38, %v692
        %v1447 = vsel %vm1415, 3.4e+38, %v693
        %v1448 = vsel %vm1416, 3.4e+38, %v694
        %v1449 = vsel %vm1417, 3.4e+38, %v695
        %v1450 = vsel %vm1418, 3.4e+38, %v696
        %v1451 = vsel %vm1419, 3.4e+38, %v697
        %v1452 = vsel %vm1420, 3.4e+38, %v698
        %v1453 = vsel %vm1421, 3.4e+38, %v699
        %v1454 = vsel %vm1422, 3.4e+38, %v700
        %v1455 = vsel %vm1423, 3.4e+38, %v701
        %v1456 = vsel %vm1424, 3.4e+38, %v702
        %v1457 = vsel %vm1425, 3.4e+38, %v703
        %v1458 = vsel %vm1426, 3.4e+38, %v704
        %v1459 = vsel %vm1427, 3.4e+38, %v705
        %v1460 = vsel %vm1428, 3.4e+38, %v706
        %v1461 = vsel %vm1429, 3.4e+38, %v707
        %v1462 = vsel %vm1430, 3.4e+38, %v708
        %v1463 = vsel %vm1431, 3.4e+38, %v709
        %v1464 = vsel %vm1432, 3.4e+38, %v710
        %v1465 = vmin.f32 %v1433, %v1434
        %1466 = vmin.xlane.f32.xlu0 %v1465
        %v1467 = vpop.xlane.xlu0 %1466
        %v1468 = vmin.f32 %v1435, %v1436
        %1469 = vmin.xlane.f32.xlu0 %v1468
        %v1470 = vpop.xlane.xlu0 %1469
        %v1471 = vmin.f32 %v1437, %v1438
        %1472 = vmin.xlane.f32.xlu0 %v1471
        %v1473 = vpop.xlane.xlu0 %1472
        %v1474 = vmin.f32 %v1439, %v1440
        %1475 = vmin.xlane.f32.xlu0 %v1474
        %v1476 = vpop.xlane.xlu0 %1475
        %v1477 = vmin.f32 %v1441, %v1442
        %1478 = vmin.xlane.f32.xlu0 %v1477
        %v1479 = vpop.xlane.xlu0 %1478
        %v1480 = vmin.f32 %v1443, %v1444
        %1481 = vmin.xlane.f32.xlu0 %v1480
        %v1482 = vpop.xlane.xlu0 %1481
        %v1483 = vmin.f32 %v1445, %v1446
        %1484 = vmin.xlane.f32.xlu0 %v1483
        %v1485 = vpop.xlane.xlu0 %1484
        %v1486 = vmin.f32 %v1447, %v1448
        %1487 = vmin.xlane.f32.xlu0 %v1486
        %v1488 = vpop.xlane.xlu0 %1487
        %v1489 = vmin.f32 %v1449, %v1450
        %1490 = vmin.xlane.f32.xlu0 %v1489
        %v1491 = vpop.xlane.xlu0 %1490
        %v1492 = vmin.f32 %v1451, %v1452
        %1493 = vmin.xlane.f32.xlu0 %v1492
        %v1494 = vpop.xlane.xlu0 %1493
        %v1495 = vmin.f32 %v1453, %v1454
        %1496 = vmin.xlane.f32.xlu0 %v1495
        %v1497 = vpop.xlane.xlu0 %1496
        %v1498 = vmin.f32 %v1455, %v1456
        %1499 = vmin.xlane.f32.xlu0 %v1498
        %v1500 = vpop.xlane.xlu0 %1499
        %v1501 = vmin.f32 %v1457, %v1458
        %1502 = vmin.xlane.f32.xlu0 %v1501
        %v1503 = vpop.xlane.xlu0 %1502
        %v1504 = vmin.f32 %v1459, %v1460
        %1505 = vmin.xlane.f32.xlu0 %v1504
        %v1506 = vpop.xlane.xlu0 %1505
        %v1507 = vmin.f32 %v1461, %v1462
        %1508 = vmin.xlane.f32.xlu0 %v1507
        %v1509 = vpop.xlane.xlu0 %1508
        %v1510 = vmin.f32 %v1463, %v1464
        %1511 = vmin.xlane.f32.xlu0 %v1510
        %v1512 = vpop.xlane.xlu0 %1511
        %vm1513 = vcmp.eq.f32.partialorder %v1433, %v1467
        %vm1514 = vcmp.eq.f32.partialorder %v1434, %v1467
        %vm1515 = vcmp.eq.f32.partialorder %v1435, %v1470
        %vm1516 = vcmp.eq.f32.partialorder %v1436, %v1470
        %vm1517 = vcmp.eq.f32.partialorder %v1437, %v1473
        %vm1518 = vcmp.eq.f32.partialorder %v1438, %v1473
        %vm1519 = vcmp.eq.f32.partialorder %v1439, %v1476
        %vm1520 = vcmp.eq.f32.partialorder %v1440, %v1476
        %vm1521 = vcmp.eq.f32.partialorder %v1441, %v1479
        %vm1522 = vcmp.eq.f32.partialorder %v1442, %v1479
        %vm1523 = vcmp.eq.f32.partialorder %v1443, %v1482
        %vm1524 = vcmp.eq.f32.partialorder %v1444, %v1482
        %vm1525 = vcmp.eq.f32.partialorder %v1445, %v1485
        %vm1526 = vcmp.eq.f32.partialorder %v1446, %v1485
        %vm1527 = vcmp.eq.f32.partialorder %v1447, %v1488
        %vm1528 = vcmp.eq.f32.partialorder %v1448, %v1488
        %vm1529 = vcmp.eq.f32.partialorder %v1449, %v1491
        %vm1530 = vcmp.eq.f32.partialorder %v1450, %v1491
        %vm1531 = vcmp.eq.f32.partialorder %v1451, %v1494
        %vm1532 = vcmp.eq.f32.partialorder %v1452, %v1494
        %vm1533 = vcmp.eq.f32.partialorder %v1453, %v1497
        %vm1534 = vcmp.eq.f32.partialorder %v1454, %v1497
        %vm1535 = vcmp.eq.f32.partialorder %v1455, %v1500
        %vm1536 = vcmp.eq.f32.partialorder %v1456, %v1500
        %vm1537 = vcmp.eq.f32.partialorder %v1457, %v1503
        %vm1538 = vcmp.eq.f32.partialorder %v1458, %v1503
        %vm1539 = vcmp.eq.f32.partialorder %v1459, %v1506
        %vm1540 = vcmp.eq.f32.partialorder %v1460, %v1506
        %vm1541 = vcmp.eq.f32.partialorder %v1461, %v1509
        %vm1542 = vcmp.eq.f32.partialorder %v1462, %v1509
        %vm1543 = vcmp.eq.f32.partialorder %v1463, %v1512
        %vm1544 = vcmp.eq.f32.partialorder %v1464, %v1512
        %v1545 = vsel %vm1513, %v712, 256
        %v1546 = vsel %vm1514, %v713, 256
        %v1547 = vsel %vm1515, %v712, 256
        %v1548 = vsel %vm1516, %v713, 256
        %v1549 = vsel %vm1517, %v712, 256
        %v1550 = vsel %vm1518, %v713, 256
        %v1551 = vsel %vm1519, %v712, 256
        %v1552 = vsel %vm1520, %v713, 256
        %v1553 = vsel %vm1521, %v712, 256
        %v1554 = vsel %vm1522, %v713, 256
        %v1555 = vsel %vm1523, %v712, 256
        %v1556 = vsel %vm1524, %v713, 256
        %v1557 = vsel %vm1525, %v712, 256
        %v1558 = vsel %vm1526, %v713, 256
        %v1559 = vsel %vm1527, %v712, 256
        %v1560 = vsel %vm1528, %v713, 256
        %v1561 = vsel %vm1529, %v712, 256
        %v1562 = vsel %vm1530, %v713, 256
        %v1563 = vsel %vm1531, %v712, 256
        %v1564 = vsel %vm1532, %v713, 256
        %v1565 = vsel %vm1533, %v712, 256
        %v1566 = vsel %vm1534, %v713, 256
        %v1567 = vsel %vm1535, %v712, 256
        %v1568 = vsel %vm1536, %v713, 256
        %v1569 = vsel %vm1537, %v712, 256
        %v1570 = vsel %vm1538, %v713, 256
        %v1571 = vsel %vm1539, %v712, 256
        %v1572 = vsel %vm1540, %v713, 256
        %v1573 = vsel %vm1541, %v712, 256
        %v1574 = vsel %vm1542, %v713, 256
        %v1575 = vsel %vm1543, %v712, 256
        %v1576 = vsel %vm1544, %v713, 256
        %vm1577 = vcmp.lt.s32.totalorder %v1545, %v1546
        %v1578 = vsel %vm1577, %v1545, %v1546
        %v1579 = vand.u32 %v1578, 65535
        %v1580 = vshra.s32 %v1578, 16
        %v1581 = vcvt.s32.f32 %v1579
        %v1582 = vcvt.s32.f32 %v1580
        %1583 = vmin.xlane.f32.xlu0 %v1582
        %v1584 = vpop.xlane.xlu0 %1583
        %vm1585 = vcmp.eq.f32.partialorder %v1582, %v1584
        %v1586 = vsel %vm1585, %v1581, inf
        %1587 = vmin.xlane.f32.xlu0 %v1586
        %v1588 = vpop.xlane.xlu0 %1587
        %v1589 = vcvt.f32.s32 %v1588
        %v1590 = vcvt.f32.s32 %v1584
        %v1591 = vshll.u32 %v1590, 16
        %v1592 = vadd.s32 %v1591, %v1589
        %vm1593 = vcmp.lt.s32.totalorder %v1547, %v1548
        %v1594 = vsel %vm1593, %v1547, %v1548
        %v1595 = vand.u32 %v1594, 65535
        %v1596 = vshra.s32 %v1594, 16
        %v1597 = vcvt.s32.f32 %v1595
        %v1598 = vcvt.s32.f32 %v1596
        %1599 = vmin.xlane.f32.xlu0 %v1598
        %v1600 = vpop.xlane.xlu0 %1599
        %vm1601 = vcmp.eq.f32.partialorder %v1598, %v1600
        %v1602 = vsel %vm1601, %v1597, inf
        %1603 = vmin.xlane.f32.xlu0 %v1602
        %v1604 = vpop.xlane.xlu0 %1603
        %v1605 = vcvt.f32.s32 %v1604
        %v1606 = vcvt.f32.s32 %v1600
        %v1607 = vshll.u32 %v1606, 16
        %v1608 = vadd.s32 %v1607, %v1605
        %vm1609 = vcmp.lt.s32.totalorder %v1549, %v1550
        %v1610 = vsel %vm1609, %v1549, %v1550
        %v1611 = vand.u32 %v1610, 65535
        %v1612 = vshra.s32 %v1610, 16
        %v1613 = vcvt.s32.f32 %v1611
        %v1614 = vcvt.s32.f32 %v1612
        %1615 = vmin.xlane.f32.xlu0 %v1614
        %v1616 = vpop.xlane.xlu0 %1615
        %vm1617 = vcmp.eq.f32.partialorder %v1614, %v1616
        %v1618 = vsel %vm1617, %v1613, inf
        %1619 = vmin.xlane.f32.xlu0 %v1618
        %v1620 = vpop.xlane.xlu0 %1619
        %v1621 = vcvt.f32.s32 %v1620
        %v1622 = vcvt.f32.s32 %v1616
        %v1623 = vshll.u32 %v1622, 16
        %v1624 = vadd.s32 %v1623, %v1621
        %vm1625 = vcmp.lt.s32.totalorder %v1551, %v1552
        %v1626 = vsel %vm1625, %v1551, %v1552
        %v1627 = vand.u32 %v1626, 65535
        %v1628 = vshra.s32 %v1626, 16
        %v1629 = vcvt.s32.f32 %v1627
        %v1630 = vcvt.s32.f32 %v1628
        %1631 = vmin.xlane.f32.xlu0 %v1630
        %v1632 = vpop.xlane.xlu0 %1631
        %vm1633 = vcmp.eq.f32.partialorder %v1630, %v1632
        %v1634 = vsel %vm1633, %v1629, inf
        %1635 = vmin.xlane.f32.xlu0 %v1634
        %v1636 = vpop.xlane.xlu0 %1635
        %v1637 = vcvt.f32.s32 %v1636
        %v1638 = vcvt.f32.s32 %v1632
        %v1639 = vshll.u32 %v1638, 16
        %v1640 = vadd.s32 %v1639, %v1637
        %vm1641 = vcmp.lt.s32.totalorder %v1553, %v1554
        %v1642 = vsel %vm1641, %v1553, %v1554
        %v1643 = vand.u32 %v1642, 65535
        %v1644 = vshra.s32 %v1642, 16
        %v1645 = vcvt.s32.f32 %v1643
        %v1646 = vcvt.s32.f32 %v1644
        %1647 = vmin.xlane.f32.xlu0 %v1646
        %v1648 = vpop.xlane.xlu0 %1647
        %vm1649 = vcmp.eq.f32.partialorder %v1646, %v1648
        %v1650 = vsel %vm1649, %v1645, inf
        %1651 = vmin.xlane.f32.xlu0 %v1650
        %v1652 = vpop.xlane.xlu0 %1651
        %v1653 = vcvt.f32.s32 %v1652
        %v1654 = vcvt.f32.s32 %v1648
        %v1655 = vshll.u32 %v1654, 16
        %v1656 = vadd.s32 %v1655, %v1653
        %vm1657 = vcmp.lt.s32.totalorder %v1555, %v1556
        %v1658 = vsel %vm1657, %v1555, %v1556
        %v1659 = vand.u32 %v1658, 65535
        %v1660 = vshra.s32 %v1658, 16
        %v1661 = vcvt.s32.f32 %v1659
        %v1662 = vcvt.s32.f32 %v1660
        %1663 = vmin.xlane.f32.xlu0 %v1662
        %v1664 = vpop.xlane.xlu0 %1663
        %vm1665 = vcmp.eq.f32.partialorder %v1662, %v1664
        %v1666 = vsel %vm1665, %v1661, inf
        %1667 = vmin.xlane.f32.xlu0 %v1666
        %v1668 = vpop.xlane.xlu0 %1667
        %v1669 = vcvt.f32.s32 %v1668
        %v1670 = vcvt.f32.s32 %v1664
        %v1671 = vshll.u32 %v1670, 16
        %v1672 = vadd.s32 %v1671, %v1669
        %vm1673 = vcmp.lt.s32.totalorder %v1557, %v1558
        %v1674 = vsel %vm1673, %v1557, %v1558
        %v1675 = vand.u32 %v1674, 65535
        %v1676 = vshra.s32 %v1674, 16
        %v1677 = vcvt.s32.f32 %v1675
        %v1678 = vcvt.s32.f32 %v1676
        %1679 = vmin.xlane.f32.xlu0 %v1678
        %v1680 = vpop.xlane.xlu0 %1679
        %vm1681 = vcmp.eq.f32.partialorder %v1678, %v1680
        %v1682 = vsel %vm1681, %v1677, inf
        %1683 = vmin.xlane.f32.xlu0 %v1682
        %v1684 = vpop.xlane.xlu0 %1683
        %v1685 = vcvt.f32.s32 %v1684
        %v1686 = vcvt.f32.s32 %v1680
        %v1687 = vshll.u32 %v1686, 16
        %v1688 = vadd.s32 %v1687, %v1685
        %vm1689 = vcmp.lt.s32.totalorder %v1559, %v1560
        %v1690 = vsel %vm1689, %v1559, %v1560
        %v1691 = vand.u32 %v1690, 65535
        %v1692 = vshra.s32 %v1690, 16
        %v1693 = vcvt.s32.f32 %v1691
        %v1694 = vcvt.s32.f32 %v1692
        %1695 = vmin.xlane.f32.xlu0 %v1694
        %v1696 = vpop.xlane.xlu0 %1695
        %vm1697 = vcmp.eq.f32.partialorder %v1694, %v1696
        %v1698 = vsel %vm1697, %v1693, inf
        %1699 = vmin.xlane.f32.xlu0 %v1698
        %v1700 = vpop.xlane.xlu0 %1699
        %v1701 = vcvt.f32.s32 %v1700
        %v1702 = vcvt.f32.s32 %v1696
        %v1703 = vshll.u32 %v1702, 16
        %v1704 = vadd.s32 %v1703, %v1701
        %vm1705 = vcmp.lt.s32.totalorder %v1561, %v1562
        %v1706 = vsel %vm1705, %v1561, %v1562
        %v1707 = vand.u32 %v1706, 65535
        %v1708 = vshra.s32 %v1706, 16
        %v1709 = vcvt.s32.f32 %v1707
        %v1710 = vcvt.s32.f32 %v1708
        %1711 = vmin.xlane.f32.xlu0 %v1710
        %v1712 = vpop.xlane.xlu0 %1711
        %vm1713 = vcmp.eq.f32.partialorder %v1710, %v1712
        %v1714 = vsel %vm1713, %v1709, inf
        %1715 = vmin.xlane.f32.xlu0 %v1714
        %v1716 = vpop.xlane.xlu0 %1715
        %v1717 = vcvt.f32.s32 %v1716
        %v1718 = vcvt.f32.s32 %v1712
        %v1719 = vshll.u32 %v1718, 16
        %v1720 = vadd.s32 %v1719, %v1717
        %vm1721 = vcmp.lt.s32.totalorder %v1563, %v1564
        %v1722 = vsel %vm1721, %v1563, %v1564
        %v1723 = vand.u32 %v1722, 65535
        %v1724 = vshra.s32 %v1722, 16
        %v1725 = vcvt.s32.f32 %v1723
        %v1726 = vcvt.s32.f32 %v1724
        %1727 = vmin.xlane.f32.xlu0 %v1726
        %v1728 = vpop.xlane.xlu0 %1727
        %vm1729 = vcmp.eq.f32.partialorder %v1726, %v1728
        %v1730 = vsel %vm1729, %v1725, inf
        %1731 = vmin.xlane.f32.xlu0 %v1730
        %v1732 = vpop.xlane.xlu0 %1731
        %v1733 = vcvt.f32.s32 %v1732
        %v1734 = vcvt.f32.s32 %v1728
        %v1735 = vshll.u32 %v1734, 16
        %v1736 = vadd.s32 %v1735, %v1733
        %vm1737 = vcmp.lt.s32.totalorder %v1565, %v1566
        %v1738 = vsel %vm1737, %v1565, %v1566
        %v1739 = vand.u32 %v1738, 65535
        %v1740 = vshra.s32 %v1738, 16
        %v1741 = vcvt.s32.f32 %v1739
        %v1742 = vcvt.s32.f32 %v1740
        %1743 = vmin.xlane.f32.xlu0 %v1742
        %v1744 = vpop.xlane.xlu0 %1743
        %vm1745 = vcmp.eq.f32.partialorder %v1742, %v1744
        %v1746 = vsel %vm1745, %v1741, inf
        %1747 = vmin.xlane.f32.xlu0 %v1746
        %v1748 = vpop.xlane.xlu0 %1747
        %v1749 = vcvt.f32.s32 %v1748
        %v1750 = vcvt.f32.s32 %v1744
        %v1751 = vshll.u32 %v1750, 16
        %v1752 = vadd.s32 %v1751, %v1749
        %vm1753 = vcmp.lt.s32.totalorder %v1567, %v1568
        %v1754 = vsel %vm1753, %v1567, %v1568
        %v1755 = vand.u32 %v1754, 65535
        %v1756 = vshra.s32 %v1754, 16
        %v1757 = vcvt.s32.f32 %v1755
        %v1758 = vcvt.s32.f32 %v1756
        %1759 = vmin.xlane.f32.xlu0 %v1758
        %v1760 = vpop.xlane.xlu0 %1759
        %vm1761 = vcmp.eq.f32.partialorder %v1758, %v1760
        %v1762 = vsel %vm1761, %v1757, inf
        %1763 = vmin.xlane.f32.xlu0 %v1762
        %v1764 = vpop.xlane.xlu0 %1763
        %v1765 = vcvt.f32.s32 %v1764
        %v1766 = vcvt.f32.s32 %v1760
        %v1767 = vshll.u32 %v1766, 16
        %v1768 = vadd.s32 %v1767, %v1765
        %vm1769 = vcmp.lt.s32.totalorder %v1569, %v1570
        %v1770 = vsel %vm1769, %v1569, %v1570
        %v1771 = vand.u32 %v1770, 65535
        %v1772 = vshra.s32 %v1770, 16
        %v1773 = vcvt.s32.f32 %v1771
        %v1774 = vcvt.s32.f32 %v1772
        %1775 = vmin.xlane.f32.xlu0 %v1774
        %v1776 = vpop.xlane.xlu0 %1775
        %vm1777 = vcmp.eq.f32.partialorder %v1774, %v1776
        %v1778 = vsel %vm1777, %v1773, inf
        %1779 = vmin.xlane.f32.xlu0 %v1778
        %v1780 = vpop.xlane.xlu0 %1779
        %v1781 = vcvt.f32.s32 %v1780
        %v1782 = vcvt.f32.s32 %v1776
        %v1783 = vshll.u32 %v1782, 16
        %v1784 = vadd.s32 %v1783, %v1781
        %vm1785 = vcmp.lt.s32.totalorder %v1571, %v1572
        %v1786 = vsel %vm1785, %v1571, %v1572
        %v1787 = vand.u32 %v1786, 65535
        %v1788 = vshra.s32 %v1786, 16
        %v1789 = vcvt.s32.f32 %v1787
        %v1790 = vcvt.s32.f32 %v1788
        %1791 = vmin.xlane.f32.xlu0 %v1790
        %v1792 = vpop.xlane.xlu0 %1791
        %vm1793 = vcmp.eq.f32.partialorder %v1790, %v1792
        %v1794 = vsel %vm1793, %v1789, inf
        %1795 = vmin.xlane.f32.xlu0 %v1794
        %v1796 = vpop.xlane.xlu0 %1795
        %v1797 = vcvt.f32.s32 %v1796
        %v1798 = vcvt.f32.s32 %v1792
        %v1799 = vshll.u32 %v1798, 16
        %v1800 = vadd.s32 %v1799, %v1797
        %vm1801 = vcmp.lt.s32.totalorder %v1573, %v1574
        %v1802 = vsel %vm1801, %v1573, %v1574
        %v1803 = vand.u32 %v1802, 65535
        %v1804 = vshra.s32 %v1802, 16
        %v1805 = vcvt.s32.f32 %v1803
        %v1806 = vcvt.s32.f32 %v1804
        %1807 = vmin.xlane.f32.xlu0 %v1806
        %v1808 = vpop.xlane.xlu0 %1807
        %vm1809 = vcmp.eq.f32.partialorder %v1806, %v1808
        %v1810 = vsel %vm1809, %v1805, inf
        %1811 = vmin.xlane.f32.xlu0 %v1810
        %v1812 = vpop.xlane.xlu0 %1811
        %v1813 = vcvt.f32.s32 %v1812
        %v1814 = vcvt.f32.s32 %v1808
        %v1815 = vshll.u32 %v1814, 16
        %v1816 = vadd.s32 %v1815, %v1813
        %vm1817 = vcmp.lt.s32.totalorder %v1575, %v1576
        %v1818 = vsel %vm1817, %v1575, %v1576
        %v1819 = vand.u32 %v1818, 65535
        %v1820 = vshra.s32 %v1818, 16
        %v1821 = vcvt.s32.f32 %v1819
        %v1822 = vcvt.s32.f32 %v1820
        %1823 = vmin.xlane.f32.xlu0 %v1822
        %v1824 = vpop.xlane.xlu0 %1823
        %vm1825 = vcmp.eq.f32.partialorder %v1822, %v1824
        %v1826 = vsel %vm1825, %v1821, inf
        %1827 = vmin.xlane.f32.xlu0 %v1826
        %v1828 = vpop.xlane.xlu0 %1827
        %v1829 = vcvt.f32.s32 %v1828
        %v1830 = vcvt.f32.s32 %v1824
        %v1831 = vshll.u32 %v1830, 16
        %v1832 = vadd.s32 %v1831, %v1829
        %v1833 = vlaneseq
        %v1834 = vshrl.u32 %v1833, 7
        %v1835 = vsub.s32 %v712, %v1834
        %v1836 = vrot.slane %v1592, %v1835
        %v1837 = vlaneseq
        %v1838 = vshrl.u32 %v1837, 7
        %v1839 = vsub.s32 %v1086, %v1838
        %v1840 = vrot.slane %v1608, %v1839
        %v1841 = vsel %vm1091, %v1840, %v1836
        %v1842 = vlaneseq
        %v1843 = vshrl.u32 %v1842, 7
        %v1844 = vsub.s32 %v1093, %v1843
        %v1845 = vrot.slane %v1624, %v1844
        %v1846 = vsel %vm1098, %v1845, %v1841
        %v1847 = vlaneseq
        %v1848 = vshrl.u32 %v1847, 7
        %v1849 = vsub.s32 %v1100, %v1848
        %v1850 = vrot.slane %v1640, %v1849
        %v1851 = vsel %vm1105, %v1850, %v1846
        %v1852 = vlaneseq
        %v1853 = vshrl.u32 %v1852, 7
        %v1854 = vsub.s32 %v1107, %v1853
        %v1855 = vrot.slane %v1656, %v1854
        %v1856 = vsel %vm1112, %v1855, %v1851
        %v1857 = vlaneseq
        %v1858 = vshrl.u32 %v1857, 7
        %v1859 = vsub.s32 %v1114, %v1858
        %v1860 = vrot.slane %v1672, %v1859
        %v1861 = vsel %vm1119, %v1860, %v1856
        %v1862 = vlaneseq
        %v1863 = vshrl.u32 %v1862, 7
        %v1864 = vsub.s32 %v1121, %v1863
        %v1865 = vrot.slane %v1688, %v1864
        %v1866 = vsel %vm1126, %v1865, %v1861
        %v1867 = vlaneseq
        %v1868 = vshrl.u32 %v1867, 7
        %v1869 = vsub.s32 %v1128, %v1868
        %v1870 = vrot.slane %v1704, %v1869
        %v1871 = vsel %vm1133, %v1870, %v1866
        %v1872 = vlaneseq
        %v1873 = vshrl.u32 %v1872, 7
        %v1874 = vsub.s32 %v1135, %v1873
        %v1875 = vrot.slane %v1720, %v1874
        %v1876 = vsel %vm1140, %v1875, %v1871
        %v1877 = vlaneseq
        %v1878 = vshrl.u32 %v1877, 7
        %v1879 = vsub.s32 %v1142, %v1878
        %v1880 = vrot.slane %v1736, %v1879
        %v1881 = vsel %vm1147, %v1880, %v1876
        %v1882 = vlaneseq
        %v1883 = vshrl.u32 %v1882, 7
        %v1884 = vsub.s32 %v1149, %v1883
        %v1885 = vrot.slane %v1752, %v1884
        %v1886 = vsel %vm1154, %v1885, %v1881
        %v1887 = vlaneseq
        %v1888 = vshrl.u32 %v1887, 7
        %v1889 = vsub.s32 %v1156, %v1888
        %v1890 = vrot.slane %v1768, %v1889
        %v1891 = vsel %vm1161, %v1890, %v1886
        %v1892 = vlaneseq
        %v1893 = vshrl.u32 %v1892, 7
        %v1894 = vsub.s32 %v1163, %v1893
        %v1895 = vrot.slane %v1784, %v1894
        %v1896 = vsel %vm1168, %v1895, %v1891
        %v1897 = vlaneseq
        %v1898 = vshrl.u32 %v1897, 7
        %v1899 = vsub.s32 %v1170, %v1898
        %v1900 = vrot.slane %v1800, %v1899
        %v1901 = vsel %vm1175, %v1900, %v1896
        %v1902 = vlaneseq
        %v1903 = vshrl.u32 %v1902, 7
        %v1904 = vsub.s32 %v1177, %v1903
        %v1905 = vrot.slane %v1816, %v1904
        %v1906 = vsel %vm1182, %v1905, %v1901
        %v1907 = vlaneseq
        %v1908 = vshrl.u32 %v1907, 7
        %v1909 = vsub.s32 %v1184, %v1908
        %v1910 = vrot.slane %v1832, %v1909
        %v1911 = vsel %vm1189, %v1910, %v1906
        %1912 = vst [vmem:[%s246 + $0x1] sm:$0x1] %v1911
        %v1913 = vrsqrt.pop %v1467
        %v1914 = vmul.f32 %v1467, %v1913
        %vm1915 = vcmp.eq.f32.partialorder %v1467, inf
        %v1916 = vsel %vm1915, %v1467, %v1914
        %vm1917 = vcmp.eq.f32.partialorder %v1467, 0.0
        %v1918 = vand.u32 %v1467, 2147483648
        %v1919 = vsel %vm1917, %v1918, %v1916
        %v1920 = vrsqrt.pop %v1470
        %v1921 = vmul.f32 %v1470, %v1920
        %vm1922 = vcmp.eq.f32.partialorder %v1470, inf
        %v1923 = vsel %vm1922, %v1470, %v1921
        %vm1924 = vcmp.eq.f32.partialorder %v1470, 0.0
        %v1925 = vand.u32 %v1470, 2147483648
        %v1926 = vsel %vm1924, %v1925, %v1923
        %v1927 = vrsqrt.pop %v1473
        %v1928 = vmul.f32 %v1473, %v1927
        %vm1929 = vcmp.eq.f32.partialorder %v1473, inf
        %v1930 = vsel %vm1929, %v1473, %v1928
        %vm1931 = vcmp.eq.f32.partialorder %v1473, 0.0
        %v1932 = vand.u32 %v1473, 2147483648
        %v1933 = vsel %vm1931, %v1932, %v1930
        %v1934 = vrsqrt.pop %v1476
        %v1935 = vmul.f32 %v1476, %v1934
        %vm1936 = vcmp.eq.f32.partialorder %v1476, inf
        %v1937 = vsel %vm1936, %v1476, %v1935
        %vm1938 = vcmp.eq.f32.partialorder %v1476, 0.0
        %v1939 = vand.u32 %v1476, 2147483648
        %v1940 = vsel %vm1938, %v1939, %v1937
        %v1941 = vrsqrt.pop %v1479
        %v1942 = vmul.f32 %v1479, %v1941
        %vm1943 = vcmp.eq.f32.partialorder %v1479, inf
        %v1944 = vsel %vm1943, %v1479, %v1942
        %vm1945 = vcmp.eq.f32.partialorder %v1479, 0.0
        %v1946 = vand.u32 %v1479, 2147483648
        %v1947 = vsel %vm1945, %v1946, %v1944
        %v1948 = vrsqrt.pop %v1482
        %v1949 = vmul.f32 %v1482, %v1948
        %vm1950 = vcmp.eq.f32.partialorder %v1482, inf
        %v1951 = vsel %vm1950, %v1482, %v1949
        %vm1952 = vcmp.eq.f32.partialorder %v1482, 0.0
        %v1953 = vand.u32 %v1482, 2147483648
        %v1954 = vsel %vm1952, %v1953, %v1951
        %v1955 = vrsqrt.pop %v1485
        %v1956 = vmul.f32 %v1485, %v1955
        %vm1957 = vcmp.eq.f32.partialorder %v1485, inf
        %v1958 = vsel %vm1957, %v1485, %v1956
        %vm1959 = vcmp.eq.f32.partialorder %v1485, 0.0
        %v1960 = vand.u32 %v1485, 2147483648
        %v1961 = vsel %vm1959, %v1960, %v1958
        %v1962 = vrsqrt.pop %v1488
        %v1963 = vmul.f32 %v1488, %v1962
        %vm1964 = vcmp.eq.f32.partialorder %v1488, inf
        %v1965 = vsel %vm1964, %v1488, %v1963
        %vm1966 = vcmp.eq.f32.partialorder %v1488, 0.0
        %v1967 = vand.u32 %v1488, 2147483648
        %v1968 = vsel %vm1966, %v1967, %v1965
        %v1969 = vrsqrt.pop %v1491
        %v1970 = vmul.f32 %v1491, %v1969
        %vm1971 = vcmp.eq.f32.partialorder %v1491, inf
        %v1972 = vsel %vm1971, %v1491, %v1970
        %vm1973 = vcmp.eq.f32.partialorder %v1491, 0.0
        %v1974 = vand.u32 %v1491, 2147483648
        %v1975 = vsel %vm1973, %v1974, %v1972
        %v1976 = vrsqrt.pop %v1494
        %v1977 = vmul.f32 %v1494, %v1976
        %vm1978 = vcmp.eq.f32.partialorder %v1494, inf
        %v1979 = vsel %vm1978, %v1494, %v1977
        %vm1980 = vcmp.eq.f32.partialorder %v1494, 0.0
        %v1981 = vand.u32 %v1494, 2147483648
        %v1982 = vsel %vm1980, %v1981, %v1979
        %v1983 = vrsqrt.pop %v1497
        %v1984 = vmul.f32 %v1497, %v1983
        %vm1985 = vcmp.eq.f32.partialorder %v1497, inf
        %v1986 = vsel %vm1985, %v1497, %v1984
        %vm1987 = vcmp.eq.f32.partialorder %v1497, 0.0
        %v1988 = vand.u32 %v1497, 2147483648
        %v1989 = vsel %vm1987, %v1988, %v1986
        %v1990 = vrsqrt.pop %v1500
        %v1991 = vmul.f32 %v1500, %v1990
        %vm1992 = vcmp.eq.f32.partialorder %v1500, inf
        %v1993 = vsel %vm1992, %v1500, %v1991
        %vm1994 = vcmp.eq.f32.partialorder %v1500, 0.0
        %v1995 = vand.u32 %v1500, 2147483648
        %v1996 = vsel %vm1994, %v1995, %v1993
        %v1997 = vrsqrt.pop %v1503
        %v1998 = vmul.f32 %v1503, %v1997
        %vm1999 = vcmp.eq.f32.partialorder %v1503, inf
        %v2000 = vsel %vm1999, %v1503, %v1998
        %vm2001 = vcmp.eq.f32.partialorder %v1503, 0.0
        %v2002 = vand.u32 %v1503, 2147483648
        %v2003 = vsel %vm2001, %v2002, %v2000
        %v2004 = vrsqrt.pop %v1506
        %v2005 = vmul.f32 %v1506, %v2004
        %vm2006 = vcmp.eq.f32.partialorder %v1506, inf
        %v2007 = vsel %vm2006, %v1506, %v2005
        %vm2008 = vcmp.eq.f32.partialorder %v1506, 0.0
        %v2009 = vand.u32 %v1506, 2147483648
        %v2010 = vsel %vm2008, %v2009, %v2007
        %v2011 = vrsqrt.pop %v1509
        %v2012 = vmul.f32 %v1509, %v2011
        %vm2013 = vcmp.eq.f32.partialorder %v1509, inf
        %v2014 = vsel %vm2013, %v1509, %v2012
        %vm2015 = vcmp.eq.f32.partialorder %v1509, 0.0
        %v2016 = vand.u32 %v1509, 2147483648
        %v2017 = vsel %vm2015, %v2016, %v2014
        %v2018 = vrsqrt.pop %v1512
        %v2019 = vmul.f32 %v1512, %v2018
        %vm2020 = vcmp.eq.f32.partialorder %v1512, inf
        %v2021 = vsel %vm2020, %v1512, %v2019
        %vm2022 = vcmp.eq.f32.partialorder %v1512, 0.0
        %v2023 = vand.u32 %v1512, 2147483648
        %v2024 = vsel %vm2022, %v2023, %v2021
        %v2041 = vlaneseq
        %v2042 = vshrl.u32 %v2041, 7
        %v2043 = vsub.s32 %v712, %v2042
        %v2044 = vrot.slane %v1919, %v2043
        %v2045 = vlaneseq
        %v2046 = vshrl.u32 %v2045, 7
        %v2047 = vsub.s32 %v1086, %v2046
        %v2048 = vrot.slane %v1926, %v2047
        %v2049 = vsel %vm1091, %v2048, %v2044
        %v2050 = vlaneseq
        %v2051 = vshrl.u32 %v2050, 7
        %v2052 = vsub.s32 %v1093, %v2051
        %v2053 = vrot.slane %v1933, %v2052
        %v2054 = vsel %vm1098, %v2053, %v2049
        %v2055 = vlaneseq
        %v2056 = vshrl.u32 %v2055, 7
        %v2057 = vsub.s32 %v1100, %v2056
        %v2058 = vrot.slane %v1940, %v2057
        %v2059 = vsel %vm1105, %v2058, %v2054
        %v2060 = vlaneseq
        %v2061 = vshrl.u32 %v2060, 7
        %v2062 = vsub.s32 %v1107, %v2061
        %v2063 = vrot.slane %v1947, %v2062
        %v2064 = vsel %vm1112, %v2063, %v2059
        %v2065 = vlaneseq
        %v2066 = vshrl.u32 %v2065, 7
        %v2067 = vsub.s32 %v1114, %v2066
        %v2068 = vrot.slane %v1954, %v2067
        %v2069 = vsel %vm1119, %v2068, %v2064
        %v2070 = vlaneseq
        %v2071 = vshrl.u32 %v2070, 7
        %v2072 = vsub.s32 %v1121, %v2071
        %v2073 = vrot.slane %v1961, %v2072
        %v2074 = vsel %vm1126, %v2073, %v2069
        %v2075 = vlaneseq
        %v2076 = vshrl.u32 %v2075, 7
        %v2077 = vsub.s32 %v1128, %v2076
        %v2078 = vrot.slane %v1968, %v2077
        %v2079 = vsel %vm1133, %v2078, %v2074
        %v2080 = vlaneseq
        %v2081 = vshrl.u32 %v2080, 7
        %v2082 = vsub.s32 %v1135, %v2081
        %v2083 = vrot.slane %v1975, %v2082
        %v2084 = vsel %vm1140, %v2083, %v2079
        %v2085 = vlaneseq
        %v2086 = vshrl.u32 %v2085, 7
        %v2087 = vsub.s32 %v1142, %v2086
        %v2088 = vrot.slane %v1982, %v2087
        %v2089 = vsel %vm1147, %v2088, %v2084
        %v2090 = vlaneseq
        %v2091 = vshrl.u32 %v2090, 7
        %v2092 = vsub.s32 %v1149, %v2091
        %v2093 = vrot.slane %v1989, %v2092
        %v2094 = vsel %vm1154, %v2093, %v2089
        %v2095 = vlaneseq
        %v2096 = vshrl.u32 %v2095, 7
        %v2097 = vsub.s32 %v1156, %v2096
        %v2098 = vrot.slane %v1996, %v2097
        %v2099 = vsel %vm1161, %v2098, %v2094
        %v2100 = vlaneseq
        %v2101 = vshrl.u32 %v2100, 7
        %v2102 = vsub.s32 %v1163, %v2101
        %v2103 = vrot.slane %v2003, %v2102
        %v2104 = vsel %vm1168, %v2103, %v2099
        %v2105 = vlaneseq
        %v2106 = vshrl.u32 %v2105, 7
        %v2107 = vsub.s32 %v1170, %v2106
        %v2108 = vrot.slane %v2010, %v2107
        %v2109 = vsel %vm1175, %v2108, %v2104
        %v2110 = vlaneseq
        %v2111 = vshrl.u32 %v2110, 7
        %v2112 = vsub.s32 %v1177, %v2111
        %v2113 = vrot.slane %v2017, %v2112
        %v2114 = vsel %vm1182, %v2113, %v2109
        %v2115 = vlaneseq
        %v2116 = vshrl.u32 %v2115, 7
        %v2117 = vsub.s32 %v1184, %v2116
        %v2118 = vrot.slane %v2024, %v2117
        %v2119 = vsel %vm1189, %v2118, %v2114
        %2121 = vst [vmem:[%s253 + $0x1] sm:$0x1] %v2119
        %vm2122 = vcmp.eq.s32.totalorder %v712, %v1592
        %vm2123 = vcmp.eq.s32.totalorder %v713, %v1592
        %vm2124 = vcmp.eq.s32.totalorder %v712, %v1608
        %vm2125 = vcmp.eq.s32.totalorder %v713, %v1608
        %vm2126 = vcmp.eq.s32.totalorder %v712, %v1624
        %vm2127 = vcmp.eq.s32.totalorder %v713, %v1624
        %vm2128 = vcmp.eq.s32.totalorder %v712, %v1640
        %vm2129 = vcmp.eq.s32.totalorder %v713, %v1640
        %vm2130 = vcmp.eq.s32.totalorder %v712, %v1656
        %vm2131 = vcmp.eq.s32.totalorder %v713, %v1656
        %vm2132 = vcmp.eq.s32.totalorder %v712, %v1672
        %vm2133 = vcmp.eq.s32.totalorder %v713, %v1672
        %vm2134 = vcmp.eq.s32.totalorder %v712, %v1688
        %vm2135 = vcmp.eq.s32.totalorder %v713, %v1688
        %vm2136 = vcmp.eq.s32.totalorder %v712, %v1704
        %vm2137 = vcmp.eq.s32.totalorder %v713, %v1704
        %vm2138 = vcmp.eq.s32.totalorder %v712, %v1720
        %vm2139 = vcmp.eq.s32.totalorder %v713, %v1720
        %vm2140 = vcmp.eq.s32.totalorder %v712, %v1736
        %vm2141 = vcmp.eq.s32.totalorder %v713, %v1736
        %vm2142 = vcmp.eq.s32.totalorder %v712, %v1752
        %vm2143 = vcmp.eq.s32.totalorder %v713, %v1752
        %vm2144 = vcmp.eq.s32.totalorder %v712, %v1768
        %vm2145 = vcmp.eq.s32.totalorder %v713, %v1768
        %vm2146 = vcmp.eq.s32.totalorder %v712, %v1784
        %vm2147 = vcmp.eq.s32.totalorder %v713, %v1784
        %vm2148 = vcmp.eq.s32.totalorder %v712, %v1800
        %vm2149 = vcmp.eq.s32.totalorder %v713, %v1800
        %vm2150 = vcmp.eq.s32.totalorder %v712, %v1816
        %vm2151 = vcmp.eq.s32.totalorder %v713, %v1816
        %vm2152 = vcmp.eq.s32.totalorder %v712, %v1832
        %vm2153 = vcmp.eq.s32.totalorder %v713, %v1832
        %v2154 = vsel %vm2122, 3.4e+38, %v1433
        %v2155 = vsel %vm2123, 3.4e+38, %v1434
        %v2156 = vsel %vm2124, 3.4e+38, %v1435
        %v2157 = vsel %vm2125, 3.4e+38, %v1436
        %v2158 = vsel %vm2126, 3.4e+38, %v1437
        %v2159 = vsel %vm2127, 3.4e+38, %v1438
        %v2160 = vsel %vm2128, 3.4e+38, %v1439
        %v2161 = vsel %vm2129, 3.4e+38, %v1440
        %v2162 = vsel %vm2130, 3.4e+38, %v1441
        %v2163 = vsel %vm2131, 3.4e+38, %v1442
        %v2164 = vsel %vm2132, 3.4e+38, %v1443
        %v2165 = vsel %vm2133, 3.4e+38, %v1444
        %v2166 = vsel %vm2134, 3.4e+38, %v1445
        %v2167 = vsel %vm2135, 3.4e+38, %v1446
        %v2168 = vsel %vm2136, 3.4e+38, %v1447
        %v2169 = vsel %vm2137, 3.4e+38, %v1448
        %v2170 = vsel %vm2138, 3.4e+38, %v1449
        %v2171 = vsel %vm2139, 3.4e+38, %v1450
        %v2172 = vsel %vm2140, 3.4e+38, %v1451
        %v2173 = vsel %vm2141, 3.4e+38, %v1452
        %v2174 = vsel %vm2142, 3.4e+38, %v1453
        %v2175 = vsel %vm2143, 3.4e+38, %v1454
        %v2176 = vsel %vm2144, 3.4e+38, %v1455
        %v2177 = vsel %vm2145, 3.4e+38, %v1456
        %v2178 = vsel %vm2146, 3.4e+38, %v1457
        %v2179 = vsel %vm2147, 3.4e+38, %v1458
        %v2180 = vsel %vm2148, 3.4e+38, %v1459
        %v2181 = vsel %vm2149, 3.4e+38, %v1460
        %v2182 = vsel %vm2150, 3.4e+38, %v1461
        %v2183 = vsel %vm2151, 3.4e+38, %v1462
        %v2184 = vsel %vm2152, 3.4e+38, %v1463
        %v2185 = vsel %vm2153, 3.4e+38, %v1464
        %v2186 = vmin.f32 %v2154, %v2155
        %2187 = vmin.xlane.f32.xlu0 %v2186
        %v2188 = vpop.xlane.xlu0 %2187
        %v2189 = vmin.f32 %v2156, %v2157
        %2190 = vmin.xlane.f32.xlu0 %v2189
        %v2191 = vpop.xlane.xlu0 %2190
        %v2192 = vmin.f32 %v2158, %v2159
        %2193 = vmin.xlane.f32.xlu0 %v2192
        %v2194 = vpop.xlane.xlu0 %2193
        %v2195 = vmin.f32 %v2160, %v2161
        %2196 = vmin.xlane.f32.xlu0 %v2195
        %v2197 = vpop.xlane.xlu0 %2196
        %v2198 = vmin.f32 %v2162, %v2163
        %2199 = vmin.xlane.f32.xlu0 %v2198
        %v2200 = vpop.xlane.xlu0 %2199
        %v2201 = vmin.f32 %v2164, %v2165
        %2202 = vmin.xlane.f32.xlu0 %v2201
        %v2203 = vpop.xlane.xlu0 %2202
        %v2204 = vmin.f32 %v2166, %v2167
        %2205 = vmin.xlane.f32.xlu0 %v2204
        %v2206 = vpop.xlane.xlu0 %2205
        %v2207 = vmin.f32 %v2168, %v2169
        %2208 = vmin.xlane.f32.xlu0 %v2207
        %v2209 = vpop.xlane.xlu0 %2208
        %v2210 = vmin.f32 %v2170, %v2171
        %2211 = vmin.xlane.f32.xlu0 %v2210
        %v2212 = vpop.xlane.xlu0 %2211
        %v2213 = vmin.f32 %v2172, %v2173
        %2214 = vmin.xlane.f32.xlu0 %v2213
        %v2215 = vpop.xlane.xlu0 %2214
        %v2216 = vmin.f32 %v2174, %v2175
        %2217 = vmin.xlane.f32.xlu0 %v2216
        %v2218 = vpop.xlane.xlu0 %2217
        %v2219 = vmin.f32 %v2176, %v2177
        %2220 = vmin.xlane.f32.xlu0 %v2219
        %v2221 = vpop.xlane.xlu0 %2220
        %v2222 = vmin.f32 %v2178, %v2179
        %2223 = vmin.xlane.f32.xlu0 %v2222
        %v2224 = vpop.xlane.xlu0 %2223
        %v2225 = vmin.f32 %v2180, %v2181
        %2226 = vmin.xlane.f32.xlu0 %v2225
        %v2227 = vpop.xlane.xlu0 %2226
        %v2228 = vmin.f32 %v2182, %v2183
        %2229 = vmin.xlane.f32.xlu0 %v2228
        %v2230 = vpop.xlane.xlu0 %2229
        %v2231 = vmin.f32 %v2184, %v2185
        %2232 = vmin.xlane.f32.xlu0 %v2231
        %v2233 = vpop.xlane.xlu0 %2232
        %vm2234 = vcmp.eq.f32.partialorder %v2154, %v2188
        %vm2235 = vcmp.eq.f32.partialorder %v2155, %v2188
        %vm2236 = vcmp.eq.f32.partialorder %v2156, %v2191
        %vm2237 = vcmp.eq.f32.partialorder %v2157, %v2191
        %vm2238 = vcmp.eq.f32.partialorder %v2158, %v2194
        %vm2239 = vcmp.eq.f32.partialorder %v2159, %v2194
        %vm2240 = vcmp.eq.f32.partialorder %v2160, %v2197
        %vm2241 = vcmp.eq.f32.partialorder %v2161, %v2197
        %vm2242 = vcmp.eq.f32.partialorder %v2162, %v2200
        %vm2243 = vcmp.eq.f32.partialorder %v2163, %v2200
        %vm2244 = vcmp.eq.f32.partialorder %v2164, %v2203
        %vm2245 = vcmp.eq.f32.partialorder %v2165, %v2203
        %vm2246 = vcmp.eq.f32.partialorder %v2166, %v2206
        %vm2247 = vcmp.eq.f32.partialorder %v2167, %v2206
        %vm2248 = vcmp.eq.f32.partialorder %v2168, %v2209
        %vm2249 = vcmp.eq.f32.partialorder %v2169, %v2209
        %vm2250 = vcmp.eq.f32.partialorder %v2170, %v2212
        %vm2251 = vcmp.eq.f32.partialorder %v2171, %v2212
        %vm2252 = vcmp.eq.f32.partialorder %v2172, %v2215
        %vm2253 = vcmp.eq.f32.partialorder %v2173, %v2215
        %vm2254 = vcmp.eq.f32.partialorder %v2174, %v2218
        %vm2255 = vcmp.eq.f32.partialorder %v2175, %v2218
        %vm2256 = vcmp.eq.f32.partialorder %v2176, %v2221
        %vm2257 = vcmp.eq.f32.partialorder %v2177, %v2221
        %vm2258 = vcmp.eq.f32.partialorder %v2178, %v2224
        %vm2259 = vcmp.eq.f32.partialorder %v2179, %v2224
        %vm2260 = vcmp.eq.f32.partialorder %v2180, %v2227
        %vm2261 = vcmp.eq.f32.partialorder %v2181, %v2227
        %vm2262 = vcmp.eq.f32.partialorder %v2182, %v2230
        %vm2263 = vcmp.eq.f32.partialorder %v2183, %v2230
        %vm2264 = vcmp.eq.f32.partialorder %v2184, %v2233
        %vm2265 = vcmp.eq.f32.partialorder %v2185, %v2233
        %v2266 = vsel %vm2234, %v712, 256
        %v2267 = vsel %vm2235, %v713, 256
        %v2268 = vsel %vm2236, %v712, 256
        %v2269 = vsel %vm2237, %v713, 256
        %v2270 = vsel %vm2238, %v712, 256
        %v2271 = vsel %vm2239, %v713, 256
        %v2272 = vsel %vm2240, %v712, 256
        %v2273 = vsel %vm2241, %v713, 256
        %v2274 = vsel %vm2242, %v712, 256
        %v2275 = vsel %vm2243, %v713, 256
        %v2276 = vsel %vm2244, %v712, 256
        %v2277 = vsel %vm2245, %v713, 256
        %v2278 = vsel %vm2246, %v712, 256
        %v2279 = vsel %vm2247, %v713, 256
        %v2280 = vsel %vm2248, %v712, 256
        %v2281 = vsel %vm2249, %v713, 256
        %v2282 = vsel %vm2250, %v712, 256
        %v2283 = vsel %vm2251, %v713, 256
        %v2284 = vsel %vm2252, %v712, 256
        %v2285 = vsel %vm2253, %v713, 256
        %v2286 = vsel %vm2254, %v712, 256
        %v2287 = vsel %vm2255, %v713, 256
        %v2288 = vsel %vm2256, %v712, 256
        %v2289 = vsel %vm2257, %v713, 256
        %v2290 = vsel %vm2258, %v712, 256
        %v2291 = vsel %vm2259, %v713, 256
        %v2292 = vsel %vm2260, %v712, 256
        %v2293 = vsel %vm2261, %v713, 256
        %v2294 = vsel %vm2262, %v712, 256
        %v2295 = vsel %vm2263, %v713, 256
        %v2296 = vsel %vm2264, %v712, 256
        %v2297 = vsel %vm2265, %v713, 256
        %vm2298 = vcmp.lt.s32.totalorder %v2266, %v2267
        %v2299 = vsel %vm2298, %v2266, %v2267
        %v2300 = vand.u32 %v2299, 65535
        %v2301 = vshra.s32 %v2299, 16
        %v2302 = vcvt.s32.f32 %v2300
        %v2303 = vcvt.s32.f32 %v2301
        %2304 = vmin.xlane.f32.xlu0 %v2303
        %v2305 = vpop.xlane.xlu0 %2304
        %vm2306 = vcmp.eq.f32.partialorder %v2303, %v2305
        %v2307 = vsel %vm2306, %v2302, inf
        %2308 = vmin.xlane.f32.xlu0 %v2307
        %v2309 = vpop.xlane.xlu0 %2308
        %v2310 = vcvt.f32.s32 %v2309
        %v2311 = vcvt.f32.s32 %v2305
        %v2312 = vshll.u32 %v2311, 16
        %v2313 = vadd.s32 %v2312, %v2310
        %vm2314 = vcmp.lt.s32.totalorder %v2268, %v2269
        %v2315 = vsel %vm2314, %v2268, %v2269
        %v2316 = vand.u32 %v2315, 65535
        %v2317 = vshra.s32 %v2315, 16
        %v2318 = vcvt.s32.f32 %v2316
        %v2319 = vcvt.s32.f32 %v2317
        %2320 = vmin.xlane.f32.xlu0 %v2319
        %v2321 = vpop.xlane.xlu0 %2320
        %vm2322 = vcmp.eq.f32.partialorder %v2319, %v2321
        %v2323 = vsel %vm2322, %v2318, inf
        %2324 = vmin.xlane.f32.xlu0 %v2323
        %v2325 = vpop.xlane.xlu0 %2324
        %v2326 = vcvt.f32.s32 %v2325
        %v2327 = vcvt.f32.s32 %v2321
        %v2328 = vshll.u32 %v2327, 16
        %v2329 = vadd.s32 %v2328, %v2326
        %vm2330 = vcmp.lt.s32.totalorder %v2270, %v2271
        %v2331 = vsel %vm2330, %v2270, %v2271
        %v2332 = vand.u32 %v2331, 65535
        %v2333 = vshra.s32 %v2331, 16
        %v2334 = vcvt.s32.f32 %v2332
        %v2335 = vcvt.s32.f32 %v2333
        %2336 = vmin.xlane.f32.xlu0 %v2335
        %v2337 = vpop.xlane.xlu0 %2336
        %vm2338 = vcmp.eq.f32.partialorder %v2335, %v2337
        %v2339 = vsel %vm2338, %v2334, inf
        %2340 = vmin.xlane.f32.xlu0 %v2339
        %v2341 = vpop.xlane.xlu0 %2340
        %v2342 = vcvt.f32.s32 %v2341
        %v2343 = vcvt.f32.s32 %v2337
        %v2344 = vshll.u32 %v2343, 16
        %v2345 = vadd.s32 %v2344, %v2342
        %vm2346 = vcmp.lt.s32.totalorder %v2272, %v2273
        %v2347 = vsel %vm2346, %v2272, %v2273
        %v2348 = vand.u32 %v2347, 65535
        %v2349 = vshra.s32 %v2347, 16
        %v2350 = vcvt.s32.f32 %v2348
        %v2351 = vcvt.s32.f32 %v2349
        %2352 = vmin.xlane.f32.xlu0 %v2351
        %v2353 = vpop.xlane.xlu0 %2352
        %vm2354 = vcmp.eq.f32.partialorder %v2351, %v2353
        %v2355 = vsel %vm2354, %v2350, inf
        %2356 = vmin.xlane.f32.xlu0 %v2355
        %v2357 = vpop.xlane.xlu0 %2356
        %v2358 = vcvt.f32.s32 %v2357
        %v2359 = vcvt.f32.s32 %v2353
        %v2360 = vshll.u32 %v2359, 16
        %v2361 = vadd.s32 %v2360, %v2358
        %vm2362 = vcmp.lt.s32.totalorder %v2274, %v2275
        %v2363 = vsel %vm2362, %v2274, %v2275
        %v2364 = vand.u32 %v2363, 65535
        %v2365 = vshra.s32 %v2363, 16
        %v2366 = vcvt.s32.f32 %v2364
        %v2367 = vcvt.s32.f32 %v2365
        %2368 = vmin.xlane.f32.xlu0 %v2367
        %v2369 = vpop.xlane.xlu0 %2368
        %vm2370 = vcmp.eq.f32.partialorder %v2367, %v2369
        %v2371 = vsel %vm2370, %v2366, inf
        %2372 = vmin.xlane.f32.xlu0 %v2371
        %v2373 = vpop.xlane.xlu0 %2372
        %v2374 = vcvt.f32.s32 %v2373
        %v2375 = vcvt.f32.s32 %v2369
        %v2376 = vshll.u32 %v2375, 16
        %v2377 = vadd.s32 %v2376, %v2374
        %vm2378 = vcmp.lt.s32.totalorder %v2276, %v2277
        %v2379 = vsel %vm2378, %v2276, %v2277
        %v2380 = vand.u32 %v2379, 65535
        %v2381 = vshra.s32 %v2379, 16
        %v2382 = vcvt.s32.f32 %v2380
        %v2383 = vcvt.s32.f32 %v2381
        %2384 = vmin.xlane.f32.xlu0 %v2383
        %v2385 = vpop.xlane.xlu0 %2384
        %vm2386 = vcmp.eq.f32.partialorder %v2383, %v2385
        %v2387 = vsel %vm2386, %v2382, inf
        %2388 = vmin.xlane.f32.xlu0 %v2387
        %v2389 = vpop.xlane.xlu0 %2388
        %v2390 = vcvt.f32.s32 %v2389
        %v2391 = vcvt.f32.s32 %v2385
        %v2392 = vshll.u32 %v2391, 16
        %v2393 = vadd.s32 %v2392, %v2390
        %vm2394 = vcmp.lt.s32.totalorder %v2278, %v2279
        %v2395 = vsel %vm2394, %v2278, %v2279
        %v2396 = vand.u32 %v2395, 65535
        %v2397 = vshra.s32 %v2395, 16
        %v2398 = vcvt.s32.f32 %v2396
        %v2399 = vcvt.s32.f32 %v2397
        %2400 = vmin.xlane.f32.xlu0 %v2399
        %v2401 = vpop.xlane.xlu0 %2400
        %vm2402 = vcmp.eq.f32.partialorder %v2399, %v2401
        %v2403 = vsel %vm2402, %v2398, inf
        %2404 = vmin.xlane.f32.xlu0 %v2403
        %v2405 = vpop.xlane.xlu0 %2404
        %v2406 = vcvt.f32.s32 %v2405
        %v2407 = vcvt.f32.s32 %v2401
        %v2408 = vshll.u32 %v2407, 16
        %v2409 = vadd.s32 %v2408, %v2406
        %vm2410 = vcmp.lt.s32.totalorder %v2280, %v2281
        %v2411 = vsel %vm2410, %v2280, %v2281
        %v2412 = vand.u32 %v2411, 65535
        %v2413 = vshra.s32 %v2411, 16
        %v2414 = vcvt.s32.f32 %v2412
        %v2415 = vcvt.s32.f32 %v2413
        %2416 = vmin.xlane.f32.xlu0 %v2415
        %v2417 = vpop.xlane.xlu0 %2416
        %vm2418 = vcmp.eq.f32.partialorder %v2415, %v2417
        %v2419 = vsel %vm2418, %v2414, inf
        %2420 = vmin.xlane.f32.xlu0 %v2419
        %v2421 = vpop.xlane.xlu0 %2420
        %v2422 = vcvt.f32.s32 %v2421
        %v2423 = vcvt.f32.s32 %v2417
        %v2424 = vshll.u32 %v2423, 16
        %v2425 = vadd.s32 %v2424, %v2422
        %vm2426 = vcmp.lt.s32.totalorder %v2282, %v2283
        %v2427 = vsel %vm2426, %v2282, %v2283
        %v2428 = vand.u32 %v2427, 65535
        %v2429 = vshra.s32 %v2427, 16
        %v2430 = vcvt.s32.f32 %v2428
        %v2431 = vcvt.s32.f32 %v2429
        %2432 = vmin.xlane.f32.xlu0 %v2431
        %v2433 = vpop.xlane.xlu0 %2432
        %vm2434 = vcmp.eq.f32.partialorder %v2431, %v2433
        %v2435 = vsel %vm2434, %v2430, inf
        %2436 = vmin.xlane.f32.xlu0 %v2435
        %v2437 = vpop.xlane.xlu0 %2436
        %v2438 = vcvt.f32.s32 %v2437
        %v2439 = vcvt.f32.s32 %v2433
        %v2440 = vshll.u32 %v2439, 16
        %v2441 = vadd.s32 %v2440, %v2438
        %vm2442 = vcmp.lt.s32.totalorder %v2284, %v2285
        %v2443 = vsel %vm2442, %v2284, %v2285
        %v2444 = vand.u32 %v2443, 65535
        %v2445 = vshra.s32 %v2443, 16
        %v2446 = vcvt.s32.f32 %v2444
        %v2447 = vcvt.s32.f32 %v2445
        %2448 = vmin.xlane.f32.xlu0 %v2447
        %v2449 = vpop.xlane.xlu0 %2448
        %vm2450 = vcmp.eq.f32.partialorder %v2447, %v2449
        %v2451 = vsel %vm2450, %v2446, inf
        %2452 = vmin.xlane.f32.xlu0 %v2451
        %v2453 = vpop.xlane.xlu0 %2452
        %v2454 = vcvt.f32.s32 %v2453
        %v2455 = vcvt.f32.s32 %v2449
        %v2456 = vshll.u32 %v2455, 16
        %v2457 = vadd.s32 %v2456, %v2454
        %vm2458 = vcmp.lt.s32.totalorder %v2286, %v2287
        %v2459 = vsel %vm2458, %v2286, %v2287
        %v2460 = vand.u32 %v2459, 65535
        %v2461 = vshra.s32 %v2459, 16
        %v2462 = vcvt.s32.f32 %v2460
        %v2463 = vcvt.s32.f32 %v2461
        %2464 = vmin.xlane.f32.xlu0 %v2463
        %v2465 = vpop.xlane.xlu0 %2464
        %vm2466 = vcmp.eq.f32.partialorder %v2463, %v2465
        %v2467 = vsel %vm2466, %v2462, inf
        %2468 = vmin.xlane.f32.xlu0 %v2467
        %v2469 = vpop.xlane.xlu0 %2468
        %v2470 = vcvt.f32.s32 %v2469
        %v2471 = vcvt.f32.s32 %v2465
        %v2472 = vshll.u32 %v2471, 16
        %v2473 = vadd.s32 %v2472, %v2470
        %vm2474 = vcmp.lt.s32.totalorder %v2288, %v2289
        %v2475 = vsel %vm2474, %v2288, %v2289
        %v2476 = vand.u32 %v2475, 65535
        %v2477 = vshra.s32 %v2475, 16
        %v2478 = vcvt.s32.f32 %v2476
        %v2479 = vcvt.s32.f32 %v2477
        %2480 = vmin.xlane.f32.xlu0 %v2479
        %v2481 = vpop.xlane.xlu0 %2480
        %vm2482 = vcmp.eq.f32.partialorder %v2479, %v2481
        %v2483 = vsel %vm2482, %v2478, inf
        %2484 = vmin.xlane.f32.xlu0 %v2483
        %v2485 = vpop.xlane.xlu0 %2484
        %v2486 = vcvt.f32.s32 %v2485
        %v2487 = vcvt.f32.s32 %v2481
        %v2488 = vshll.u32 %v2487, 16
        %v2489 = vadd.s32 %v2488, %v2486
        %vm2490 = vcmp.lt.s32.totalorder %v2290, %v2291
        %v2491 = vsel %vm2490, %v2290, %v2291
        %v2492 = vand.u32 %v2491, 65535
        %v2493 = vshra.s32 %v2491, 16
        %v2494 = vcvt.s32.f32 %v2492
        %v2495 = vcvt.s32.f32 %v2493
        %2496 = vmin.xlane.f32.xlu0 %v2495
        %v2497 = vpop.xlane.xlu0 %2496
        %vm2498 = vcmp.eq.f32.partialorder %v2495, %v2497
        %v2499 = vsel %vm2498, %v2494, inf
        %2500 = vmin.xlane.f32.xlu0 %v2499
        %v2501 = vpop.xlane.xlu0 %2500
        %v2502 = vcvt.f32.s32 %v2501
        %v2503 = vcvt.f32.s32 %v2497
        %v2504 = vshll.u32 %v2503, 16
        %v2505 = vadd.s32 %v2504, %v2502
        %vm2506 = vcmp.lt.s32.totalorder %v2292, %v2293
        %v2507 = vsel %vm2506, %v2292, %v2293
        %v2508 = vand.u32 %v2507, 65535
        %v2509 = vshra.s32 %v2507, 16
        %v2510 = vcvt.s32.f32 %v2508
        %v2511 = vcvt.s32.f32 %v2509
        %2512 = vmin.xlane.f32.xlu0 %v2511
        %v2513 = vpop.xlane.xlu0 %2512
        %vm2514 = vcmp.eq.f32.partialorder %v2511, %v2513
        %v2515 = vsel %vm2514, %v2510, inf
        %2516 = vmin.xlane.f32.xlu0 %v2515
        %v2517 = vpop.xlane.xlu0 %2516
        %v2518 = vcvt.f32.s32 %v2517
        %v2519 = vcvt.f32.s32 %v2513
        %v2520 = vshll.u32 %v2519, 16
        %v2521 = vadd.s32 %v2520, %v2518
        %vm2522 = vcmp.lt.s32.totalorder %v2294, %v2295
        %v2523 = vsel %vm2522, %v2294, %v2295
        %v2524 = vand.u32 %v2523, 65535
        %v2525 = vshra.s32 %v2523, 16
        %v2526 = vcvt.s32.f32 %v2524
        %v2527 = vcvt.s32.f32 %v2525
        %2528 = vmin.xlane.f32.xlu0 %v2527
        %v2529 = vpop.xlane.xlu0 %2528
        %vm2530 = vcmp.eq.f32.partialorder %v2527, %v2529
        %v2531 = vsel %vm2530, %v2526, inf
        %2532 = vmin.xlane.f32.xlu0 %v2531
        %v2533 = vpop.xlane.xlu0 %2532
        %v2534 = vcvt.f32.s32 %v2533
        %v2535 = vcvt.f32.s32 %v2529
        %v2536 = vshll.u32 %v2535, 16
        %v2537 = vadd.s32 %v2536, %v2534
        %vm2538 = vcmp.lt.s32.totalorder %v2296, %v2297
        %v2539 = vsel %vm2538, %v2296, %v2297
        %v2540 = vand.u32 %v2539, 65535
        %v2541 = vshra.s32 %v2539, 16
        %v2542 = vcvt.s32.f32 %v2540
        %v2543 = vcvt.s32.f32 %v2541
        %2544 = vmin.xlane.f32.xlu0 %v2543
        %v2545 = vpop.xlane.xlu0 %2544
        %vm2546 = vcmp.eq.f32.partialorder %v2543, %v2545
        %v2547 = vsel %vm2546, %v2542, inf
        %2548 = vmin.xlane.f32.xlu0 %v2547
        %v2549 = vpop.xlane.xlu0 %2548
        %v2550 = vcvt.f32.s32 %v2549
        %v2551 = vcvt.f32.s32 %v2545
        %v2552 = vshll.u32 %v2551, 16
        %v2553 = vadd.s32 %v2552, %v2550
        %v2554 = vlaneseq
        %v2555 = vshrl.u32 %v2554, 7
        %v2556 = vsub.s32 %v712, %v2555
        %v2557 = vrot.slane %v2313, %v2556
        %v2558 = vlaneseq
        %v2559 = vshrl.u32 %v2558, 7
        %v2560 = vsub.s32 %v1086, %v2559
        %v2561 = vrot.slane %v2329, %v2560
        %v2562 = vsel %vm1091, %v2561, %v2557
        %v2563 = vlaneseq
        %v2564 = vshrl.u32 %v2563, 7
        %v2565 = vsub.s32 %v1093, %v2564
        %v2566 = vrot.slane %v2345, %v2565
        %v2567 = vsel %vm1098, %v2566, %v2562
        %v2568 = vlaneseq
        %v2569 = vshrl.u32 %v2568, 7
        %v2570 = vsub.s32 %v1100, %v2569
        %v2571 = vrot.slane %v2361, %v2570
        %v2572 = vsel %vm1105, %v2571, %v2567
        %v2573 = vlaneseq
        %v2574 = vshrl.u32 %v2573, 7
        %v2575 = vsub.s32 %v1107, %v2574
        %v2576 = vrot.slane %v2377, %v2575
        %v2577 = vsel %vm1112, %v2576, %v2572
        %v2578 = vlaneseq
        %v2579 = vshrl.u32 %v2578, 7
        %v2580 = vsub.s32 %v1114, %v2579
        %v2581 = vrot.slane %v2393, %v2580
        %v2582 = vsel %vm1119, %v2581, %v2577
        %v2583 = vlaneseq
        %v2584 = vshrl.u32 %v2583, 7
        %v2585 = vsub.s32 %v1121, %v2584
        %v2586 = vrot.slane %v2409, %v2585
        %v2587 = vsel %vm1126, %v2586, %v2582
        %v2588 = vlaneseq
        %v2589 = vshrl.u32 %v2588, 7
        %v2590 = vsub.s32 %v1128, %v2589
        %v2591 = vrot.slane %v2425, %v2590
        %v2592 = vsel %vm1133, %v2591, %v2587
        %v2593 = vlaneseq
        %v2594 = vshrl.u32 %v2593, 7
        %v2595 = vsub.s32 %v1135, %v2594
        %v2596 = vrot.slane %v2441, %v2595
        %v2597 = vsel %vm1140, %v2596, %v2592
        %v2598 = vlaneseq
        %v2599 = vshrl.u32 %v2598, 7
        %v2600 = vsub.s32 %v1142, %v2599
        %v2601 = vrot.slane %v2457, %v2600
        %v2602 = vsel %vm1147, %v2601, %v2597
        %v2603 = vlaneseq
        %v2604 = vshrl.u32 %v2603, 7
        %v2605 = vsub.s32 %v1149, %v2604
        %v2606 = vrot.slane %v2473, %v2605
        %v2607 = vsel %vm1154, %v2606, %v2602
        %v2608 = vlaneseq
        %v2609 = vshrl.u32 %v2608, 7
        %v2610 = vsub.s32 %v1156, %v2609
        %v2611 = vrot.slane %v2489, %v2610
        %v2612 = vsel %vm1161, %v2611, %v2607
        %v2613 = vlaneseq
        %v2614 = vshrl.u32 %v2613, 7
        %v2615 = vsub.s32 %v1163, %v2614
        %v2616 = vrot.slane %v2505, %v2615
        %v2617 = vsel %vm1168, %v2616, %v2612
        %v2618 = vlaneseq
        %v2619 = vshrl.u32 %v2618, 7
        %v2620 = vsub.s32 %v1170, %v2619
        %v2621 = vrot.slane %v2521, %v2620
        %v2622 = vsel %vm1175, %v2621, %v2617
        %v2623 = vlaneseq
        %v2624 = vshrl.u32 %v2623, 7
        %v2625 = vsub.s32 %v1177, %v2624
        %v2626 = vrot.slane %v2537, %v2625
        %v2627 = vsel %vm1182, %v2626, %v2622
        %v2628 = vlaneseq
        %v2629 = vshrl.u32 %v2628, 7
        %v2630 = vsub.s32 %v1184, %v2629
        %v2631 = vrot.slane %v2553, %v2630
        %v2632 = vsel %vm1189, %v2631, %v2627
        %2633 = vst [vmem:[%s246 + $0x2] sm:$0x1] %v2632
        %v2634 = vrsqrt.pop %v2188
        %v2635 = vmul.f32 %v2188, %v2634
        %vm2636 = vcmp.eq.f32.partialorder %v2188, inf
        %v2637 = vsel %vm2636, %v2188, %v2635
        %vm2638 = vcmp.eq.f32.partialorder %v2188, 0.0
        %v2639 = vand.u32 %v2188, 2147483648
        %v2640 = vsel %vm2638, %v2639, %v2637
        %v2641 = vrsqrt.pop %v2191
        %v2642 = vmul.f32 %v2191, %v2641
        %vm2643 = vcmp.eq.f32.partialorder %v2191, inf
        %v2644 = vsel %vm2643, %v2191, %v2642
        %vm2645 = vcmp.eq.f32.partialorder %v2191, 0.0
        %v2646 = vand.u32 %v2191, 2147483648
        %v2647 = vsel %vm2645, %v2646, %v2644
        %v2648 = vrsqrt.pop %v2194
        %v2649 = vmul.f32 %v2194, %v2648
        %vm2650 = vcmp.eq.f32.partialorder %v2194, inf
        %v2651 = vsel %vm2650, %v2194, %v2649
        %vm2652 = vcmp.eq.f32.partialorder %v2194, 0.0
        %v2653 = vand.u32 %v2194, 2147483648
        %v2654 = vsel %vm2652, %v2653, %v2651
        %v2655 = vrsqrt.pop %v2197
        %v2656 = vmul.f32 %v2197, %v2655
        %vm2657 = vcmp.eq.f32.partialorder %v2197, inf
        %v2658 = vsel %vm2657, %v2197, %v2656
        %vm2659 = vcmp.eq.f32.partialorder %v2197, 0.0
        %v2660 = vand.u32 %v2197, 2147483648
        %v2661 = vsel %vm2659, %v2660, %v2658
        %v2662 = vrsqrt.pop %v2200
        %v2663 = vmul.f32 %v2200, %v2662
        %vm2664 = vcmp.eq.f32.partialorder %v2200, inf
        %v2665 = vsel %vm2664, %v2200, %v2663
        %vm2666 = vcmp.eq.f32.partialorder %v2200, 0.0
        %v2667 = vand.u32 %v2200, 2147483648
        %v2668 = vsel %vm2666, %v2667, %v2665
        %v2669 = vrsqrt.pop %v2203
        %v2670 = vmul.f32 %v2203, %v2669
        %vm2671 = vcmp.eq.f32.partialorder %v2203, inf
        %v2672 = vsel %vm2671, %v2203, %v2670
        %vm2673 = vcmp.eq.f32.partialorder %v2203, 0.0
        %v2674 = vand.u32 %v2203, 2147483648
        %v2675 = vsel %vm2673, %v2674, %v2672
        %v2676 = vrsqrt.pop %v2206
        %v2677 = vmul.f32 %v2206, %v2676
        %vm2678 = vcmp.eq.f32.partialorder %v2206, inf
        %v2679 = vsel %vm2678, %v2206, %v2677
        %vm2680 = vcmp.eq.f32.partialorder %v2206, 0.0
        %v2681 = vand.u32 %v2206, 2147483648
        %v2682 = vsel %vm2680, %v2681, %v2679
        %v2683 = vrsqrt.pop %v2209
        %v2684 = vmul.f32 %v2209, %v2683
        %vm2685 = vcmp.eq.f32.partialorder %v2209, inf
        %v2686 = vsel %vm2685, %v2209, %v2684
        %vm2687 = vcmp.eq.f32.partialorder %v2209, 0.0
        %v2688 = vand.u32 %v2209, 2147483648
        %v2689 = vsel %vm2687, %v2688, %v2686
        %v2690 = vrsqrt.pop %v2212
        %v2691 = vmul.f32 %v2212, %v2690
        %vm2692 = vcmp.eq.f32.partialorder %v2212, inf
        %v2693 = vsel %vm2692, %v2212, %v2691
        %vm2694 = vcmp.eq.f32.partialorder %v2212, 0.0
        %v2695 = vand.u32 %v2212, 2147483648
        %v2696 = vsel %vm2694, %v2695, %v2693
        %v2697 = vrsqrt.pop %v2215
        %v2698 = vmul.f32 %v2215, %v2697
        %vm2699 = vcmp.eq.f32.partialorder %v2215, inf
        %v2700 = vsel %vm2699, %v2215, %v2698
        %vm2701 = vcmp.eq.f32.partialorder %v2215, 0.0
        %v2702 = vand.u32 %v2215, 2147483648
        %v2703 = vsel %vm2701, %v2702, %v2700
        %v2704 = vrsqrt.pop %v2218
        %v2705 = vmul.f32 %v2218, %v2704
        %vm2706 = vcmp.eq.f32.partialorder %v2218, inf
        %v2707 = vsel %vm2706, %v2218, %v2705
        %vm2708 = vcmp.eq.f32.partialorder %v2218, 0.0
        %v2709 = vand.u32 %v2218, 2147483648
        %v2710 = vsel %vm2708, %v2709, %v2707
        %v2711 = vrsqrt.pop %v2221
        %v2712 = vmul.f32 %v2221, %v2711
        %vm2713 = vcmp.eq.f32.partialorder %v2221, inf
        %v2714 = vsel %vm2713, %v2221, %v2712
        %vm2715 = vcmp.eq.f32.partialorder %v2221, 0.0
        %v2716 = vand.u32 %v2221, 2147483648
        %v2717 = vsel %vm2715, %v2716, %v2714
        %v2718 = vrsqrt.pop %v2224
        %v2719 = vmul.f32 %v2224, %v2718
        %vm2720 = vcmp.eq.f32.partialorder %v2224, inf
        %v2721 = vsel %vm2720, %v2224, %v2719
        %vm2722 = vcmp.eq.f32.partialorder %v2224, 0.0
        %v2723 = vand.u32 %v2224, 2147483648
        %v2724 = vsel %vm2722, %v2723, %v2721
        %v2725 = vrsqrt.pop %v2227
        %v2726 = vmul.f32 %v2227, %v2725
        %vm2727 = vcmp.eq.f32.partialorder %v2227, inf
        %v2728 = vsel %vm2727, %v2227, %v2726
        %vm2729 = vcmp.eq.f32.partialorder %v2227, 0.0
        %v2730 = vand.u32 %v2227, 2147483648
        %v2731 = vsel %vm2729, %v2730, %v2728
        %v2732 = vrsqrt.pop %v2230
        %v2733 = vmul.f32 %v2230, %v2732
        %vm2734 = vcmp.eq.f32.partialorder %v2230, inf
        %v2735 = vsel %vm2734, %v2230, %v2733
        %vm2736 = vcmp.eq.f32.partialorder %v2230, 0.0
        %v2737 = vand.u32 %v2230, 2147483648
        %v2738 = vsel %vm2736, %v2737, %v2735
        %v2739 = vrsqrt.pop %v2233
        %v2740 = vmul.f32 %v2233, %v2739
        %vm2741 = vcmp.eq.f32.partialorder %v2233, inf
        %v2742 = vsel %vm2741, %v2233, %v2740
        %vm2743 = vcmp.eq.f32.partialorder %v2233, 0.0
        %v2744 = vand.u32 %v2233, 2147483648
        %v2745 = vsel %vm2743, %v2744, %v2742
        %v2762 = vlaneseq
        %v2763 = vshrl.u32 %v2762, 7
        %v2764 = vsub.s32 %v712, %v2763
        %v2765 = vrot.slane %v2640, %v2764
        %v2766 = vlaneseq
        %v2767 = vshrl.u32 %v2766, 7
        %v2768 = vsub.s32 %v1086, %v2767
        %v2769 = vrot.slane %v2647, %v2768
        %v2770 = vsel %vm1091, %v2769, %v2765
        %v2771 = vlaneseq
        %v2772 = vshrl.u32 %v2771, 7
        %v2773 = vsub.s32 %v1093, %v2772
        %v2774 = vrot.slane %v2654, %v2773
        %v2775 = vsel %vm1098, %v2774, %v2770
        %v2776 = vlaneseq
        %v2777 = vshrl.u32 %v2776, 7
        %v2778 = vsub.s32 %v1100, %v2777
        %v2779 = vrot.slane %v2661, %v2778
        %v2780 = vsel %vm1105, %v2779, %v2775
        %v2781 = vlaneseq
        %v2782 = vshrl.u32 %v2781, 7
        %v2783 = vsub.s32 %v1107, %v2782
        %v2784 = vrot.slane %v2668, %v2783
        %v2785 = vsel %vm1112, %v2784, %v2780
        %v2786 = vlaneseq
        %v2787 = vshrl.u32 %v2786, 7
        %v2788 = vsub.s32 %v1114, %v2787
        %v2789 = vrot.slane %v2675, %v2788
        %v2790 = vsel %vm1119, %v2789, %v2785
        %v2791 = vlaneseq
        %v2792 = vshrl.u32 %v2791, 7
        %v2793 = vsub.s32 %v1121, %v2792
        %v2794 = vrot.slane %v2682, %v2793
        %v2795 = vsel %vm1126, %v2794, %v2790
        %v2796 = vlaneseq
        %v2797 = vshrl.u32 %v2796, 7
        %v2798 = vsub.s32 %v1128, %v2797
        %v2799 = vrot.slane %v2689, %v2798
        %v2800 = vsel %vm1133, %v2799, %v2795
        %v2801 = vlaneseq
        %v2802 = vshrl.u32 %v2801, 7
        %v2803 = vsub.s32 %v1135, %v2802
        %v2804 = vrot.slane %v2696, %v2803
        %v2805 = vsel %vm1140, %v2804, %v2800
        %v2806 = vlaneseq
        %v2807 = vshrl.u32 %v2806, 7
        %v2808 = vsub.s32 %v1142, %v2807
        %v2809 = vrot.slane %v2703, %v2808
        %v2810 = vsel %vm1147, %v2809, %v2805
        %v2811 = vlaneseq
        %v2812 = vshrl.u32 %v2811, 7
        %v2813 = vsub.s32 %v1149, %v2812
        %v2814 = vrot.slane %v2710, %v2813
        %v2815 = vsel %vm1154, %v2814, %v2810
        %v2816 = vlaneseq
        %v2817 = vshrl.u32 %v2816, 7
        %v2818 = vsub.s32 %v1156, %v2817
        %v2819 = vrot.slane %v2717, %v2818
        %v2820 = vsel %vm1161, %v2819, %v2815
        %v2821 = vlaneseq
        %v2822 = vshrl.u32 %v2821, 7
        %v2823 = vsub.s32 %v1163, %v2822
        %v2824 = vrot.slane %v2724, %v2823
        %v2825 = vsel %vm1168, %v2824, %v2820
        %v2826 = vlaneseq
        %v2827 = vshrl.u32 %v2826, 7
        %v2828 = vsub.s32 %v1170, %v2827
        %v2829 = vrot.slane %v2731, %v2828
        %v2830 = vsel %vm1175, %v2829, %v2825
        %v2831 = vlaneseq
        %v2832 = vshrl.u32 %v2831, 7
        %v2833 = vsub.s32 %v1177, %v2832
        %v2834 = vrot.slane %v2738, %v2833
        %v2835 = vsel %vm1182, %v2834, %v2830
        %v2836 = vlaneseq
        %v2837 = vshrl.u32 %v2836, 7
        %v2838 = vsub.s32 %v1184, %v2837
        %v2839 = vrot.slane %v2745, %v2838
        %v2840 = vsel %vm1189, %v2839, %v2835
        %2842 = vst [vmem:[%s253 + $0x2] sm:$0x1] %v2840
        %vm2843 = vcmp.eq.s32.totalorder %v712, %v2313
        %vm2844 = vcmp.eq.s32.totalorder %v713, %v2313
        %vm2845 = vcmp.eq.s32.totalorder %v712, %v2329
        %vm2846 = vcmp.eq.s32.totalorder %v713, %v2329
        %vm2847 = vcmp.eq.s32.totalorder %v712, %v2345
        %vm2848 = vcmp.eq.s32.totalorder %v713, %v2345
        %vm2849 = vcmp.eq.s32.totalorder %v712, %v2361
        %vm2850 = vcmp.eq.s32.totalorder %v713, %v2361
        %vm2851 = vcmp.eq.s32.totalorder %v712, %v2377
        %vm2852 = vcmp.eq.s32.totalorder %v713, %v2377
        %vm2853 = vcmp.eq.s32.totalorder %v712, %v2393
        %vm2854 = vcmp.eq.s32.totalorder %v713, %v2393
        %vm2855 = vcmp.eq.s32.totalorder %v712, %v2409
        %vm2856 = vcmp.eq.s32.totalorder %v713, %v2409
        %vm2857 = vcmp.eq.s32.totalorder %v712, %v2425
        %vm2858 = vcmp.eq.s32.totalorder %v713, %v2425
        %vm2859 = vcmp.eq.s32.totalorder %v712, %v2441
        %vm2860 = vcmp.eq.s32.totalorder %v713, %v2441
        %vm2861 = vcmp.eq.s32.totalorder %v712, %v2457
        %vm2862 = vcmp.eq.s32.totalorder %v713, %v2457
        %vm2863 = vcmp.eq.s32.totalorder %v712, %v2473
        %vm2864 = vcmp.eq.s32.totalorder %v713, %v2473
        %vm2865 = vcmp.eq.s32.totalorder %v712, %v2489
        %vm2866 = vcmp.eq.s32.totalorder %v713, %v2489
        %vm2867 = vcmp.eq.s32.totalorder %v712, %v2505
        %vm2868 = vcmp.eq.s32.totalorder %v713, %v2505
        %vm2869 = vcmp.eq.s32.totalorder %v712, %v2521
        %vm2870 = vcmp.eq.s32.totalorder %v713, %v2521
        %vm2871 = vcmp.eq.s32.totalorder %v712, %v2537
        %vm2872 = vcmp.eq.s32.totalorder %v713, %v2537
        %vm2873 = vcmp.eq.s32.totalorder %v712, %v2553
        %vm2874 = vcmp.eq.s32.totalorder %v713, %v2553
        %v2875 = vsel %vm2843, 3.4e+38, %v2154
        %v2876 = vsel %vm2844, 3.4e+38, %v2155
        %v2877 = vsel %vm2845, 3.4e+38, %v2156
        %v2878 = vsel %vm2846, 3.4e+38, %v2157
        %v2879 = vsel %vm2847, 3.4e+38, %v2158
        %v2880 = vsel %vm2848, 3.4e+38, %v2159
        %v2881 = vsel %vm2849, 3.4e+38, %v2160
        %v2882 = vsel %vm2850, 3.4e+38, %v2161
        %v2883 = vsel %vm2851, 3.4e+38, %v2162
        %v2884 = vsel %vm2852, 3.4e+38, %v2163
        %v2885 = vsel %vm2853, 3.4e+38, %v2164
        %v2886 = vsel %vm2854, 3.4e+38, %v2165
        %v2887 = vsel %vm2855, 3.4e+38, %v2166
        %v2888 = vsel %vm2856, 3.4e+38, %v2167
        %v2889 = vsel %vm2857, 3.4e+38, %v2168
        %v2890 = vsel %vm2858, 3.4e+38, %v2169
        %v2891 = vsel %vm2859, 3.4e+38, %v2170
        %v2892 = vsel %vm2860, 3.4e+38, %v2171
        %v2893 = vsel %vm2861, 3.4e+38, %v2172
        %v2894 = vsel %vm2862, 3.4e+38, %v2173
        %v2895 = vsel %vm2863, 3.4e+38, %v2174
        %v2896 = vsel %vm2864, 3.4e+38, %v2175
        %v2897 = vsel %vm2865, 3.4e+38, %v2176
        %v2898 = vsel %vm2866, 3.4e+38, %v2177
        %v2899 = vsel %vm2867, 3.4e+38, %v2178
        %v2900 = vsel %vm2868, 3.4e+38, %v2179
        %v2901 = vsel %vm2869, 3.4e+38, %v2180
        %v2902 = vsel %vm2870, 3.4e+38, %v2181
        %v2903 = vsel %vm2871, 3.4e+38, %v2182
        %v2904 = vsel %vm2872, 3.4e+38, %v2183
        %v2905 = vsel %vm2873, 3.4e+38, %v2184
        %v2906 = vsel %vm2874, 3.4e+38, %v2185
        %v2907 = vmin.f32 %v2875, %v2876
        %2908 = vmin.xlane.f32.xlu0 %v2907
        %v2909 = vpop.xlane.xlu0 %2908
        %v2910 = vmin.f32 %v2877, %v2878
        %2911 = vmin.xlane.f32.xlu0 %v2910
        %v2912 = vpop.xlane.xlu0 %2911
        %v2913 = vmin.f32 %v2879, %v2880
        %2914 = vmin.xlane.f32.xlu0 %v2913
        %v2915 = vpop.xlane.xlu0 %2914
        %v2916 = vmin.f32 %v2881, %v2882
        %2917 = vmin.xlane.f32.xlu0 %v2916
        %v2918 = vpop.xlane.xlu0 %2917
        %v2919 = vmin.f32 %v2883, %v2884
        %2920 = vmin.xlane.f32.xlu0 %v2919
        %v2921 = vpop.xlane.xlu0 %2920
        %v2922 = vmin.f32 %v2885, %v2886
        %2923 = vmin.xlane.f32.xlu0 %v2922
        %v2924 = vpop.xlane.xlu0 %2923
        %v2925 = vmin.f32 %v2887, %v2888
        %2926 = vmin.xlane.f32.xlu0 %v2925
        %v2927 = vpop.xlane.xlu0 %2926
        %v2928 = vmin.f32 %v2889, %v2890
        %2929 = vmin.xlane.f32.xlu0 %v2928
        %v2930 = vpop.xlane.xlu0 %2929
        %v2931 = vmin.f32 %v2891, %v2892
        %2932 = vmin.xlane.f32.xlu0 %v2931
        %v2933 = vpop.xlane.xlu0 %2932
        %v2934 = vmin.f32 %v2893, %v2894
        %2935 = vmin.xlane.f32.xlu0 %v2934
        %v2936 = vpop.xlane.xlu0 %2935
        %v2937 = vmin.f32 %v2895, %v2896
        %2938 = vmin.xlane.f32.xlu0 %v2937
        %v2939 = vpop.xlane.xlu0 %2938
        %v2940 = vmin.f32 %v2897, %v2898
        %2941 = vmin.xlane.f32.xlu0 %v2940
        %v2942 = vpop.xlane.xlu0 %2941
        %v2943 = vmin.f32 %v2899, %v2900
        %2944 = vmin.xlane.f32.xlu0 %v2943
        %v2945 = vpop.xlane.xlu0 %2944
        %v2946 = vmin.f32 %v2901, %v2902
        %2947 = vmin.xlane.f32.xlu0 %v2946
        %v2948 = vpop.xlane.xlu0 %2947
        %v2949 = vmin.f32 %v2903, %v2904
        %2950 = vmin.xlane.f32.xlu0 %v2949
        %v2951 = vpop.xlane.xlu0 %2950
        %v2952 = vmin.f32 %v2905, %v2906
        %2953 = vmin.xlane.f32.xlu0 %v2952
        %v2954 = vpop.xlane.xlu0 %2953
        %vm2955 = vcmp.eq.f32.partialorder %v2875, %v2909
        %vm2956 = vcmp.eq.f32.partialorder %v2876, %v2909
        %vm2957 = vcmp.eq.f32.partialorder %v2877, %v2912
        %vm2958 = vcmp.eq.f32.partialorder %v2878, %v2912
        %vm2959 = vcmp.eq.f32.partialorder %v2879, %v2915
        %vm2960 = vcmp.eq.f32.partialorder %v2880, %v2915
        %vm2961 = vcmp.eq.f32.partialorder %v2881, %v2918
        %vm2962 = vcmp.eq.f32.partialorder %v2882, %v2918
        %vm2963 = vcmp.eq.f32.partialorder %v2883, %v2921
        %vm2964 = vcmp.eq.f32.partialorder %v2884, %v2921
        %vm2965 = vcmp.eq.f32.partialorder %v2885, %v2924
        %vm2966 = vcmp.eq.f32.partialorder %v2886, %v2924
        %vm2967 = vcmp.eq.f32.partialorder %v2887, %v2927
        %vm2968 = vcmp.eq.f32.partialorder %v2888, %v2927
        %vm2969 = vcmp.eq.f32.partialorder %v2889, %v2930
        %vm2970 = vcmp.eq.f32.partialorder %v2890, %v2930
        %vm2971 = vcmp.eq.f32.partialorder %v2891, %v2933
        %vm2972 = vcmp.eq.f32.partialorder %v2892, %v2933
        %vm2973 = vcmp.eq.f32.partialorder %v2893, %v2936
        %vm2974 = vcmp.eq.f32.partialorder %v2894, %v2936
        %vm2975 = vcmp.eq.f32.partialorder %v2895, %v2939
        %vm2976 = vcmp.eq.f32.partialorder %v2896, %v2939
        %vm2977 = vcmp.eq.f32.partialorder %v2897, %v2942
        %vm2978 = vcmp.eq.f32.partialorder %v2898, %v2942
        %vm2979 = vcmp.eq.f32.partialorder %v2899, %v2945
        %vm2980 = vcmp.eq.f32.partialorder %v2900, %v2945
        %vm2981 = vcmp.eq.f32.partialorder %v2901, %v2948
        %vm2982 = vcmp.eq.f32.partialorder %v2902, %v2948
        %vm2983 = vcmp.eq.f32.partialorder %v2903, %v2951
        %vm2984 = vcmp.eq.f32.partialorder %v2904, %v2951
        %vm2985 = vcmp.eq.f32.partialorder %v2905, %v2954
        %vm2986 = vcmp.eq.f32.partialorder %v2906, %v2954
        %v2987 = vsel %vm2955, %v712, 256
        %v2988 = vsel %vm2956, %v713, 256
        %v2989 = vsel %vm2957, %v712, 256
        %v2990 = vsel %vm2958, %v713, 256
        %v2991 = vsel %vm2959, %v712, 256
        %v2992 = vsel %vm2960, %v713, 256
        %v2993 = vsel %vm2961, %v712, 256
        %v2994 = vsel %vm2962, %v713, 256
        %v2995 = vsel %vm2963, %v712, 256
        %v2996 = vsel %vm2964, %v713, 256
        %v2997 = vsel %vm2965, %v712, 256
        %v2998 = vsel %vm2966, %v713, 256
        %v2999 = vsel %vm2967, %v712, 256
        %v3000 = vsel %vm2968, %v713, 256
        %v3001 = vsel %vm2969, %v712, 256
        %v3002 = vsel %vm2970, %v713, 256
        %v3003 = vsel %vm2971, %v712, 256
        %v3004 = vsel %vm2972, %v713, 256
        %v3005 = vsel %vm2973, %v712, 256
        %v3006 = vsel %vm2974, %v713, 256
        %v3007 = vsel %vm2975, %v712, 256
        %v3008 = vsel %vm2976, %v713, 256
        %v3009 = vsel %vm2977, %v712, 256
        %v3010 = vsel %vm2978, %v713, 256
        %v3011 = vsel %vm2979, %v712, 256
        %v3012 = vsel %vm2980, %v713, 256
        %v3013 = vsel %vm2981, %v712, 256
        %v3014 = vsel %vm2982, %v713, 256
        %v3015 = vsel %vm2983, %v712, 256
        %v3016 = vsel %vm2984, %v713, 256
        %v3017 = vsel %vm2985, %v712, 256
        %v3018 = vsel %vm2986, %v713, 256
        %vm3019 = vcmp.lt.s32.totalorder %v2987, %v2988
        %v3020 = vsel %vm3019, %v2987, %v2988
        %v3021 = vand.u32 %v3020, 65535
        %v3022 = vshra.s32 %v3020, 16
        %v3023 = vcvt.s32.f32 %v3021
        %v3024 = vcvt.s32.f32 %v3022
        %3025 = vmin.xlane.f32.xlu0 %v3024
        %v3026 = vpop.xlane.xlu0 %3025
        %vm3027 = vcmp.eq.f32.partialorder %v3024, %v3026
        %v3028 = vsel %vm3027, %v3023, inf
        %3029 = vmin.xlane.f32.xlu0 %v3028
        %v3030 = vpop.xlane.xlu0 %3029
        %v3031 = vcvt.f32.s32 %v3030
        %v3032 = vcvt.f32.s32 %v3026
        %v3033 = vshll.u32 %v3032, 16
        %v3034 = vadd.s32 %v3033, %v3031
        %vm3035 = vcmp.lt.s32.totalorder %v2989, %v2990
        %v3036 = vsel %vm3035, %v2989, %v2990
        %v3037 = vand.u32 %v3036, 65535
        %v3038 = vshra.s32 %v3036, 16
        %v3039 = vcvt.s32.f32 %v3037
        %v3040 = vcvt.s32.f32 %v3038
        %3041 = vmin.xlane.f32.xlu0 %v3040
        %v3042 = vpop.xlane.xlu0 %3041
        %vm3043 = vcmp.eq.f32.partialorder %v3040, %v3042
        %v3044 = vsel %vm3043, %v3039, inf
        %3045 = vmin.xlane.f32.xlu0 %v3044
        %v3046 = vpop.xlane.xlu0 %3045
        %v3047 = vcvt.f32.s32 %v3046
        %v3048 = vcvt.f32.s32 %v3042
        %v3049 = vshll.u32 %v3048, 16
        %v3050 = vadd.s32 %v3049, %v3047
        %vm3051 = vcmp.lt.s32.totalorder %v2991, %v2992
        %v3052 = vsel %vm3051, %v2991, %v2992
        %v3053 = vand.u32 %v3052, 65535
        %v3054 = vshra.s32 %v3052, 16
        %v3055 = vcvt.s32.f32 %v3053
        %v3056 = vcvt.s32.f32 %v3054
        %3057 = vmin.xlane.f32.xlu0 %v3056
        %v3058 = vpop.xlane.xlu0 %3057
        %vm3059 = vcmp.eq.f32.partialorder %v3056, %v3058
        %v3060 = vsel %vm3059, %v3055, inf
        %3061 = vmin.xlane.f32.xlu0 %v3060
        %v3062 = vpop.xlane.xlu0 %3061
        %v3063 = vcvt.f32.s32 %v3062
        %v3064 = vcvt.f32.s32 %v3058
        %v3065 = vshll.u32 %v3064, 16
        %v3066 = vadd.s32 %v3065, %v3063
        %vm3067 = vcmp.lt.s32.totalorder %v2993, %v2994
        %v3068 = vsel %vm3067, %v2993, %v2994
        %v3069 = vand.u32 %v3068, 65535
        %v3070 = vshra.s32 %v3068, 16
        %v3071 = vcvt.s32.f32 %v3069
        %v3072 = vcvt.s32.f32 %v3070
        %3073 = vmin.xlane.f32.xlu0 %v3072
        %v3074 = vpop.xlane.xlu0 %3073
        %vm3075 = vcmp.eq.f32.partialorder %v3072, %v3074
        %v3076 = vsel %vm3075, %v3071, inf
        %3077 = vmin.xlane.f32.xlu0 %v3076
        %v3078 = vpop.xlane.xlu0 %3077
        %v3079 = vcvt.f32.s32 %v3078
        %v3080 = vcvt.f32.s32 %v3074
        %v3081 = vshll.u32 %v3080, 16
        %v3082 = vadd.s32 %v3081, %v3079
        %vm3083 = vcmp.lt.s32.totalorder %v2995, %v2996
        %v3084 = vsel %vm3083, %v2995, %v2996
        %v3085 = vand.u32 %v3084, 65535
        %v3086 = vshra.s32 %v3084, 16
        %v3087 = vcvt.s32.f32 %v3085
        %v3088 = vcvt.s32.f32 %v3086
        %3089 = vmin.xlane.f32.xlu0 %v3088
        %v3090 = vpop.xlane.xlu0 %3089
        %vm3091 = vcmp.eq.f32.partialorder %v3088, %v3090
        %v3092 = vsel %vm3091, %v3087, inf
        %3093 = vmin.xlane.f32.xlu0 %v3092
        %v3094 = vpop.xlane.xlu0 %3093
        %v3095 = vcvt.f32.s32 %v3094
        %v3096 = vcvt.f32.s32 %v3090
        %v3097 = vshll.u32 %v3096, 16
        %v3098 = vadd.s32 %v3097, %v3095
        %vm3099 = vcmp.lt.s32.totalorder %v2997, %v2998
        %v3100 = vsel %vm3099, %v2997, %v2998
        %v3101 = vand.u32 %v3100, 65535
        %v3102 = vshra.s32 %v3100, 16
        %v3103 = vcvt.s32.f32 %v3101
        %v3104 = vcvt.s32.f32 %v3102
        %3105 = vmin.xlane.f32.xlu0 %v3104
        %v3106 = vpop.xlane.xlu0 %3105
        %vm3107 = vcmp.eq.f32.partialorder %v3104, %v3106
        %v3108 = vsel %vm3107, %v3103, inf
        %3109 = vmin.xlane.f32.xlu0 %v3108
        %v3110 = vpop.xlane.xlu0 %3109
        %v3111 = vcvt.f32.s32 %v3110
        %v3112 = vcvt.f32.s32 %v3106
        %v3113 = vshll.u32 %v3112, 16
        %v3114 = vadd.s32 %v3113, %v3111
        %vm3115 = vcmp.lt.s32.totalorder %v2999, %v3000
        %v3116 = vsel %vm3115, %v2999, %v3000
        %v3117 = vand.u32 %v3116, 65535
        %v3118 = vshra.s32 %v3116, 16
        %v3119 = vcvt.s32.f32 %v3117
        %v3120 = vcvt.s32.f32 %v3118
        %3121 = vmin.xlane.f32.xlu0 %v3120
        %v3122 = vpop.xlane.xlu0 %3121
        %vm3123 = vcmp.eq.f32.partialorder %v3120, %v3122
        %v3124 = vsel %vm3123, %v3119, inf
        %3125 = vmin.xlane.f32.xlu0 %v3124
        %v3126 = vpop.xlane.xlu0 %3125
        %v3127 = vcvt.f32.s32 %v3126
        %v3128 = vcvt.f32.s32 %v3122
        %v3129 = vshll.u32 %v3128, 16
        %v3130 = vadd.s32 %v3129, %v3127
        %vm3131 = vcmp.lt.s32.totalorder %v3001, %v3002
        %v3132 = vsel %vm3131, %v3001, %v3002
        %v3133 = vand.u32 %v3132, 65535
        %v3134 = vshra.s32 %v3132, 16
        %v3135 = vcvt.s32.f32 %v3133
        %v3136 = vcvt.s32.f32 %v3134
        %3137 = vmin.xlane.f32.xlu0 %v3136
        %v3138 = vpop.xlane.xlu0 %3137
        %vm3139 = vcmp.eq.f32.partialorder %v3136, %v3138
        %v3140 = vsel %vm3139, %v3135, inf
        %3141 = vmin.xlane.f32.xlu0 %v3140
        %v3142 = vpop.xlane.xlu0 %3141
        %v3143 = vcvt.f32.s32 %v3142
        %v3144 = vcvt.f32.s32 %v3138
        %v3145 = vshll.u32 %v3144, 16
        %v3146 = vadd.s32 %v3145, %v3143
        %vm3147 = vcmp.lt.s32.totalorder %v3003, %v3004
        %v3148 = vsel %vm3147, %v3003, %v3004
        %v3149 = vand.u32 %v3148, 65535
        %v3150 = vshra.s32 %v3148, 16
        %v3151 = vcvt.s32.f32 %v3149
        %v3152 = vcvt.s32.f32 %v3150
        %3153 = vmin.xlane.f32.xlu0 %v3152
        %v3154 = vpop.xlane.xlu0 %3153
        %vm3155 = vcmp.eq.f32.partialorder %v3152, %v3154
        %v3156 = vsel %vm3155, %v3151, inf
        %3157 = vmin.xlane.f32.xlu0 %v3156
        %v3158 = vpop.xlane.xlu0 %3157
        %v3159 = vcvt.f32.s32 %v3158
        %v3160 = vcvt.f32.s32 %v3154
        %v3161 = vshll.u32 %v3160, 16
        %v3162 = vadd.s32 %v3161, %v3159
        %vm3163 = vcmp.lt.s32.totalorder %v3005, %v3006
        %v3164 = vsel %vm3163, %v3005, %v3006
        %v3165 = vand.u32 %v3164, 65535
        %v3166 = vshra.s32 %v3164, 16
        %v3167 = vcvt.s32.f32 %v3165
        %v3168 = vcvt.s32.f32 %v3166
        %3169 = vmin.xlane.f32.xlu0 %v3168
        %v3170 = vpop.xlane.xlu0 %3169
        %vm3171 = vcmp.eq.f32.partialorder %v3168, %v3170
        %v3172 = vsel %vm3171, %v3167, inf
        %3173 = vmin.xlane.f32.xlu0 %v3172
        %v3174 = vpop.xlane.xlu0 %3173
        %v3175 = vcvt.f32.s32 %v3174
        %v3176 = vcvt.f32.s32 %v3170
        %v3177 = vshll.u32 %v3176, 16
        %v3178 = vadd.s32 %v3177, %v3175
        %vm3179 = vcmp.lt.s32.totalorder %v3007, %v3008
        %v3180 = vsel %vm3179, %v3007, %v3008
        %v3181 = vand.u32 %v3180, 65535
        %v3182 = vshra.s32 %v3180, 16
        %v3183 = vcvt.s32.f32 %v3181
        %v3184 = vcvt.s32.f32 %v3182
        %3185 = vmin.xlane.f32.xlu0 %v3184
        %v3186 = vpop.xlane.xlu0 %3185
        %vm3187 = vcmp.eq.f32.partialorder %v3184, %v3186
        %v3188 = vsel %vm3187, %v3183, inf
        %3189 = vmin.xlane.f32.xlu0 %v3188
        %v3190 = vpop.xlane.xlu0 %3189
        %v3191 = vcvt.f32.s32 %v3190
        %v3192 = vcvt.f32.s32 %v3186
        %v3193 = vshll.u32 %v3192, 16
        %v3194 = vadd.s32 %v3193, %v3191
        %vm3195 = vcmp.lt.s32.totalorder %v3009, %v3010
        %v3196 = vsel %vm3195, %v3009, %v3010
        %v3197 = vand.u32 %v3196, 65535
        %v3198 = vshra.s32 %v3196, 16
        %v3199 = vcvt.s32.f32 %v3197
        %v3200 = vcvt.s32.f32 %v3198
        %3201 = vmin.xlane.f32.xlu0 %v3200
        %v3202 = vpop.xlane.xlu0 %3201
        %vm3203 = vcmp.eq.f32.partialorder %v3200, %v3202
        %v3204 = vsel %vm3203, %v3199, inf
        %3205 = vmin.xlane.f32.xlu0 %v3204
        %v3206 = vpop.xlane.xlu0 %3205
        %v3207 = vcvt.f32.s32 %v3206
        %v3208 = vcvt.f32.s32 %v3202
        %v3209 = vshll.u32 %v3208, 16
        %v3210 = vadd.s32 %v3209, %v3207
        %vm3211 = vcmp.lt.s32.totalorder %v3011, %v3012
        %v3212 = vsel %vm3211, %v3011, %v3012
        %v3213 = vand.u32 %v3212, 65535
        %v3214 = vshra.s32 %v3212, 16
        %v3215 = vcvt.s32.f32 %v3213
        %v3216 = vcvt.s32.f32 %v3214
        %3217 = vmin.xlane.f32.xlu0 %v3216
        %v3218 = vpop.xlane.xlu0 %3217
        %vm3219 = vcmp.eq.f32.partialorder %v3216, %v3218
        %v3220 = vsel %vm3219, %v3215, inf
        %3221 = vmin.xlane.f32.xlu0 %v3220
        %v3222 = vpop.xlane.xlu0 %3221
        %v3223 = vcvt.f32.s32 %v3222
        %v3224 = vcvt.f32.s32 %v3218
        %v3225 = vshll.u32 %v3224, 16
        %v3226 = vadd.s32 %v3225, %v3223
        %vm3227 = vcmp.lt.s32.totalorder %v3013, %v3014
        %v3228 = vsel %vm3227, %v3013, %v3014
        %v3229 = vand.u32 %v3228, 65535
        %v3230 = vshra.s32 %v3228, 16
        %v3231 = vcvt.s32.f32 %v3229
        %v3232 = vcvt.s32.f32 %v3230
        %3233 = vmin.xlane.f32.xlu0 %v3232
        %v3234 = vpop.xlane.xlu0 %3233
        %vm3235 = vcmp.eq.f32.partialorder %v3232, %v3234
        %v3236 = vsel %vm3235, %v3231, inf
        %3237 = vmin.xlane.f32.xlu0 %v3236
        %v3238 = vpop.xlane.xlu0 %3237
        %v3239 = vcvt.f32.s32 %v3238
        %v3240 = vcvt.f32.s32 %v3234
        %v3241 = vshll.u32 %v3240, 16
        %v3242 = vadd.s32 %v3241, %v3239
        %vm3243 = vcmp.lt.s32.totalorder %v3015, %v3016
        %v3244 = vsel %vm3243, %v3015, %v3016
        %v3245 = vand.u32 %v3244, 65535
        %v3246 = vshra.s32 %v3244, 16
        %v3247 = vcvt.s32.f32 %v3245
        %v3248 = vcvt.s32.f32 %v3246
        %3249 = vmin.xlane.f32.xlu0 %v3248
        %v3250 = vpop.xlane.xlu0 %3249
        %vm3251 = vcmp.eq.f32.partialorder %v3248, %v3250
        %v3252 = vsel %vm3251, %v3247, inf
        %3253 = vmin.xlane.f32.xlu0 %v3252
        %v3254 = vpop.xlane.xlu0 %3253
        %v3255 = vcvt.f32.s32 %v3254
        %v3256 = vcvt.f32.s32 %v3250
        %v3257 = vshll.u32 %v3256, 16
        %v3258 = vadd.s32 %v3257, %v3255
        %vm3259 = vcmp.lt.s32.totalorder %v3017, %v3018
        %v3260 = vsel %vm3259, %v3017, %v3018
        %v3261 = vand.u32 %v3260, 65535
        %v3262 = vshra.s32 %v3260, 16
        %v3263 = vcvt.s32.f32 %v3261
        %v3264 = vcvt.s32.f32 %v3262
        %3265 = vmin.xlane.f32.xlu0 %v3264
        %v3266 = vpop.xlane.xlu0 %3265
        %vm3267 = vcmp.eq.f32.partialorder %v3264, %v3266
        %v3268 = vsel %vm3267, %v3263, inf
        %3269 = vmin.xlane.f32.xlu0 %v3268
        %v3270 = vpop.xlane.xlu0 %3269
        %v3271 = vcvt.f32.s32 %v3270
        %v3272 = vcvt.f32.s32 %v3266
        %v3273 = vshll.u32 %v3272, 16
        %v3274 = vadd.s32 %v3273, %v3271
        %v3275 = vlaneseq
        %v3276 = vshrl.u32 %v3275, 7
        %v3277 = vsub.s32 %v712, %v3276
        %v3278 = vrot.slane %v3034, %v3277
        %v3279 = vlaneseq
        %v3280 = vshrl.u32 %v3279, 7
        %v3281 = vsub.s32 %v1086, %v3280
        %v3282 = vrot.slane %v3050, %v3281
        %v3283 = vsel %vm1091, %v3282, %v3278
        %v3284 = vlaneseq
        %v3285 = vshrl.u32 %v3284, 7
        %v3286 = vsub.s32 %v1093, %v3285
        %v3287 = vrot.slane %v3066, %v3286
        %v3288 = vsel %vm1098, %v3287, %v3283
        %v3289 = vlaneseq
        %v3290 = vshrl.u32 %v3289, 7
        %v3291 = vsub.s32 %v1100, %v3290
        %v3292 = vrot.slane %v3082, %v3291
        %v3293 = vsel %vm1105, %v3292, %v3288
        %v3294 = vlaneseq
        %v3295 = vshrl.u32 %v3294, 7
        %v3296 = vsub.s32 %v1107, %v3295
        %v3297 = vrot.slane %v3098, %v3296
        %v3298 = vsel %vm1112, %v3297, %v3293
        %v3299 = vlaneseq
        %v3300 = vshrl.u32 %v3299, 7
        %v3301 = vsub.s32 %v1114, %v3300
        %v3302 = vrot.slane %v3114, %v3301
        %v3303 = vsel %vm1119, %v3302, %v3298
        %v3304 = vlaneseq
        %v3305 = vshrl.u32 %v3304, 7
        %v3306 = vsub.s32 %v1121, %v3305
        %v3307 = vrot.slane %v3130, %v3306
        %v3308 = vsel %vm1126, %v3307, %v3303
        %v3309 = vlaneseq
        %v3310 = vshrl.u32 %v3309, 7
        %v3311 = vsub.s32 %v1128, %v3310
        %v3312 = vrot.slane %v3146, %v3311
        %v3313 = vsel %vm1133, %v3312, %v3308
        %v3314 = vlaneseq
        %v3315 = vshrl.u32 %v3314, 7
        %v3316 = vsub.s32 %v1135, %v3315
        %v3317 = vrot.slane %v3162, %v3316
        %v3318 = vsel %vm1140, %v3317, %v3313
        %v3319 = vlaneseq
        %v3320 = vshrl.u32 %v3319, 7
        %v3321 = vsub.s32 %v1142, %v3320
        %v3322 = vrot.slane %v3178, %v3321
        %v3323 = vsel %vm1147, %v3322, %v3318
        %v3324 = vlaneseq
        %v3325 = vshrl.u32 %v3324, 7
        %v3326 = vsub.s32 %v1149, %v3325
        %v3327 = vrot.slane %v3194, %v3326
        %v3328 = vsel %vm1154, %v3327, %v3323
        %v3329 = vlaneseq
        %v3330 = vshrl.u32 %v3329, 7
        %v3331 = vsub.s32 %v1156, %v3330
        %v3332 = vrot.slane %v3210, %v3331
        %v3333 = vsel %vm1161, %v3332, %v3328
        %v3334 = vlaneseq
        %v3335 = vshrl.u32 %v3334, 7
        %v3336 = vsub.s32 %v1163, %v3335
        %v3337 = vrot.slane %v3226, %v3336
        %v3338 = vsel %vm1168, %v3337, %v3333
        %v3339 = vlaneseq
        %v3340 = vshrl.u32 %v3339, 7
        %v3341 = vsub.s32 %v1170, %v3340
        %v3342 = vrot.slane %v3242, %v3341
        %v3343 = vsel %vm1175, %v3342, %v3338
        %v3344 = vlaneseq
        %v3345 = vshrl.u32 %v3344, 7
        %v3346 = vsub.s32 %v1177, %v3345
        %v3347 = vrot.slane %v3258, %v3346
        %v3348 = vsel %vm1182, %v3347, %v3343
        %v3349 = vlaneseq
        %v3350 = vshrl.u32 %v3349, 7
        %v3351 = vsub.s32 %v1184, %v3350
        %v3352 = vrot.slane %v3274, %v3351
        %v3353 = vsel %vm1189, %v3352, %v3348
        %3354 = vst [vmem:[%s246 + $0x3] sm:$0x1] %v3353
        %v3355 = vrsqrt.pop %v2909
        %v3356 = vmul.f32 %v2909, %v3355
        %vm3357 = vcmp.eq.f32.partialorder %v2909, inf
        %v3358 = vsel %vm3357, %v2909, %v3356
        %vm3359 = vcmp.eq.f32.partialorder %v2909, 0.0
        %v3360 = vand.u32 %v2909, 2147483648
        %v3361 = vsel %vm3359, %v3360, %v3358
        %v3362 = vrsqrt.pop %v2912
        %v3363 = vmul.f32 %v2912, %v3362
        %vm3364 = vcmp.eq.f32.partialorder %v2912, inf
        %v3365 = vsel %vm3364, %v2912, %v3363
        %vm3366 = vcmp.eq.f32.partialorder %v2912, 0.0
        %v3367 = vand.u32 %v2912, 2147483648
        %v3368 = vsel %vm3366, %v3367, %v3365
        %v3369 = vrsqrt.pop %v2915
        %v3370 = vmul.f32 %v2915, %v3369
        %vm3371 = vcmp.eq.f32.partialorder %v2915, inf
        %v3372 = vsel %vm3371, %v2915, %v3370
        %vm3373 = vcmp.eq.f32.partialorder %v2915, 0.0
        %v3374 = vand.u32 %v2915, 2147483648
        %v3375 = vsel %vm3373, %v3374, %v3372
        %v3376 = vrsqrt.pop %v2918
        %v3377 = vmul.f32 %v2918, %v3376
        %vm3378 = vcmp.eq.f32.partialorder %v2918, inf
        %v3379 = vsel %vm3378, %v2918, %v3377
        %vm3380 = vcmp.eq.f32.partialorder %v2918, 0.0
        %v3381 = vand.u32 %v2918, 2147483648
        %v3382 = vsel %vm3380, %v3381, %v3379
        %v3383 = vrsqrt.pop %v2921
        %v3384 = vmul.f32 %v2921, %v3383
        %vm3385 = vcmp.eq.f32.partialorder %v2921, inf
        %v3386 = vsel %vm3385, %v2921, %v3384
        %vm3387 = vcmp.eq.f32.partialorder %v2921, 0.0
        %v3388 = vand.u32 %v2921, 2147483648
        %v3389 = vsel %vm3387, %v3388, %v3386
        %v3390 = vrsqrt.pop %v2924
        %v3391 = vmul.f32 %v2924, %v3390
        %vm3392 = vcmp.eq.f32.partialorder %v2924, inf
        %v3393 = vsel %vm3392, %v2924, %v3391
        %vm3394 = vcmp.eq.f32.partialorder %v2924, 0.0
        %v3395 = vand.u32 %v2924, 2147483648
        %v3396 = vsel %vm3394, %v3395, %v3393
        %v3397 = vrsqrt.pop %v2927
        %v3398 = vmul.f32 %v2927, %v3397
        %vm3399 = vcmp.eq.f32.partialorder %v2927, inf
        %v3400 = vsel %vm3399, %v2927, %v3398
        %vm3401 = vcmp.eq.f32.partialorder %v2927, 0.0
        %v3402 = vand.u32 %v2927, 2147483648
        %v3403 = vsel %vm3401, %v3402, %v3400
        %v3404 = vrsqrt.pop %v2930
        %v3405 = vmul.f32 %v2930, %v3404
        %vm3406 = vcmp.eq.f32.partialorder %v2930, inf
        %v3407 = vsel %vm3406, %v2930, %v3405
        %vm3408 = vcmp.eq.f32.partialorder %v2930, 0.0
        %v3409 = vand.u32 %v2930, 2147483648
        %v3410 = vsel %vm3408, %v3409, %v3407
        %v3411 = vrsqrt.pop %v2933
        %v3412 = vmul.f32 %v2933, %v3411
        %vm3413 = vcmp.eq.f32.partialorder %v2933, inf
        %v3414 = vsel %vm3413, %v2933, %v3412
        %vm3415 = vcmp.eq.f32.partialorder %v2933, 0.0
        %v3416 = vand.u32 %v2933, 2147483648
        %v3417 = vsel %vm3415, %v3416, %v3414
        %v3418 = vrsqrt.pop %v2936
        %v3419 = vmul.f32 %v2936, %v3418
        %vm3420 = vcmp.eq.f32.partialorder %v2936, inf
        %v3421 = vsel %vm3420, %v2936, %v3419
        %vm3422 = vcmp.eq.f32.partialorder %v2936, 0.0
        %v3423 = vand.u32 %v2936, 2147483648
        %v3424 = vsel %vm3422, %v3423, %v3421
        %v3425 = vrsqrt.pop %v2939
        %v3426 = vmul.f32 %v2939, %v3425
        %vm3427 = vcmp.eq.f32.partialorder %v2939, inf
        %v3428 = vsel %vm3427, %v2939, %v3426
        %vm3429 = vcmp.eq.f32.partialorder %v2939, 0.0
        %v3430 = vand.u32 %v2939, 2147483648
        %v3431 = vsel %vm3429, %v3430, %v3428
        %v3432 = vrsqrt.pop %v2942
        %v3433 = vmul.f32 %v2942, %v3432
        %vm3434 = vcmp.eq.f32.partialorder %v2942, inf
        %v3435 = vsel %vm3434, %v2942, %v3433
        %vm3436 = vcmp.eq.f32.partialorder %v2942, 0.0
        %v3437 = vand.u32 %v2942, 2147483648
        %v3438 = vsel %vm3436, %v3437, %v3435
        %v3439 = vrsqrt.pop %v2945
        %v3440 = vmul.f32 %v2945, %v3439
        %vm3441 = vcmp.eq.f32.partialorder %v2945, inf
        %v3442 = vsel %vm3441, %v2945, %v3440
        %vm3443 = vcmp.eq.f32.partialorder %v2945, 0.0
        %v3444 = vand.u32 %v2945, 2147483648
        %v3445 = vsel %vm3443, %v3444, %v3442
        %v3446 = vrsqrt.pop %v2948
        %v3447 = vmul.f32 %v2948, %v3446
        %vm3448 = vcmp.eq.f32.partialorder %v2948, inf
        %v3449 = vsel %vm3448, %v2948, %v3447
        %vm3450 = vcmp.eq.f32.partialorder %v2948, 0.0
        %v3451 = vand.u32 %v2948, 2147483648
        %v3452 = vsel %vm3450, %v3451, %v3449
        %v3453 = vrsqrt.pop %v2951
        %v3454 = vmul.f32 %v2951, %v3453
        %vm3455 = vcmp.eq.f32.partialorder %v2951, inf
        %v3456 = vsel %vm3455, %v2951, %v3454
        %vm3457 = vcmp.eq.f32.partialorder %v2951, 0.0
        %v3458 = vand.u32 %v2951, 2147483648
        %v3459 = vsel %vm3457, %v3458, %v3456
        %v3460 = vrsqrt.pop %v2954
        %v3461 = vmul.f32 %v2954, %v3460
        %vm3462 = vcmp.eq.f32.partialorder %v2954, inf
        %v3463 = vsel %vm3462, %v2954, %v3461
        %vm3464 = vcmp.eq.f32.partialorder %v2954, 0.0
        %v3465 = vand.u32 %v2954, 2147483648
        %v3466 = vsel %vm3464, %v3465, %v3463
        %v3483 = vlaneseq
        %v3484 = vshrl.u32 %v3483, 7
        %v3485 = vsub.s32 %v712, %v3484
        %v3486 = vrot.slane %v3361, %v3485
        %v3487 = vlaneseq
        %v3488 = vshrl.u32 %v3487, 7
        %v3489 = vsub.s32 %v1086, %v3488
        %v3490 = vrot.slane %v3368, %v3489
        %v3491 = vsel %vm1091, %v3490, %v3486
        %v3492 = vlaneseq
        %v3493 = vshrl.u32 %v3492, 7
        %v3494 = vsub.s32 %v1093, %v3493
        %v3495 = vrot.slane %v3375, %v3494
        %v3496 = vsel %vm1098, %v3495, %v3491
        %v3497 = vlaneseq
        %v3498 = vshrl.u32 %v3497, 7
        %v3499 = vsub.s32 %v1100, %v3498
        %v3500 = vrot.slane %v3382, %v3499
        %v3501 = vsel %vm1105, %v3500, %v3496
        %v3502 = vlaneseq
        %v3503 = vshrl.u32 %v3502, 7
        %v3504 = vsub.s32 %v1107, %v3503
        %v3505 = vrot.slane %v3389, %v3504
        %v3506 = vsel %vm1112, %v3505, %v3501
        %v3507 = vlaneseq
        %v3508 = vshrl.u32 %v3507, 7
        %v3509 = vsub.s32 %v1114, %v3508
        %v3510 = vrot.slane %v3396, %v3509
        %v3511 = vsel %vm1119, %v3510, %v3506
        %v3512 = vlaneseq
        %v3513 = vshrl.u32 %v3512, 7
        %v3514 = vsub.s32 %v1121, %v3513
        %v3515 = vrot.slane %v3403, %v3514
        %v3516 = vsel %vm1126, %v3515, %v3511
        %v3517 = vlaneseq
        %v3518 = vshrl.u32 %v3517, 7
        %v3519 = vsub.s32 %v1128, %v3518
        %v3520 = vrot.slane %v3410, %v3519
        %v3521 = vsel %vm1133, %v3520, %v3516
        %v3522 = vlaneseq
        %v3523 = vshrl.u32 %v3522, 7
        %v3524 = vsub.s32 %v1135, %v3523
        %v3525 = vrot.slane %v3417, %v3524
        %v3526 = vsel %vm1140, %v3525, %v3521
        %v3527 = vlaneseq
        %v3528 = vshrl.u32 %v3527, 7
        %v3529 = vsub.s32 %v1142, %v3528
        %v3530 = vrot.slane %v3424, %v3529
        %v3531 = vsel %vm1147, %v3530, %v3526
        %v3532 = vlaneseq
        %v3533 = vshrl.u32 %v3532, 7
        %v3534 = vsub.s32 %v1149, %v3533
        %v3535 = vrot.slane %v3431, %v3534
        %v3536 = vsel %vm1154, %v3535, %v3531
        %v3537 = vlaneseq
        %v3538 = vshrl.u32 %v3537, 7
        %v3539 = vsub.s32 %v1156, %v3538
        %v3540 = vrot.slane %v3438, %v3539
        %v3541 = vsel %vm1161, %v3540, %v3536
        %v3542 = vlaneseq
        %v3543 = vshrl.u32 %v3542, 7
        %v3544 = vsub.s32 %v1163, %v3543
        %v3545 = vrot.slane %v3445, %v3544
        %v3546 = vsel %vm1168, %v3545, %v3541
        %v3547 = vlaneseq
        %v3548 = vshrl.u32 %v3547, 7
        %v3549 = vsub.s32 %v1170, %v3548
        %v3550 = vrot.slane %v3452, %v3549
        %v3551 = vsel %vm1175, %v3550, %v3546
        %v3552 = vlaneseq
        %v3553 = vshrl.u32 %v3552, 7
        %v3554 = vsub.s32 %v1177, %v3553
        %v3555 = vrot.slane %v3459, %v3554
        %v3556 = vsel %vm1182, %v3555, %v3551
        %v3557 = vlaneseq
        %v3558 = vshrl.u32 %v3557, 7
        %v3559 = vsub.s32 %v1184, %v3558
        %v3560 = vrot.slane %v3466, %v3559
        %v3561 = vsel %vm1189, %v3560, %v3556
        %3563 = vst [vmem:[%s253 + $0x3] sm:$0x1] %v3561
        %vm3564 = vcmp.eq.s32.totalorder %v712, %v3034
        %vm3565 = vcmp.eq.s32.totalorder %v713, %v3034
        %vm3566 = vcmp.eq.s32.totalorder %v712, %v3050
        %vm3567 = vcmp.eq.s32.totalorder %v713, %v3050
        %vm3568 = vcmp.eq.s32.totalorder %v712, %v3066
        %vm3569 = vcmp.eq.s32.totalorder %v713, %v3066
        %vm3570 = vcmp.eq.s32.totalorder %v712, %v3082
        %vm3571 = vcmp.eq.s32.totalorder %v713, %v3082
        %vm3572 = vcmp.eq.s32.totalorder %v712, %v3098
        %vm3573 = vcmp.eq.s32.totalorder %v713, %v3098
        %vm3574 = vcmp.eq.s32.totalorder %v712, %v3114
        %vm3575 = vcmp.eq.s32.totalorder %v713, %v3114
        %vm3576 = vcmp.eq.s32.totalorder %v712, %v3130
        %vm3577 = vcmp.eq.s32.totalorder %v713, %v3130
        %vm3578 = vcmp.eq.s32.totalorder %v712, %v3146
        %vm3579 = vcmp.eq.s32.totalorder %v713, %v3146
        %vm3580 = vcmp.eq.s32.totalorder %v712, %v3162
        %vm3581 = vcmp.eq.s32.totalorder %v713, %v3162
        %vm3582 = vcmp.eq.s32.totalorder %v712, %v3178
        %vm3583 = vcmp.eq.s32.totalorder %v713, %v3178
        %vm3584 = vcmp.eq.s32.totalorder %v712, %v3194
        %vm3585 = vcmp.eq.s32.totalorder %v713, %v3194
        %vm3586 = vcmp.eq.s32.totalorder %v712, %v3210
        %vm3587 = vcmp.eq.s32.totalorder %v713, %v3210
        %vm3588 = vcmp.eq.s32.totalorder %v712, %v3226
        %vm3589 = vcmp.eq.s32.totalorder %v713, %v3226
        %vm3590 = vcmp.eq.s32.totalorder %v712, %v3242
        %vm3591 = vcmp.eq.s32.totalorder %v713, %v3242
        %vm3592 = vcmp.eq.s32.totalorder %v712, %v3258
        %vm3593 = vcmp.eq.s32.totalorder %v713, %v3258
        %vm3594 = vcmp.eq.s32.totalorder %v712, %v3274
        %vm3595 = vcmp.eq.s32.totalorder %v713, %v3274
        %v3596 = vsel %vm3564, 3.4e+38, %v2875
        %v3597 = vsel %vm3565, 3.4e+38, %v2876
        %v3598 = vsel %vm3566, 3.4e+38, %v2877
        %v3599 = vsel %vm3567, 3.4e+38, %v2878
        %v3600 = vsel %vm3568, 3.4e+38, %v2879
        %v3601 = vsel %vm3569, 3.4e+38, %v2880
        %v3602 = vsel %vm3570, 3.4e+38, %v2881
        %v3603 = vsel %vm3571, 3.4e+38, %v2882
        %v3604 = vsel %vm3572, 3.4e+38, %v2883
        %v3605 = vsel %vm3573, 3.4e+38, %v2884
        %v3606 = vsel %vm3574, 3.4e+38, %v2885
        %v3607 = vsel %vm3575, 3.4e+38, %v2886
        %v3608 = vsel %vm3576, 3.4e+38, %v2887
        %v3609 = vsel %vm3577, 3.4e+38, %v2888
        %v3610 = vsel %vm3578, 3.4e+38, %v2889
        %v3611 = vsel %vm3579, 3.4e+38, %v2890
        %v3612 = vsel %vm3580, 3.4e+38, %v2891
        %v3613 = vsel %vm3581, 3.4e+38, %v2892
        %v3614 = vsel %vm3582, 3.4e+38, %v2893
        %v3615 = vsel %vm3583, 3.4e+38, %v2894
        %v3616 = vsel %vm3584, 3.4e+38, %v2895
        %v3617 = vsel %vm3585, 3.4e+38, %v2896
        %v3618 = vsel %vm3586, 3.4e+38, %v2897
        %v3619 = vsel %vm3587, 3.4e+38, %v2898
        %v3620 = vsel %vm3588, 3.4e+38, %v2899
        %v3621 = vsel %vm3589, 3.4e+38, %v2900
        %v3622 = vsel %vm3590, 3.4e+38, %v2901
        %v3623 = vsel %vm3591, 3.4e+38, %v2902
        %v3624 = vsel %vm3592, 3.4e+38, %v2903
        %v3625 = vsel %vm3593, 3.4e+38, %v2904
        %v3626 = vsel %vm3594, 3.4e+38, %v2905
        %v3627 = vsel %vm3595, 3.4e+38, %v2906
        %v3628 = vmin.f32 %v3596, %v3597
        %3629 = vmin.xlane.f32.xlu0 %v3628
        %v3630 = vpop.xlane.xlu0 %3629
        %v3631 = vmin.f32 %v3598, %v3599
        %3632 = vmin.xlane.f32.xlu0 %v3631
        %v3633 = vpop.xlane.xlu0 %3632
        %v3634 = vmin.f32 %v3600, %v3601
        %3635 = vmin.xlane.f32.xlu0 %v3634
        %v3636 = vpop.xlane.xlu0 %3635
        %v3637 = vmin.f32 %v3602, %v3603
        %3638 = vmin.xlane.f32.xlu0 %v3637
        %v3639 = vpop.xlane.xlu0 %3638
        %v3640 = vmin.f32 %v3604, %v3605
        %3641 = vmin.xlane.f32.xlu0 %v3640
        %v3642 = vpop.xlane.xlu0 %3641
        %v3643 = vmin.f32 %v3606, %v3607
        %3644 = vmin.xlane.f32.xlu0 %v3643
        %v3645 = vpop.xlane.xlu0 %3644
        %v3646 = vmin.f32 %v3608, %v3609
        %3647 = vmin.xlane.f32.xlu0 %v3646
        %v3648 = vpop.xlane.xlu0 %3647
        %v3649 = vmin.f32 %v3610, %v3611
        %3650 = vmin.xlane.f32.xlu0 %v3649
        %v3651 = vpop.xlane.xlu0 %3650
        %v3652 = vmin.f32 %v3612, %v3613
        %3653 = vmin.xlane.f32.xlu0 %v3652
        %v3654 = vpop.xlane.xlu0 %3653
        %v3655 = vmin.f32 %v3614, %v3615
        %3656 = vmin.xlane.f32.xlu0 %v3655
        %v3657 = vpop.xlane.xlu0 %3656
        %v3658 = vmin.f32 %v3616, %v3617
        %3659 = vmin.xlane.f32.xlu0 %v3658
        %v3660 = vpop.xlane.xlu0 %3659
        %v3661 = vmin.f32 %v3618, %v3619
        %3662 = vmin.xlane.f32.xlu0 %v3661
        %v3663 = vpop.xlane.xlu0 %3662
        %v3664 = vmin.f32 %v3620, %v3621
        %3665 = vmin.xlane.f32.xlu0 %v3664
        %v3666 = vpop.xlane.xlu0 %3665
        %v3667 = vmin.f32 %v3622, %v3623
        %3668 = vmin.xlane.f32.xlu0 %v3667
        %v3669 = vpop.xlane.xlu0 %3668
        %v3670 = vmin.f32 %v3624, %v3625
        %3671 = vmin.xlane.f32.xlu0 %v3670
        %v3672 = vpop.xlane.xlu0 %3671
        %v3673 = vmin.f32 %v3626, %v3627
        %3674 = vmin.xlane.f32.xlu0 %v3673
        %v3675 = vpop.xlane.xlu0 %3674
        %vm3676 = vcmp.eq.f32.partialorder %v3596, %v3630
        %vm3677 = vcmp.eq.f32.partialorder %v3597, %v3630
        %vm3678 = vcmp.eq.f32.partialorder %v3598, %v3633
        %vm3679 = vcmp.eq.f32.partialorder %v3599, %v3633
        %vm3680 = vcmp.eq.f32.partialorder %v3600, %v3636
        %vm3681 = vcmp.eq.f32.partialorder %v3601, %v3636
        %vm3682 = vcmp.eq.f32.partialorder %v3602, %v3639
        %vm3683 = vcmp.eq.f32.partialorder %v3603, %v3639
        %vm3684 = vcmp.eq.f32.partialorder %v3604, %v3642
        %vm3685 = vcmp.eq.f32.partialorder %v3605, %v3642
        %vm3686 = vcmp.eq.f32.partialorder %v3606, %v3645
        %vm3687 = vcmp.eq.f32.partialorder %v3607, %v3645
        %vm3688 = vcmp.eq.f32.partialorder %v3608, %v3648
        %vm3689 = vcmp.eq.f32.partialorder %v3609, %v3648
        %vm3690 = vcmp.eq.f32.partialorder %v3610, %v3651
        %vm3691 = vcmp.eq.f32.partialorder %v3611, %v3651
        %vm3692 = vcmp.eq.f32.partialorder %v3612, %v3654
        %vm3693 = vcmp.eq.f32.partialorder %v3613, %v3654
        %vm3694 = vcmp.eq.f32.partialorder %v3614, %v3657
        %vm3695 = vcmp.eq.f32.partialorder %v3615, %v3657
        %vm3696 = vcmp.eq.f32.partialorder %v3616, %v3660
        %vm3697 = vcmp.eq.f32.partialorder %v3617, %v3660
        %vm3698 = vcmp.eq.f32.partialorder %v3618, %v3663
        %vm3699 = vcmp.eq.f32.partialorder %v3619, %v3663
        %vm3700 = vcmp.eq.f32.partialorder %v3620, %v3666
        %vm3701 = vcmp.eq.f32.partialorder %v3621, %v3666
        %vm3702 = vcmp.eq.f32.partialorder %v3622, %v3669
        %vm3703 = vcmp.eq.f32.partialorder %v3623, %v3669
        %vm3704 = vcmp.eq.f32.partialorder %v3624, %v3672
        %vm3705 = vcmp.eq.f32.partialorder %v3625, %v3672
        %vm3706 = vcmp.eq.f32.partialorder %v3626, %v3675
        %vm3707 = vcmp.eq.f32.partialorder %v3627, %v3675
        %v3708 = vsel %vm3676, %v712, 256
        %v3709 = vsel %vm3677, %v713, 256
        %v3710 = vsel %vm3678, %v712, 256
        %v3711 = vsel %vm3679, %v713, 256
        %v3712 = vsel %vm3680, %v712, 256
        %v3713 = vsel %vm3681, %v713, 256
        %v3714 = vsel %vm3682, %v712, 256
        %v3715 = vsel %vm3683, %v713, 256
        %v3716 = vsel %vm3684, %v712, 256
        %v3717 = vsel %vm3685, %v713, 256
        %v3718 = vsel %vm3686, %v712, 256
        %v3719 = vsel %vm3687, %v713, 256
        %v3720 = vsel %vm3688, %v712, 256
        %v3721 = vsel %vm3689, %v713, 256
        %v3722 = vsel %vm3690, %v712, 256
        %v3723 = vsel %vm3691, %v713, 256
        %v3724 = vsel %vm3692, %v712, 256
        %v3725 = vsel %vm3693, %v713, 256
        %v3726 = vsel %vm3694, %v712, 256
        %v3727 = vsel %vm3695, %v713, 256
        %v3728 = vsel %vm3696, %v712, 256
        %v3729 = vsel %vm3697, %v713, 256
        %v3730 = vsel %vm3698, %v712, 256
        %v3731 = vsel %vm3699, %v713, 256
        %v3732 = vsel %vm3700, %v712, 256
        %v3733 = vsel %vm3701, %v713, 256
        %v3734 = vsel %vm3702, %v712, 256
        %v3735 = vsel %vm3703, %v713, 256
        %v3736 = vsel %vm3704, %v712, 256
        %v3737 = vsel %vm3705, %v713, 256
        %v3738 = vsel %vm3706, %v712, 256
        %v3739 = vsel %vm3707, %v713, 256
        %vm3740 = vcmp.lt.s32.totalorder %v3708, %v3709
        %v3741 = vsel %vm3740, %v3708, %v3709
        %v3742 = vand.u32 %v3741, 65535
        %v3743 = vshra.s32 %v3741, 16
        %v3744 = vcvt.s32.f32 %v3742
        %v3745 = vcvt.s32.f32 %v3743
        %3746 = vmin.xlane.f32.xlu0 %v3745
        %v3747 = vpop.xlane.xlu0 %3746
        %vm3748 = vcmp.eq.f32.partialorder %v3745, %v3747
        %v3749 = vsel %vm3748, %v3744, inf
        %3750 = vmin.xlane.f32.xlu0 %v3749
        %v3751 = vpop.xlane.xlu0 %3750
        %v3752 = vcvt.f32.s32 %v3751
        %v3753 = vcvt.f32.s32 %v3747
        %v3754 = vshll.u32 %v3753, 16
        %v3755 = vadd.s32 %v3754, %v3752
        %vm3756 = vcmp.lt.s32.totalorder %v3710, %v3711
        %v3757 = vsel %vm3756, %v3710, %v3711
        %v3758 = vand.u32 %v3757, 65535
        %v3759 = vshra.s32 %v3757, 16
        %v3760 = vcvt.s32.f32 %v3758
        %v3761 = vcvt.s32.f32 %v3759
        %3762 = vmin.xlane.f32.xlu0 %v3761
        %v3763 = vpop.xlane.xlu0 %3762
        %vm3764 = vcmp.eq.f32.partialorder %v3761, %v3763
        %v3765 = vsel %vm3764, %v3760, inf
        %3766 = vmin.xlane.f32.xlu0 %v3765
        %v3767 = vpop.xlane.xlu0 %3766
        %v3768 = vcvt.f32.s32 %v3767
        %v3769 = vcvt.f32.s32 %v3763
        %v3770 = vshll.u32 %v3769, 16
        %v3771 = vadd.s32 %v3770, %v3768
        %vm3772 = vcmp.lt.s32.totalorder %v3712, %v3713
        %v3773 = vsel %vm3772, %v3712, %v3713
        %v3774 = vand.u32 %v3773, 65535
        %v3775 = vshra.s32 %v3773, 16
        %v3776 = vcvt.s32.f32 %v3774
        %v3777 = vcvt.s32.f32 %v3775
        %3778 = vmin.xlane.f32.xlu0 %v3777
        %v3779 = vpop.xlane.xlu0 %3778
        %vm3780 = vcmp.eq.f32.partialorder %v3777, %v3779
        %v3781 = vsel %vm3780, %v3776, inf
        %3782 = vmin.xlane.f32.xlu0 %v3781
        %v3783 = vpop.xlane.xlu0 %3782
        %v3784 = vcvt.f32.s32 %v3783
        %v3785 = vcvt.f32.s32 %v3779
        %v3786 = vshll.u32 %v3785, 16
        %v3787 = vadd.s32 %v3786, %v3784
        %vm3788 = vcmp.lt.s32.totalorder %v3714, %v3715
        %v3789 = vsel %vm3788, %v3714, %v3715
        %v3790 = vand.u32 %v3789, 65535
        %v3791 = vshra.s32 %v3789, 16
        %v3792 = vcvt.s32.f32 %v3790
        %v3793 = vcvt.s32.f32 %v3791
        %3794 = vmin.xlane.f32.xlu0 %v3793
        %v3795 = vpop.xlane.xlu0 %3794
        %vm3796 = vcmp.eq.f32.partialorder %v3793, %v3795
        %v3797 = vsel %vm3796, %v3792, inf
        %3798 = vmin.xlane.f32.xlu0 %v3797
        %v3799 = vpop.xlane.xlu0 %3798
        %v3800 = vcvt.f32.s32 %v3799
        %v3801 = vcvt.f32.s32 %v3795
        %v3802 = vshll.u32 %v3801, 16
        %v3803 = vadd.s32 %v3802, %v3800
        %vm3804 = vcmp.lt.s32.totalorder %v3716, %v3717
        %v3805 = vsel %vm3804, %v3716, %v3717
        %v3806 = vand.u32 %v3805, 65535
        %v3807 = vshra.s32 %v3805, 16
        %v3808 = vcvt.s32.f32 %v3806
        %v3809 = vcvt.s32.f32 %v3807
        %3810 = vmin.xlane.f32.xlu0 %v3809
        %v3811 = vpop.xlane.xlu0 %3810
        %vm3812 = vcmp.eq.f32.partialorder %v3809, %v3811
        %v3813 = vsel %vm3812, %v3808, inf
        %3814 = vmin.xlane.f32.xlu0 %v3813
        %v3815 = vpop.xlane.xlu0 %3814
        %v3816 = vcvt.f32.s32 %v3815
        %v3817 = vcvt.f32.s32 %v3811
        %v3818 = vshll.u32 %v3817, 16
        %v3819 = vadd.s32 %v3818, %v3816
        %vm3820 = vcmp.lt.s32.totalorder %v3718, %v3719
        %v3821 = vsel %vm3820, %v3718, %v3719
        %v3822 = vand.u32 %v3821, 65535
        %v3823 = vshra.s32 %v3821, 16
        %v3824 = vcvt.s32.f32 %v3822
        %v3825 = vcvt.s32.f32 %v3823
        %3826 = vmin.xlane.f32.xlu0 %v3825
        %v3827 = vpop.xlane.xlu0 %3826
        %vm3828 = vcmp.eq.f32.partialorder %v3825, %v3827
        %v3829 = vsel %vm3828, %v3824, inf
        %3830 = vmin.xlane.f32.xlu0 %v3829
        %v3831 = vpop.xlane.xlu0 %3830
        %v3832 = vcvt.f32.s32 %v3831
        %v3833 = vcvt.f32.s32 %v3827
        %v3834 = vshll.u32 %v3833, 16
        %v3835 = vadd.s32 %v3834, %v3832
        %vm3836 = vcmp.lt.s32.totalorder %v3720, %v3721
        %v3837 = vsel %vm3836, %v3720, %v3721
        %v3838 = vand.u32 %v3837, 65535
        %v3839 = vshra.s32 %v3837, 16
        %v3840 = vcvt.s32.f32 %v3838
        %v3841 = vcvt.s32.f32 %v3839
        %3842 = vmin.xlane.f32.xlu0 %v3841
        %v3843 = vpop.xlane.xlu0 %3842
        %vm3844 = vcmp.eq.f32.partialorder %v3841, %v3843
        %v3845 = vsel %vm3844, %v3840, inf
        %3846 = vmin.xlane.f32.xlu0 %v3845
        %v3847 = vpop.xlane.xlu0 %3846
        %v3848 = vcvt.f32.s32 %v3847
        %v3849 = vcvt.f32.s32 %v3843
        %v3850 = vshll.u32 %v3849, 16
        %v3851 = vadd.s32 %v3850, %v3848
        %vm3852 = vcmp.lt.s32.totalorder %v3722, %v3723
        %v3853 = vsel %vm3852, %v3722, %v3723
        %v3854 = vand.u32 %v3853, 65535
        %v3855 = vshra.s32 %v3853, 16
        %v3856 = vcvt.s32.f32 %v3854
        %v3857 = vcvt.s32.f32 %v3855
        %3858 = vmin.xlane.f32.xlu0 %v3857
        %v3859 = vpop.xlane.xlu0 %3858
        %vm3860 = vcmp.eq.f32.partialorder %v3857, %v3859
        %v3861 = vsel %vm3860, %v3856, inf
        %3862 = vmin.xlane.f32.xlu0 %v3861
        %v3863 = vpop.xlane.xlu0 %3862
        %v3864 = vcvt.f32.s32 %v3863
        %v3865 = vcvt.f32.s32 %v3859
        %v3866 = vshll.u32 %v3865, 16
        %v3867 = vadd.s32 %v3866, %v3864
        %vm3868 = vcmp.lt.s32.totalorder %v3724, %v3725
        %v3869 = vsel %vm3868, %v3724, %v3725
        %v3870 = vand.u32 %v3869, 65535
        %v3871 = vshra.s32 %v3869, 16
        %v3872 = vcvt.s32.f32 %v3870
        %v3873 = vcvt.s32.f32 %v3871
        %3874 = vmin.xlane.f32.xlu0 %v3873
        %v3875 = vpop.xlane.xlu0 %3874
        %vm3876 = vcmp.eq.f32.partialorder %v3873, %v3875
        %v3877 = vsel %vm3876, %v3872, inf
        %3878 = vmin.xlane.f32.xlu0 %v3877
        %v3879 = vpop.xlane.xlu0 %3878
        %v3880 = vcvt.f32.s32 %v3879
        %v3881 = vcvt.f32.s32 %v3875
        %v3882 = vshll.u32 %v3881, 16
        %v3883 = vadd.s32 %v3882, %v3880
        %vm3884 = vcmp.lt.s32.totalorder %v3726, %v3727
        %v3885 = vsel %vm3884, %v3726, %v3727
        %v3886 = vand.u32 %v3885, 65535
        %v3887 = vshra.s32 %v3885, 16
        %v3888 = vcvt.s32.f32 %v3886
        %v3889 = vcvt.s32.f32 %v3887
        %3890 = vmin.xlane.f32.xlu0 %v3889
        %v3891 = vpop.xlane.xlu0 %3890
        %vm3892 = vcmp.eq.f32.partialorder %v3889, %v3891
        %v3893 = vsel %vm3892, %v3888, inf
        %3894 = vmin.xlane.f32.xlu0 %v3893
        %v3895 = vpop.xlane.xlu0 %3894
        %v3896 = vcvt.f32.s32 %v3895
        %v3897 = vcvt.f32.s32 %v3891
        %v3898 = vshll.u32 %v3897, 16
        %v3899 = vadd.s32 %v3898, %v3896
        %vm3900 = vcmp.lt.s32.totalorder %v3728, %v3729
        %v3901 = vsel %vm3900, %v3728, %v3729
        %v3902 = vand.u32 %v3901, 65535
        %v3903 = vshra.s32 %v3901, 16
        %v3904 = vcvt.s32.f32 %v3902
        %v3905 = vcvt.s32.f32 %v3903
        %3906 = vmin.xlane.f32.xlu0 %v3905
        %v3907 = vpop.xlane.xlu0 %3906
        %vm3908 = vcmp.eq.f32.partialorder %v3905, %v3907
        %v3909 = vsel %vm3908, %v3904, inf
        %3910 = vmin.xlane.f32.xlu0 %v3909
        %v3911 = vpop.xlane.xlu0 %3910
        %v3912 = vcvt.f32.s32 %v3911
        %v3913 = vcvt.f32.s32 %v3907
        %v3914 = vshll.u32 %v3913, 16
        %v3915 = vadd.s32 %v3914, %v3912
        %vm3916 = vcmp.lt.s32.totalorder %v3730, %v3731
        %v3917 = vsel %vm3916, %v3730, %v3731
        %v3918 = vand.u32 %v3917, 65535
        %v3919 = vshra.s32 %v3917, 16
        %v3920 = vcvt.s32.f32 %v3918
        %v3921 = vcvt.s32.f32 %v3919
        %3922 = vmin.xlane.f32.xlu0 %v3921
        %v3923 = vpop.xlane.xlu0 %3922
        %vm3924 = vcmp.eq.f32.partialorder %v3921, %v3923
        %v3925 = vsel %vm3924, %v3920, inf
        %3926 = vmin.xlane.f32.xlu0 %v3925
        %v3927 = vpop.xlane.xlu0 %3926
        %v3928 = vcvt.f32.s32 %v3927
        %v3929 = vcvt.f32.s32 %v3923
        %v3930 = vshll.u32 %v3929, 16
        %v3931 = vadd.s32 %v3930, %v3928
        %vm3932 = vcmp.lt.s32.totalorder %v3732, %v3733
        %v3933 = vsel %vm3932, %v3732, %v3733
        %v3934 = vand.u32 %v3933, 65535
        %v3935 = vshra.s32 %v3933, 16
        %v3936 = vcvt.s32.f32 %v3934
        %v3937 = vcvt.s32.f32 %v3935
        %3938 = vmin.xlane.f32.xlu0 %v3937
        %v3939 = vpop.xlane.xlu0 %3938
        %vm3940 = vcmp.eq.f32.partialorder %v3937, %v3939
        %v3941 = vsel %vm3940, %v3936, inf
        %3942 = vmin.xlane.f32.xlu0 %v3941
        %v3943 = vpop.xlane.xlu0 %3942
        %v3944 = vcvt.f32.s32 %v3943
        %v3945 = vcvt.f32.s32 %v3939
        %v3946 = vshll.u32 %v3945, 16
        %v3947 = vadd.s32 %v3946, %v3944
        %vm3948 = vcmp.lt.s32.totalorder %v3734, %v3735
        %v3949 = vsel %vm3948, %v3734, %v3735
        %v3950 = vand.u32 %v3949, 65535
        %v3951 = vshra.s32 %v3949, 16
        %v3952 = vcvt.s32.f32 %v3950
        %v3953 = vcvt.s32.f32 %v3951
        %3954 = vmin.xlane.f32.xlu0 %v3953
        %v3955 = vpop.xlane.xlu0 %3954
        %vm3956 = vcmp.eq.f32.partialorder %v3953, %v3955
        %v3957 = vsel %vm3956, %v3952, inf
        %3958 = vmin.xlane.f32.xlu0 %v3957
        %v3959 = vpop.xlane.xlu0 %3958
        %v3960 = vcvt.f32.s32 %v3959
        %v3961 = vcvt.f32.s32 %v3955
        %v3962 = vshll.u32 %v3961, 16
        %v3963 = vadd.s32 %v3962, %v3960
        %vm3964 = vcmp.lt.s32.totalorder %v3736, %v3737
        %v3965 = vsel %vm3964, %v3736, %v3737
        %v3966 = vand.u32 %v3965, 65535
        %v3967 = vshra.s32 %v3965, 16
        %v3968 = vcvt.s32.f32 %v3966
        %v3969 = vcvt.s32.f32 %v3967
        %3970 = vmin.xlane.f32.xlu0 %v3969
        %v3971 = vpop.xlane.xlu0 %3970
        %vm3972 = vcmp.eq.f32.partialorder %v3969, %v3971
        %v3973 = vsel %vm3972, %v3968, inf
        %3974 = vmin.xlane.f32.xlu0 %v3973
        %v3975 = vpop.xlane.xlu0 %3974
        %v3976 = vcvt.f32.s32 %v3975
        %v3977 = vcvt.f32.s32 %v3971
        %v3978 = vshll.u32 %v3977, 16
        %v3979 = vadd.s32 %v3978, %v3976
        %vm3980 = vcmp.lt.s32.totalorder %v3738, %v3739
        %v3981 = vsel %vm3980, %v3738, %v3739
        %v3982 = vand.u32 %v3981, 65535
        %v3983 = vshra.s32 %v3981, 16
        %v3984 = vcvt.s32.f32 %v3982
        %v3985 = vcvt.s32.f32 %v3983
        %3986 = vmin.xlane.f32.xlu0 %v3985
        %v3987 = vpop.xlane.xlu0 %3986
        %vm3988 = vcmp.eq.f32.partialorder %v3985, %v3987
        %v3989 = vsel %vm3988, %v3984, inf
        %3990 = vmin.xlane.f32.xlu0 %v3989
        %v3991 = vpop.xlane.xlu0 %3990
        %v3992 = vcvt.f32.s32 %v3991
        %v3993 = vcvt.f32.s32 %v3987
        %v3994 = vshll.u32 %v3993, 16
        %v3995 = vadd.s32 %v3994, %v3992
        %v3996 = vlaneseq
        %v3997 = vshrl.u32 %v3996, 7
        %v3998 = vsub.s32 %v712, %v3997
        %v3999 = vrot.slane %v3755, %v3998
        %v4000 = vlaneseq
        %v4001 = vshrl.u32 %v4000, 7
        %v4002 = vsub.s32 %v1086, %v4001
        %v4003 = vrot.slane %v3771, %v4002
        %v4004 = vsel %vm1091, %v4003, %v3999
        %v4005 = vlaneseq
        %v4006 = vshrl.u32 %v4005, 7
        %v4007 = vsub.s32 %v1093, %v4006
        %v4008 = vrot.slane %v3787, %v4007
        %v4009 = vsel %vm1098, %v4008, %v4004
        %v4010 = vlaneseq
        %v4011 = vshrl.u32 %v4010, 7
        %v4012 = vsub.s32 %v1100, %v4011
        %v4013 = vrot.slane %v3803, %v4012
        %v4014 = vsel %vm1105, %v4013, %v4009
        %v4015 = vlaneseq
        %v4016 = vshrl.u32 %v4015, 7
        %v4017 = vsub.s32 %v1107, %v4016
        %v4018 = vrot.slane %v3819, %v4017
        %v4019 = vsel %vm1112, %v4018, %v4014
        %v4020 = vlaneseq
        %v4021 = vshrl.u32 %v4020, 7
        %v4022 = vsub.s32 %v1114, %v4021
        %v4023 = vrot.slane %v3835, %v4022
        %v4024 = vsel %vm1119, %v4023, %v4019
        %v4025 = vlaneseq
        %v4026 = vshrl.u32 %v4025, 7
        %v4027 = vsub.s32 %v1121, %v4026
        %v4028 = vrot.slane %v3851, %v4027
        %v4029 = vsel %vm1126, %v4028, %v4024
        %v4030 = vlaneseq
        %v4031 = vshrl.u32 %v4030, 7
        %v4032 = vsub.s32 %v1128, %v4031
        %v4033 = vrot.slane %v3867, %v4032
        %v4034 = vsel %vm1133, %v4033, %v4029
        %v4035 = vlaneseq
        %v4036 = vshrl.u32 %v4035, 7
        %v4037 = vsub.s32 %v1135, %v4036
        %v4038 = vrot.slane %v3883, %v4037
        %v4039 = vsel %vm1140, %v4038, %v4034
        %v4040 = vlaneseq
        %v4041 = vshrl.u32 %v4040, 7
        %v4042 = vsub.s32 %v1142, %v4041
        %v4043 = vrot.slane %v3899, %v4042
        %v4044 = vsel %vm1147, %v4043, %v4039
        %v4045 = vlaneseq
        %v4046 = vshrl.u32 %v4045, 7
        %v4047 = vsub.s32 %v1149, %v4046
        %v4048 = vrot.slane %v3915, %v4047
        %v4049 = vsel %vm1154, %v4048, %v4044
        %v4050 = vlaneseq
        %v4051 = vshrl.u32 %v4050, 7
        %v4052 = vsub.s32 %v1156, %v4051
        %v4053 = vrot.slane %v3931, %v4052
        %v4054 = vsel %vm1161, %v4053, %v4049
        %v4055 = vlaneseq
        %v4056 = vshrl.u32 %v4055, 7
        %v4057 = vsub.s32 %v1163, %v4056
        %v4058 = vrot.slane %v3947, %v4057
        %v4059 = vsel %vm1168, %v4058, %v4054
        %v4060 = vlaneseq
        %v4061 = vshrl.u32 %v4060, 7
        %v4062 = vsub.s32 %v1170, %v4061
        %v4063 = vrot.slane %v3963, %v4062
        %v4064 = vsel %vm1175, %v4063, %v4059
        %v4065 = vlaneseq
        %v4066 = vshrl.u32 %v4065, 7
        %v4067 = vsub.s32 %v1177, %v4066
        %v4068 = vrot.slane %v3979, %v4067
        %v4069 = vsel %vm1182, %v4068, %v4064
        %v4070 = vlaneseq
        %v4071 = vshrl.u32 %v4070, 7
        %v4072 = vsub.s32 %v1184, %v4071
        %v4073 = vrot.slane %v3995, %v4072
        %v4074 = vsel %vm1189, %v4073, %v4069
        %4075 = vst [vmem:[%s246 + $0x4] sm:$0x1] %v4074
        %v4076 = vrsqrt.pop %v3630
        %v4077 = vmul.f32 %v3630, %v4076
        %vm4078 = vcmp.eq.f32.partialorder %v3630, inf
        %v4079 = vsel %vm4078, %v3630, %v4077
        %vm4080 = vcmp.eq.f32.partialorder %v3630, 0.0
        %v4081 = vand.u32 %v3630, 2147483648
        %v4082 = vsel %vm4080, %v4081, %v4079
        %v4083 = vrsqrt.pop %v3633
        %v4084 = vmul.f32 %v3633, %v4083
        %vm4085 = vcmp.eq.f32.partialorder %v3633, inf
        %v4086 = vsel %vm4085, %v3633, %v4084
        %vm4087 = vcmp.eq.f32.partialorder %v3633, 0.0
        %v4088 = vand.u32 %v3633, 2147483648
        %v4089 = vsel %vm4087, %v4088, %v4086
        %v4090 = vrsqrt.pop %v3636
        %v4091 = vmul.f32 %v3636, %v4090
        %vm4092 = vcmp.eq.f32.partialorder %v3636, inf
        %v4093 = vsel %vm4092, %v3636, %v4091
        %vm4094 = vcmp.eq.f32.partialorder %v3636, 0.0
        %v4095 = vand.u32 %v3636, 2147483648
        %v4096 = vsel %vm4094, %v4095, %v4093
        %v4097 = vrsqrt.pop %v3639
        %v4098 = vmul.f32 %v3639, %v4097
        %vm4099 = vcmp.eq.f32.partialorder %v3639, inf
        %v4100 = vsel %vm4099, %v3639, %v4098
        %vm4101 = vcmp.eq.f32.partialorder %v3639, 0.0
        %v4102 = vand.u32 %v3639, 2147483648
        %v4103 = vsel %vm4101, %v4102, %v4100
        %v4104 = vrsqrt.pop %v3642
        %v4105 = vmul.f32 %v3642, %v4104
        %vm4106 = vcmp.eq.f32.partialorder %v3642, inf
        %v4107 = vsel %vm4106, %v3642, %v4105
        %vm4108 = vcmp.eq.f32.partialorder %v3642, 0.0
        %v4109 = vand.u32 %v3642, 2147483648
        %v4110 = vsel %vm4108, %v4109, %v4107
        %v4111 = vrsqrt.pop %v3645
        %v4112 = vmul.f32 %v3645, %v4111
        %vm4113 = vcmp.eq.f32.partialorder %v3645, inf
        %v4114 = vsel %vm4113, %v3645, %v4112
        %vm4115 = vcmp.eq.f32.partialorder %v3645, 0.0
        %v4116 = vand.u32 %v3645, 2147483648
        %v4117 = vsel %vm4115, %v4116, %v4114
        %v4118 = vrsqrt.pop %v3648
        %v4119 = vmul.f32 %v3648, %v4118
        %vm4120 = vcmp.eq.f32.partialorder %v3648, inf
        %v4121 = vsel %vm4120, %v3648, %v4119
        %vm4122 = vcmp.eq.f32.partialorder %v3648, 0.0
        %v4123 = vand.u32 %v3648, 2147483648
        %v4124 = vsel %vm4122, %v4123, %v4121
        %v4125 = vrsqrt.pop %v3651
        %v4126 = vmul.f32 %v3651, %v4125
        %vm4127 = vcmp.eq.f32.partialorder %v3651, inf
        %v4128 = vsel %vm4127, %v3651, %v4126
        %vm4129 = vcmp.eq.f32.partialorder %v3651, 0.0
        %v4130 = vand.u32 %v3651, 2147483648
        %v4131 = vsel %vm4129, %v4130, %v4128
        %v4132 = vrsqrt.pop %v3654
        %v4133 = vmul.f32 %v3654, %v4132
        %vm4134 = vcmp.eq.f32.partialorder %v3654, inf
        %v4135 = vsel %vm4134, %v3654, %v4133
        %vm4136 = vcmp.eq.f32.partialorder %v3654, 0.0
        %v4137 = vand.u32 %v3654, 2147483648
        %v4138 = vsel %vm4136, %v4137, %v4135
        %v4139 = vrsqrt.pop %v3657
        %v4140 = vmul.f32 %v3657, %v4139
        %vm4141 = vcmp.eq.f32.partialorder %v3657, inf
        %v4142 = vsel %vm4141, %v3657, %v4140
        %vm4143 = vcmp.eq.f32.partialorder %v3657, 0.0
        %v4144 = vand.u32 %v3657, 2147483648
        %v4145 = vsel %vm4143, %v4144, %v4142
        %v4146 = vrsqrt.pop %v3660
        %v4147 = vmul.f32 %v3660, %v4146
        %vm4148 = vcmp.eq.f32.partialorder %v3660, inf
        %v4149 = vsel %vm4148, %v3660, %v4147
        %vm4150 = vcmp.eq.f32.partialorder %v3660, 0.0
        %v4151 = vand.u32 %v3660, 2147483648
        %v4152 = vsel %vm4150, %v4151, %v4149
        %v4153 = vrsqrt.pop %v3663
        %v4154 = vmul.f32 %v3663, %v4153
        %vm4155 = vcmp.eq.f32.partialorder %v3663, inf
        %v4156 = vsel %vm4155, %v3663, %v4154
        %vm4157 = vcmp.eq.f32.partialorder %v3663, 0.0
        %v4158 = vand.u32 %v3663, 2147483648
        %v4159 = vsel %vm4157, %v4158, %v4156
        %v4160 = vrsqrt.pop %v3666
        %v4161 = vmul.f32 %v3666, %v4160
        %vm4162 = vcmp.eq.f32.partialorder %v3666, inf
        %v4163 = vsel %vm4162, %v3666, %v4161
        %vm4164 = vcmp.eq.f32.partialorder %v3666, 0.0
        %v4165 = vand.u32 %v3666, 2147483648
        %v4166 = vsel %vm4164, %v4165, %v4163
        %v4167 = vrsqrt.pop %v3669
        %v4168 = vmul.f32 %v3669, %v4167
        %vm4169 = vcmp.eq.f32.partialorder %v3669, inf
        %v4170 = vsel %vm4169, %v3669, %v4168
        %vm4171 = vcmp.eq.f32.partialorder %v3669, 0.0
        %v4172 = vand.u32 %v3669, 2147483648
        %v4173 = vsel %vm4171, %v4172, %v4170
        %v4174 = vrsqrt.pop %v3672
        %v4175 = vmul.f32 %v3672, %v4174
        %vm4176 = vcmp.eq.f32.partialorder %v3672, inf
        %v4177 = vsel %vm4176, %v3672, %v4175
        %vm4178 = vcmp.eq.f32.partialorder %v3672, 0.0
        %v4179 = vand.u32 %v3672, 2147483648
        %v4180 = vsel %vm4178, %v4179, %v4177
        %v4181 = vrsqrt.pop %v3675
        %v4182 = vmul.f32 %v3675, %v4181
        %vm4183 = vcmp.eq.f32.partialorder %v3675, inf
        %v4184 = vsel %vm4183, %v3675, %v4182
        %vm4185 = vcmp.eq.f32.partialorder %v3675, 0.0
        %v4186 = vand.u32 %v3675, 2147483648
        %v4187 = vsel %vm4185, %v4186, %v4184
        %v4204 = vlaneseq
        %v4205 = vshrl.u32 %v4204, 7
        %v4206 = vsub.s32 %v712, %v4205
        %v4207 = vrot.slane %v4082, %v4206
        %v4208 = vlaneseq
        %v4209 = vshrl.u32 %v4208, 7
        %v4210 = vsub.s32 %v1086, %v4209
        %v4211 = vrot.slane %v4089, %v4210
        %v4212 = vsel %vm1091, %v4211, %v4207
        %v4213 = vlaneseq
        %v4214 = vshrl.u32 %v4213, 7
        %v4215 = vsub.s32 %v1093, %v4214
        %v4216 = vrot.slane %v4096, %v4215
        %v4217 = vsel %vm1098, %v4216, %v4212
        %v4218 = vlaneseq
        %v4219 = vshrl.u32 %v4218, 7
        %v4220 = vsub.s32 %v1100, %v4219
        %v4221 = vrot.slane %v4103, %v4220
        %v4222 = vsel %vm1105, %v4221, %v4217
        %v4223 = vlaneseq
        %v4224 = vshrl.u32 %v4223, 7
        %v4225 = vsub.s32 %v1107, %v4224
        %v4226 = vrot.slane %v4110, %v4225
        %v4227 = vsel %vm1112, %v4226, %v4222
        %v4228 = vlaneseq
        %v4229 = vshrl.u32 %v4228, 7
        %v4230 = vsub.s32 %v1114, %v4229
        %v4231 = vrot.slane %v4117, %v4230
        %v4232 = vsel %vm1119, %v4231, %v4227
        %v4233 = vlaneseq
        %v4234 = vshrl.u32 %v4233, 7
        %v4235 = vsub.s32 %v1121, %v4234
        %v4236 = vrot.slane %v4124, %v4235
        %v4237 = vsel %vm1126, %v4236, %v4232
        %v4238 = vlaneseq
        %v4239 = vshrl.u32 %v4238, 7
        %v4240 = vsub.s32 %v1128, %v4239
        %v4241 = vrot.slane %v4131, %v4240
        %v4242 = vsel %vm1133, %v4241, %v4237
        %v4243 = vlaneseq
        %v4244 = vshrl.u32 %v4243, 7
        %v4245 = vsub.s32 %v1135, %v4244
        %v4246 = vrot.slane %v4138, %v4245
        %v4247 = vsel %vm1140, %v4246, %v4242
        %v4248 = vlaneseq
        %v4249 = vshrl.u32 %v4248, 7
        %v4250 = vsub.s32 %v1142, %v4249
        %v4251 = vrot.slane %v4145, %v4250
        %v4252 = vsel %vm1147, %v4251, %v4247
        %v4253 = vlaneseq
        %v4254 = vshrl.u32 %v4253, 7
        %v4255 = vsub.s32 %v1149, %v4254
        %v4256 = vrot.slane %v4152, %v4255
        %v4257 = vsel %vm1154, %v4256, %v4252
        %v4258 = vlaneseq
        %v4259 = vshrl.u32 %v4258, 7
        %v4260 = vsub.s32 %v1156, %v4259
        %v4261 = vrot.slane %v4159, %v4260
        %v4262 = vsel %vm1161, %v4261, %v4257
        %v4263 = vlaneseq
        %v4264 = vshrl.u32 %v4263, 7
        %v4265 = vsub.s32 %v1163, %v4264
        %v4266 = vrot.slane %v4166, %v4265
        %v4267 = vsel %vm1168, %v4266, %v4262
        %v4268 = vlaneseq
        %v4269 = vshrl.u32 %v4268, 7
        %v4270 = vsub.s32 %v1170, %v4269
        %v4271 = vrot.slane %v4173, %v4270
        %v4272 = vsel %vm1175, %v4271, %v4267
        %v4273 = vlaneseq
        %v4274 = vshrl.u32 %v4273, 7
        %v4275 = vsub.s32 %v1177, %v4274
        %v4276 = vrot.slane %v4180, %v4275
        %v4277 = vsel %vm1182, %v4276, %v4272
        %v4278 = vlaneseq
        %v4279 = vshrl.u32 %v4278, 7
        %v4280 = vsub.s32 %v1184, %v4279
        %v4281 = vrot.slane %v4187, %v4280
        %v4282 = vsel %vm1189, %v4281, %v4277
        %4284 = vst [vmem:[%s253 + $0x4] sm:$0x1] %v4282
        %vm4285 = vcmp.eq.s32.totalorder %v712, %v3755
        %vm4286 = vcmp.eq.s32.totalorder %v713, %v3755
        %vm4287 = vcmp.eq.s32.totalorder %v712, %v3771
        %vm4288 = vcmp.eq.s32.totalorder %v713, %v3771
        %vm4289 = vcmp.eq.s32.totalorder %v712, %v3787
        %vm4290 = vcmp.eq.s32.totalorder %v713, %v3787
        %vm4291 = vcmp.eq.s32.totalorder %v712, %v3803
        %vm4292 = vcmp.eq.s32.totalorder %v713, %v3803
        %vm4293 = vcmp.eq.s32.totalorder %v712, %v3819
        %vm4294 = vcmp.eq.s32.totalorder %v713, %v3819
        %vm4295 = vcmp.eq.s32.totalorder %v712, %v3835
        %vm4296 = vcmp.eq.s32.totalorder %v713, %v3835
        %vm4297 = vcmp.eq.s32.totalorder %v712, %v3851
        %vm4298 = vcmp.eq.s32.totalorder %v713, %v3851
        %vm4299 = vcmp.eq.s32.totalorder %v712, %v3867
        %vm4300 = vcmp.eq.s32.totalorder %v713, %v3867
        %vm4301 = vcmp.eq.s32.totalorder %v712, %v3883
        %vm4302 = vcmp.eq.s32.totalorder %v713, %v3883
        %vm4303 = vcmp.eq.s32.totalorder %v712, %v3899
        %vm4304 = vcmp.eq.s32.totalorder %v713, %v3899
        %vm4305 = vcmp.eq.s32.totalorder %v712, %v3915
        %vm4306 = vcmp.eq.s32.totalorder %v713, %v3915
        %vm4307 = vcmp.eq.s32.totalorder %v712, %v3931
        %vm4308 = vcmp.eq.s32.totalorder %v713, %v3931
        %vm4309 = vcmp.eq.s32.totalorder %v712, %v3947
        %vm4310 = vcmp.eq.s32.totalorder %v713, %v3947
        %vm4311 = vcmp.eq.s32.totalorder %v712, %v3963
        %vm4312 = vcmp.eq.s32.totalorder %v713, %v3963
        %vm4313 = vcmp.eq.s32.totalorder %v712, %v3979
        %vm4314 = vcmp.eq.s32.totalorder %v713, %v3979
        %vm4315 = vcmp.eq.s32.totalorder %v712, %v3995
        %vm4316 = vcmp.eq.s32.totalorder %v713, %v3995
        %v4317 = vsel %vm4285, 3.4e+38, %v3596
        %v4318 = vsel %vm4286, 3.4e+38, %v3597
        %v4319 = vsel %vm4287, 3.4e+38, %v3598
        %v4320 = vsel %vm4288, 3.4e+38, %v3599
        %v4321 = vsel %vm4289, 3.4e+38, %v3600
        %v4322 = vsel %vm4290, 3.4e+38, %v3601
        %v4323 = vsel %vm4291, 3.4e+38, %v3602
        %v4324 = vsel %vm4292, 3.4e+38, %v3603
        %v4325 = vsel %vm4293, 3.4e+38, %v3604
        %v4326 = vsel %vm4294, 3.4e+38, %v3605
        %v4327 = vsel %vm4295, 3.4e+38, %v3606
        %v4328 = vsel %vm4296, 3.4e+38, %v3607
        %v4329 = vsel %vm4297, 3.4e+38, %v3608
        %v4330 = vsel %vm4298, 3.4e+38, %v3609
        %v4331 = vsel %vm4299, 3.4e+38, %v3610
        %v4332 = vsel %vm4300, 3.4e+38, %v3611
        %v4333 = vsel %vm4301, 3.4e+38, %v3612
        %v4334 = vsel %vm4302, 3.4e+38, %v3613
        %v4335 = vsel %vm4303, 3.4e+38, %v3614
        %v4336 = vsel %vm4304, 3.4e+38, %v3615
        %v4337 = vsel %vm4305, 3.4e+38, %v3616
        %v4338 = vsel %vm4306, 3.4e+38, %v3617
        %v4339 = vsel %vm4307, 3.4e+38, %v3618
        %v4340 = vsel %vm4308, 3.4e+38, %v3619
        %v4341 = vsel %vm4309, 3.4e+38, %v3620
        %v4342 = vsel %vm4310, 3.4e+38, %v3621
        %v4343 = vsel %vm4311, 3.4e+38, %v3622
        %v4344 = vsel %vm4312, 3.4e+38, %v3623
        %v4345 = vsel %vm4313, 3.4e+38, %v3624
        %v4346 = vsel %vm4314, 3.4e+38, %v3625
        %v4347 = vsel %vm4315, 3.4e+38, %v3626
        %v4348 = vsel %vm4316, 3.4e+38, %v3627
        %v4349 = vmin.f32 %v4317, %v4318
        %4350 = vmin.xlane.f32.xlu0 %v4349
        %v4351 = vpop.xlane.xlu0 %4350
        %v4352 = vmin.f32 %v4319, %v4320
        %4353 = vmin.xlane.f32.xlu0 %v4352
        %v4354 = vpop.xlane.xlu0 %4353
        %v4355 = vmin.f32 %v4321, %v4322
        %4356 = vmin.xlane.f32.xlu0 %v4355
        %v4357 = vpop.xlane.xlu0 %4356
        %v4358 = vmin.f32 %v4323, %v4324
        %4359 = vmin.xlane.f32.xlu0 %v4358
        %v4360 = vpop.xlane.xlu0 %4359
        %v4361 = vmin.f32 %v4325, %v4326
        %4362 = vmin.xlane.f32.xlu0 %v4361
        %v4363 = vpop.xlane.xlu0 %4362
        %v4364 = vmin.f32 %v4327, %v4328
        %4365 = vmin.xlane.f32.xlu0 %v4364
        %v4366 = vpop.xlane.xlu0 %4365
        %v4367 = vmin.f32 %v4329, %v4330
        %4368 = vmin.xlane.f32.xlu0 %v4367
        %v4369 = vpop.xlane.xlu0 %4368
        %v4370 = vmin.f32 %v4331, %v4332
        %4371 = vmin.xlane.f32.xlu0 %v4370
        %v4372 = vpop.xlane.xlu0 %4371
        %v4373 = vmin.f32 %v4333, %v4334
        %4374 = vmin.xlane.f32.xlu0 %v4373
        %v4375 = vpop.xlane.xlu0 %4374
        %v4376 = vmin.f32 %v4335, %v4336
        %4377 = vmin.xlane.f32.xlu0 %v4376
        %v4378 = vpop.xlane.xlu0 %4377
        %v4379 = vmin.f32 %v4337, %v4338
        %4380 = vmin.xlane.f32.xlu0 %v4379
        %v4381 = vpop.xlane.xlu0 %4380
        %v4382 = vmin.f32 %v4339, %v4340
        %4383 = vmin.xlane.f32.xlu0 %v4382
        %v4384 = vpop.xlane.xlu0 %4383
        %v4385 = vmin.f32 %v4341, %v4342
        %4386 = vmin.xlane.f32.xlu0 %v4385
        %v4387 = vpop.xlane.xlu0 %4386
        %v4388 = vmin.f32 %v4343, %v4344
        %4389 = vmin.xlane.f32.xlu0 %v4388
        %v4390 = vpop.xlane.xlu0 %4389
        %v4391 = vmin.f32 %v4345, %v4346
        %4392 = vmin.xlane.f32.xlu0 %v4391
        %v4393 = vpop.xlane.xlu0 %4392
        %v4394 = vmin.f32 %v4347, %v4348
        %4395 = vmin.xlane.f32.xlu0 %v4394
        %v4396 = vpop.xlane.xlu0 %4395
        %vm4397 = vcmp.eq.f32.partialorder %v4317, %v4351
        %vm4398 = vcmp.eq.f32.partialorder %v4318, %v4351
        %vm4399 = vcmp.eq.f32.partialorder %v4319, %v4354
        %vm4400 = vcmp.eq.f32.partialorder %v4320, %v4354
        %vm4401 = vcmp.eq.f32.partialorder %v4321, %v4357
        %vm4402 = vcmp.eq.f32.partialorder %v4322, %v4357
        %vm4403 = vcmp.eq.f32.partialorder %v4323, %v4360
        %vm4404 = vcmp.eq.f32.partialorder %v4324, %v4360
        %vm4405 = vcmp.eq.f32.partialorder %v4325, %v4363
        %vm4406 = vcmp.eq.f32.partialorder %v4326, %v4363
        %vm4407 = vcmp.eq.f32.partialorder %v4327, %v4366
        %vm4408 = vcmp.eq.f32.partialorder %v4328, %v4366
        %vm4409 = vcmp.eq.f32.partialorder %v4329, %v4369
        %vm4410 = vcmp.eq.f32.partialorder %v4330, %v4369
        %vm4411 = vcmp.eq.f32.partialorder %v4331, %v4372
        %vm4412 = vcmp.eq.f32.partialorder %v4332, %v4372
        %vm4413 = vcmp.eq.f32.partialorder %v4333, %v4375
        %vm4414 = vcmp.eq.f32.partialorder %v4334, %v4375
        %vm4415 = vcmp.eq.f32.partialorder %v4335, %v4378
        %vm4416 = vcmp.eq.f32.partialorder %v4336, %v4378
        %vm4417 = vcmp.eq.f32.partialorder %v4337, %v4381
        %vm4418 = vcmp.eq.f32.partialorder %v4338, %v4381
        %vm4419 = vcmp.eq.f32.partialorder %v4339, %v4384
        %vm4420 = vcmp.eq.f32.partialorder %v4340, %v4384
        %vm4421 = vcmp.eq.f32.partialorder %v4341, %v4387
        %vm4422 = vcmp.eq.f32.partialorder %v4342, %v4387
        %vm4423 = vcmp.eq.f32.partialorder %v4343, %v4390
        %vm4424 = vcmp.eq.f32.partialorder %v4344, %v4390
        %vm4425 = vcmp.eq.f32.partialorder %v4345, %v4393
        %vm4426 = vcmp.eq.f32.partialorder %v4346, %v4393
        %vm4427 = vcmp.eq.f32.partialorder %v4347, %v4396
        %vm4428 = vcmp.eq.f32.partialorder %v4348, %v4396
        %v4429 = vsel %vm4397, %v712, 256
        %v4430 = vsel %vm4398, %v713, 256
        %v4431 = vsel %vm4399, %v712, 256
        %v4432 = vsel %vm4400, %v713, 256
        %v4433 = vsel %vm4401, %v712, 256
        %v4434 = vsel %vm4402, %v713, 256
        %v4435 = vsel %vm4403, %v712, 256
        %v4436 = vsel %vm4404, %v713, 256
        %v4437 = vsel %vm4405, %v712, 256
        %v4438 = vsel %vm4406, %v713, 256
        %v4439 = vsel %vm4407, %v712, 256
        %v4440 = vsel %vm4408, %v713, 256
        %v4441 = vsel %vm4409, %v712, 256
        %v4442 = vsel %vm4410, %v713, 256
        %v4443 = vsel %vm4411, %v712, 256
        %v4444 = vsel %vm4412, %v713, 256
        %v4445 = vsel %vm4413, %v712, 256
        %v4446 = vsel %vm4414, %v713, 256
        %v4447 = vsel %vm4415, %v712, 256
        %v4448 = vsel %vm4416, %v713, 256
        %v4449 = vsel %vm4417, %v712, 256
        %v4450 = vsel %vm4418, %v713, 256
        %v4451 = vsel %vm4419, %v712, 256
        %v4452 = vsel %vm4420, %v713, 256
        %v4453 = vsel %vm4421, %v712, 256
        %v4454 = vsel %vm4422, %v713, 256
        %v4455 = vsel %vm4423, %v712, 256
        %v4456 = vsel %vm4424, %v713, 256
        %v4457 = vsel %vm4425, %v712, 256
        %v4458 = vsel %vm4426, %v713, 256
        %v4459 = vsel %vm4427, %v712, 256
        %v4460 = vsel %vm4428, %v713, 256
        %vm4461 = vcmp.lt.s32.totalorder %v4429, %v4430
        %v4462 = vsel %vm4461, %v4429, %v4430
        %v4463 = vand.u32 %v4462, 65535
        %v4464 = vshra.s32 %v4462, 16
        %v4465 = vcvt.s32.f32 %v4463
        %v4466 = vcvt.s32.f32 %v4464
        %4467 = vmin.xlane.f32.xlu0 %v4466
        %v4468 = vpop.xlane.xlu0 %4467
        %vm4469 = vcmp.eq.f32.partialorder %v4466, %v4468
        %v4470 = vsel %vm4469, %v4465, inf
        %4471 = vmin.xlane.f32.xlu0 %v4470
        %v4472 = vpop.xlane.xlu0 %4471
        %v4473 = vcvt.f32.s32 %v4472
        %v4474 = vcvt.f32.s32 %v4468
        %v4475 = vshll.u32 %v4474, 16
        %v4476 = vadd.s32 %v4475, %v4473
        %vm4477 = vcmp.lt.s32.totalorder %v4431, %v4432
        %v4478 = vsel %vm4477, %v4431, %v4432
        %v4479 = vand.u32 %v4478, 65535
        %v4480 = vshra.s32 %v4478, 16
        %v4481 = vcvt.s32.f32 %v4479
        %v4482 = vcvt.s32.f32 %v4480
        %4483 = vmin.xlane.f32.xlu0 %v4482
        %v4484 = vpop.xlane.xlu0 %4483
        %vm4485 = vcmp.eq.f32.partialorder %v4482, %v4484
        %v4486 = vsel %vm4485, %v4481, inf
        %4487 = vmin.xlane.f32.xlu0 %v4486
        %v4488 = vpop.xlane.xlu0 %4487
        %v4489 = vcvt.f32.s32 %v4488
        %v4490 = vcvt.f32.s32 %v4484
        %v4491 = vshll.u32 %v4490, 16
        %v4492 = vadd.s32 %v4491, %v4489
        %vm4493 = vcmp.lt.s32.totalorder %v4433, %v4434
        %v4494 = vsel %vm4493, %v4433, %v4434
        %v4495 = vand.u32 %v4494, 65535
        %v4496 = vshra.s32 %v4494, 16
        %v4497 = vcvt.s32.f32 %v4495
        %v4498 = vcvt.s32.f32 %v4496
        %4499 = vmin.xlane.f32.xlu0 %v4498
        %v4500 = vpop.xlane.xlu0 %4499
        %vm4501 = vcmp.eq.f32.partialorder %v4498, %v4500
        %v4502 = vsel %vm4501, %v4497, inf
        %4503 = vmin.xlane.f32.xlu0 %v4502
        %v4504 = vpop.xlane.xlu0 %4503
        %v4505 = vcvt.f32.s32 %v4504
        %v4506 = vcvt.f32.s32 %v4500
        %v4507 = vshll.u32 %v4506, 16
        %v4508 = vadd.s32 %v4507, %v4505
        %vm4509 = vcmp.lt.s32.totalorder %v4435, %v4436
        %v4510 = vsel %vm4509, %v4435, %v4436
        %v4511 = vand.u32 %v4510, 65535
        %v4512 = vshra.s32 %v4510, 16
        %v4513 = vcvt.s32.f32 %v4511
        %v4514 = vcvt.s32.f32 %v4512
        %4515 = vmin.xlane.f32.xlu0 %v4514
        %v4516 = vpop.xlane.xlu0 %4515
        %vm4517 = vcmp.eq.f32.partialorder %v4514, %v4516
        %v4518 = vsel %vm4517, %v4513, inf
        %4519 = vmin.xlane.f32.xlu0 %v4518
        %v4520 = vpop.xlane.xlu0 %4519
        %v4521 = vcvt.f32.s32 %v4520
        %v4522 = vcvt.f32.s32 %v4516
        %v4523 = vshll.u32 %v4522, 16
        %v4524 = vadd.s32 %v4523, %v4521
        %vm4525 = vcmp.lt.s32.totalorder %v4437, %v4438
        %v4526 = vsel %vm4525, %v4437, %v4438
        %v4527 = vand.u32 %v4526, 65535
        %v4528 = vshra.s32 %v4526, 16
        %v4529 = vcvt.s32.f32 %v4527
        %v4530 = vcvt.s32.f32 %v4528
        %4531 = vmin.xlane.f32.xlu0 %v4530
        %v4532 = vpop.xlane.xlu0 %4531
        %vm4533 = vcmp.eq.f32.partialorder %v4530, %v4532
        %v4534 = vsel %vm4533, %v4529, inf
        %4535 = vmin.xlane.f32.xlu0 %v4534
        %v4536 = vpop.xlane.xlu0 %4535
        %v4537 = vcvt.f32.s32 %v4536
        %v4538 = vcvt.f32.s32 %v4532
        %v4539 = vshll.u32 %v4538, 16
        %v4540 = vadd.s32 %v4539, %v4537
        %vm4541 = vcmp.lt.s32.totalorder %v4439, %v4440
        %v4542 = vsel %vm4541, %v4439, %v4440
        %v4543 = vand.u32 %v4542, 65535
        %v4544 = vshra.s32 %v4542, 16
        %v4545 = vcvt.s32.f32 %v4543
        %v4546 = vcvt.s32.f32 %v4544
        %4547 = vmin.xlane.f32.xlu0 %v4546
        %v4548 = vpop.xlane.xlu0 %4547
        %vm4549 = vcmp.eq.f32.partialorder %v4546, %v4548
        %v4550 = vsel %vm4549, %v4545, inf
        %4551 = vmin.xlane.f32.xlu0 %v4550
        %v4552 = vpop.xlane.xlu0 %4551
        %v4553 = vcvt.f32.s32 %v4552
        %v4554 = vcvt.f32.s32 %v4548
        %v4555 = vshll.u32 %v4554, 16
        %v4556 = vadd.s32 %v4555, %v4553
        %vm4557 = vcmp.lt.s32.totalorder %v4441, %v4442
        %v4558 = vsel %vm4557, %v4441, %v4442
        %v4559 = vand.u32 %v4558, 65535
        %v4560 = vshra.s32 %v4558, 16
        %v4561 = vcvt.s32.f32 %v4559
        %v4562 = vcvt.s32.f32 %v4560
        %4563 = vmin.xlane.f32.xlu0 %v4562
        %v4564 = vpop.xlane.xlu0 %4563
        %vm4565 = vcmp.eq.f32.partialorder %v4562, %v4564
        %v4566 = vsel %vm4565, %v4561, inf
        %4567 = vmin.xlane.f32.xlu0 %v4566
        %v4568 = vpop.xlane.xlu0 %4567
        %v4569 = vcvt.f32.s32 %v4568
        %v4570 = vcvt.f32.s32 %v4564
        %v4571 = vshll.u32 %v4570, 16
        %v4572 = vadd.s32 %v4571, %v4569
        %vm4573 = vcmp.lt.s32.totalorder %v4443, %v4444
        %v4574 = vsel %vm4573, %v4443, %v4444
        %v4575 = vand.u32 %v4574, 65535
        %v4576 = vshra.s32 %v4574, 16
        %v4577 = vcvt.s32.f32 %v4575
        %v4578 = vcvt.s32.f32 %v4576
        %4579 = vmin.xlane.f32.xlu0 %v4578
        %v4580 = vpop.xlane.xlu0 %4579
        %vm4581 = vcmp.eq.f32.partialorder %v4578, %v4580
        %v4582 = vsel %vm4581, %v4577, inf
        %4583 = vmin.xlane.f32.xlu0 %v4582
        %v4584 = vpop.xlane.xlu0 %4583
        %v4585 = vcvt.f32.s32 %v4584
        %v4586 = vcvt.f32.s32 %v4580
        %v4587 = vshll.u32 %v4586, 16
        %v4588 = vadd.s32 %v4587, %v4585
        %vm4589 = vcmp.lt.s32.totalorder %v4445, %v4446
        %v4590 = vsel %vm4589, %v4445, %v4446
        %v4591 = vand.u32 %v4590, 65535
        %v4592 = vshra.s32 %v4590, 16
        %v4593 = vcvt.s32.f32 %v4591
        %v4594 = vcvt.s32.f32 %v4592
        %4595 = vmin.xlane.f32.xlu0 %v4594
        %v4596 = vpop.xlane.xlu0 %4595
        %vm4597 = vcmp.eq.f32.partialorder %v4594, %v4596
        %v4598 = vsel %vm4597, %v4593, inf
        %4599 = vmin.xlane.f32.xlu0 %v4598
        %v4600 = vpop.xlane.xlu0 %4599
        %v4601 = vcvt.f32.s32 %v4600
        %v4602 = vcvt.f32.s32 %v4596
        %v4603 = vshll.u32 %v4602, 16
        %v4604 = vadd.s32 %v4603, %v4601
        %vm4605 = vcmp.lt.s32.totalorder %v4447, %v4448
        %v4606 = vsel %vm4605, %v4447, %v4448
        %v4607 = vand.u32 %v4606, 65535
        %v4608 = vshra.s32 %v4606, 16
        %v4609 = vcvt.s32.f32 %v4607
        %v4610 = vcvt.s32.f32 %v4608
        %4611 = vmin.xlane.f32.xlu0 %v4610
        %v4612 = vpop.xlane.xlu0 %4611
        %vm4613 = vcmp.eq.f32.partialorder %v4610, %v4612
        %v4614 = vsel %vm4613, %v4609, inf
        %4615 = vmin.xlane.f32.xlu0 %v4614
        %v4616 = vpop.xlane.xlu0 %4615
        %v4617 = vcvt.f32.s32 %v4616
        %v4618 = vcvt.f32.s32 %v4612
        %v4619 = vshll.u32 %v4618, 16
        %v4620 = vadd.s32 %v4619, %v4617
        %vm4621 = vcmp.lt.s32.totalorder %v4449, %v4450
        %v4622 = vsel %vm4621, %v4449, %v4450
        %v4623 = vand.u32 %v4622, 65535
        %v4624 = vshra.s32 %v4622, 16
        %v4625 = vcvt.s32.f32 %v4623
        %v4626 = vcvt.s32.f32 %v4624
        %4627 = vmin.xlane.f32.xlu0 %v4626
        %v4628 = vpop.xlane.xlu0 %4627
        %vm4629 = vcmp.eq.f32.partialorder %v4626, %v4628
        %v4630 = vsel %vm4629, %v4625, inf
        %4631 = vmin.xlane.f32.xlu0 %v4630
        %v4632 = vpop.xlane.xlu0 %4631
        %v4633 = vcvt.f32.s32 %v4632
        %v4634 = vcvt.f32.s32 %v4628
        %v4635 = vshll.u32 %v4634, 16
        %v4636 = vadd.s32 %v4635, %v4633
        %vm4637 = vcmp.lt.s32.totalorder %v4451, %v4452
        %v4638 = vsel %vm4637, %v4451, %v4452
        %v4639 = vand.u32 %v4638, 65535
        %v4640 = vshra.s32 %v4638, 16
        %v4641 = vcvt.s32.f32 %v4639
        %v4642 = vcvt.s32.f32 %v4640
        %4643 = vmin.xlane.f32.xlu0 %v4642
        %v4644 = vpop.xlane.xlu0 %4643
        %vm4645 = vcmp.eq.f32.partialorder %v4642, %v4644
        %v4646 = vsel %vm4645, %v4641, inf
        %4647 = vmin.xlane.f32.xlu0 %v4646
        %v4648 = vpop.xlane.xlu0 %4647
        %v4649 = vcvt.f32.s32 %v4648
        %v4650 = vcvt.f32.s32 %v4644
        %v4651 = vshll.u32 %v4650, 16
        %v4652 = vadd.s32 %v4651, %v4649
        %vm4653 = vcmp.lt.s32.totalorder %v4453, %v4454
        %v4654 = vsel %vm4653, %v4453, %v4454
        %v4655 = vand.u32 %v4654, 65535
        %v4656 = vshra.s32 %v4654, 16
        %v4657 = vcvt.s32.f32 %v4655
        %v4658 = vcvt.s32.f32 %v4656
        %4659 = vmin.xlane.f32.xlu0 %v4658
        %v4660 = vpop.xlane.xlu0 %4659
        %vm4661 = vcmp.eq.f32.partialorder %v4658, %v4660
        %v4662 = vsel %vm4661, %v4657, inf
        %4663 = vmin.xlane.f32.xlu0 %v4662
        %v4664 = vpop.xlane.xlu0 %4663
        %v4665 = vcvt.f32.s32 %v4664
        %v4666 = vcvt.f32.s32 %v4660
        %v4667 = vshll.u32 %v4666, 16
        %v4668 = vadd.s32 %v4667, %v4665
        %vm4669 = vcmp.lt.s32.totalorder %v4455, %v4456
        %v4670 = vsel %vm4669, %v4455, %v4456
        %v4671 = vand.u32 %v4670, 65535
        %v4672 = vshra.s32 %v4670, 16
        %v4673 = vcvt.s32.f32 %v4671
        %v4674 = vcvt.s32.f32 %v4672
        %4675 = vmin.xlane.f32.xlu0 %v4674
        %v4676 = vpop.xlane.xlu0 %4675
        %vm4677 = vcmp.eq.f32.partialorder %v4674, %v4676
        %v4678 = vsel %vm4677, %v4673, inf
        %4679 = vmin.xlane.f32.xlu0 %v4678
        %v4680 = vpop.xlane.xlu0 %4679
        %v4681 = vcvt.f32.s32 %v4680
        %v4682 = vcvt.f32.s32 %v4676
        %v4683 = vshll.u32 %v4682, 16
        %v4684 = vadd.s32 %v4683, %v4681
        %vm4685 = vcmp.lt.s32.totalorder %v4457, %v4458
        %v4686 = vsel %vm4685, %v4457, %v4458
        %v4687 = vand.u32 %v4686, 65535
        %v4688 = vshra.s32 %v4686, 16
        %v4689 = vcvt.s32.f32 %v4687
        %v4690 = vcvt.s32.f32 %v4688
        %4691 = vmin.xlane.f32.xlu0 %v4690
        %v4692 = vpop.xlane.xlu0 %4691
        %vm4693 = vcmp.eq.f32.partialorder %v4690, %v4692
        %v4694 = vsel %vm4693, %v4689, inf
        %4695 = vmin.xlane.f32.xlu0 %v4694
        %v4696 = vpop.xlane.xlu0 %4695
        %v4697 = vcvt.f32.s32 %v4696
        %v4698 = vcvt.f32.s32 %v4692
        %v4699 = vshll.u32 %v4698, 16
        %v4700 = vadd.s32 %v4699, %v4697
        %vm4701 = vcmp.lt.s32.totalorder %v4459, %v4460
        %v4702 = vsel %vm4701, %v4459, %v4460
        %v4703 = vand.u32 %v4702, 65535
        %v4704 = vshra.s32 %v4702, 16
        %v4705 = vcvt.s32.f32 %v4703
        %v4706 = vcvt.s32.f32 %v4704
        %4707 = vmin.xlane.f32.xlu0 %v4706
        %v4708 = vpop.xlane.xlu0 %4707
        %vm4709 = vcmp.eq.f32.partialorder %v4706, %v4708
        %v4710 = vsel %vm4709, %v4705, inf
        %4711 = vmin.xlane.f32.xlu0 %v4710
        %v4712 = vpop.xlane.xlu0 %4711
        %v4713 = vcvt.f32.s32 %v4712
        %v4714 = vcvt.f32.s32 %v4708
        %v4715 = vshll.u32 %v4714, 16
        %v4716 = vadd.s32 %v4715, %v4713
        %v4717 = vlaneseq
        %v4718 = vshrl.u32 %v4717, 7
        %v4719 = vsub.s32 %v712, %v4718
        %v4720 = vrot.slane %v4476, %v4719
        %v4721 = vlaneseq
        %v4722 = vshrl.u32 %v4721, 7
        %v4723 = vsub.s32 %v1086, %v4722
        %v4724 = vrot.slane %v4492, %v4723
        %v4725 = vsel %vm1091, %v4724, %v4720
        %v4726 = vlaneseq
        %v4727 = vshrl.u32 %v4726, 7
        %v4728 = vsub.s32 %v1093, %v4727
        %v4729 = vrot.slane %v4508, %v4728
        %v4730 = vsel %vm1098, %v4729, %v4725
        %v4731 = vlaneseq
        %v4732 = vshrl.u32 %v4731, 7
        %v4733 = vsub.s32 %v1100, %v4732
        %v4734 = vrot.slane %v4524, %v4733
        %v4735 = vsel %vm1105, %v4734, %v4730
        %v4736 = vlaneseq
        %v4737 = vshrl.u32 %v4736, 7
        %v4738 = vsub.s32 %v1107, %v4737
        %v4739 = vrot.slane %v4540, %v4738
        %v4740 = vsel %vm1112, %v4739, %v4735
        %v4741 = vlaneseq
        %v4742 = vshrl.u32 %v4741, 7
        %v4743 = vsub.s32 %v1114, %v4742
        %v4744 = vrot.slane %v4556, %v4743
        %v4745 = vsel %vm1119, %v4744, %v4740
        %v4746 = vlaneseq
        %v4747 = vshrl.u32 %v4746, 7
        %v4748 = vsub.s32 %v1121, %v4747
        %v4749 = vrot.slane %v4572, %v4748
        %v4750 = vsel %vm1126, %v4749, %v4745
        %v4751 = vlaneseq
        %v4752 = vshrl.u32 %v4751, 7
        %v4753 = vsub.s32 %v1128, %v4752
        %v4754 = vrot.slane %v4588, %v4753
        %v4755 = vsel %vm1133, %v4754, %v4750
        %v4756 = vlaneseq
        %v4757 = vshrl.u32 %v4756, 7
        %v4758 = vsub.s32 %v1135, %v4757
        %v4759 = vrot.slane %v4604, %v4758
        %v4760 = vsel %vm1140, %v4759, %v4755
        %v4761 = vlaneseq
        %v4762 = vshrl.u32 %v4761, 7
        %v4763 = vsub.s32 %v1142, %v4762
        %v4764 = vrot.slane %v4620, %v4763
        %v4765 = vsel %vm1147, %v4764, %v4760
        %v4766 = vlaneseq
        %v4767 = vshrl.u32 %v4766, 7
        %v4768 = vsub.s32 %v1149, %v4767
        %v4769 = vrot.slane %v4636, %v4768
        %v4770 = vsel %vm1154, %v4769, %v4765
        %v4771 = vlaneseq
        %v4772 = vshrl.u32 %v4771, 7
        %v4773 = vsub.s32 %v1156, %v4772
        %v4774 = vrot.slane %v4652, %v4773
        %v4775 = vsel %vm1161, %v4774, %v4770
        %v4776 = vlaneseq
        %v4777 = vshrl.u32 %v4776, 7
        %v4778 = vsub.s32 %v1163, %v4777
        %v4779 = vrot.slane %v4668, %v4778
        %v4780 = vsel %vm1168, %v4779, %v4775
        %v4781 = vlaneseq
        %v4782 = vshrl.u32 %v4781, 7
        %v4783 = vsub.s32 %v1170, %v4782
        %v4784 = vrot.slane %v4684, %v4783
        %v4785 = vsel %vm1175, %v4784, %v4780
        %v4786 = vlaneseq
        %v4787 = vshrl.u32 %v4786, 7
        %v4788 = vsub.s32 %v1177, %v4787
        %v4789 = vrot.slane %v4700, %v4788
        %v4790 = vsel %vm1182, %v4789, %v4785
        %v4791 = vlaneseq
        %v4792 = vshrl.u32 %v4791, 7
        %v4793 = vsub.s32 %v1184, %v4792
        %v4794 = vrot.slane %v4716, %v4793
        %v4795 = vsel %vm1189, %v4794, %v4790
        %4796 = vst [vmem:[%s246 + $0x5] sm:$0x1] %v4795
        %v4797 = vrsqrt.pop %v4351
        %v4798 = vmul.f32 %v4351, %v4797
        %vm4799 = vcmp.eq.f32.partialorder %v4351, inf
        %v4800 = vsel %vm4799, %v4351, %v4798
        %vm4801 = vcmp.eq.f32.partialorder %v4351, 0.0
        %v4802 = vand.u32 %v4351, 2147483648
        %v4803 = vsel %vm4801, %v4802, %v4800
        %v4804 = vrsqrt.pop %v4354
        %v4805 = vmul.f32 %v4354, %v4804
        %vm4806 = vcmp.eq.f32.partialorder %v4354, inf
        %v4807 = vsel %vm4806, %v4354, %v4805
        %vm4808 = vcmp.eq.f32.partialorder %v4354, 0.0
        %v4809 = vand.u32 %v4354, 2147483648
        %v4810 = vsel %vm4808, %v4809, %v4807
        %v4811 = vrsqrt.pop %v4357
        %v4812 = vmul.f32 %v4357, %v4811
        %vm4813 = vcmp.eq.f32.partialorder %v4357, inf
        %v4814 = vsel %vm4813, %v4357, %v4812
        %vm4815 = vcmp.eq.f32.partialorder %v4357, 0.0
        %v4816 = vand.u32 %v4357, 2147483648
        %v4817 = vsel %vm4815, %v4816, %v4814
        %v4818 = vrsqrt.pop %v4360
        %v4819 = vmul.f32 %v4360, %v4818
        %vm4820 = vcmp.eq.f32.partialorder %v4360, inf
        %v4821 = vsel %vm4820, %v4360, %v4819
        %vm4822 = vcmp.eq.f32.partialorder %v4360, 0.0
        %v4823 = vand.u32 %v4360, 2147483648
        %v4824 = vsel %vm4822, %v4823, %v4821
        %v4825 = vrsqrt.pop %v4363
        %v4826 = vmul.f32 %v4363, %v4825
        %vm4827 = vcmp.eq.f32.partialorder %v4363, inf
        %v4828 = vsel %vm4827, %v4363, %v4826
        %vm4829 = vcmp.eq.f32.partialorder %v4363, 0.0
        %v4830 = vand.u32 %v4363, 2147483648
        %v4831 = vsel %vm4829, %v4830, %v4828
        %v4832 = vrsqrt.pop %v4366
        %v4833 = vmul.f32 %v4366, %v4832
        %vm4834 = vcmp.eq.f32.partialorder %v4366, inf
        %v4835 = vsel %vm4834, %v4366, %v4833
        %vm4836 = vcmp.eq.f32.partialorder %v4366, 0.0
        %v4837 = vand.u32 %v4366, 2147483648
        %v4838 = vsel %vm4836, %v4837, %v4835
        %v4839 = vrsqrt.pop %v4369
        %v4840 = vmul.f32 %v4369, %v4839
        %vm4841 = vcmp.eq.f32.partialorder %v4369, inf
        %v4842 = vsel %vm4841, %v4369, %v4840
        %vm4843 = vcmp.eq.f32.partialorder %v4369, 0.0
        %v4844 = vand.u32 %v4369, 2147483648
        %v4845 = vsel %vm4843, %v4844, %v4842
        %v4846 = vrsqrt.pop %v4372
        %v4847 = vmul.f32 %v4372, %v4846
        %vm4848 = vcmp.eq.f32.partialorder %v4372, inf
        %v4849 = vsel %vm4848, %v4372, %v4847
        %vm4850 = vcmp.eq.f32.partialorder %v4372, 0.0
        %v4851 = vand.u32 %v4372, 2147483648
        %v4852 = vsel %vm4850, %v4851, %v4849
        %v4853 = vrsqrt.pop %v4375
        %v4854 = vmul.f32 %v4375, %v4853
        %vm4855 = vcmp.eq.f32.partialorder %v4375, inf
        %v4856 = vsel %vm4855, %v4375, %v4854
        %vm4857 = vcmp.eq.f32.partialorder %v4375, 0.0
        %v4858 = vand.u32 %v4375, 2147483648
        %v4859 = vsel %vm4857, %v4858, %v4856
        %v4860 = vrsqrt.pop %v4378
        %v4861 = vmul.f32 %v4378, %v4860
        %vm4862 = vcmp.eq.f32.partialorder %v4378, inf
        %v4863 = vsel %vm4862, %v4378, %v4861
        %vm4864 = vcmp.eq.f32.partialorder %v4378, 0.0
        %v4865 = vand.u32 %v4378, 2147483648
        %v4866 = vsel %vm4864, %v4865, %v4863
        %v4867 = vrsqrt.pop %v4381
        %v4868 = vmul.f32 %v4381, %v4867
        %vm4869 = vcmp.eq.f32.partialorder %v4381, inf
        %v4870 = vsel %vm4869, %v4381, %v4868
        %vm4871 = vcmp.eq.f32.partialorder %v4381, 0.0
        %v4872 = vand.u32 %v4381, 2147483648
        %v4873 = vsel %vm4871, %v4872, %v4870
        %v4874 = vrsqrt.pop %v4384
        %v4875 = vmul.f32 %v4384, %v4874
        %vm4876 = vcmp.eq.f32.partialorder %v4384, inf
        %v4877 = vsel %vm4876, %v4384, %v4875
        %vm4878 = vcmp.eq.f32.partialorder %v4384, 0.0
        %v4879 = vand.u32 %v4384, 2147483648
        %v4880 = vsel %vm4878, %v4879, %v4877
        %v4881 = vrsqrt.pop %v4387
        %v4882 = vmul.f32 %v4387, %v4881
        %vm4883 = vcmp.eq.f32.partialorder %v4387, inf
        %v4884 = vsel %vm4883, %v4387, %v4882
        %vm4885 = vcmp.eq.f32.partialorder %v4387, 0.0
        %v4886 = vand.u32 %v4387, 2147483648
        %v4887 = vsel %vm4885, %v4886, %v4884
        %v4888 = vrsqrt.pop %v4390
        %v4889 = vmul.f32 %v4390, %v4888
        %vm4890 = vcmp.eq.f32.partialorder %v4390, inf
        %v4891 = vsel %vm4890, %v4390, %v4889
        %vm4892 = vcmp.eq.f32.partialorder %v4390, 0.0
        %v4893 = vand.u32 %v4390, 2147483648
        %v4894 = vsel %vm4892, %v4893, %v4891
        %v4895 = vrsqrt.pop %v4393
        %v4896 = vmul.f32 %v4393, %v4895
        %vm4897 = vcmp.eq.f32.partialorder %v4393, inf
        %v4898 = vsel %vm4897, %v4393, %v4896
        %vm4899 = vcmp.eq.f32.partialorder %v4393, 0.0
        %v4900 = vand.u32 %v4393, 2147483648
        %v4901 = vsel %vm4899, %v4900, %v4898
        %v4902 = vrsqrt.pop %v4396
        %v4903 = vmul.f32 %v4396, %v4902
        %vm4904 = vcmp.eq.f32.partialorder %v4396, inf
        %v4905 = vsel %vm4904, %v4396, %v4903
        %vm4906 = vcmp.eq.f32.partialorder %v4396, 0.0
        %v4907 = vand.u32 %v4396, 2147483648
        %v4908 = vsel %vm4906, %v4907, %v4905
        %v4925 = vlaneseq
        %v4926 = vshrl.u32 %v4925, 7
        %v4927 = vsub.s32 %v712, %v4926
        %v4928 = vrot.slane %v4803, %v4927
        %v4929 = vlaneseq
        %v4930 = vshrl.u32 %v4929, 7
        %v4931 = vsub.s32 %v1086, %v4930
        %v4932 = vrot.slane %v4810, %v4931
        %v4933 = vsel %vm1091, %v4932, %v4928
        %v4934 = vlaneseq
        %v4935 = vshrl.u32 %v4934, 7
        %v4936 = vsub.s32 %v1093, %v4935
        %v4937 = vrot.slane %v4817, %v4936
        %v4938 = vsel %vm1098, %v4937, %v4933
        %v4939 = vlaneseq
        %v4940 = vshrl.u32 %v4939, 7
        %v4941 = vsub.s32 %v1100, %v4940
        %v4942 = vrot.slane %v4824, %v4941
        %v4943 = vsel %vm1105, %v4942, %v4938
        %v4944 = vlaneseq
        %v4945 = vshrl.u32 %v4944, 7
        %v4946 = vsub.s32 %v1107, %v4945
        %v4947 = vrot.slane %v4831, %v4946
        %v4948 = vsel %vm1112, %v4947, %v4943
        %v4949 = vlaneseq
        %v4950 = vshrl.u32 %v4949, 7
        %v4951 = vsub.s32 %v1114, %v4950
        %v4952 = vrot.slane %v4838, %v4951
        %v4953 = vsel %vm1119, %v4952, %v4948
        %v4954 = vlaneseq
        %v4955 = vshrl.u32 %v4954, 7
        %v4956 = vsub.s32 %v1121, %v4955
        %v4957 = vrot.slane %v4845, %v4956
        %v4958 = vsel %vm1126, %v4957, %v4953
        %v4959 = vlaneseq
        %v4960 = vshrl.u32 %v4959, 7
        %v4961 = vsub.s32 %v1128, %v4960
        %v4962 = vrot.slane %v4852, %v4961
        %v4963 = vsel %vm1133, %v4962, %v4958
        %v4964 = vlaneseq
        %v4965 = vshrl.u32 %v4964, 7
        %v4966 = vsub.s32 %v1135, %v4965
        %v4967 = vrot.slane %v4859, %v4966
        %v4968 = vsel %vm1140, %v4967, %v4963
        %v4969 = vlaneseq
        %v4970 = vshrl.u32 %v4969, 7
        %v4971 = vsub.s32 %v1142, %v4970
        %v4972 = vrot.slane %v4866, %v4971
        %v4973 = vsel %vm1147, %v4972, %v4968
        %v4974 = vlaneseq
        %v4975 = vshrl.u32 %v4974, 7
        %v4976 = vsub.s32 %v1149, %v4975
        %v4977 = vrot.slane %v4873, %v4976
        %v4978 = vsel %vm1154, %v4977, %v4973
        %v4979 = vlaneseq
        %v4980 = vshrl.u32 %v4979, 7
        %v4981 = vsub.s32 %v1156, %v4980
        %v4982 = vrot.slane %v4880, %v4981
        %v4983 = vsel %vm1161, %v4982, %v4978
        %v4984 = vlaneseq
        %v4985 = vshrl.u32 %v4984, 7
        %v4986 = vsub.s32 %v1163, %v4985
        %v4987 = vrot.slane %v4887, %v4986
        %v4988 = vsel %vm1168, %v4987, %v4983
        %v4989 = vlaneseq
        %v4990 = vshrl.u32 %v4989, 7
        %v4991 = vsub.s32 %v1170, %v4990
        %v4992 = vrot.slane %v4894, %v4991
        %v4993 = vsel %vm1175, %v4992, %v4988
        %v4994 = vlaneseq
        %v4995 = vshrl.u32 %v4994, 7
        %v4996 = vsub.s32 %v1177, %v4995
        %v4997 = vrot.slane %v4901, %v4996
        %v4998 = vsel %vm1182, %v4997, %v4993
        %v4999 = vlaneseq
        %v5000 = vshrl.u32 %v4999, 7
        %v5001 = vsub.s32 %v1184, %v5000
        %v5002 = vrot.slane %v4908, %v5001
        %v5003 = vsel %vm1189, %v5002, %v4998
        %5005 = vst [vmem:[%s253 + $0x5] sm:$0x1] %v5003
        %vm5006 = vcmp.eq.s32.totalorder %v712, %v4476
        %vm5007 = vcmp.eq.s32.totalorder %v713, %v4476
        %vm5008 = vcmp.eq.s32.totalorder %v712, %v4492
        %vm5009 = vcmp.eq.s32.totalorder %v713, %v4492
        %vm5010 = vcmp.eq.s32.totalorder %v712, %v4508
        %vm5011 = vcmp.eq.s32.totalorder %v713, %v4508
        %vm5012 = vcmp.eq.s32.totalorder %v712, %v4524
        %vm5013 = vcmp.eq.s32.totalorder %v713, %v4524
        %vm5014 = vcmp.eq.s32.totalorder %v712, %v4540
        %vm5015 = vcmp.eq.s32.totalorder %v713, %v4540
        %vm5016 = vcmp.eq.s32.totalorder %v712, %v4556
        %vm5017 = vcmp.eq.s32.totalorder %v713, %v4556
        %vm5018 = vcmp.eq.s32.totalorder %v712, %v4572
        %vm5019 = vcmp.eq.s32.totalorder %v713, %v4572
        %vm5020 = vcmp.eq.s32.totalorder %v712, %v4588
        %vm5021 = vcmp.eq.s32.totalorder %v713, %v4588
        %vm5022 = vcmp.eq.s32.totalorder %v712, %v4604
        %vm5023 = vcmp.eq.s32.totalorder %v713, %v4604
        %vm5024 = vcmp.eq.s32.totalorder %v712, %v4620
        %vm5025 = vcmp.eq.s32.totalorder %v713, %v4620
        %vm5026 = vcmp.eq.s32.totalorder %v712, %v4636
        %vm5027 = vcmp.eq.s32.totalorder %v713, %v4636
        %vm5028 = vcmp.eq.s32.totalorder %v712, %v4652
        %vm5029 = vcmp.eq.s32.totalorder %v713, %v4652
        %vm5030 = vcmp.eq.s32.totalorder %v712, %v4668
        %vm5031 = vcmp.eq.s32.totalorder %v713, %v4668
        %vm5032 = vcmp.eq.s32.totalorder %v712, %v4684
        %vm5033 = vcmp.eq.s32.totalorder %v713, %v4684
        %vm5034 = vcmp.eq.s32.totalorder %v712, %v4700
        %vm5035 = vcmp.eq.s32.totalorder %v713, %v4700
        %vm5036 = vcmp.eq.s32.totalorder %v712, %v4716
        %vm5037 = vcmp.eq.s32.totalorder %v713, %v4716
        %v5038 = vsel %vm5006, 3.4e+38, %v4317
        %v5039 = vsel %vm5007, 3.4e+38, %v4318
        %v5040 = vsel %vm5008, 3.4e+38, %v4319
        %v5041 = vsel %vm5009, 3.4e+38, %v4320
        %v5042 = vsel %vm5010, 3.4e+38, %v4321
        %v5043 = vsel %vm5011, 3.4e+38, %v4322
        %v5044 = vsel %vm5012, 3.4e+38, %v4323
        %v5045 = vsel %vm5013, 3.4e+38, %v4324
        %v5046 = vsel %vm5014, 3.4e+38, %v4325
        %v5047 = vsel %vm5015, 3.4e+38, %v4326
        %v5048 = vsel %vm5016, 3.4e+38, %v4327
        %v5049 = vsel %vm5017, 3.4e+38, %v4328
        %v5050 = vsel %vm5018, 3.4e+38, %v4329
        %v5051 = vsel %vm5019, 3.4e+38, %v4330
        %v5052 = vsel %vm5020, 3.4e+38, %v4331
        %v5053 = vsel %vm5021, 3.4e+38, %v4332
        %v5054 = vsel %vm5022, 3.4e+38, %v4333
        %v5055 = vsel %vm5023, 3.4e+38, %v4334
        %v5056 = vsel %vm5024, 3.4e+38, %v4335
        %v5057 = vsel %vm5025, 3.4e+38, %v4336
        %v5058 = vsel %vm5026, 3.4e+38, %v4337
        %v5059 = vsel %vm5027, 3.4e+38, %v4338
        %v5060 = vsel %vm5028, 3.4e+38, %v4339
        %v5061 = vsel %vm5029, 3.4e+38, %v4340
        %v5062 = vsel %vm5030, 3.4e+38, %v4341
        %v5063 = vsel %vm5031, 3.4e+38, %v4342
        %v5064 = vsel %vm5032, 3.4e+38, %v4343
        %v5065 = vsel %vm5033, 3.4e+38, %v4344
        %v5066 = vsel %vm5034, 3.4e+38, %v4345
        %v5067 = vsel %vm5035, 3.4e+38, %v4346
        %v5068 = vsel %vm5036, 3.4e+38, %v4347
        %v5069 = vsel %vm5037, 3.4e+38, %v4348
        %v5070 = vmin.f32 %v5038, %v5039
        %5071 = vmin.xlane.f32.xlu0 %v5070
        %v5072 = vpop.xlane.xlu0 %5071
        %v5073 = vmin.f32 %v5040, %v5041
        %5074 = vmin.xlane.f32.xlu0 %v5073
        %v5075 = vpop.xlane.xlu0 %5074
        %v5076 = vmin.f32 %v5042, %v5043
        %5077 = vmin.xlane.f32.xlu0 %v5076
        %v5078 = vpop.xlane.xlu0 %5077
        %v5079 = vmin.f32 %v5044, %v5045
        %5080 = vmin.xlane.f32.xlu0 %v5079
        %v5081 = vpop.xlane.xlu0 %5080
        %v5082 = vmin.f32 %v5046, %v5047
        %5083 = vmin.xlane.f32.xlu0 %v5082
        %v5084 = vpop.xlane.xlu0 %5083
        %v5085 = vmin.f32 %v5048, %v5049
        %5086 = vmin.xlane.f32.xlu0 %v5085
        %v5087 = vpop.xlane.xlu0 %5086
        %v5088 = vmin.f32 %v5050, %v5051
        %5089 = vmin.xlane.f32.xlu0 %v5088
        %v5090 = vpop.xlane.xlu0 %5089
        %v5091 = vmin.f32 %v5052, %v5053
        %5092 = vmin.xlane.f32.xlu0 %v5091
        %v5093 = vpop.xlane.xlu0 %5092
        %v5094 = vmin.f32 %v5054, %v5055
        %5095 = vmin.xlane.f32.xlu0 %v5094
        %v5096 = vpop.xlane.xlu0 %5095
        %v5097 = vmin.f32 %v5056, %v5057
        %5098 = vmin.xlane.f32.xlu0 %v5097
        %v5099 = vpop.xlane.xlu0 %5098
        %v5100 = vmin.f32 %v5058, %v5059
        %5101 = vmin.xlane.f32.xlu0 %v5100
        %v5102 = vpop.xlane.xlu0 %5101
        %v5103 = vmin.f32 %v5060, %v5061
        %5104 = vmin.xlane.f32.xlu0 %v5103
        %v5105 = vpop.xlane.xlu0 %5104
        %v5106 = vmin.f32 %v5062, %v5063
        %5107 = vmin.xlane.f32.xlu0 %v5106
        %v5108 = vpop.xlane.xlu0 %5107
        %v5109 = vmin.f32 %v5064, %v5065
        %5110 = vmin.xlane.f32.xlu0 %v5109
        %v5111 = vpop.xlane.xlu0 %5110
        %v5112 = vmin.f32 %v5066, %v5067
        %5113 = vmin.xlane.f32.xlu0 %v5112
        %v5114 = vpop.xlane.xlu0 %5113
        %v5115 = vmin.f32 %v5068, %v5069
        %5116 = vmin.xlane.f32.xlu0 %v5115
        %v5117 = vpop.xlane.xlu0 %5116
        %vm5118 = vcmp.eq.f32.partialorder %v5038, %v5072
        %vm5119 = vcmp.eq.f32.partialorder %v5039, %v5072
        %vm5120 = vcmp.eq.f32.partialorder %v5040, %v5075
        %vm5121 = vcmp.eq.f32.partialorder %v5041, %v5075
        %vm5122 = vcmp.eq.f32.partialorder %v5042, %v5078
        %vm5123 = vcmp.eq.f32.partialorder %v5043, %v5078
        %vm5124 = vcmp.eq.f32.partialorder %v5044, %v5081
        %vm5125 = vcmp.eq.f32.partialorder %v5045, %v5081
        %vm5126 = vcmp.eq.f32.partialorder %v5046, %v5084
        %vm5127 = vcmp.eq.f32.partialorder %v5047, %v5084
        %vm5128 = vcmp.eq.f32.partialorder %v5048, %v5087
        %vm5129 = vcmp.eq.f32.partialorder %v5049, %v5087
        %vm5130 = vcmp.eq.f32.partialorder %v5050, %v5090
        %vm5131 = vcmp.eq.f32.partialorder %v5051, %v5090
        %vm5132 = vcmp.eq.f32.partialorder %v5052, %v5093
        %vm5133 = vcmp.eq.f32.partialorder %v5053, %v5093
        %vm5134 = vcmp.eq.f32.partialorder %v5054, %v5096
        %vm5135 = vcmp.eq.f32.partialorder %v5055, %v5096
        %vm5136 = vcmp.eq.f32.partialorder %v5056, %v5099
        %vm5137 = vcmp.eq.f32.partialorder %v5057, %v5099
        %vm5138 = vcmp.eq.f32.partialorder %v5058, %v5102
        %vm5139 = vcmp.eq.f32.partialorder %v5059, %v5102
        %vm5140 = vcmp.eq.f32.partialorder %v5060, %v5105
        %vm5141 = vcmp.eq.f32.partialorder %v5061, %v5105
        %vm5142 = vcmp.eq.f32.partialorder %v5062, %v5108
        %vm5143 = vcmp.eq.f32.partialorder %v5063, %v5108
        %vm5144 = vcmp.eq.f32.partialorder %v5064, %v5111
        %vm5145 = vcmp.eq.f32.partialorder %v5065, %v5111
        %vm5146 = vcmp.eq.f32.partialorder %v5066, %v5114
        %vm5147 = vcmp.eq.f32.partialorder %v5067, %v5114
        %vm5148 = vcmp.eq.f32.partialorder %v5068, %v5117
        %vm5149 = vcmp.eq.f32.partialorder %v5069, %v5117
        %v5150 = vsel %vm5118, %v712, 256
        %v5151 = vsel %vm5119, %v713, 256
        %v5152 = vsel %vm5120, %v712, 256
        %v5153 = vsel %vm5121, %v713, 256
        %v5154 = vsel %vm5122, %v712, 256
        %v5155 = vsel %vm5123, %v713, 256
        %v5156 = vsel %vm5124, %v712, 256
        %v5157 = vsel %vm5125, %v713, 256
        %v5158 = vsel %vm5126, %v712, 256
        %v5159 = vsel %vm5127, %v713, 256
        %v5160 = vsel %vm5128, %v712, 256
        %v5161 = vsel %vm5129, %v713, 256
        %v5162 = vsel %vm5130, %v712, 256
        %v5163 = vsel %vm5131, %v713, 256
        %v5164 = vsel %vm5132, %v712, 256
        %v5165 = vsel %vm5133, %v713, 256
        %v5166 = vsel %vm5134, %v712, 256
        %v5167 = vsel %vm5135, %v713, 256
        %v5168 = vsel %vm5136, %v712, 256
        %v5169 = vsel %vm5137, %v713, 256
        %v5170 = vsel %vm5138, %v712, 256
        %v5171 = vsel %vm5139, %v713, 256
        %v5172 = vsel %vm5140, %v712, 256
        %v5173 = vsel %vm5141, %v713, 256
        %v5174 = vsel %vm5142, %v712, 256
        %v5175 = vsel %vm5143, %v713, 256
        %v5176 = vsel %vm5144, %v712, 256
        %v5177 = vsel %vm5145, %v713, 256
        %v5178 = vsel %vm5146, %v712, 256
        %v5179 = vsel %vm5147, %v713, 256
        %v5180 = vsel %vm5148, %v712, 256
        %v5181 = vsel %vm5149, %v713, 256
        %vm5182 = vcmp.lt.s32.totalorder %v5150, %v5151
        %v5183 = vsel %vm5182, %v5150, %v5151
        %v5184 = vand.u32 %v5183, 65535
        %v5185 = vshra.s32 %v5183, 16
        %v5186 = vcvt.s32.f32 %v5184
        %v5187 = vcvt.s32.f32 %v5185
        %5188 = vmin.xlane.f32.xlu0 %v5187
        %v5189 = vpop.xlane.xlu0 %5188
        %vm5190 = vcmp.eq.f32.partialorder %v5187, %v5189
        %v5191 = vsel %vm5190, %v5186, inf
        %5192 = vmin.xlane.f32.xlu0 %v5191
        %v5193 = vpop.xlane.xlu0 %5192
        %v5194 = vcvt.f32.s32 %v5193
        %v5195 = vcvt.f32.s32 %v5189
        %v5196 = vshll.u32 %v5195, 16
        %v5197 = vadd.s32 %v5196, %v5194
        %vm5198 = vcmp.lt.s32.totalorder %v5152, %v5153
        %v5199 = vsel %vm5198, %v5152, %v5153
        %v5200 = vand.u32 %v5199, 65535
        %v5201 = vshra.s32 %v5199, 16
        %v5202 = vcvt.s32.f32 %v5200
        %v5203 = vcvt.s32.f32 %v5201
        %5204 = vmin.xlane.f32.xlu0 %v5203
        %v5205 = vpop.xlane.xlu0 %5204
        %vm5206 = vcmp.eq.f32.partialorder %v5203, %v5205
        %v5207 = vsel %vm5206, %v5202, inf
        %5208 = vmin.xlane.f32.xlu0 %v5207
        %v5209 = vpop.xlane.xlu0 %5208
        %v5210 = vcvt.f32.s32 %v5209
        %v5211 = vcvt.f32.s32 %v5205
        %v5212 = vshll.u32 %v5211, 16
        %v5213 = vadd.s32 %v5212, %v5210
        %vm5214 = vcmp.lt.s32.totalorder %v5154, %v5155
        %v5215 = vsel %vm5214, %v5154, %v5155
        %v5216 = vand.u32 %v5215, 65535
        %v5217 = vshra.s32 %v5215, 16
        %v5218 = vcvt.s32.f32 %v5216
        %v5219 = vcvt.s32.f32 %v5217
        %5220 = vmin.xlane.f32.xlu0 %v5219
        %v5221 = vpop.xlane.xlu0 %5220
        %vm5222 = vcmp.eq.f32.partialorder %v5219, %v5221
        %v5223 = vsel %vm5222, %v5218, inf
        %5224 = vmin.xlane.f32.xlu0 %v5223
        %v5225 = vpop.xlane.xlu0 %5224
        %v5226 = vcvt.f32.s32 %v5225
        %v5227 = vcvt.f32.s32 %v5221
        %v5228 = vshll.u32 %v5227, 16
        %v5229 = vadd.s32 %v5228, %v5226
        %vm5230 = vcmp.lt.s32.totalorder %v5156, %v5157
        %v5231 = vsel %vm5230, %v5156, %v5157
        %v5232 = vand.u32 %v5231, 65535
        %v5233 = vshra.s32 %v5231, 16
        %v5234 = vcvt.s32.f32 %v5232
        %v5235 = vcvt.s32.f32 %v5233
        %5236 = vmin.xlane.f32.xlu0 %v5235
        %v5237 = vpop.xlane.xlu0 %5236
        %vm5238 = vcmp.eq.f32.partialorder %v5235, %v5237
        %v5239 = vsel %vm5238, %v5234, inf
        %5240 = vmin.xlane.f32.xlu0 %v5239
        %v5241 = vpop.xlane.xlu0 %5240
        %v5242 = vcvt.f32.s32 %v5241
        %v5243 = vcvt.f32.s32 %v5237
        %v5244 = vshll.u32 %v5243, 16
        %v5245 = vadd.s32 %v5244, %v5242
        %vm5246 = vcmp.lt.s32.totalorder %v5158, %v5159
        %v5247 = vsel %vm5246, %v5158, %v5159
        %v5248 = vand.u32 %v5247, 65535
        %v5249 = vshra.s32 %v5247, 16
        %v5250 = vcvt.s32.f32 %v5248
        %v5251 = vcvt.s32.f32 %v5249
        %5252 = vmin.xlane.f32.xlu0 %v5251
        %v5253 = vpop.xlane.xlu0 %5252
        %vm5254 = vcmp.eq.f32.partialorder %v5251, %v5253
        %v5255 = vsel %vm5254, %v5250, inf
        %5256 = vmin.xlane.f32.xlu0 %v5255
        %v5257 = vpop.xlane.xlu0 %5256
        %v5258 = vcvt.f32.s32 %v5257
        %v5259 = vcvt.f32.s32 %v5253
        %v5260 = vshll.u32 %v5259, 16
        %v5261 = vadd.s32 %v5260, %v5258
        %vm5262 = vcmp.lt.s32.totalorder %v5160, %v5161
        %v5263 = vsel %vm5262, %v5160, %v5161
        %v5264 = vand.u32 %v5263, 65535
        %v5265 = vshra.s32 %v5263, 16
        %v5266 = vcvt.s32.f32 %v5264
        %v5267 = vcvt.s32.f32 %v5265
        %5268 = vmin.xlane.f32.xlu0 %v5267
        %v5269 = vpop.xlane.xlu0 %5268
        %vm5270 = vcmp.eq.f32.partialorder %v5267, %v5269
        %v5271 = vsel %vm5270, %v5266, inf
        %5272 = vmin.xlane.f32.xlu0 %v5271
        %v5273 = vpop.xlane.xlu0 %5272
        %v5274 = vcvt.f32.s32 %v5273
        %v5275 = vcvt.f32.s32 %v5269
        %v5276 = vshll.u32 %v5275, 16
        %v5277 = vadd.s32 %v5276, %v5274
        %vm5278 = vcmp.lt.s32.totalorder %v5162, %v5163
        %v5279 = vsel %vm5278, %v5162, %v5163
        %v5280 = vand.u32 %v5279, 65535
        %v5281 = vshra.s32 %v5279, 16
        %v5282 = vcvt.s32.f32 %v5280
        %v5283 = vcvt.s32.f32 %v5281
        %5284 = vmin.xlane.f32.xlu0 %v5283
        %v5285 = vpop.xlane.xlu0 %5284
        %vm5286 = vcmp.eq.f32.partialorder %v5283, %v5285
        %v5287 = vsel %vm5286, %v5282, inf
        %5288 = vmin.xlane.f32.xlu0 %v5287
        %v5289 = vpop.xlane.xlu0 %5288
        %v5290 = vcvt.f32.s32 %v5289
        %v5291 = vcvt.f32.s32 %v5285
        %v5292 = vshll.u32 %v5291, 16
        %v5293 = vadd.s32 %v5292, %v5290
        %vm5294 = vcmp.lt.s32.totalorder %v5164, %v5165
        %v5295 = vsel %vm5294, %v5164, %v5165
        %v5296 = vand.u32 %v5295, 65535
        %v5297 = vshra.s32 %v5295, 16
        %v5298 = vcvt.s32.f32 %v5296
        %v5299 = vcvt.s32.f32 %v5297
        %5300 = vmin.xlane.f32.xlu0 %v5299
        %v5301 = vpop.xlane.xlu0 %5300
        %vm5302 = vcmp.eq.f32.partialorder %v5299, %v5301
        %v5303 = vsel %vm5302, %v5298, inf
        %5304 = vmin.xlane.f32.xlu0 %v5303
        %v5305 = vpop.xlane.xlu0 %5304
        %v5306 = vcvt.f32.s32 %v5305
        %v5307 = vcvt.f32.s32 %v5301
        %v5308 = vshll.u32 %v5307, 16
        %v5309 = vadd.s32 %v5308, %v5306
        %vm5310 = vcmp.lt.s32.totalorder %v5166, %v5167
        %v5311 = vsel %vm5310, %v5166, %v5167
        %v5312 = vand.u32 %v5311, 65535
        %v5313 = vshra.s32 %v5311, 16
        %v5314 = vcvt.s32.f32 %v5312
        %v5315 = vcvt.s32.f32 %v5313
        %5316 = vmin.xlane.f32.xlu0 %v5315
        %v5317 = vpop.xlane.xlu0 %5316
        %vm5318 = vcmp.eq.f32.partialorder %v5315, %v5317
        %v5319 = vsel %vm5318, %v5314, inf
        %5320 = vmin.xlane.f32.xlu0 %v5319
        %v5321 = vpop.xlane.xlu0 %5320
        %v5322 = vcvt.f32.s32 %v5321
        %v5323 = vcvt.f32.s32 %v5317
        %v5324 = vshll.u32 %v5323, 16
        %v5325 = vadd.s32 %v5324, %v5322
        %vm5326 = vcmp.lt.s32.totalorder %v5168, %v5169
        %v5327 = vsel %vm5326, %v5168, %v5169
        %v5328 = vand.u32 %v5327, 65535
        %v5329 = vshra.s32 %v5327, 16
        %v5330 = vcvt.s32.f32 %v5328
        %v5331 = vcvt.s32.f32 %v5329
        %5332 = vmin.xlane.f32.xlu0 %v5331
        %v5333 = vpop.xlane.xlu0 %5332
        %vm5334 = vcmp.eq.f32.partialorder %v5331, %v5333
        %v5335 = vsel %vm5334, %v5330, inf
        %5336 = vmin.xlane.f32.xlu0 %v5335
        %v5337 = vpop.xlane.xlu0 %5336
        %v5338 = vcvt.f32.s32 %v5337
        %v5339 = vcvt.f32.s32 %v5333
        %v5340 = vshll.u32 %v5339, 16
        %v5341 = vadd.s32 %v5340, %v5338
        %vm5342 = vcmp.lt.s32.totalorder %v5170, %v5171
        %v5343 = vsel %vm5342, %v5170, %v5171
        %v5344 = vand.u32 %v5343, 65535
        %v5345 = vshra.s32 %v5343, 16
        %v5346 = vcvt.s32.f32 %v5344
        %v5347 = vcvt.s32.f32 %v5345
        %5348 = vmin.xlane.f32.xlu0 %v5347
        %v5349 = vpop.xlane.xlu0 %5348
        %vm5350 = vcmp.eq.f32.partialorder %v5347, %v5349
        %v5351 = vsel %vm5350, %v5346, inf
        %5352 = vmin.xlane.f32.xlu0 %v5351
        %v5353 = vpop.xlane.xlu0 %5352
        %v5354 = vcvt.f32.s32 %v5353
        %v5355 = vcvt.f32.s32 %v5349
        %v5356 = vshll.u32 %v5355, 16
        %v5357 = vadd.s32 %v5356, %v5354
        %vm5358 = vcmp.lt.s32.totalorder %v5172, %v5173
        %v5359 = vsel %vm5358, %v5172, %v5173
        %v5360 = vand.u32 %v5359, 65535
        %v5361 = vshra.s32 %v5359, 16
        %v5362 = vcvt.s32.f32 %v5360
        %v5363 = vcvt.s32.f32 %v5361
        %5364 = vmin.xlane.f32.xlu0 %v5363
        %v5365 = vpop.xlane.xlu0 %5364
        %vm5366 = vcmp.eq.f32.partialorder %v5363, %v5365
        %v5367 = vsel %vm5366, %v5362, inf
        %5368 = vmin.xlane.f32.xlu0 %v5367
        %v5369 = vpop.xlane.xlu0 %5368
        %v5370 = vcvt.f32.s32 %v5369
        %v5371 = vcvt.f32.s32 %v5365
        %v5372 = vshll.u32 %v5371, 16
        %v5373 = vadd.s32 %v5372, %v5370
        %vm5374 = vcmp.lt.s32.totalorder %v5174, %v5175
        %v5375 = vsel %vm5374, %v5174, %v5175
        %v5376 = vand.u32 %v5375, 65535
        %v5377 = vshra.s32 %v5375, 16
        %v5378 = vcvt.s32.f32 %v5376
        %v5379 = vcvt.s32.f32 %v5377
        %5380 = vmin.xlane.f32.xlu0 %v5379
        %v5381 = vpop.xlane.xlu0 %5380
        %vm5382 = vcmp.eq.f32.partialorder %v5379, %v5381
        %v5383 = vsel %vm5382, %v5378, inf
        %5384 = vmin.xlane.f32.xlu0 %v5383
        %v5385 = vpop.xlane.xlu0 %5384
        %v5386 = vcvt.f32.s32 %v5385
        %v5387 = vcvt.f32.s32 %v5381
        %v5388 = vshll.u32 %v5387, 16
        %v5389 = vadd.s32 %v5388, %v5386
        %vm5390 = vcmp.lt.s32.totalorder %v5176, %v5177
        %v5391 = vsel %vm5390, %v5176, %v5177
        %v5392 = vand.u32 %v5391, 65535
        %v5393 = vshra.s32 %v5391, 16
        %v5394 = vcvt.s32.f32 %v5392
        %v5395 = vcvt.s32.f32 %v5393
        %5396 = vmin.xlane.f32.xlu0 %v5395
        %v5397 = vpop.xlane.xlu0 %5396
        %vm5398 = vcmp.eq.f32.partialorder %v5395, %v5397
        %v5399 = vsel %vm5398, %v5394, inf
        %5400 = vmin.xlane.f32.xlu0 %v5399
        %v5401 = vpop.xlane.xlu0 %5400
        %v5402 = vcvt.f32.s32 %v5401
        %v5403 = vcvt.f32.s32 %v5397
        %v5404 = vshll.u32 %v5403, 16
        %v5405 = vadd.s32 %v5404, %v5402
        %vm5406 = vcmp.lt.s32.totalorder %v5178, %v5179
        %v5407 = vsel %vm5406, %v5178, %v5179
        %v5408 = vand.u32 %v5407, 65535
        %v5409 = vshra.s32 %v5407, 16
        %v5410 = vcvt.s32.f32 %v5408
        %v5411 = vcvt.s32.f32 %v5409
        %5412 = vmin.xlane.f32.xlu0 %v5411
        %v5413 = vpop.xlane.xlu0 %5412
        %vm5414 = vcmp.eq.f32.partialorder %v5411, %v5413
        %v5415 = vsel %vm5414, %v5410, inf
        %5416 = vmin.xlane.f32.xlu0 %v5415
        %v5417 = vpop.xlane.xlu0 %5416
        %v5418 = vcvt.f32.s32 %v5417
        %v5419 = vcvt.f32.s32 %v5413
        %v5420 = vshll.u32 %v5419, 16
        %v5421 = vadd.s32 %v5420, %v5418
        %vm5422 = vcmp.lt.s32.totalorder %v5180, %v5181
        %v5423 = vsel %vm5422, %v5180, %v5181
        %v5424 = vand.u32 %v5423, 65535
        %v5425 = vshra.s32 %v5423, 16
        %v5426 = vcvt.s32.f32 %v5424
        %v5427 = vcvt.s32.f32 %v5425
        %5428 = vmin.xlane.f32.xlu0 %v5427
        %v5429 = vpop.xlane.xlu0 %5428
        %vm5430 = vcmp.eq.f32.partialorder %v5427, %v5429
        %v5431 = vsel %vm5430, %v5426, inf
        %5432 = vmin.xlane.f32.xlu0 %v5431
        %v5433 = vpop.xlane.xlu0 %5432
        %v5434 = vcvt.f32.s32 %v5433
        %v5435 = vcvt.f32.s32 %v5429
        %v5436 = vshll.u32 %v5435, 16
        %v5437 = vadd.s32 %v5436, %v5434
        %v5438 = vlaneseq
        %v5439 = vshrl.u32 %v5438, 7
        %v5440 = vsub.s32 %v712, %v5439
        %v5441 = vrot.slane %v5197, %v5440
        %v5442 = vlaneseq
        %v5443 = vshrl.u32 %v5442, 7
        %v5444 = vsub.s32 %v1086, %v5443
        %v5445 = vrot.slane %v5213, %v5444
        %v5446 = vsel %vm1091, %v5445, %v5441
        %v5447 = vlaneseq
        %v5448 = vshrl.u32 %v5447, 7
        %v5449 = vsub.s32 %v1093, %v5448
        %v5450 = vrot.slane %v5229, %v5449
        %v5451 = vsel %vm1098, %v5450, %v5446
        %v5452 = vlaneseq
        %v5453 = vshrl.u32 %v5452, 7
        %v5454 = vsub.s32 %v1100, %v5453
        %v5455 = vrot.slane %v5245, %v5454
        %v5456 = vsel %vm1105, %v5455, %v5451
        %v5457 = vlaneseq
        %v5458 = vshrl.u32 %v5457, 7
        %v5459 = vsub.s32 %v1107, %v5458
        %v5460 = vrot.slane %v5261, %v5459
        %v5461 = vsel %vm1112, %v5460, %v5456
        %v5462 = vlaneseq
        %v5463 = vshrl.u32 %v5462, 7
        %v5464 = vsub.s32 %v1114, %v5463
        %v5465 = vrot.slane %v5277, %v5464
        %v5466 = vsel %vm1119, %v5465, %v5461
        %v5467 = vlaneseq
        %v5468 = vshrl.u32 %v5467, 7
        %v5469 = vsub.s32 %v1121, %v5468
        %v5470 = vrot.slane %v5293, %v5469
        %v5471 = vsel %vm1126, %v5470, %v5466
        %v5472 = vlaneseq
        %v5473 = vshrl.u32 %v5472, 7
        %v5474 = vsub.s32 %v1128, %v5473
        %v5475 = vrot.slane %v5309, %v5474
        %v5476 = vsel %vm1133, %v5475, %v5471
        %v5477 = vlaneseq
        %v5478 = vshrl.u32 %v5477, 7
        %v5479 = vsub.s32 %v1135, %v5478
        %v5480 = vrot.slane %v5325, %v5479
        %v5481 = vsel %vm1140, %v5480, %v5476
        %v5482 = vlaneseq
        %v5483 = vshrl.u32 %v5482, 7
        %v5484 = vsub.s32 %v1142, %v5483
        %v5485 = vrot.slane %v5341, %v5484
        %v5486 = vsel %vm1147, %v5485, %v5481
        %v5487 = vlaneseq
        %v5488 = vshrl.u32 %v5487, 7
        %v5489 = vsub.s32 %v1149, %v5488
        %v5490 = vrot.slane %v5357, %v5489
        %v5491 = vsel %vm1154, %v5490, %v5486
        %v5492 = vlaneseq
        %v5493 = vshrl.u32 %v5492, 7
        %v5494 = vsub.s32 %v1156, %v5493
        %v5495 = vrot.slane %v5373, %v5494
        %v5496 = vsel %vm1161, %v5495, %v5491
        %v5497 = vlaneseq
        %v5498 = vshrl.u32 %v5497, 7
        %v5499 = vsub.s32 %v1163, %v5498
        %v5500 = vrot.slane %v5389, %v5499
        %v5501 = vsel %vm1168, %v5500, %v5496
        %v5502 = vlaneseq
        %v5503 = vshrl.u32 %v5502, 7
        %v5504 = vsub.s32 %v1170, %v5503
        %v5505 = vrot.slane %v5405, %v5504
        %v5506 = vsel %vm1175, %v5505, %v5501
        %v5507 = vlaneseq
        %v5508 = vshrl.u32 %v5507, 7
        %v5509 = vsub.s32 %v1177, %v5508
        %v5510 = vrot.slane %v5421, %v5509
        %v5511 = vsel %vm1182, %v5510, %v5506
        %v5512 = vlaneseq
        %v5513 = vshrl.u32 %v5512, 7
        %v5514 = vsub.s32 %v1184, %v5513
        %v5515 = vrot.slane %v5437, %v5514
        %v5516 = vsel %vm1189, %v5515, %v5511
        %5517 = vst [vmem:[%s246 + $0x6] sm:$0x1] %v5516
        %v5518 = vrsqrt.pop %v5072
        %v5519 = vmul.f32 %v5072, %v5518
        %vm5520 = vcmp.eq.f32.partialorder %v5072, inf
        %v5521 = vsel %vm5520, %v5072, %v5519
        %vm5522 = vcmp.eq.f32.partialorder %v5072, 0.0
        %v5523 = vand.u32 %v5072, 2147483648
        %v5524 = vsel %vm5522, %v5523, %v5521
        %v5525 = vrsqrt.pop %v5075
        %v5526 = vmul.f32 %v5075, %v5525
        %vm5527 = vcmp.eq.f32.partialorder %v5075, inf
        %v5528 = vsel %vm5527, %v5075, %v5526
        %vm5529 = vcmp.eq.f32.partialorder %v5075, 0.0
        %v5530 = vand.u32 %v5075, 2147483648
        %v5531 = vsel %vm5529, %v5530, %v5528
        %v5532 = vrsqrt.pop %v5078
        %v5533 = vmul.f32 %v5078, %v5532
        %vm5534 = vcmp.eq.f32.partialorder %v5078, inf
        %v5535 = vsel %vm5534, %v5078, %v5533
        %vm5536 = vcmp.eq.f32.partialorder %v5078, 0.0
        %v5537 = vand.u32 %v5078, 2147483648
        %v5538 = vsel %vm5536, %v5537, %v5535
        %v5539 = vrsqrt.pop %v5081
        %v5540 = vmul.f32 %v5081, %v5539
        %vm5541 = vcmp.eq.f32.partialorder %v5081, inf
        %v5542 = vsel %vm5541, %v5081, %v5540
        %vm5543 = vcmp.eq.f32.partialorder %v5081, 0.0
        %v5544 = vand.u32 %v5081, 2147483648
        %v5545 = vsel %vm5543, %v5544, %v5542
        %v5546 = vrsqrt.pop %v5084
        %v5547 = vmul.f32 %v5084, %v5546
        %vm5548 = vcmp.eq.f32.partialorder %v5084, inf
        %v5549 = vsel %vm5548, %v5084, %v5547
        %vm5550 = vcmp.eq.f32.partialorder %v5084, 0.0
        %v5551 = vand.u32 %v5084, 2147483648
        %v5552 = vsel %vm5550, %v5551, %v5549
        %v5553 = vrsqrt.pop %v5087
        %v5554 = vmul.f32 %v5087, %v5553
        %vm5555 = vcmp.eq.f32.partialorder %v5087, inf
        %v5556 = vsel %vm5555, %v5087, %v5554
        %vm5557 = vcmp.eq.f32.partialorder %v5087, 0.0
        %v5558 = vand.u32 %v5087, 2147483648
        %v5559 = vsel %vm5557, %v5558, %v5556
        %v5560 = vrsqrt.pop %v5090
        %v5561 = vmul.f32 %v5090, %v5560
        %vm5562 = vcmp.eq.f32.partialorder %v5090, inf
        %v5563 = vsel %vm5562, %v5090, %v5561
        %vm5564 = vcmp.eq.f32.partialorder %v5090, 0.0
        %v5565 = vand.u32 %v5090, 2147483648
        %v5566 = vsel %vm5564, %v5565, %v5563
        %v5567 = vrsqrt.pop %v5093
        %v5568 = vmul.f32 %v5093, %v5567
        %vm5569 = vcmp.eq.f32.partialorder %v5093, inf
        %v5570 = vsel %vm5569, %v5093, %v5568
        %vm5571 = vcmp.eq.f32.partialorder %v5093, 0.0
        %v5572 = vand.u32 %v5093, 2147483648
        %v5573 = vsel %vm5571, %v5572, %v5570
        %v5574 = vrsqrt.pop %v5096
        %v5575 = vmul.f32 %v5096, %v5574
        %vm5576 = vcmp.eq.f32.partialorder %v5096, inf
        %v5577 = vsel %vm5576, %v5096, %v5575
        %vm5578 = vcmp.eq.f32.partialorder %v5096, 0.0
        %v5579 = vand.u32 %v5096, 2147483648
        %v5580 = vsel %vm5578, %v5579, %v5577
        %v5581 = vrsqrt.pop %v5099
        %v5582 = vmul.f32 %v5099, %v5581
        %vm5583 = vcmp.eq.f32.partialorder %v5099, inf
        %v5584 = vsel %vm5583, %v5099, %v5582
        %vm5585 = vcmp.eq.f32.partialorder %v5099, 0.0
        %v5586 = vand.u32 %v5099, 2147483648
        %v5587 = vsel %vm5585, %v5586, %v5584
        %v5588 = vrsqrt.pop %v5102
        %v5589 = vmul.f32 %v5102, %v5588
        %vm5590 = vcmp.eq.f32.partialorder %v5102, inf
        %v5591 = vsel %vm5590, %v5102, %v5589
        %vm5592 = vcmp.eq.f32.partialorder %v5102, 0.0
        %v5593 = vand.u32 %v5102, 2147483648
        %v5594 = vsel %vm5592, %v5593, %v5591
        %v5595 = vrsqrt.pop %v5105
        %v5596 = vmul.f32 %v5105, %v5595
        %vm5597 = vcmp.eq.f32.partialorder %v5105, inf
        %v5598 = vsel %vm5597, %v5105, %v5596
        %vm5599 = vcmp.eq.f32.partialorder %v5105, 0.0
        %v5600 = vand.u32 %v5105, 2147483648
        %v5601 = vsel %vm5599, %v5600, %v5598
        %v5602 = vrsqrt.pop %v5108
        %v5603 = vmul.f32 %v5108, %v5602
        %vm5604 = vcmp.eq.f32.partialorder %v5108, inf
        %v5605 = vsel %vm5604, %v5108, %v5603
        %vm5606 = vcmp.eq.f32.partialorder %v5108, 0.0
        %v5607 = vand.u32 %v5108, 2147483648
        %v5608 = vsel %vm5606, %v5607, %v5605
        %v5609 = vrsqrt.pop %v5111
        %v5610 = vmul.f32 %v5111, %v5609
        %vm5611 = vcmp.eq.f32.partialorder %v5111, inf
        %v5612 = vsel %vm5611, %v5111, %v5610
        %vm5613 = vcmp.eq.f32.partialorder %v5111, 0.0
        %v5614 = vand.u32 %v5111, 2147483648
        %v5615 = vsel %vm5613, %v5614, %v5612
        %v5616 = vrsqrt.pop %v5114
        %v5617 = vmul.f32 %v5114, %v5616
        %vm5618 = vcmp.eq.f32.partialorder %v5114, inf
        %v5619 = vsel %vm5618, %v5114, %v5617
        %vm5620 = vcmp.eq.f32.partialorder %v5114, 0.0
        %v5621 = vand.u32 %v5114, 2147483648
        %v5622 = vsel %vm5620, %v5621, %v5619
        %v5623 = vrsqrt.pop %v5117
        %v5624 = vmul.f32 %v5117, %v5623
        %vm5625 = vcmp.eq.f32.partialorder %v5117, inf
        %v5626 = vsel %vm5625, %v5117, %v5624
        %vm5627 = vcmp.eq.f32.partialorder %v5117, 0.0
        %v5628 = vand.u32 %v5117, 2147483648
        %v5629 = vsel %vm5627, %v5628, %v5626
        %v5646 = vlaneseq
        %v5647 = vshrl.u32 %v5646, 7
        %v5648 = vsub.s32 %v712, %v5647
        %v5649 = vrot.slane %v5524, %v5648
        %v5650 = vlaneseq
        %v5651 = vshrl.u32 %v5650, 7
        %v5652 = vsub.s32 %v1086, %v5651
        %v5653 = vrot.slane %v5531, %v5652
        %v5654 = vsel %vm1091, %v5653, %v5649
        %v5655 = vlaneseq
        %v5656 = vshrl.u32 %v5655, 7
        %v5657 = vsub.s32 %v1093, %v5656
        %v5658 = vrot.slane %v5538, %v5657
        %v5659 = vsel %vm1098, %v5658, %v5654
        %v5660 = vlaneseq
        %v5661 = vshrl.u32 %v5660, 7
        %v5662 = vsub.s32 %v1100, %v5661
        %v5663 = vrot.slane %v5545, %v5662
        %v5664 = vsel %vm1105, %v5663, %v5659
        %v5665 = vlaneseq
        %v5666 = vshrl.u32 %v5665, 7
        %v5667 = vsub.s32 %v1107, %v5666
        %v5668 = vrot.slane %v5552, %v5667
        %v5669 = vsel %vm1112, %v5668, %v5664
        %v5670 = vlaneseq
        %v5671 = vshrl.u32 %v5670, 7
        %v5672 = vsub.s32 %v1114, %v5671
        %v5673 = vrot.slane %v5559, %v5672
        %v5674 = vsel %vm1119, %v5673, %v5669
        %v5675 = vlaneseq
        %v5676 = vshrl.u32 %v5675, 7
        %v5677 = vsub.s32 %v1121, %v5676
        %v5678 = vrot.slane %v5566, %v5677
        %v5679 = vsel %vm1126, %v5678, %v5674
        %v5680 = vlaneseq
        %v5681 = vshrl.u32 %v5680, 7
        %v5682 = vsub.s32 %v1128, %v5681
        %v5683 = vrot.slane %v5573, %v5682
        %v5684 = vsel %vm1133, %v5683, %v5679
        %v5685 = vlaneseq
        %v5686 = vshrl.u32 %v5685, 7
        %v5687 = vsub.s32 %v1135, %v5686
        %v5688 = vrot.slane %v5580, %v5687
        %v5689 = vsel %vm1140, %v5688, %v5684
        %v5690 = vlaneseq
        %v5691 = vshrl.u32 %v5690, 7
        %v5692 = vsub.s32 %v1142, %v5691
        %v5693 = vrot.slane %v5587, %v5692
        %v5694 = vsel %vm1147, %v5693, %v5689
        %v5695 = vlaneseq
        %v5696 = vshrl.u32 %v5695, 7
        %v5697 = vsub.s32 %v1149, %v5696
        %v5698 = vrot.slane %v5594, %v5697
        %v5699 = vsel %vm1154, %v5698, %v5694
        %v5700 = vlaneseq
        %v5701 = vshrl.u32 %v5700, 7
        %v5702 = vsub.s32 %v1156, %v5701
        %v5703 = vrot.slane %v5601, %v5702
        %v5704 = vsel %vm1161, %v5703, %v5699
        %v5705 = vlaneseq
        %v5706 = vshrl.u32 %v5705, 7
        %v5707 = vsub.s32 %v1163, %v5706
        %v5708 = vrot.slane %v5608, %v5707
        %v5709 = vsel %vm1168, %v5708, %v5704
        %v5710 = vlaneseq
        %v5711 = vshrl.u32 %v5710, 7
        %v5712 = vsub.s32 %v1170, %v5711
        %v5713 = vrot.slane %v5615, %v5712
        %v5714 = vsel %vm1175, %v5713, %v5709
        %v5715 = vlaneseq
        %v5716 = vshrl.u32 %v5715, 7
        %v5717 = vsub.s32 %v1177, %v5716
        %v5718 = vrot.slane %v5622, %v5717
        %v5719 = vsel %vm1182, %v5718, %v5714
        %v5720 = vlaneseq
        %v5721 = vshrl.u32 %v5720, 7
        %v5722 = vsub.s32 %v1184, %v5721
        %v5723 = vrot.slane %v5629, %v5722
        %v5724 = vsel %vm1189, %v5723, %v5719
        %5726 = vst [vmem:[%s253 + $0x6] sm:$0x1] %v5724
        %vm5727 = vcmp.eq.s32.totalorder %v712, %v5197
        %vm5728 = vcmp.eq.s32.totalorder %v713, %v5197
        %vm5729 = vcmp.eq.s32.totalorder %v712, %v5213
        %vm5730 = vcmp.eq.s32.totalorder %v713, %v5213
        %vm5731 = vcmp.eq.s32.totalorder %v712, %v5229
        %vm5732 = vcmp.eq.s32.totalorder %v713, %v5229
        %vm5733 = vcmp.eq.s32.totalorder %v712, %v5245
        %vm5734 = vcmp.eq.s32.totalorder %v713, %v5245
        %vm5735 = vcmp.eq.s32.totalorder %v712, %v5261
        %vm5736 = vcmp.eq.s32.totalorder %v713, %v5261
        %vm5737 = vcmp.eq.s32.totalorder %v712, %v5277
        %vm5738 = vcmp.eq.s32.totalorder %v713, %v5277
        %vm5739 = vcmp.eq.s32.totalorder %v712, %v5293
        %vm5740 = vcmp.eq.s32.totalorder %v713, %v5293
        %vm5741 = vcmp.eq.s32.totalorder %v712, %v5309
        %vm5742 = vcmp.eq.s32.totalorder %v713, %v5309
        %vm5743 = vcmp.eq.s32.totalorder %v712, %v5325
        %vm5744 = vcmp.eq.s32.totalorder %v713, %v5325
        %vm5745 = vcmp.eq.s32.totalorder %v712, %v5341
        %vm5746 = vcmp.eq.s32.totalorder %v713, %v5341
        %vm5747 = vcmp.eq.s32.totalorder %v712, %v5357
        %vm5748 = vcmp.eq.s32.totalorder %v713, %v5357
        %vm5749 = vcmp.eq.s32.totalorder %v712, %v5373
        %vm5750 = vcmp.eq.s32.totalorder %v713, %v5373
        %vm5751 = vcmp.eq.s32.totalorder %v712, %v5389
        %vm5752 = vcmp.eq.s32.totalorder %v713, %v5389
        %vm5753 = vcmp.eq.s32.totalorder %v712, %v5405
        %vm5754 = vcmp.eq.s32.totalorder %v713, %v5405
        %vm5755 = vcmp.eq.s32.totalorder %v712, %v5421
        %vm5756 = vcmp.eq.s32.totalorder %v713, %v5421
        %vm5757 = vcmp.eq.s32.totalorder %v712, %v5437
        %vm5758 = vcmp.eq.s32.totalorder %v713, %v5437
        %v5759 = vsel %vm5727, 3.4e+38, %v5038
        %v5760 = vsel %vm5728, 3.4e+38, %v5039
        %v5761 = vsel %vm5729, 3.4e+38, %v5040
        %v5762 = vsel %vm5730, 3.4e+38, %v5041
        %v5763 = vsel %vm5731, 3.4e+38, %v5042
        %v5764 = vsel %vm5732, 3.4e+38, %v5043
        %v5765 = vsel %vm5733, 3.4e+38, %v5044
        %v5766 = vsel %vm5734, 3.4e+38, %v5045
        %v5767 = vsel %vm5735, 3.4e+38, %v5046
        %v5768 = vsel %vm5736, 3.4e+38, %v5047
        %v5769 = vsel %vm5737, 3.4e+38, %v5048
        %v5770 = vsel %vm5738, 3.4e+38, %v5049
        %v5771 = vsel %vm5739, 3.4e+38, %v5050
        %v5772 = vsel %vm5740, 3.4e+38, %v5051
        %v5773 = vsel %vm5741, 3.4e+38, %v5052
        %v5774 = vsel %vm5742, 3.4e+38, %v5053
        %v5775 = vsel %vm5743, 3.4e+38, %v5054
        %v5776 = vsel %vm5744, 3.4e+38, %v5055
        %v5777 = vsel %vm5745, 3.4e+38, %v5056
        %v5778 = vsel %vm5746, 3.4e+38, %v5057
        %v5779 = vsel %vm5747, 3.4e+38, %v5058
        %v5780 = vsel %vm5748, 3.4e+38, %v5059
        %v5781 = vsel %vm5749, 3.4e+38, %v5060
        %v5782 = vsel %vm5750, 3.4e+38, %v5061
        %v5783 = vsel %vm5751, 3.4e+38, %v5062
        %v5784 = vsel %vm5752, 3.4e+38, %v5063
        %v5785 = vsel %vm5753, 3.4e+38, %v5064
        %v5786 = vsel %vm5754, 3.4e+38, %v5065
        %v5787 = vsel %vm5755, 3.4e+38, %v5066
        %v5788 = vsel %vm5756, 3.4e+38, %v5067
        %v5789 = vsel %vm5757, 3.4e+38, %v5068
        %v5790 = vsel %vm5758, 3.4e+38, %v5069
        %v5791 = vmin.f32 %v5759, %v5760
        %5792 = vmin.xlane.f32.xlu0 %v5791
        %v5793 = vpop.xlane.xlu0 %5792
        %v5794 = vmin.f32 %v5761, %v5762
        %5795 = vmin.xlane.f32.xlu0 %v5794
        %v5796 = vpop.xlane.xlu0 %5795
        %v5797 = vmin.f32 %v5763, %v5764
        %5798 = vmin.xlane.f32.xlu0 %v5797
        %v5799 = vpop.xlane.xlu0 %5798
        %v5800 = vmin.f32 %v5765, %v5766
        %5801 = vmin.xlane.f32.xlu0 %v5800
        %v5802 = vpop.xlane.xlu0 %5801
        %v5803 = vmin.f32 %v5767, %v5768
        %5804 = vmin.xlane.f32.xlu0 %v5803
        %v5805 = vpop.xlane.xlu0 %5804
        %v5806 = vmin.f32 %v5769, %v5770
        %5807 = vmin.xlane.f32.xlu0 %v5806
        %v5808 = vpop.xlane.xlu0 %5807
        %v5809 = vmin.f32 %v5771, %v5772
        %5810 = vmin.xlane.f32.xlu0 %v5809
        %v5811 = vpop.xlane.xlu0 %5810
        %v5812 = vmin.f32 %v5773, %v5774
        %5813 = vmin.xlane.f32.xlu0 %v5812
        %v5814 = vpop.xlane.xlu0 %5813
        %v5815 = vmin.f32 %v5775, %v5776
        %5816 = vmin.xlane.f32.xlu0 %v5815
        %v5817 = vpop.xlane.xlu0 %5816
        %v5818 = vmin.f32 %v5777, %v5778
        %5819 = vmin.xlane.f32.xlu0 %v5818
        %v5820 = vpop.xlane.xlu0 %5819
        %v5821 = vmin.f32 %v5779, %v5780
        %5822 = vmin.xlane.f32.xlu0 %v5821
        %v5823 = vpop.xlane.xlu0 %5822
        %v5824 = vmin.f32 %v5781, %v5782
        %5825 = vmin.xlane.f32.xlu0 %v5824
        %v5826 = vpop.xlane.xlu0 %5825
        %v5827 = vmin.f32 %v5783, %v5784
        %5828 = vmin.xlane.f32.xlu0 %v5827
        %v5829 = vpop.xlane.xlu0 %5828
        %v5830 = vmin.f32 %v5785, %v5786
        %5831 = vmin.xlane.f32.xlu0 %v5830
        %v5832 = vpop.xlane.xlu0 %5831
        %v5833 = vmin.f32 %v5787, %v5788
        %5834 = vmin.xlane.f32.xlu0 %v5833
        %v5835 = vpop.xlane.xlu0 %5834
        %v5836 = vmin.f32 %v5789, %v5790
        %5837 = vmin.xlane.f32.xlu0 %v5836
        %v5838 = vpop.xlane.xlu0 %5837
        %vm5839 = vcmp.eq.f32.partialorder %v5759, %v5793
        %vm5840 = vcmp.eq.f32.partialorder %v5760, %v5793
        %vm5841 = vcmp.eq.f32.partialorder %v5761, %v5796
        %vm5842 = vcmp.eq.f32.partialorder %v5762, %v5796
        %vm5843 = vcmp.eq.f32.partialorder %v5763, %v5799
        %vm5844 = vcmp.eq.f32.partialorder %v5764, %v5799
        %vm5845 = vcmp.eq.f32.partialorder %v5765, %v5802
        %vm5846 = vcmp.eq.f32.partialorder %v5766, %v5802
        %vm5847 = vcmp.eq.f32.partialorder %v5767, %v5805
        %vm5848 = vcmp.eq.f32.partialorder %v5768, %v5805
        %vm5849 = vcmp.eq.f32.partialorder %v5769, %v5808
        %vm5850 = vcmp.eq.f32.partialorder %v5770, %v5808
        %vm5851 = vcmp.eq.f32.partialorder %v5771, %v5811
        %vm5852 = vcmp.eq.f32.partialorder %v5772, %v5811
        %vm5853 = vcmp.eq.f32.partialorder %v5773, %v5814
        %vm5854 = vcmp.eq.f32.partialorder %v5774, %v5814
        %vm5855 = vcmp.eq.f32.partialorder %v5775, %v5817
        %vm5856 = vcmp.eq.f32.partialorder %v5776, %v5817
        %vm5857 = vcmp.eq.f32.partialorder %v5777, %v5820
        %vm5858 = vcmp.eq.f32.partialorder %v5778, %v5820
        %vm5859 = vcmp.eq.f32.partialorder %v5779, %v5823
        %vm5860 = vcmp.eq.f32.partialorder %v5780, %v5823
        %vm5861 = vcmp.eq.f32.partialorder %v5781, %v5826
        %vm5862 = vcmp.eq.f32.partialorder %v5782, %v5826
        %vm5863 = vcmp.eq.f32.partialorder %v5783, %v5829
        %vm5864 = vcmp.eq.f32.partialorder %v5784, %v5829
        %vm5865 = vcmp.eq.f32.partialorder %v5785, %v5832
        %vm5866 = vcmp.eq.f32.partialorder %v5786, %v5832
        %vm5867 = vcmp.eq.f32.partialorder %v5787, %v5835
        %vm5868 = vcmp.eq.f32.partialorder %v5788, %v5835
        %vm5869 = vcmp.eq.f32.partialorder %v5789, %v5838
        %vm5870 = vcmp.eq.f32.partialorder %v5790, %v5838
        %v5871 = vsel %vm5839, %v712, 256
        %v5872 = vsel %vm5840, %v713, 256
        %v5873 = vsel %vm5841, %v712, 256
        %v5874 = vsel %vm5842, %v713, 256
        %v5875 = vsel %vm5843, %v712, 256
        %v5876 = vsel %vm5844, %v713, 256
        %v5877 = vsel %vm5845, %v712, 256
        %v5878 = vsel %vm5846, %v713, 256
        %v5879 = vsel %vm5847, %v712, 256
        %v5880 = vsel %vm5848, %v713, 256
        %v5881 = vsel %vm5849, %v712, 256
        %v5882 = vsel %vm5850, %v713, 256
        %v5883 = vsel %vm5851, %v712, 256
        %v5884 = vsel %vm5852, %v713, 256
        %v5885 = vsel %vm5853, %v712, 256
        %v5886 = vsel %vm5854, %v713, 256
        %v5887 = vsel %vm5855, %v712, 256
        %v5888 = vsel %vm5856, %v713, 256
        %v5889 = vsel %vm5857, %v712, 256
        %v5890 = vsel %vm5858, %v713, 256
        %v5891 = vsel %vm5859, %v712, 256
        %v5892 = vsel %vm5860, %v713, 256
        %v5893 = vsel %vm5861, %v712, 256
        %v5894 = vsel %vm5862, %v713, 256
        %v5895 = vsel %vm5863, %v712, 256
        %v5896 = vsel %vm5864, %v713, 256
        %v5897 = vsel %vm5865, %v712, 256
        %v5898 = vsel %vm5866, %v713, 256
        %v5899 = vsel %vm5867, %v712, 256
        %v5900 = vsel %vm5868, %v713, 256
        %v5901 = vsel %vm5869, %v712, 256
        %v5902 = vsel %vm5870, %v713, 256
        %vm5903 = vcmp.lt.s32.totalorder %v5871, %v5872
        %v5904 = vsel %vm5903, %v5871, %v5872
        %v5905 = vand.u32 %v5904, 65535
        %v5906 = vshra.s32 %v5904, 16
        %v5907 = vcvt.s32.f32 %v5905
        %v5908 = vcvt.s32.f32 %v5906
        %5909 = vmin.xlane.f32.xlu0 %v5908
        %v5910 = vpop.xlane.xlu0 %5909
        %vm5911 = vcmp.eq.f32.partialorder %v5908, %v5910
        %v5912 = vsel %vm5911, %v5907, inf
        %5913 = vmin.xlane.f32.xlu0 %v5912
        %v5914 = vpop.xlane.xlu0 %5913
        %v5915 = vcvt.f32.s32 %v5914
        %v5916 = vcvt.f32.s32 %v5910
        %v5917 = vshll.u32 %v5916, 16
        %v5918 = vadd.s32 %v5917, %v5915
        %vm5919 = vcmp.lt.s32.totalorder %v5873, %v5874
        %v5920 = vsel %vm5919, %v5873, %v5874
        %v5921 = vand.u32 %v5920, 65535
        %v5922 = vshra.s32 %v5920, 16
        %v5923 = vcvt.s32.f32 %v5921
        %v5924 = vcvt.s32.f32 %v5922
        %5925 = vmin.xlane.f32.xlu0 %v5924
        %v5926 = vpop.xlane.xlu0 %5925
        %vm5927 = vcmp.eq.f32.partialorder %v5924, %v5926
        %v5928 = vsel %vm5927, %v5923, inf
        %5929 = vmin.xlane.f32.xlu0 %v5928
        %v5930 = vpop.xlane.xlu0 %5929
        %v5931 = vcvt.f32.s32 %v5930
        %v5932 = vcvt.f32.s32 %v5926
        %v5933 = vshll.u32 %v5932, 16
        %v5934 = vadd.s32 %v5933, %v5931
        %vm5935 = vcmp.lt.s32.totalorder %v5875, %v5876
        %v5936 = vsel %vm5935, %v5875, %v5876
        %v5937 = vand.u32 %v5936, 65535
        %v5938 = vshra.s32 %v5936, 16
        %v5939 = vcvt.s32.f32 %v5937
        %v5940 = vcvt.s32.f32 %v5938
        %5941 = vmin.xlane.f32.xlu0 %v5940
        %v5942 = vpop.xlane.xlu0 %5941
        %vm5943 = vcmp.eq.f32.partialorder %v5940, %v5942
        %v5944 = vsel %vm5943, %v5939, inf
        %5945 = vmin.xlane.f32.xlu0 %v5944
        %v5946 = vpop.xlane.xlu0 %5945
        %v5947 = vcvt.f32.s32 %v5946
        %v5948 = vcvt.f32.s32 %v5942
        %v5949 = vshll.u32 %v5948, 16
        %v5950 = vadd.s32 %v5949, %v5947
        %vm5951 = vcmp.lt.s32.totalorder %v5877, %v5878
        %v5952 = vsel %vm5951, %v5877, %v5878
        %v5953 = vand.u32 %v5952, 65535
        %v5954 = vshra.s32 %v5952, 16
        %v5955 = vcvt.s32.f32 %v5953
        %v5956 = vcvt.s32.f32 %v5954
        %5957 = vmin.xlane.f32.xlu0 %v5956
        %v5958 = vpop.xlane.xlu0 %5957
        %vm5959 = vcmp.eq.f32.partialorder %v5956, %v5958
        %v5960 = vsel %vm5959, %v5955, inf
        %5961 = vmin.xlane.f32.xlu0 %v5960
        %v5962 = vpop.xlane.xlu0 %5961
        %v5963 = vcvt.f32.s32 %v5962
        %v5964 = vcvt.f32.s32 %v5958
        %v5965 = vshll.u32 %v5964, 16
        %v5966 = vadd.s32 %v5965, %v5963
        %vm5967 = vcmp.lt.s32.totalorder %v5879, %v5880
        %v5968 = vsel %vm5967, %v5879, %v5880
        %v5969 = vand.u32 %v5968, 65535
        %v5970 = vshra.s32 %v5968, 16
        %v5971 = vcvt.s32.f32 %v5969
        %v5972 = vcvt.s32.f32 %v5970
        %5973 = vmin.xlane.f32.xlu0 %v5972
        %v5974 = vpop.xlane.xlu0 %5973
        %vm5975 = vcmp.eq.f32.partialorder %v5972, %v5974
        %v5976 = vsel %vm5975, %v5971, inf
        %5977 = vmin.xlane.f32.xlu0 %v5976
        %v5978 = vpop.xlane.xlu0 %5977
        %v5979 = vcvt.f32.s32 %v5978
        %v5980 = vcvt.f32.s32 %v5974
        %v5981 = vshll.u32 %v5980, 16
        %v5982 = vadd.s32 %v5981, %v5979
        %vm5983 = vcmp.lt.s32.totalorder %v5881, %v5882
        %v5984 = vsel %vm5983, %v5881, %v5882
        %v5985 = vand.u32 %v5984, 65535
        %v5986 = vshra.s32 %v5984, 16
        %v5987 = vcvt.s32.f32 %v5985
        %v5988 = vcvt.s32.f32 %v5986
        %5989 = vmin.xlane.f32.xlu0 %v5988
        %v5990 = vpop.xlane.xlu0 %5989
        %vm5991 = vcmp.eq.f32.partialorder %v5988, %v5990
        %v5992 = vsel %vm5991, %v5987, inf
        %5993 = vmin.xlane.f32.xlu0 %v5992
        %v5994 = vpop.xlane.xlu0 %5993
        %v5995 = vcvt.f32.s32 %v5994
        %v5996 = vcvt.f32.s32 %v5990
        %v5997 = vshll.u32 %v5996, 16
        %v5998 = vadd.s32 %v5997, %v5995
        %vm5999 = vcmp.lt.s32.totalorder %v5883, %v5884
        %v6000 = vsel %vm5999, %v5883, %v5884
        %v6001 = vand.u32 %v6000, 65535
        %v6002 = vshra.s32 %v6000, 16
        %v6003 = vcvt.s32.f32 %v6001
        %v6004 = vcvt.s32.f32 %v6002
        %6005 = vmin.xlane.f32.xlu0 %v6004
        %v6006 = vpop.xlane.xlu0 %6005
        %vm6007 = vcmp.eq.f32.partialorder %v6004, %v6006
        %v6008 = vsel %vm6007, %v6003, inf
        %6009 = vmin.xlane.f32.xlu0 %v6008
        %v6010 = vpop.xlane.xlu0 %6009
        %v6011 = vcvt.f32.s32 %v6010
        %v6012 = vcvt.f32.s32 %v6006
        %v6013 = vshll.u32 %v6012, 16
        %v6014 = vadd.s32 %v6013, %v6011
        %vm6015 = vcmp.lt.s32.totalorder %v5885, %v5886
        %v6016 = vsel %vm6015, %v5885, %v5886
        %v6017 = vand.u32 %v6016, 65535
        %v6018 = vshra.s32 %v6016, 16
        %v6019 = vcvt.s32.f32 %v6017
        %v6020 = vcvt.s32.f32 %v6018
        %6021 = vmin.xlane.f32.xlu0 %v6020
        %v6022 = vpop.xlane.xlu0 %6021
        %vm6023 = vcmp.eq.f32.partialorder %v6020, %v6022
        %v6024 = vsel %vm6023, %v6019, inf
        %6025 = vmin.xlane.f32.xlu0 %v6024
        %v6026 = vpop.xlane.xlu0 %6025
        %v6027 = vcvt.f32.s32 %v6026
        %v6028 = vcvt.f32.s32 %v6022
        %v6029 = vshll.u32 %v6028, 16
        %v6030 = vadd.s32 %v6029, %v6027
        %vm6031 = vcmp.lt.s32.totalorder %v5887, %v5888
        %v6032 = vsel %vm6031, %v5887, %v5888
        %v6033 = vand.u32 %v6032, 65535
        %v6034 = vshra.s32 %v6032, 16
        %v6035 = vcvt.s32.f32 %v6033
        %v6036 = vcvt.s32.f32 %v6034
        %6037 = vmin.xlane.f32.xlu0 %v6036
        %v6038 = vpop.xlane.xlu0 %6037
        %vm6039 = vcmp.eq.f32.partialorder %v6036, %v6038
        %v6040 = vsel %vm6039, %v6035, inf
        %6041 = vmin.xlane.f32.xlu0 %v6040
        %v6042 = vpop.xlane.xlu0 %6041
        %v6043 = vcvt.f32.s32 %v6042
        %v6044 = vcvt.f32.s32 %v6038
        %v6045 = vshll.u32 %v6044, 16
        %v6046 = vadd.s32 %v6045, %v6043
        %vm6047 = vcmp.lt.s32.totalorder %v5889, %v5890
        %v6048 = vsel %vm6047, %v5889, %v5890
        %v6049 = vand.u32 %v6048, 65535
        %v6050 = vshra.s32 %v6048, 16
        %v6051 = vcvt.s32.f32 %v6049
        %v6052 = vcvt.s32.f32 %v6050
        %6053 = vmin.xlane.f32.xlu0 %v6052
        %v6054 = vpop.xlane.xlu0 %6053
        %vm6055 = vcmp.eq.f32.partialorder %v6052, %v6054
        %v6056 = vsel %vm6055, %v6051, inf
        %6057 = vmin.xlane.f32.xlu0 %v6056
        %v6058 = vpop.xlane.xlu0 %6057
        %v6059 = vcvt.f32.s32 %v6058
        %v6060 = vcvt.f32.s32 %v6054
        %v6061 = vshll.u32 %v6060, 16
        %v6062 = vadd.s32 %v6061, %v6059
        %vm6063 = vcmp.lt.s32.totalorder %v5891, %v5892
        %v6064 = vsel %vm6063, %v5891, %v5892
        %v6065 = vand.u32 %v6064, 65535
        %v6066 = vshra.s32 %v6064, 16
        %v6067 = vcvt.s32.f32 %v6065
        %v6068 = vcvt.s32.f32 %v6066
        %6069 = vmin.xlane.f32.xlu0 %v6068
        %v6070 = vpop.xlane.xlu0 %6069
        %vm6071 = vcmp.eq.f32.partialorder %v6068, %v6070
        %v6072 = vsel %vm6071, %v6067, inf
        %6073 = vmin.xlane.f32.xlu0 %v6072
        %v6074 = vpop.xlane.xlu0 %6073
        %v6075 = vcvt.f32.s32 %v6074
        %v6076 = vcvt.f32.s32 %v6070
        %v6077 = vshll.u32 %v6076, 16
        %v6078 = vadd.s32 %v6077, %v6075
        %vm6079 = vcmp.lt.s32.totalorder %v5893, %v5894
        %v6080 = vsel %vm6079, %v5893, %v5894
        %v6081 = vand.u32 %v6080, 65535
        %v6082 = vshra.s32 %v6080, 16
        %v6083 = vcvt.s32.f32 %v6081
        %v6084 = vcvt.s32.f32 %v6082
        %6085 = vmin.xlane.f32.xlu0 %v6084
        %v6086 = vpop.xlane.xlu0 %6085
        %vm6087 = vcmp.eq.f32.partialorder %v6084, %v6086
        %v6088 = vsel %vm6087, %v6083, inf
        %6089 = vmin.xlane.f32.xlu0 %v6088
        %v6090 = vpop.xlane.xlu0 %6089
        %v6091 = vcvt.f32.s32 %v6090
        %v6092 = vcvt.f32.s32 %v6086
        %v6093 = vshll.u32 %v6092, 16
        %v6094 = vadd.s32 %v6093, %v6091
        %vm6095 = vcmp.lt.s32.totalorder %v5895, %v5896
        %v6096 = vsel %vm6095, %v5895, %v5896
        %v6097 = vand.u32 %v6096, 65535
        %v6098 = vshra.s32 %v6096, 16
        %v6099 = vcvt.s32.f32 %v6097
        %v6100 = vcvt.s32.f32 %v6098
        %6101 = vmin.xlane.f32.xlu0 %v6100
        %v6102 = vpop.xlane.xlu0 %6101
        %vm6103 = vcmp.eq.f32.partialorder %v6100, %v6102
        %v6104 = vsel %vm6103, %v6099, inf
        %6105 = vmin.xlane.f32.xlu0 %v6104
        %v6106 = vpop.xlane.xlu0 %6105
        %v6107 = vcvt.f32.s32 %v6106
        %v6108 = vcvt.f32.s32 %v6102
        %v6109 = vshll.u32 %v6108, 16
        %v6110 = vadd.s32 %v6109, %v6107
        %vm6111 = vcmp.lt.s32.totalorder %v5897, %v5898
        %v6112 = vsel %vm6111, %v5897, %v5898
        %v6113 = vand.u32 %v6112, 65535
        %v6114 = vshra.s32 %v6112, 16
        %v6115 = vcvt.s32.f32 %v6113
        %v6116 = vcvt.s32.f32 %v6114
        %6117 = vmin.xlane.f32.xlu0 %v6116
        %v6118 = vpop.xlane.xlu0 %6117
        %vm6119 = vcmp.eq.f32.partialorder %v6116, %v6118
        %v6120 = vsel %vm6119, %v6115, inf
        %6121 = vmin.xlane.f32.xlu0 %v6120
        %v6122 = vpop.xlane.xlu0 %6121
        %v6123 = vcvt.f32.s32 %v6122
        %v6124 = vcvt.f32.s32 %v6118
        %v6125 = vshll.u32 %v6124, 16
        %v6126 = vadd.s32 %v6125, %v6123
        %vm6127 = vcmp.lt.s32.totalorder %v5899, %v5900
        %v6128 = vsel %vm6127, %v5899, %v5900
        %v6129 = vand.u32 %v6128, 65535
        %v6130 = vshra.s32 %v6128, 16
        %v6131 = vcvt.s32.f32 %v6129
        %v6132 = vcvt.s32.f32 %v6130
        %6133 = vmin.xlane.f32.xlu0 %v6132
        %v6134 = vpop.xlane.xlu0 %6133
        %vm6135 = vcmp.eq.f32.partialorder %v6132, %v6134
        %v6136 = vsel %vm6135, %v6131, inf
        %6137 = vmin.xlane.f32.xlu0 %v6136
        %v6138 = vpop.xlane.xlu0 %6137
        %v6139 = vcvt.f32.s32 %v6138
        %v6140 = vcvt.f32.s32 %v6134
        %v6141 = vshll.u32 %v6140, 16
        %v6142 = vadd.s32 %v6141, %v6139
        %vm6143 = vcmp.lt.s32.totalorder %v5901, %v5902
        %v6144 = vsel %vm6143, %v5901, %v5902
        %v6145 = vand.u32 %v6144, 65535
        %v6146 = vshra.s32 %v6144, 16
        %v6147 = vcvt.s32.f32 %v6145
        %v6148 = vcvt.s32.f32 %v6146
        %6149 = vmin.xlane.f32.xlu0 %v6148
        %v6150 = vpop.xlane.xlu0 %6149
        %vm6151 = vcmp.eq.f32.partialorder %v6148, %v6150
        %v6152 = vsel %vm6151, %v6147, inf
        %6153 = vmin.xlane.f32.xlu0 %v6152
        %v6154 = vpop.xlane.xlu0 %6153
        %v6155 = vcvt.f32.s32 %v6154
        %v6156 = vcvt.f32.s32 %v6150
        %v6157 = vshll.u32 %v6156, 16
        %v6158 = vadd.s32 %v6157, %v6155
        %v6159 = vlaneseq
        %v6160 = vshrl.u32 %v6159, 7
        %v6161 = vsub.s32 %v712, %v6160
        %v6162 = vrot.slane %v5918, %v6161
        %v6163 = vlaneseq
        %v6164 = vshrl.u32 %v6163, 7
        %v6165 = vsub.s32 %v1086, %v6164
        %v6166 = vrot.slane %v5934, %v6165
        %v6167 = vsel %vm1091, %v6166, %v6162
        %v6168 = vlaneseq
        %v6169 = vshrl.u32 %v6168, 7
        %v6170 = vsub.s32 %v1093, %v6169
        %v6171 = vrot.slane %v5950, %v6170
        %v6172 = vsel %vm1098, %v6171, %v6167
        %v6173 = vlaneseq
        %v6174 = vshrl.u32 %v6173, 7
        %v6175 = vsub.s32 %v1100, %v6174
        %v6176 = vrot.slane %v5966, %v6175
        %v6177 = vsel %vm1105, %v6176, %v6172
        %v6178 = vlaneseq
        %v6179 = vshrl.u32 %v6178, 7
        %v6180 = vsub.s32 %v1107, %v6179
        %v6181 = vrot.slane %v5982, %v6180
        %v6182 = vsel %vm1112, %v6181, %v6177
        %v6183 = vlaneseq
        %v6184 = vshrl.u32 %v6183, 7
        %v6185 = vsub.s32 %v1114, %v6184
        %v6186 = vrot.slane %v5998, %v6185
        %v6187 = vsel %vm1119, %v6186, %v6182
        %v6188 = vlaneseq
        %v6189 = vshrl.u32 %v6188, 7
        %v6190 = vsub.s32 %v1121, %v6189
        %v6191 = vrot.slane %v6014, %v6190
        %v6192 = vsel %vm1126, %v6191, %v6187
        %v6193 = vlaneseq
        %v6194 = vshrl.u32 %v6193, 7
        %v6195 = vsub.s32 %v1128, %v6194
        %v6196 = vrot.slane %v6030, %v6195
        %v6197 = vsel %vm1133, %v6196, %v6192
        %v6198 = vlaneseq
        %v6199 = vshrl.u32 %v6198, 7
        %v6200 = vsub.s32 %v1135, %v6199
        %v6201 = vrot.slane %v6046, %v6200
        %v6202 = vsel %vm1140, %v6201, %v6197
        %v6203 = vlaneseq
        %v6204 = vshrl.u32 %v6203, 7
        %v6205 = vsub.s32 %v1142, %v6204
        %v6206 = vrot.slane %v6062, %v6205
        %v6207 = vsel %vm1147, %v6206, %v6202
        %v6208 = vlaneseq
        %v6209 = vshrl.u32 %v6208, 7
        %v6210 = vsub.s32 %v1149, %v6209
        %v6211 = vrot.slane %v6078, %v6210
        %v6212 = vsel %vm1154, %v6211, %v6207
        %v6213 = vlaneseq
        %v6214 = vshrl.u32 %v6213, 7
        %v6215 = vsub.s32 %v1156, %v6214
        %v6216 = vrot.slane %v6094, %v6215
        %v6217 = vsel %vm1161, %v6216, %v6212
        %v6218 = vlaneseq
        %v6219 = vshrl.u32 %v6218, 7
        %v6220 = vsub.s32 %v1163, %v6219
        %v6221 = vrot.slane %v6110, %v6220
        %v6222 = vsel %vm1168, %v6221, %v6217
        %v6223 = vlaneseq
        %v6224 = vshrl.u32 %v6223, 7
        %v6225 = vsub.s32 %v1170, %v6224
        %v6226 = vrot.slane %v6126, %v6225
        %v6227 = vsel %vm1175, %v6226, %v6222
        %v6228 = vlaneseq
        %v6229 = vshrl.u32 %v6228, 7
        %v6230 = vsub.s32 %v1177, %v6229
        %v6231 = vrot.slane %v6142, %v6230
        %v6232 = vsel %vm1182, %v6231, %v6227
        %v6233 = vlaneseq
        %v6234 = vshrl.u32 %v6233, 7
        %v6235 = vsub.s32 %v1184, %v6234
        %v6236 = vrot.slane %v6158, %v6235
        %v6237 = vsel %vm1189, %v6236, %v6232
        %6238 = vst [vmem:[%s246 + $0x7] sm:$0x1] %v6237
        %v6239 = vrsqrt.pop %v5793
        %v6240 = vmul.f32 %v5793, %v6239
        %vm6241 = vcmp.eq.f32.partialorder %v5793, inf
        %v6242 = vsel %vm6241, %v5793, %v6240
        %vm6243 = vcmp.eq.f32.partialorder %v5793, 0.0
        %v6244 = vand.u32 %v5793, 2147483648
        %v6245 = vsel %vm6243, %v6244, %v6242
        %v6246 = vrsqrt.pop %v5796
        %v6247 = vmul.f32 %v5796, %v6246
        %vm6248 = vcmp.eq.f32.partialorder %v5796, inf
        %v6249 = vsel %vm6248, %v5796, %v6247
        %vm6250 = vcmp.eq.f32.partialorder %v5796, 0.0
        %v6251 = vand.u32 %v5796, 2147483648
        %v6252 = vsel %vm6250, %v6251, %v6249
        %v6253 = vrsqrt.pop %v5799
        %v6254 = vmul.f32 %v5799, %v6253
        %vm6255 = vcmp.eq.f32.partialorder %v5799, inf
        %v6256 = vsel %vm6255, %v5799, %v6254
        %vm6257 = vcmp.eq.f32.partialorder %v5799, 0.0
        %v6258 = vand.u32 %v5799, 2147483648
        %v6259 = vsel %vm6257, %v6258, %v6256
        %v6260 = vrsqrt.pop %v5802
        %v6261 = vmul.f32 %v5802, %v6260
        %vm6262 = vcmp.eq.f32.partialorder %v5802, inf
        %v6263 = vsel %vm6262, %v5802, %v6261
        %vm6264 = vcmp.eq.f32.partialorder %v5802, 0.0
        %v6265 = vand.u32 %v5802, 2147483648
        %v6266 = vsel %vm6264, %v6265, %v6263
        %v6267 = vrsqrt.pop %v5805
        %v6268 = vmul.f32 %v5805, %v6267
        %vm6269 = vcmp.eq.f32.partialorder %v5805, inf
        %v6270 = vsel %vm6269, %v5805, %v6268
        %vm6271 = vcmp.eq.f32.partialorder %v5805, 0.0
        %v6272 = vand.u32 %v5805, 2147483648
        %v6273 = vsel %vm6271, %v6272, %v6270
        %v6274 = vrsqrt.pop %v5808
        %v6275 = vmul.f32 %v5808, %v6274
        %vm6276 = vcmp.eq.f32.partialorder %v5808, inf
        %v6277 = vsel %vm6276, %v5808, %v6275
        %vm6278 = vcmp.eq.f32.partialorder %v5808, 0.0
        %v6279 = vand.u32 %v5808, 2147483648
        %v6280 = vsel %vm6278, %v6279, %v6277
        %v6281 = vrsqrt.pop %v5811
        %v6282 = vmul.f32 %v5811, %v6281
        %vm6283 = vcmp.eq.f32.partialorder %v5811, inf
        %v6284 = vsel %vm6283, %v5811, %v6282
        %vm6285 = vcmp.eq.f32.partialorder %v5811, 0.0
        %v6286 = vand.u32 %v5811, 2147483648
        %v6287 = vsel %vm6285, %v6286, %v6284
        %v6288 = vrsqrt.pop %v5814
        %v6289 = vmul.f32 %v5814, %v6288
        %vm6290 = vcmp.eq.f32.partialorder %v5814, inf
        %v6291 = vsel %vm6290, %v5814, %v6289
        %vm6292 = vcmp.eq.f32.partialorder %v5814, 0.0
        %v6293 = vand.u32 %v5814, 2147483648
        %v6294 = vsel %vm6292, %v6293, %v6291
        %v6295 = vrsqrt.pop %v5817
        %v6296 = vmul.f32 %v5817, %v6295
        %vm6297 = vcmp.eq.f32.partialorder %v5817, inf
        %v6298 = vsel %vm6297, %v5817, %v6296
        %vm6299 = vcmp.eq.f32.partialorder %v5817, 0.0
        %v6300 = vand.u32 %v5817, 2147483648
        %v6301 = vsel %vm6299, %v6300, %v6298
        %v6302 = vrsqrt.pop %v5820
        %v6303 = vmul.f32 %v5820, %v6302
        %vm6304 = vcmp.eq.f32.partialorder %v5820, inf
        %v6305 = vsel %vm6304, %v5820, %v6303
        %vm6306 = vcmp.eq.f32.partialorder %v5820, 0.0
        %v6307 = vand.u32 %v5820, 2147483648
        %v6308 = vsel %vm6306, %v6307, %v6305
        %v6309 = vrsqrt.pop %v5823
        %v6310 = vmul.f32 %v5823, %v6309
        %vm6311 = vcmp.eq.f32.partialorder %v5823, inf
        %v6312 = vsel %vm6311, %v5823, %v6310
        %vm6313 = vcmp.eq.f32.partialorder %v5823, 0.0
        %v6314 = vand.u32 %v5823, 2147483648
        %v6315 = vsel %vm6313, %v6314, %v6312
        %v6316 = vrsqrt.pop %v5826
        %v6317 = vmul.f32 %v5826, %v6316
        %vm6318 = vcmp.eq.f32.partialorder %v5826, inf
        %v6319 = vsel %vm6318, %v5826, %v6317
        %vm6320 = vcmp.eq.f32.partialorder %v5826, 0.0
        %v6321 = vand.u32 %v5826, 2147483648
        %v6322 = vsel %vm6320, %v6321, %v6319
        %v6323 = vrsqrt.pop %v5829
        %v6324 = vmul.f32 %v5829, %v6323
        %vm6325 = vcmp.eq.f32.partialorder %v5829, inf
        %v6326 = vsel %vm6325, %v5829, %v6324
        %vm6327 = vcmp.eq.f32.partialorder %v5829, 0.0
        %v6328 = vand.u32 %v5829, 2147483648
        %v6329 = vsel %vm6327, %v6328, %v6326
        %v6330 = vrsqrt.pop %v5832
        %v6331 = vmul.f32 %v5832, %v6330
        %vm6332 = vcmp.eq.f32.partialorder %v5832, inf
        %v6333 = vsel %vm6332, %v5832, %v6331
        %vm6334 = vcmp.eq.f32.partialorder %v5832, 0.0
        %v6335 = vand.u32 %v5832, 2147483648
        %v6336 = vsel %vm6334, %v6335, %v6333
        %v6337 = vrsqrt.pop %v5835
        %v6338 = vmul.f32 %v5835, %v6337
        %vm6339 = vcmp.eq.f32.partialorder %v5835, inf
        %v6340 = vsel %vm6339, %v5835, %v6338
        %vm6341 = vcmp.eq.f32.partialorder %v5835, 0.0
        %v6342 = vand.u32 %v5835, 2147483648
        %v6343 = vsel %vm6341, %v6342, %v6340
        %v6344 = vrsqrt.pop %v5838
        %v6345 = vmul.f32 %v5838, %v6344
        %vm6346 = vcmp.eq.f32.partialorder %v5838, inf
        %v6347 = vsel %vm6346, %v5838, %v6345
        %vm6348 = vcmp.eq.f32.partialorder %v5838, 0.0
        %v6349 = vand.u32 %v5838, 2147483648
        %v6350 = vsel %vm6348, %v6349, %v6347
        %v6367 = vlaneseq
        %v6368 = vshrl.u32 %v6367, 7
        %v6369 = vsub.s32 %v712, %v6368
        %v6370 = vrot.slane %v6245, %v6369
        %v6371 = vlaneseq
        %v6372 = vshrl.u32 %v6371, 7
        %v6373 = vsub.s32 %v1086, %v6372
        %v6374 = vrot.slane %v6252, %v6373
        %v6375 = vsel %vm1091, %v6374, %v6370
        %v6376 = vlaneseq
        %v6377 = vshrl.u32 %v6376, 7
        %v6378 = vsub.s32 %v1093, %v6377
        %v6379 = vrot.slane %v6259, %v6378
        %v6380 = vsel %vm1098, %v6379, %v6375
        %v6381 = vlaneseq
        %v6382 = vshrl.u32 %v6381, 7
        %v6383 = vsub.s32 %v1100, %v6382
        %v6384 = vrot.slane %v6266, %v6383
        %v6385 = vsel %vm1105, %v6384, %v6380
        %v6386 = vlaneseq
        %v6387 = vshrl.u32 %v6386, 7
        %v6388 = vsub.s32 %v1107, %v6387
        %v6389 = vrot.slane %v6273, %v6388
        %v6390 = vsel %vm1112, %v6389, %v6385
        %v6391 = vlaneseq
        %v6392 = vshrl.u32 %v6391, 7
        %v6393 = vsub.s32 %v1114, %v6392
        %v6394 = vrot.slane %v6280, %v6393
        %v6395 = vsel %vm1119, %v6394, %v6390
        %v6396 = vlaneseq
        %v6397 = vshrl.u32 %v6396, 7
        %v6398 = vsub.s32 %v1121, %v6397
        %v6399 = vrot.slane %v6287, %v6398
        %v6400 = vsel %vm1126, %v6399, %v6395
        %v6401 = vlaneseq
        %v6402 = vshrl.u32 %v6401, 7
        %v6403 = vsub.s32 %v1128, %v6402
        %v6404 = vrot.slane %v6294, %v6403
        %v6405 = vsel %vm1133, %v6404, %v6400
        %v6406 = vlaneseq
        %v6407 = vshrl.u32 %v6406, 7
        %v6408 = vsub.s32 %v1135, %v6407
        %v6409 = vrot.slane %v6301, %v6408
        %v6410 = vsel %vm1140, %v6409, %v6405
        %v6411 = vlaneseq
        %v6412 = vshrl.u32 %v6411, 7
        %v6413 = vsub.s32 %v1142, %v6412
        %v6414 = vrot.slane %v6308, %v6413
        %v6415 = vsel %vm1147, %v6414, %v6410
        %v6416 = vlaneseq
        %v6417 = vshrl.u32 %v6416, 7
        %v6418 = vsub.s32 %v1149, %v6417
        %v6419 = vrot.slane %v6315, %v6418
        %v6420 = vsel %vm1154, %v6419, %v6415
        %v6421 = vlaneseq
        %v6422 = vshrl.u32 %v6421, 7
        %v6423 = vsub.s32 %v1156, %v6422
        %v6424 = vrot.slane %v6322, %v6423
        %v6425 = vsel %vm1161, %v6424, %v6420
        %v6426 = vlaneseq
        %v6427 = vshrl.u32 %v6426, 7
        %v6428 = vsub.s32 %v1163, %v6427
        %v6429 = vrot.slane %v6329, %v6428
        %v6430 = vsel %vm1168, %v6429, %v6425
        %v6431 = vlaneseq
        %v6432 = vshrl.u32 %v6431, 7
        %v6433 = vsub.s32 %v1170, %v6432
        %v6434 = vrot.slane %v6336, %v6433
        %v6435 = vsel %vm1175, %v6434, %v6430
        %v6436 = vlaneseq
        %v6437 = vshrl.u32 %v6436, 7
        %v6438 = vsub.s32 %v1177, %v6437
        %v6439 = vrot.slane %v6343, %v6438
        %v6440 = vsel %vm1182, %v6439, %v6435
        %v6441 = vlaneseq
        %v6442 = vshrl.u32 %v6441, 7
        %v6443 = vsub.s32 %v1184, %v6442
        %v6444 = vrot.slane %v6350, %v6443
        %v6445 = vsel %vm1189, %v6444, %v6440
        %6447 = vst [vmem:[%s253 + $0x7] sm:$0x1] %v6445
        %s6448 = sand.u32 %s103, 1
        %s6449 = scalar_lea.sflag [#allocation4], %s6448
        %s6450 = sand.u32 %s103, 1
        %s6451 = smul.addr %s6450, 8
        %s6452 = scalar_lea.vmem [#allocation7], %s6451
        %s6453 = sand.u32 %s131, 1
        %s6454 = scalar_lea.sflag [#allocation9], %s6453
        %s6455 = sand.u32 %s131, 1
        %s6456 = smul.addr %s6455, 8
        %s6457 = scalar_lea.vmem [#allocation8], %s6456
        // Predicated region
        $region37: #{tpu_custom_call.1} parent=27 // pred_check
          %p6458 = pneg %p113
        $region38: #{tpu_custom_call.1} parent=27 // pred_check_branch
          %6460 = sbr.rel (%p6458) target = $region40
        $region39: #{tpu_custom_call.1} parent=27 // pred_region
          %s6462 = ssub.s32 128, 128
          %6463 = vsyncadd %s6449, %s6462
          %s6464 = sadd.s32 %s32, %s31
          %s6465 = smul.addr %s6464, 128
          %s6466 = scalar_lea.hbm %s2, %s6465
          %s6468 = sshll.u32 %s6452, 4
          %s6469 = int_to_ptr.vmem [resolvable:$true] %s6468
          %6471 = dma.vmem_to_hbm [thread:$0]  %s6469, 128, %s6466, %s6449
        $region40: #{tpu_custom_call.1} parent=27 // pred_fallthru
          _
        // Predicated region
        $region41: #{tpu_custom_call.1} parent=27 // pred_check
          %p6472 = pneg %p141
        $region42: #{tpu_custom_call.1} parent=27 // pred_check_branch
          %6474 = sbr.rel (%p6472) target = $region44
        $region43: #{tpu_custom_call.1} parent=27 // pred_region
          %s6476 = ssub.s32 128, 128
          %6477 = vsyncadd %s6454, %s6476
          %s6478 = sadd.s32 %s32, %s31
          %s6479 = smul.addr %s6478, 128
          %s6480 = scalar_lea.hbm %s3, %s6479
          %s6482 = sshll.u32 %s6457, 4
          %s6483 = int_to_ptr.vmem [resolvable:$true] %s6482
          %6485 = dma.vmem_to_hbm [thread:$0]  %s6483, 128, %s6480, %s6454
        $region44: #{tpu_custom_call.1} parent=27 // pred_fallthru
          _
      $region28: #{tpu_custom_call.1} parent=5 // pred_fallthru
        _
      %p6486 = scmp.le.s32.totalorder 2, %s22
      // Predicated region
      $region45: #{tpu_custom_call.1} parent=5 // pred_check
        %p6487 = pneg %p6486
      $region46: #{tpu_custom_call.1} parent=5 // pred_check_branch
        %6489 = sbr.rel (%p6487) target = $region48
      $region47: #{tpu_custom_call.1} parent=5 // pred_region
        %s6490 = ssub.s32 %s22, 2
        // Predicated region
        $region49: #{tpu_custom_call.1} parent=47 // pred_check
          %p6491 = pneg %p119
        $region50: #{tpu_custom_call.1} parent=47 // pred_check_branch
          %6493 = sbr.rel (%p6491) target = $region52
        $region51: #{tpu_custom_call.1} parent=47 // pred_region
          %s6494 = sand.u32 %s104, 1
          %s6495 = scalar_lea.sflag [#allocation4], %s6494
          %s6496 = sand.u32 %s104, 1
          %s6497 = smul.addr %s6496, 8
          %s6498 = scalar_lea.vmem [#allocation7], %s6497
          %6499 = dma.done %s6495, 128
        $region52: #{tpu_custom_call.1} parent=47 // pred_fallthru
          _
        // Predicated region
        $region53: #{tpu_custom_call.1} parent=47 // pred_check
          %p6500 = pneg %p147
        $region54: #{tpu_custom_call.1} parent=47 // pred_check_branch
          %6502 = sbr.rel (%p6500) target = $region56
        $region55: #{tpu_custom_call.1} parent=47 // pred_region
          %s6503 = sand.u32 %s132, 1
          %s6504 = scalar_lea.sflag [#allocation9], %s6503
          %s6505 = sand.u32 %s132, 1
          %s6506 = smul.addr %s6505, 8
          %s6507 = scalar_lea.vmem [#allocation8], %s6506
          %6508 = dma.done %s6504, 128
        $region56: #{tpu_custom_call.1} parent=47 // pred_fallthru
          _
      $region48: #{tpu_custom_call.1} parent=5 // pred_fallthru
        _
    $region6: #{tpu_custom_call.1} parent=1 // loop_footer
      %s26 = sadd.s32 1, %s22
    $region7: #{tpu_custom_call.1} parent=1 // loop_footer_branch
      %21 = sbr.rel target = $region3
    $region8: #{tpu_custom_call.1} parent=1 // loop_exit
      _
    %6509 = vsyncpa [#allocation3], 1
    %s6510 = scalar_lea.sflag [#allocation3], 1
    %6511 = vsyncpa %s6510, 1
    %6512 = vsyncpa [#allocation6], 1
    %s6513 = scalar_lea.sflag [#allocation6], 1
    %6514 = vsyncpa %s6513, 1
    %6515 = vsyncpa [#allocation4], 1
    %s6516 = scalar_lea.sflag [#allocation4], 1
    %6517 = vsyncpa %s6516, 1
    %6518 = vsyncpa [#allocation9], 1
    %s6519 = scalar_lea.sflag [#allocation9], 1
    %6520 = vsyncpa %s6519, 1

</llo_original>
